<compile_context>
chip_gen: v6e
topology: v6e:2x2x1
jax: 0.10.0
libtpu: 0.0.40
codegen_flags: <defaults>
</compile_context>

<pallas_src>
import math
import jax
import jax.numpy as jnp
from jax.experimental import pallas as pl
from jax.experimental.pallas import tpu as pltpu  # noqa: F401 (v7x grid variant)

# ----- hyperparameters (small, consistent with the module's structure) -----
DIM = 32          # model dim
INNER = 32        # attention inner dim
NHEAD = 4
HEAD_DIM = INNER // NHEAD       # 8
DIM_MULT = 4
FF_HIDDEN = DIM * DIM_MULT * 2  # 256
EPS = 1e-5
SEQ = 8           # decoder sequence length
ENC_SEQ = 12      # encoder sequence length
BATCH = 2


# ------------------------------- kernel ------------------------------------
def decoder_block_kernel(
    x_ref, enc_ref, rope_ref, mask_ref, lnb_ref, wself_ref, wcross_ref,
    w1_ref, b1_ref, w2_ref, out_ref,
):
    f32 = jnp.float32
    x = x_ref[...]                  # (B, S, D)
    enc = enc_ref[...]              # (B, Se, D)
    cos = rope_ref[0]               # (S, K)
    ssin = rope_ref[1]              # (S, K) rotate-half sign already folded in
    mask = mask_ref[...]            # (S, S) additive causal bias (0 / -1e30)
    lnb = lnb_ref[...]              # (8, D): ln1_g,ln1_b,ln2_g,ln2_b,ln3_g,ln3_b,b2,0

    B, S, D = x.shape
    Se = enc.shape[1]
    H, K = NHEAD, HEAD_DIM
    N = B * H
    half = K // 2

    def layernorm(t, g, b):         # t: (R, D); g, b: (1, D)
        mu = jnp.mean(t, axis=-1, keepdims=True)
        tc = t - mu
        var = jnp.mean(tc * tc, axis=-1, keepdims=True)
        return tc * jax.lax.rsqrt(var + EPS) * g + b

    def softmax_rows(s):            # exact normalization (review correctness note)
        s = s - jnp.max(s, axis=-1, keepdims=True)
        p = jnp.exp(s)
        return p / jnp.sum(p, axis=-1, keepdims=True)

    def bcast_heads(t):             # (B, R, D) -> (B*H, R, D), n = b*H + h
        R = t.shape[1]
        return jnp.broadcast_to(t[:, None], (B, H, R, D)).reshape(N, R, D)

    def tile_w(w):                  # (H, D, C) -> (B*H, D, C)
        C = w.shape[-1]
        return jnp.broadcast_to(w[None], (B, H, D, C)).reshape(N, D, C)

    def rope(t):                    # rotate-half; the +/- sign lives in ssin
        tr = jnp.concatenate([t[..., half:], t[..., :half]], axis=-1)
        return t * cos[None] + tr * ssin[None]

    def attend(q, k, v, bias):      # q: (N,S,K), k/v: (N,J,K)
        s = jnp.einsum("nqk,njk->nqj", q, k, preferred_element_type=f32)
        if bias is not None:
            s = s + bias[None]
        return jnp.einsum("nqj,njk->nqk", softmax_rows(s), v,
                          preferred_element_type=f32)

    def head_out(o, wo_t):          # (N,S,K) x (H,D,K) -> (B,S,D) summed over heads
        proj = jnp.einsum("nsk,ndk->nsd", o, tile_w(wo_t),
                          preferred_element_type=f32)
        return jnp.sum(proj.reshape(B, H, S, D), axis=1)

    # ---------------- causal self-attention with RoPE ----------------
    w_self = wself_ref[...]                           # (H, D, 4K) = [q*scale|k|v|woT]
    h = layernorm(x.reshape(B * S, D), lnb[0:1], lnb[1:2]).reshape(B, S, D)
    qkv = jnp.einsum("nsd,ndk->nsk", bcast_heads(h), tile_w(w_self[:, :, :3 * K]),
                     preferred_element_type=f32)      # (N, S, 3K)
    q = rope(qkv[:, :, :K])
    k = rope(qkv[:, :, K:2 * K])
    v = qkv[:, :, 2 * K:]
    x = x + head_out(attend(q, k, v, mask), w_self[:, :, 3 * K:])

    # ---------------- cross-attention ----------------
    w_cross = wcross_ref[...]                         # (H, D, 4K) = [q*scale|k|v|woT]
    h = layernorm(x.reshape(B * S, D), lnb[2:3], lnb[3:4]).reshape(B, S, D)
    q = jnp.einsum("nsd,ndk->nsk", bcast_heads(h), tile_w(w_cross[:, :, :K]),
                   preferred_element_type=f32)        # (N, S, K)
    kv = jnp.einsum("nsd,ndk->nsk", bcast_heads(enc), tile_w(w_cross[:, :, K:3 * K]),
                    preferred_element_type=f32)       # (N, Se, 2K)
    x = x + head_out(attend(q, kv[:, :, :K], kv[:, :, K:], None),
                     w_cross[:, :, 3 * K:])

    # ---------------- "ffSwiglu" = Linear -> SiLU -> Linear ----------------
    h = layernorm(x.reshape(B * S, D), lnb[4:5], lnb[5:6])
    hf = jnp.dot(h, w1_ref[...], preferred_element_type=f32) + b1_ref[...]
    hf = hf * jax.nn.sigmoid(hf)                      # SiLU
    ff = jnp.dot(hf, w2_ref[...], preferred_element_type=f32) + lnb[6:7]
    out_ref[...] = x + ff.reshape(B, S, D)


# ------------------------------ wrapper -------------------------------------
def pack_inputs(params, cos, sin):
    """One-time packing of weights + tables into kernel operands (hoisted)."""
    H, K = NHEAD, HEAD_DIM
    half = K // 2
    scale = 1.0 / math.sqrt(K)

    def head_in(w):       # (DIM, H*K) -> (H, DIM, K)   x @ W column blocks
        return w.reshape(DIM, H, K).transpose(1, 0, 2)

    def head_out_t(w):    # (H*K, DIM) -> (H, DIM, K)   per-head out-proj, transposed
        return w.reshape(H, K, DIM).transpose(0, 2, 1)

    # 1/sqrt(K) folded into the q columns (RoPE is linear, so pre-scaling is exact).
    w_self = jnp.concatenate(
        [head_in(params["wq_s"]) * scale, head_in(params["wk_s"]),
         head_in(params["wv_s"]), head_out_t(params["wo_s"])], axis=-1)   # (H, D, 4K)
    w_cross = jnp.concatenate(
        [head_in(params["wq_c"]) * scale, head_in(params["wk_c"]),
         head_in(params["wv_c"]), head_out_t(params["wo_c"])], axis=-1)   # (H, D, 4K)
    lnb = jnp.stack(
        [params["ln1_g"], params["ln1_b"], params["ln2_g"], params["ln2_b"],
         params["ln3_g"], params["ln3_b"], params["b2"],
         jnp.zeros((DIM,), jnp.float32)], axis=0)                          # (8, D)
    # rotate-half sign baked into the sin table:
    #   rope(q) = q*cos + concat(q_hi, q_lo) * sin_signed
    sign = jnp.concatenate([-jnp.ones((half,), jnp.float32),
                            jnp.ones((K - half,), jnp.float32)])
    rope = jnp.stack([cos, sin * sign[None, :]], axis=0)                   # (2, S, K)
    qi = jnp.arange(SEQ, dtype=jnp.int32)[:, None]
    kj = jnp.arange(SEQ, dtype=jnp.int32)[None, :]
    mask = jnp.where(kj <= qi, 0.0, -1e30).astype(jnp.float32)             # (S, S)
    return (rope, mask, lnb, w_self, w_cross,
            params["w1"], params["b1"][None, :], params["w2"])


@jax.jit
def decoder_block(x, enc, rope, mask, lnb, w_self, w_cross, w1, b1, w2):
    """Single-step (grid-less) Pallas call: batch is folded into the kernel.

    Right shape for single-TensorCore v5e/v6e (no extra ~0.35us grid step,
    16-row sublane-full tiles, ~100 KiB total VMEM).  On v7x, to use both
    TensorCores, switch to grid=(B,) with per-batch BlockSpecs on x/enc/out and
    compiler_params=pltpu.CompilerParams(dimension_semantics=("parallel",)).
    """
    B, S, D = x.shape
    return pl.pallas_call(
        decoder_block_kernel,
        out_shape=jax.ShapeDtypeStruct((B, S, D), jnp.float32),
    )(x, enc, rope, mask, lnb, w_self, w_cross, w1, b1, w2)


# ---------------- pure-JAX reference (for correctness check) ----------------
def ref_forward(x, enc, cos, sin, p):
    def ln(t, g, b):
        mu = t.mean(-1, keepdims=True)
        var = ((t - mu) ** 2).mean(-1, keepdims=True)
        return (t - mu) / jnp.sqrt(var + EPS) * g + b

    def heads(t):
        B_, S_, _ = t.shape
        return t.reshape(B_, S_, NHEAD, HEAD_DIM)

    def rope(t):
        d = t.shape[-1]
        rot = jnp.concatenate([-t[..., d // 2:], t[..., : d // 2]], -1)
        return t * cos[None, :, None, :] + rot * sin[None, :, None, :]

    def attend(q, k, v, causal):
        s = jnp.einsum("bqhd,bkhd->bhqk", q, k) / math.sqrt(HEAD_DIM)
        if causal:
            m = jnp.tril(jnp.ones((s.shape[-2], s.shape[-1]), bool))
            s = jnp.where(m, s, -1e30)
        pr = jax.nn.softmax(s, -1)
        o = jnp.einsum("bhqk,bkhd->bqhd", pr, v)
        return o.reshape(o.shape[0], o.shape[1], -1)

    xs = x
    h = ln(x, p["ln1_g"], p["ln1_b"])
    q, k, v = heads(h @ p["wq_s"]), heads(h @ p["wk_s"]), heads(h @ p["wv_s"])
    x = xs + attend(rope(q), rope(k), v, True) @ p["wo_s"]
    xs = x
    h = ln(x, p["ln2_g"], p["ln2_b"])
    q, k, v = heads(h @ p["wq_c"]), heads(enc @ p["wk_c"]), heads(enc @ p["wv_c"])
    x = xs + attend(q, k, v, False) @ p["wo_c"]
    xs = x
    h = ln(x, p["ln3_g"], p["ln3_b"])
    hf = h @ p["w1"] + p["b1"]
    hf = hf * jax.nn.sigmoid(hf)
    return xs + hf @ p["w2"] + p["b2"]


def make_params(key):
    ks = jax.random.split(key, 12)
    n = lambda k, shp: (0.02 * jax.random.normal(k, shp)).astype(jnp.float32)
    return {
        "ln1_g": jnp.ones((DIM,), jnp.float32), "ln1_b": jnp.zeros((DIM,), jnp.float32),
        "wq_s": n(ks[0], (DIM, INNER)), "wk_s": n(ks[1], (DIM, INNER)),
        "wv_s": n(ks[2], (DIM, INNER)), "wo_s": n(ks[3], (INNER, DIM)),
        "ln2_g": jnp.ones((DIM,), jnp.float32), "ln2_b": jnp.zeros((DIM,), jnp.float32),
        "wq_c": n(ks[4], (DIM, INNER)), "wk_c": n(ks[5], (DIM, INNER)),
        "wv_c": n(ks[6], (DIM, INNER)), "wo_c": n(ks[7], (INNER, DIM)),
        "ln3_g": jnp.ones((DIM,), jnp.float32), "ln3_b": jnp.zeros((DIM,), jnp.float32),
        "w1": n(ks[8], (DIM, FF_HIDDEN)), "b1": n(ks[9], (FF_HIDDEN,)),
        "w2": n(ks[10], (FF_HIDDEN, DIM)), "b2": n(ks[11], (DIM,)),
    }


def make_rope_tables(seq_len, head_dim, theta=10000.0):
    half = head_dim // 2
    inv_freq = 1.0 / (theta ** (jnp.arange(half, dtype=jnp.float32) * 2.0 / head_dim))
    ang = jnp.arange(seq_len, dtype=jnp.float32)[:, None] * inv_freq[None, :]  # (S, half)
    cos = jnp.concatenate([jnp.cos(ang), jnp.cos(ang)], -1)  # (S, head_dim)
    sin = jnp.concatenate([jnp.sin(ang), jnp.sin(ang)], -1)
    return cos, sin


if __name__ == "__main__":
    key = jax.random.PRNGKey(0)
    kx, ke, kp = jax.random.split(key, 3)
    x = jax.random.normal(kx, (BATCH, SEQ, DIM), jnp.float32)
    enc = jax.random.normal(ke, (BATCH, ENC_SEQ, DIM), jnp.float32)
    params = make_params(kp)
    cos, sin = make_rope_tables(SEQ, HEAD_DIM)

    packed = pack_inputs(params, cos, sin)        # one-time packing (hoisted)
    out = decoder_block(x, enc, *packed)
    out = jax.block_until_ready(out)

    ref = jax.block_until_ready(ref_forward(x, enc, cos, sin, params))
    assert out.shape == (BATCH, SEQ, DIM)
    # 1e-3 absorbs MXU f32 rounding differences; softmax normalization is exact.
    assert jnp.max(jnp.abs(out - ref)) < 1e-3, "mismatch vs reference"
    print("KERNEL_OK")
</pallas_src>

<mosaic_0001>
module attributes {stable_mosaic.version = 11 : i64} {
  func.func @decoder_block_kernel(%arg0: memref<2x8x32xf32, #tpu.memory_space<vmem>>, %arg1: memref<2x12x32xf32, #tpu.memory_space<vmem>>, %arg2: memref<2x8x8xf32, #tpu.memory_space<vmem>>, %arg3: memref<8x8xf32, #tpu.memory_space<vmem>>, %arg4: memref<8x32xf32, #tpu.memory_space<vmem>>, %arg5: memref<4x32x32xf32, #tpu.memory_space<vmem>>, %arg6: memref<4x32x32xf32, #tpu.memory_space<vmem>>, %arg7: memref<32x256xf32, #tpu.memory_space<vmem>>, %arg8: memref<1x256xf32, #tpu.memory_space<vmem>>, %arg9: memref<256x32xf32, #tpu.memory_space<vmem>>, %arg10: memref<2x8x32xf32, #tpu.memory_space<vmem>>) attributes {dimension_semantics = [], scalar_prefetch = 0 : i64, scratch_operands = 0 : i64, tpu.core_type = #tpu.core_type<tc>} {
    %c0 = arith.constant 0 : index
    %c0_0 = arith.constant 0 : index
    %c0_1 = arith.constant 0 : index
    %0 = vector.load %arg0[%c0, %c0_0, %c0_1] : memref<2x8x32xf32, #tpu.memory_space<vmem>>, vector<2x8x32xf32>
    %c0_2 = arith.constant 0 : index
    %c0_3 = arith.constant 0 : index
    %c0_4 = arith.constant 0 : index
    %1 = vector.load %arg1[%c0_2, %c0_3, %c0_4] : memref<2x12x32xf32, #tpu.memory_space<vmem>>, vector<2x12x32xf32>
    %c0_5 = arith.constant 0 : index
    %c0_6 = arith.constant 0 : index
    %c0_7 = arith.constant 0 : index
    %2 = vector.load %arg2[%c0_5, %c0_6, %c0_7] : memref<2x8x8xf32, #tpu.memory_space<vmem>>, vector<1x8x8xf32>
    %3 = vector.shape_cast %2 : vector<1x8x8xf32> to vector<8x8xf32>
    %c1 = arith.constant 1 : index
    %c0_8 = arith.constant 0 : index
    %c0_9 = arith.constant 0 : index
    %4 = vector.load %arg2[%c1, %c0_8, %c0_9] : memref<2x8x8xf32, #tpu.memory_space<vmem>>, vector<1x8x8xf32>
    %5 = vector.shape_cast %4 : vector<1x8x8xf32> to vector<8x8xf32>
    %c0_10 = arith.constant 0 : index
    %c0_11 = arith.constant 0 : index
    %6 = vector.load %arg3[%c0_10, %c0_11] : memref<8x8xf32, #tpu.memory_space<vmem>>, vector<8x8xf32>
    %c0_12 = arith.constant 0 : index
    %c0_13 = arith.constant 0 : index
    %7 = vector.load %arg4[%c0_12, %c0_13] : memref<8x32xf32, #tpu.memory_space<vmem>>, vector<8x32xf32>
    %c0_14 = arith.constant 0 : index
    %c0_15 = arith.constant 0 : index
    %c0_16 = arith.constant 0 : index
    %8 = vector.load %arg5[%c0_14, %c0_15, %c0_16] : memref<4x32x32xf32, #tpu.memory_space<vmem>>, vector<4x32x32xf32>
    %9 = vector.shape_cast %0 : vector<2x8x32xf32> to vector<16x32xf32>
    %10 = vector.extract_strided_slice %7 {offsets = [0, 0], sizes = [1, 32], strides = [1, 1]} : vector<8x32xf32> to vector<1x32xf32>
    %11 = vector.extract_strided_slice %7 {offsets = [1, 0], sizes = [1, 32], strides = [1, 1]} : vector<8x32xf32> to vector<1x32xf32>
    %cst = arith.constant dense<0.000000e+00> : vector<16xf32>
    %12 = vector.multi_reduction <add>, %9, %cst [1] : vector<16x32xf32> to vector<16xf32>
    %13 = vector.shape_cast %12 : vector<16xf32> to vector<16x1xf32>
    %cst_17 = arith.constant 3.200000e+01 : f32
    %14 = vector.broadcast %cst_17 : f32 to vector<16x1xf32>
    %15 = arith.divf %13, %14 : vector<16x1xf32>
    %16 = vector.broadcast %15 : vector<16x1xf32> to vector<16x32xf32>
    %17 = arith.subf %9, %16 : vector<16x32xf32>
    %18 = arith.mulf %17, %17 : vector<16x32xf32>
    %cst_18 = arith.constant dense<0.000000e+00> : vector<16xf32>
    %19 = vector.multi_reduction <add>, %18, %cst_18 [1] : vector<16x32xf32> to vector<16xf32>
    %20 = vector.shape_cast %19 : vector<16xf32> to vector<16x1xf32>
    %cst_19 = arith.constant 3.200000e+01 : f32
    %21 = vector.broadcast %cst_19 : f32 to vector<16x1xf32>
    %22 = arith.divf %20, %21 : vector<16x1xf32>
    %cst_20 = arith.constant 9.99999974E-6 : f32
    %23 = vector.broadcast %cst_20 : f32 to vector<16x1xf32>
    %24 = arith.addf %22, %23 : vector<16x1xf32>
    %25 = math.rsqrt %24 : vector<16x1xf32>
    %26 = vector.broadcast %25 : vector<16x1xf32> to vector<16x32xf32>
    %27 = arith.mulf %17, %26 : vector<16x32xf32>
    %28 = vector.broadcast %10 : vector<1x32xf32> to vector<16x32xf32>
    %29 = arith.mulf %27, %28 : vector<16x32xf32>
    %30 = vector.broadcast %11 : vector<1x32xf32> to vector<16x32xf32>
    %31 = arith.addf %29, %30 : vector<16x32xf32>
    %32 = vector.shape_cast %31 : vector<16x32xf32> to vector<2x8x32xf32>
    %33 = vector.shape_cast %32 : vector<2x8x32xf32> to vector<2x1x8x32xf32>
    %34 = vector.shape_cast %33 : vector<2x1x8x32xf32> to vector<2x1x8x32xf32>
    %35 = vector.broadcast %34 : vector<2x1x8x32xf32> to vector<2x4x8x32xf32>
    %36 = vector.shape_cast %35 : vector<2x4x8x32xf32> to vector<8x8x32xf32>
    %37 = vector.extract_strided_slice %8 {offsets = [0, 0, 0], sizes = [4, 32, 24], strides = [1, 1, 1]} : vector<4x32x32xf32> to vector<4x32x24xf32>
    %38 = vector.shape_cast %37 : vector<4x32x24xf32> to vector<1x4x32x24xf32>
    %39 = vector.shape_cast %38 : vector<1x4x32x24xf32> to vector<1x4x32x24xf32>
    %40 = vector.broadcast %39 : vector<1x4x32x24xf32> to vector<2x4x32x24xf32>
    %41 = vector.shape_cast %40 : vector<2x4x32x24xf32> to vector<8x32x24xf32>
    "tpu.trace_start"() <{level = 10 : i32, message = "nsd,ndk->nsk"}> : () -> ()
    %cst_21 = arith.constant dense<0.000000e+00> : vector<8x8x24xf32>
    %42 = tpu.matmul %36, %41, %cst_21 {dimension_numbers = #tpu.dot_dimension_numbers<[2], [1], [1], [2], [0, 0, 0, 1, 1, 2], [0], [0]>} : vector<8x8x32xf32>, vector<8x32x24xf32>, vector<8x8x24xf32> -> vector<8x8x24xf32>
    "tpu.trace_stop"() : () -> ()
    %43 = vector.extract_strided_slice %42 {offsets = [0, 0, 0], sizes = [8, 8, 8], strides = [1, 1, 1]} : vector<8x8x24xf32> to vector<8x8x8xf32>
    %44 = vector.extract_strided_slice %43 {offsets = [0, 0, 4], sizes = [8, 8, 4], strides = [1, 1, 1]} : vector<8x8x8xf32> to vector<8x8x4xf32>
    %45 = vector.extract_strided_slice %43 {offsets = [0, 0, 0], sizes = [8, 8, 4], strides = [1, 1, 1]} : vector<8x8x8xf32> to vector<8x8x4xf32>
    %46 = tpu.concatenate %44, %45 in 2 : vector<8x8x4xf32>, vector<8x8x4xf32> -> vector<8x8x8xf32>
    %47 = vector.shape_cast %3 : vector<8x8xf32> to vector<1x8x8xf32>
    %48 = vector.broadcast %47 : vector<1x8x8xf32> to vector<8x8x8xf32>
    %49 = arith.mulf %43, %48 : vector<8x8x8xf32>
    %50 = vector.shape_cast %5 : vector<8x8xf32> to vector<1x8x8xf32>
    %51 = vector.broadcast %50 : vector<1x8x8xf32> to vector<8x8x8xf32>
    %52 = arith.mulf %46, %51 : vector<8x8x8xf32>
    %53 = arith.addf %49, %52 : vector<8x8x8xf32>
    %54 = vector.extract_strided_slice %42 {offsets = [0, 0, 8], sizes = [8, 8, 8], strides = [1, 1, 1]} : vector<8x8x24xf32> to vector<8x8x8xf32>
    %55 = vector.extract_strided_slice %54 {offsets = [0, 0, 4], sizes = [8, 8, 4], strides = [1, 1, 1]} : vector<8x8x8xf32> to vector<8x8x4xf32>
    %56 = vector.extract_strided_slice %54 {offsets = [0, 0, 0], sizes = [8, 8, 4], strides = [1, 1, 1]} : vector<8x8x8xf32> to vector<8x8x4xf32>
    %57 = tpu.concatenate %55, %56 in 2 : vector<8x8x4xf32>, vector<8x8x4xf32> -> vector<8x8x8xf32>
    %58 = vector.shape_cast %3 : vector<8x8xf32> to vector<1x8x8xf32>
    %59 = vector.broadcast %58 : vector<1x8x8xf32> to vector<8x8x8xf32>
    %60 = arith.mulf %54, %59 : vector<8x8x8xf32>
    %61 = vector.shape_cast %5 : vector<8x8xf32> to vector<1x8x8xf32>
    %62 = vector.broadcast %61 : vector<1x8x8xf32> to vector<8x8x8xf32>
    %63 = arith.mulf %57, %62 : vector<8x8x8xf32>
    %64 = arith.addf %60, %63 : vector<8x8x8xf32>
    %65 = vector.extract_strided_slice %42 {offsets = [0, 0, 16], sizes = [8, 8, 8], strides = [1, 1, 1]} : vector<8x8x24xf32> to vector<8x8x8xf32>
    "tpu.trace_start"() <{level = 10 : i32, message = "nqk,njk->nqj"}> : () -> ()
    %cst_22 = arith.constant dense<0.000000e+00> : vector<8x8x8xf32>
    %66 = tpu.matmul %53, %64, %cst_22 {dimension_numbers = #tpu.dot_dimension_numbers<[2], [2], [1], [1], [0, 0, 0, 1, 1, 1], [0], [0]>} : vector<8x8x8xf32>, vector<8x8x8xf32>, vector<8x8x8xf32> -> vector<8x8x8xf32>
    "tpu.trace_stop"() : () -> ()
    %67 = vector.shape_cast %6 : vector<8x8xf32> to vector<1x8x8xf32>
    %68 = vector.broadcast %67 : vector<1x8x8xf32> to vector<8x8x8xf32>
    %69 = arith.addf %66, %68 : vector<8x8x8xf32>
    %cst_23 = arith.constant dense<0xFF800000> : vector<8x8xf32>
    %70 = vector.multi_reduction <maximumf>, %69, %cst_23 [2] : vector<8x8x8xf32> to vector<8x8xf32>
    %71 = vector.shape_cast %70 : vector<8x8xf32> to vector<8x8x1xf32>
    %72 = vector.broadcast %71 : vector<8x8x1xf32> to vector<8x8x8xf32>
    %73 = arith.subf %69, %72 : vector<8x8x8xf32>
    %74 = math.exp %73 : vector<8x8x8xf32>
    %cst_24 = arith.constant dense<0.000000e+00> : vector<8x8xf32>
    %75 = vector.multi_reduction <add>, %74, %cst_24 [2] : vector<8x8x8xf32> to vector<8x8xf32>
    %76 = vector.shape_cast %75 : vector<8x8xf32> to vector<8x8x1xf32>
    %77 = vector.broadcast %76 : vector<8x8x1xf32> to vector<8x8x8xf32>
    %78 = arith.divf %74, %77 : vector<8x8x8xf32>
    "tpu.trace_start"() <{level = 10 : i32, message = "nqj,njk->nqk"}> : () -> ()
    %cst_25 = arith.constant dense<0.000000e+00> : vector<8x8x8xf32>
    %79 = tpu.matmul %78, %65, %cst_25 {dimension_numbers = #tpu.dot_dimension_numbers<[2], [1], [1], [2], [0, 0, 0, 1, 1, 2], [0], [0]>} : vector<8x8x8xf32>, vector<8x8x8xf32>, vector<8x8x8xf32> -> vector<8x8x8xf32>
    "tpu.trace_stop"() : () -> ()
    %80 = vector.extract_strided_slice %8 {offsets = [0, 0, 24], sizes = [4, 32, 8], strides = [1, 1, 1]} : vector<4x32x32xf32> to vector<4x32x8xf32>
    %81 = vector.shape_cast %80 : vector<4x32x8xf32> to vector<1x4x32x8xf32>
    %82 = vector.shape_cast %81 : vector<1x4x32x8xf32> to vector<1x4x32x8xf32>
    %83 = vector.broadcast %82 : vector<1x4x32x8xf32> to vector<2x4x32x8xf32>
    %84 = vector.shape_cast %83 : vector<2x4x32x8xf32> to vector<8x32x8xf32>
    "tpu.trace_start"() <{level = 10 : i32, message = "nsk,ndk->nsd"}> : () -> ()
    %cst_26 = arith.constant dense<0.000000e+00> : vector<8x8x32xf32>
    %85 = tpu.matmul %79, %84, %cst_26 {dimension_numbers = #tpu.dot_dimension_numbers<[2], [2], [1], [1], [0, 0, 0, 1, 1, 1], [0], [0]>} : vector<8x8x8xf32>, vector<8x32x8xf32>, vector<8x8x32xf32> -> vector<8x8x32xf32>
    "tpu.trace_stop"() : () -> ()
    %86 = vector.shape_cast %85 : vector<8x8x32xf32> to vector<2x4x8x32xf32>
    %cst_27 = arith.constant dense<0.000000e+00> : vector<2x8x32xf32>
    %87 = vector.multi_reduction <add>, %86, %cst_27 [1] : vector<2x4x8x32xf32> to vector<2x8x32xf32>
    %88 = arith.addf %0, %87 : vector<2x8x32xf32>
    %c0_28 = arith.constant 0 : index
    %c0_29 = arith.constant 0 : index
    %c0_30 = arith.constant 0 : index
    %89 = vector.load %arg6[%c0_28, %c0_29, %c0_30] : memref<4x32x32xf32, #tpu.memory_space<vmem>>, vector<4x32x32xf32>
    %90 = vector.shape_cast %88 : vector<2x8x32xf32> to vector<16x32xf32>
    %91 = vector.extract_strided_slice %7 {offsets = [2, 0], sizes = [1, 32], strides = [1, 1]} : vector<8x32xf32> to vector<1x32xf32>
    %92 = vector.extract_strided_slice %7 {offsets = [3, 0], sizes = [1, 32], strides = [1, 1]} : vector<8x32xf32> to vector<1x32xf32>
    %cst_31 = arith.constant dense<0.000000e+00> : vector<16xf32>
    %93 = vector.multi_reduction <add>, %90, %cst_31 [1] : vector<16x32xf32> to vector<16xf32>
    %94 = vector.shape_cast %93 : vector<16xf32> to vector<16x1xf32>
    %cst_32 = arith.constant 3.200000e+01 : f32
    %95 = vector.broadcast %cst_32 : f32 to vector<16x1xf32>
    %96 = arith.divf %94, %95 : vector<16x1xf32>
    %97 = vector.broadcast %96 : vector<16x1xf32> to vector<16x32xf32>
    %98 = arith.subf %90, %97 : vector<16x32xf32>
    %99 = arith.mulf %98, %98 : vector<16x32xf32>
    %cst_33 = arith.constant dense<0.000000e+00> : vector<16xf32>
    %100 = vector.multi_reduction <add>, %99, %cst_33 [1] : vector<16x32xf32> to vector<16xf32>
    %101 = vector.shape_cast %100 : vector<16xf32> to vector<16x1xf32>
    %cst_34 = arith.constant 3.200000e+01 : f32
    %102 = vector.broadcast %cst_34 : f32 to vector<16x1xf32>
    %103 = arith.divf %101, %102 : vector<16x1xf32>
    %cst_35 = arith.constant 9.99999974E-6 : f32
    %104 = vector.broadcast %cst_35 : f32 to vector<16x1xf32>
    %105 = arith.addf %103, %104 : vector<16x1xf32>
    %106 = math.rsqrt %105 : vector<16x1xf32>
    %107 = vector.broadcast %106 : vector<16x1xf32> to vector<16x32xf32>
    %108 = arith.mulf %98, %107 : vector<16x32xf32>
    %109 = vector.broadcast %91 : vector<1x32xf32> to vector<16x32xf32>
    %110 = arith.mulf %108, %109 : vector<16x32xf32>
    %111 = vector.broadcast %92 : vector<1x32xf32> to vector<16x32xf32>
    %112 = arith.addf %110, %111 : vector<16x32xf32>
    %113 = vector.shape_cast %112 : vector<16x32xf32> to vector<2x8x32xf32>
    %114 = vector.shape_cast %113 : vector<2x8x32xf32> to vector<2x1x8x32xf32>
    %115 = vector.shape_cast %114 : vector<2x1x8x32xf32> to vector<2x1x8x32xf32>
    %116 = vector.broadcast %115 : vector<2x1x8x32xf32> to vector<2x4x8x32xf32>
    %117 = vector.shape_cast %116 : vector<2x4x8x32xf32> to vector<8x8x32xf32>
    %118 = vector.extract_strided_slice %89 {offsets = [0, 0, 0], sizes = [4, 32, 8], strides = [1, 1, 1]} : vector<4x32x32xf32> to vector<4x32x8xf32>
    %119 = vector.shape_cast %118 : vector<4x32x8xf32> to vector<1x4x32x8xf32>
    %120 = vector.shape_cast %119 : vector<1x4x32x8xf32> to vector<1x4x32x8xf32>
    %121 = vector.broadcast %120 : vector<1x4x32x8xf32> to vector<2x4x32x8xf32>
    %122 = vector.shape_cast %121 : vector<2x4x32x8xf32> to vector<8x32x8xf32>
    "tpu.trace_start"() <{level = 10 : i32, message = "nsd,ndk->nsk"}> : () -> ()
    %cst_36 = arith.constant dense<0.000000e+00> : vector<8x8x8xf32>
    %123 = tpu.matmul %117, %122, %cst_36 {dimension_numbers = #tpu.dot_dimension_numbers<[2], [1], [1], [2], [0, 0, 0, 1, 1, 2], [0], [0]>} : vector<8x8x32xf32>, vector<8x32x8xf32>, vector<8x8x8xf32> -> vector<8x8x8xf32>
    "tpu.trace_stop"() : () -> ()
    %124 = vector.shape_cast %1 : vector<2x12x32xf32> to vector<2x1x12x32xf32>
    %125 = vector.shape_cast %124 : vector<2x1x12x32xf32> to vector<2x1x12x32xf32>
    %126 = vector.broadcast %125 : vector<2x1x12x32xf32> to vector<2x4x12x32xf32>
    %127 = vector.shape_cast %126 : vector<2x4x12x32xf32> to vector<8x12x32xf32>
    %128 = vector.extract_strided_slice %89 {offsets = [0, 0, 8], sizes = [4, 32, 16], strides = [1, 1, 1]} : vector<4x32x32xf32> to vector<4x32x16xf32>
    %129 = vector.shape_cast %128 : vector<4x32x16xf32> to vector<1x4x32x16xf32>
    %130 = vector.shape_cast %129 : vector<1x4x32x16xf32> to vector<1x4x32x16xf32>
    %131 = vector.broadcast %130 : vector<1x4x32x16xf32> to vector<2x4x32x16xf32>
    %132 = vector.shape_cast %131 : vector<2x4x32x16xf32> to vector<8x32x16xf32>
    "tpu.trace_start"() <{level = 10 : i32, message = "nsd,ndk->nsk"}> : () -> ()
    %cst_37 = arith.constant dense<0.000000e+00> : vector<8x12x16xf32>
    %133 = tpu.matmul %127, %132, %cst_37 {dimension_numbers = #tpu.dot_dimension_numbers<[2], [1], [1], [2], [0, 0, 0, 1, 1, 2], [0], [0]>} : vector<8x12x32xf32>, vector<8x32x16xf32>, vector<8x12x16xf32> -> vector<8x12x16xf32>
    "tpu.trace_stop"() : () -> ()
    %134 = vector.extract_strided_slice %133 {offsets = [0, 0, 0], sizes = [8, 12, 8], strides = [1, 1, 1]} : vector<8x12x16xf32> to vector<8x12x8xf32>
    %135 = vector.extract_strided_slice %133 {offsets = [0, 0, 8], sizes = [8, 12, 8], strides = [1, 1, 1]} : vector<8x12x16xf32> to vector<8x12x8xf32>
    "tpu.trace_start"() <{level = 10 : i32, message = "nqk,njk->nqj"}> : () -> ()
    %cst_38 = arith.constant dense<0.000000e+00> : vector<8x8x12xf32>
    %136 = tpu.matmul %123, %134, %cst_38 {dimension_numbers = #tpu.dot_dimension_numbers<[2], [2], [1], [1], [0, 0, 0, 1, 1, 1], [0], [0]>} : vector<8x8x8xf32>, vector<8x12x8xf32>, vector<8x8x12xf32> -> vector<8x8x12xf32>
    "tpu.trace_stop"() : () -> ()
    %cst_39 = arith.constant dense<0xFF800000> : vector<8x8xf32>
    %137 = vector.multi_reduction <maximumf>, %136, %cst_39 [2] : vector<8x8x12xf32> to vector<8x8xf32>
    %138 = vector.shape_cast %137 : vector<8x8xf32> to vector<8x8x1xf32>
    %139 = vector.broadcast %138 : vector<8x8x1xf32> to vector<8x8x12xf32>
    %140 = arith.subf %136, %139 : vector<8x8x12xf32>
    %141 = math.exp %140 : vector<8x8x12xf32>
    %cst_40 = arith.constant dense<0.000000e+00> : vector<8x8xf32>
    %142 = vector.multi_reduction <add>, %141, %cst_40 [2] : vector<8x8x12xf32> to vector<8x8xf32>
    %143 = vector.shape_cast %142 : vector<8x8xf32> to vector<8x8x1xf32>
    %144 = vector.broadcast %143 : vector<8x8x1xf32> to vector<8x8x12xf32>
    %145 = arith.divf %141, %144 : vector<8x8x12xf32>
    "tpu.trace_start"() <{level = 10 : i32, message = "nqj,njk->nqk"}> : () -> ()
    %cst_41 = arith.constant dense<0.000000e+00> : vector<8x8x8xf32>
    %146 = tpu.matmul %145, %135, %cst_41 {dimension_numbers = #tpu.dot_dimension_numbers<[2], [1], [1], [2], [0, 0, 0, 1, 1, 2], [0], [0]>} : vector<8x8x12xf32>, vector<8x12x8xf32>, vector<8x8x8xf32> -> vector<8x8x8xf32>
    "tpu.trace_stop"() : () -> ()
    %147 = vector.extract_strided_slice %89 {offsets = [0, 0, 24], sizes = [4, 32, 8], strides = [1, 1, 1]} : vector<4x32x32xf32> to vector<4x32x8xf32>
    %148 = vector.shape_cast %147 : vector<4x32x8xf32> to vector<1x4x32x8xf32>
    %149 = vector.shape_cast %148 : vector<1x4x32x8xf32> to vector<1x4x32x8xf32>
    %150 = vector.broadcast %149 : vector<1x4x32x8xf32> to vector<2x4x32x8xf32>
    %151 = vector.shape_cast %150 : vector<2x4x32x8xf32> to vector<8x32x8xf32>
    "tpu.trace_start"() <{level = 10 : i32, message = "nsk,ndk->nsd"}> : () -> ()
    %cst_42 = arith.constant dense<0.000000e+00> : vector<8x8x32xf32>
    %152 = tpu.matmul %146, %151, %cst_42 {dimension_numbers = #tpu.dot_dimension_numbers<[2], [2], [1], [1], [0, 0, 0, 1, 1, 1], [0], [0]>} : vector<8x8x8xf32>, vector<8x32x8xf32>, vector<8x8x32xf32> -> vector<8x8x32xf32>
    "tpu.trace_stop"() : () -> ()
    %153 = vector.shape_cast %152 : vector<8x8x32xf32> to vector<2x4x8x32xf32>
    %cst_43 = arith.constant dense<0.000000e+00> : vector<2x8x32xf32>
    %154 = vector.multi_reduction <add>, %153, %cst_43 [1] : vector<2x4x8x32xf32> to vector<2x8x32xf32>
    %155 = arith.addf %88, %154 : vector<2x8x32xf32>
    %156 = vector.shape_cast %155 : vector<2x8x32xf32> to vector<16x32xf32>
    %157 = vector.extract_strided_slice %7 {offsets = [4, 0], sizes = [1, 32], strides = [1, 1]} : vector<8x32xf32> to vector<1x32xf32>
    %158 = vector.extract_strided_slice %7 {offsets = [5, 0], sizes = [1, 32], strides = [1, 1]} : vector<8x32xf32> to vector<1x32xf32>
    %cst_44 = arith.constant dense<0.000000e+00> : vector<16xf32>
    %159 = vector.multi_reduction <add>, %156, %cst_44 [1] : vector<16x32xf32> to vector<16xf32>
    %160 = vector.shape_cast %159 : vector<16xf32> to vector<16x1xf32>
    %cst_45 = arith.constant 3.200000e+01 : f32
    %161 = vector.broadcast %cst_45 : f32 to vector<16x1xf32>
    %162 = arith.divf %160, %161 : vector<16x1xf32>
    %163 = vector.broadcast %162 : vector<16x1xf32> to vector<16x32xf32>
    %164 = arith.subf %156, %163 : vector<16x32xf32>
    %165 = arith.mulf %164, %164 : vector<16x32xf32>
    %cst_46 = arith.constant dense<0.000000e+00> : vector<16xf32>
    %166 = vector.multi_reduction <add>, %165, %cst_46 [1] : vector<16x32xf32> to vector<16xf32>
    %167 = vector.shape_cast %166 : vector<16xf32> to vector<16x1xf32>
    %cst_47 = arith.constant 3.200000e+01 : f32
    %168 = vector.broadcast %cst_47 : f32 to vector<16x1xf32>
    %169 = arith.divf %167, %168 : vector<16x1xf32>
    %cst_48 = arith.constant 9.99999974E-6 : f32
    %170 = vector.broadcast %cst_48 : f32 to vector<16x1xf32>
    %171 = arith.addf %169, %170 : vector<16x1xf32>
    %172 = math.rsqrt %171 : vector<16x1xf32>
    %173 = vector.broadcast %172 : vector<16x1xf32> to vector<16x32xf32>
    %174 = arith.mulf %164, %173 : vector<16x32xf32>
    %175 = vector.broadcast %157 : vector<1x32xf32> to vector<16x32xf32>
    %176 = arith.mulf %174, %175 : vector<16x32xf32>
    %177 = vector.broadcast %158 : vector<1x32xf32> to vector<16x32xf32>
    %178 = arith.addf %176, %177 : vector<16x32xf32>
    %c0_49 = arith.constant 0 : index
    %c0_50 = arith.constant 0 : index
    %179 = vector.load %arg7[%c0_49, %c0_50] : memref<32x256xf32, #tpu.memory_space<vmem>>, vector<32x256xf32>
    %cst_51 = arith.constant dense<0.000000e+00> : vector<16x256xf32>
    %180 = tpu.matmul %178, %179, %cst_51 {dimension_numbers = #tpu.dot_dimension_numbers<[1], [0], [0], [1], [0, 0, 1, 1], [], []>} : vector<16x32xf32>, vector<32x256xf32>, vector<16x256xf32> -> vector<16x256xf32>
    %c0_52 = arith.constant 0 : index
    %c0_53 = arith.constant 0 : index
    %181 = vector.load %arg8[%c0_52, %c0_53] : memref<1x256xf32, #tpu.memory_space<vmem>>, vector<1x256xf32>
    %182 = vector.broadcast %181 : vector<1x256xf32> to vector<16x256xf32>
    %183 = arith.addf %180, %182 : vector<16x256xf32>
    %184 = arith.negf %183 : vector<16x256xf32>
    %185 = math.exp %184 : vector<16x256xf32>
    %cst_54 = arith.constant 1.000000e+00 : f32
    %186 = vector.broadcast %cst_54 : f32 to vector<16x256xf32>
    %187 = arith.addf %186, %185 : vector<16x256xf32>
    %188 = arith.divf %186, %187 : vector<16x256xf32>
    %189 = arith.mulf %183, %188 : vector<16x256xf32>
    %c0_55 = arith.constant 0 : index
    %c0_56 = arith.constant 0 : index
    %190 = vector.load %arg9[%c0_55, %c0_56] : memref<256x32xf32, #tpu.memory_space<vmem>>, vector<256x32xf32>
    %cst_57 = arith.constant dense<0.000000e+00> : vector<16x32xf32>
    %191 = tpu.matmul %189, %190, %cst_57 {dimension_numbers = #tpu.dot_dimension_numbers<[1], [0], [0], [1], [0, 0, 1, 1], [], []>} : vector<16x256xf32>, vector<256x32xf32>, vector<16x32xf32> -> vector<16x32xf32>
    %192 = vector.extract_strided_slice %7 {offsets = [6, 0], sizes = [1, 32], strides = [1, 1]} : vector<8x32xf32> to vector<1x32xf32>
    %193 = vector.broadcast %192 : vector<1x32xf32> to vector<16x32xf32>
    %194 = arith.addf %191, %193 : vector<16x32xf32>
    %195 = vector.shape_cast %194 : vector<16x32xf32> to vector<2x8x32xf32>
    %196 = arith.addf %155, %195 : vector<2x8x32xf32>
    %c0_58 = arith.constant 0 : index
    %c0_59 = arith.constant 0 : index
    %c0_60 = arith.constant 0 : index
    %197 = vector.load %arg10[%c0_58, %c0_59, %c0_60] : memref<2x8x32xf32, #tpu.memory_space<vmem>>, vector<2x8x32xf32>
    tpu.vector_store %arg10[%c0_58, %c0_59, %c0_60], %196 {strides = array<i32>} : memref<2x8x32xf32, #tpu.memory_space<vmem>>, vector<2x8x32xf32>,
    return
  }
}

</mosaic_0001>

<llo_original>
// kernel: decoder_block.1
$region0: #{decoder_block.1}
  #allocation0 [shape = 'u32[]', space=smem, size = 0x4, offset = 0x4, fixed_abs, tag = 'smem constant byte address 0x4 - core index']
  #allocation1 [shape = 'u32[144,128]{1,0:T(1,128)}', space=vmem, size = 0x12000, scoped, tag = 'internal scratch']
  %s0 = inlined_call_operand.hbm [shape: f32[2,8,32], index: 0, kind: input, shape index: {}]
  %s1 = inlined_call_operand.vmem [shape: f32[2,12,32], index: 1, kind: input, shape index: {}]
  %s2 = inlined_call_operand.hbm [shape: f32[2,8,8], index: 2, kind: input, shape index: {}]
  %s3 = inlined_call_operand.vmem [shape: f32[8,8], index: 3, kind: input, shape index: {}]
  %s4 = inlined_call_operand.hbm [shape: f32[8,32], index: 4, kind: input, shape index: {}]
  %s5 = inlined_call_operand.vmem [shape: f32[4,32,32], index: 5, kind: input, shape index: {}]
  %s6 = inlined_call_operand.vmem [shape: f32[4,32,32], index: 6, kind: input, shape index: {}]
  %s7 = inlined_call_operand.vmem [shape: f32[32,256], index: 7, kind: input, shape index: {}]
  %s8 = inlined_call_operand.hbm [shape: f32[1,256], index: 8, kind: input, shape index: {}]
  %s9 = inlined_call_operand.vmem [shape: f32[256,32], index: 9, kind: input, shape index: {}]
  %s10 = inlined_call_operand.hbm [shape: f32[2,8,32], index: 10, kind: output, shape index: {}]
  %s11 = sld [smem:[#allocation0]]
  $region66: #{decoder_block.1} parent=0
    _
  %s13 = ssub.s32 1, %s11
  %s14 = scalar_select 0, %s13, %s11
  $region1: #{decoder_block.1} parent=0
    #allocation2 [shape = 'u8[8192]{0}', space=vmem, size = 0x2000, scoped, tag = 'input window, operand 0, single buffered']
    #allocation3 [shape = 's32[1]{0}', space=sflag, size = 0x4, scoped, tag = 'scoped memory for decoder_block.1']
    #allocation4 [shape = 's32[1]{0}', space=sflag, size = 0x4, scoped, tag = 'scoped memory for decoder_block.1']
    #allocation5 [shape = 'u8[8192]{0}', space=vmem, size = 0x2000, scoped, tag = 'input window, operand 2, single buffered']
    #allocation6 [shape = 's32[1]{0}', space=sflag, size = 0x4, scoped, tag = 'scoped memory for decoder_block.1']
    #allocation7 [shape = 'u8[4096]{0}', space=vmem, size = 0x1000, scoped, tag = 'input window, operand 4, single buffered']
    #allocation8 [shape = 'u8[1024]{0}', space=vmem, size = 0x400, scoped, tag = 'input window, operand 8, single buffered']
    #allocation9 [shape = 's32[1]{0}', space=sflag, size = 0x4, scoped, tag = 'scoped memory for decoder_block.1']
    #allocation10 [shape = 'u8[8192]{0}', space=vmem, size = 0x2000, scoped, tag = 'output window, operand 0, single buffered']
    %15 = vsyncpa [#allocation3], 0
    %16 = vsyncpa [#allocation6], 0
    %17 = vsyncpa [#allocation9], 0
    %18 = vsyncpa [#allocation4], 0
    // Predicated region
    $region2: #{decoder_block.1} parent=1 // pred_check
      _
    $region3: #{decoder_block.1} parent=1 // pred_check_branch
      %20 = sbr.rel (0) target = $region5
    $region4: #{decoder_block.1} parent=1 // pred_region
      %s22 = ssub.s32 256, 256
      %23 = vsyncadd [#allocation3], %s22
      %s24 = sshll.u32 [#allocation2], 4
      %s25 = int_to_ptr.vmem [resolvable:$true] %s24
      %30 = dma.hbm_to_vmem [thread:$0]  %s0, 256, %s25, [#allocation3], 128, 128, 8
    $region5: #{decoder_block.1} parent=1 // pred_fallthru
      _
    // Predicated region
    $region6: #{decoder_block.1} parent=1 // pred_check
      _
    $region7: #{decoder_block.1} parent=1 // pred_check_branch
      %32 = sbr.rel (0) target = $region9
    $region8: #{decoder_block.1} parent=1 // pred_region
      _
    $region9: #{decoder_block.1} parent=1 // pred_fallthru
      _
    // Predicated region
    $region10: #{decoder_block.1} parent=1 // pred_check
      _
    $region11: #{decoder_block.1} parent=1 // pred_check_branch
      %34 = sbr.rel (0) target = $region13
    $region12: #{decoder_block.1} parent=1 // pred_region
      %s36 = ssub.s32 256, 256
      %37 = vsyncadd [#allocation6], %s36
      %s38 = sshll.u32 [#allocation5], 4
      %s39 = int_to_ptr.vmem [resolvable:$true] %s38
      %44 = dma.hbm_to_vmem [thread:$0]  %s2, 256, %s39, [#allocation6], 128, 128, 8
    $region13: #{decoder_block.1} parent=1 // pred_fallthru
      _
    // Predicated region
    $region14: #{decoder_block.1} parent=1 // pred_check
      _
    $region15: #{decoder_block.1} parent=1 // pred_check_branch
      %46 = sbr.rel (0) target = $region17
    $region16: #{decoder_block.1} parent=1 // pred_region
      _
    $region17: #{decoder_block.1} parent=1 // pred_fallthru
      _
    // Predicated region
    $region18: #{decoder_block.1} parent=1 // pred_check
      _
    $region19: #{decoder_block.1} parent=1 // pred_check_branch
      %48 = sbr.rel (0) target = $region21
    $region20: #{decoder_block.1} parent=1 // pred_region
      %s50 = ssub.s32 128, 128
      %51 = vsyncadd [#allocation6], %s50
      %s53 = sshll.u32 [#allocation7], 4
      %s54 = int_to_ptr.vmem [resolvable:$true] %s53
      %56 = dma.hbm_to_vmem [thread:$0]  %s4, 128, %s54, [#allocation6]
    $region21: #{decoder_block.1} parent=1 // pred_fallthru
      _
    // Predicated region
    $region22: #{decoder_block.1} parent=1 // pred_check
      _
    $region23: #{decoder_block.1} parent=1 // pred_check_branch
      %58 = sbr.rel (0) target = $region25
    $region24: #{decoder_block.1} parent=1 // pred_region
      _
    $region25: #{decoder_block.1} parent=1 // pred_fallthru
      _
    // Predicated region
    $region26: #{decoder_block.1} parent=1 // pred_check
      _
    $region27: #{decoder_block.1} parent=1 // pred_check_branch
      %60 = sbr.rel (0) target = $region29
    $region28: #{decoder_block.1} parent=1 // pred_region
      _
    $region29: #{decoder_block.1} parent=1 // pred_fallthru
      _
    // Predicated region
    $region30: #{decoder_block.1} parent=1 // pred_check
      _
    $region31: #{decoder_block.1} parent=1 // pred_check_branch
      %62 = sbr.rel (0) target = $region33
    $region32: #{decoder_block.1} parent=1 // pred_region
      _
    $region33: #{decoder_block.1} parent=1 // pred_fallthru
      _
    // Predicated region
    $region34: #{decoder_block.1} parent=1 // pred_check
      _
    $region35: #{decoder_block.1} parent=1 // pred_check_branch
      %64 = sbr.rel (0) target = $region37
    $region36: #{decoder_block.1} parent=1 // pred_region
      %s66 = ssub.s32 32, 32
      %67 = vsyncadd [#allocation9], %s66
      %s69 = sshll.u32 [#allocation8], 4
      %s70 = int_to_ptr.vmem [resolvable:$true] %s69
      %72 = dma.hbm_to_vmem [thread:$0]  %s8, 32, %s70, [#allocation9]
    $region37: #{decoder_block.1} parent=1 // pred_fallthru
      _
    // Predicated region
    $region38: #{decoder_block.1} parent=1 // pred_check
      _
    $region39: #{decoder_block.1} parent=1 // pred_check_branch
      %74 = sbr.rel (0) target = $region41
    $region40: #{decoder_block.1} parent=1 // pred_region
      _
    $region41: #{decoder_block.1} parent=1 // pred_fallthru
      _
    // Predicated region
    $region42: #{decoder_block.1} parent=1 // pred_check
      _
    $region43: #{decoder_block.1} parent=1 // pred_check_branch
      %76 = sbr.rel (0) target = $region45
    $region44: #{decoder_block.1} parent=1 // pred_region
      %77 = dma.done [#allocation3], 256
    $region45: #{decoder_block.1} parent=1 // pred_fallthru
      _
    // Predicated region
    $region46: #{decoder_block.1} parent=1 // pred_check
      _
    $region47: #{decoder_block.1} parent=1 // pred_check_branch
      %79 = sbr.rel (0) target = $region49
    $region48: #{decoder_block.1} parent=1 // pred_region
      %80 = dma.done [#allocation6], 256
    $region49: #{decoder_block.1} parent=1 // pred_fallthru
      _
    // Predicated region
    $region50: #{decoder_block.1} parent=1 // pred_check
      _
    $region51: #{decoder_block.1} parent=1 // pred_check_branch
      %82 = sbr.rel (0) target = $region53
    $region52: #{decoder_block.1} parent=1 // pred_region
      %83 = dma.done [#allocation6], 128
    $region53: #{decoder_block.1} parent=1 // pred_fallthru
      _
    // Predicated region
    $region54: #{decoder_block.1} parent=1 // pred_check
      _
    $region55: #{decoder_block.1} parent=1 // pred_check_branch
      %85 = sbr.rel (0) target = $region57
    $region56: #{decoder_block.1} parent=1 // pred_region
      %86 = dma.done [#allocation9], 32
    $region57: #{decoder_block.1} parent=1 // pred_fallthru
      _
    %v87 = vld [vmem:[#allocation2] sm:$0xff]
    %v88 = vld [vmem:[#allocation2 + $0x8] sm:$0xff]
    %v89 = vld [vmem:[%s1] sm:$0xff]
    %v90 = vld [vmem:[%s1 + $0x8] sm:$0xf]
    %v91 = vld [vmem:[%s1 + $0x10] sm:$0xff]
    %v92 = vld [vmem:[%s1 + $0x18] sm:$0xf]
    %v93 = vld [vmem:[#allocation5] sm:$0xff]
    %s94 = scalar_lea.vmem [#allocation5], 8
    %v95 = vld [vmem:[%s94] sm:$0xff]
    %v96 = vld [vmem:[%s3] sm:$0xff]
    %v97 = vld [vmem:[#allocation7] sm:$0xff]
    %v98 = vld [vmem:[%s5] sm:$0xff]
    %v99 = vld [vmem:[%s5 + $0x8] sm:$0xff]
    %v100 = vld [vmem:[%s5 + $0x10] sm:$0xff]
    %v101 = vld [vmem:[%s5 + $0x18] sm:$0xff]
    %v102 = vld [vmem:[%s5 + $0x20] sm:$0xff]
    %v103 = vld [vmem:[%s5 + $0x28] sm:$0xff]
    %v104 = vld [vmem:[%s5 + $0x30] sm:$0xff]
    %v105 = vld [vmem:[%s5 + $0x38] sm:$0xff]
    %v106 = vld [vmem:[%s5 + $0x40] sm:$0xff]
    %v107 = vld [vmem:[%s5 + $0x48] sm:$0xff]
    %v108 = vld [vmem:[%s5 + $0x50] sm:$0xff]
    %v109 = vld [vmem:[%s5 + $0x58] sm:$0xff]
    %v110 = vld [vmem:[%s5 + $0x60] sm:$0xff]
    %v111 = vld [vmem:[%s5 + $0x68] sm:$0xff]
    %v112 = vld [vmem:[%s5 + $0x70] sm:$0xff]
    %v113 = vld [vmem:[%s5 + $0x78] sm:$0xff]
    %vm114 = vcmask 261120
    %v115 = vsel %vm114, %v87, 0.0
    %116 = vadd.xlane.f32.xlu0 %v115
    %v117 = vpop.xlane.xlu0 %116
    %v118 = vsel %vm114, %v88, 0.0
    %119 = vadd.xlane.f32.xlu0 %v118
    %v120 = vpop.xlane.xlu0 %119
    %v121 = vrcp.pop 32.0
    %v122 = vmul.f32 %v117, %v121
    %v123 = vmul.f32 %v120, %v121
    %v124 = vsub.f32 %v87, %v122
    %v125 = vsub.f32 %v88, %v123
    %v126 = vmul.f32 %v124, %v124
    %v127 = vmul.f32 %v125, %v125
    %v128 = vsel %vm114, %v126, 0.0
    %129 = vadd.xlane.f32.xlu0 %v128
    %v130 = vpop.xlane.xlu0 %129
    %v131 = vsel %vm114, %v127, 0.0
    %132 = vadd.xlane.f32.xlu0 %v131
    %v133 = vpop.xlane.xlu0 %132
    %v134 = vmul.f32 %v130, %v121
    %v135 = vmul.f32 %v133, %v121
    %v136 = vadd.f32 %v134, 1e-05
    %v137 = vadd.f32 %v135, 1e-05
    %v138 = vrsqrt.pop %v136
    %v139 = vrsqrt.pop %v137
    %v140 = vmul.f32 %v124, %v138
    %v141 = vmul.f32 %v125, %v139
    %v142 = vlaneseq
    %v143 = vshrl.u32 %v142, 7
    %v144 = vsub.s32 0, %v143
    %v145 = vrot.slane %v97, %v144
    %v146 = vmul.f32 %v140, %v145
    %v147 = vmul.f32 %v141, %v145
    %v148 = vlaneseq
    %v149 = vshrl.u32 %v148, 7
    %v150 = vsub.s32 1, %v149
    %v151 = vrot.slane %v97, %v150
    %v152 = vadd.f32 %v146, %v151
    %v153 = vadd.f32 %v147, %v151
    %v155 = vsel %vm114, %v152, 0
    %157 = vmatprep.subr.mxu0 0.0
    %158 = vmatpush1.msra.mxu0 0.0
    %159 = vmatprep.subr.mxu0 0.0
    %160 = vmatpush1.msra.mxu0 0.0
    %161 = vmatprep.subr.mxu0 0.0
    %162 = vmatpush1.msra.mxu0 0.0
    %163 = vmatprep.subr.mxu0 0.0
    %164 = vmatpush1.msra.mxu0 0.0
    %165 = vmatprep.subr.mxu0 0.0
    %166 = vmatpush1.msra.mxu0 0.0
    %167 = vmatprep.subr.mxu0 0.0
    %168 = vmatpush1.msra.mxu0 0.0
    %169 = vmatprep.subr.mxu0 0.0
    %170 = vmatpush1.msra.mxu0 0.0
    %171 = vmatprep.subr.mxu0 0.0
    %172 = vmatpush1.msra.mxu0 0.0
    %173 = vmatprep.subr.mxu0 0.0
    %174 = vmatpush1.msra.mxu0 0.0
    %175 = vmatprep.subr.mxu0 0.0
    %176 = vmatpush1.msra.mxu0 0.0
    %177 = vmatprep.subr.mxu0 0.0
    %178 = vmatpush1.msra.mxu0 0.0
    %179 = vmatprep.subr.mxu0 0.0
    %180 = vmatpush1.msra.mxu0 0.0
    %181 = vmatprep.subr.mxu0 0.0
    %182 = vmatpush1.msra.mxu0 %v101
    %183 = vmatprep.subr.mxu0 0.0
    %184 = vmatpush1.msra.mxu0 %v100
    %185 = vmatprep.subr.mxu0 0.0
    %186 = vmatpush1.msra.mxu0 %v99
    %187 = vmatprep.subr.mxu0 0.0
    %188 = vmatpush1.msra.mxu0 %v98
    %189 = vmatprep.subr.mxu0 0.0
    %190 = vmatpush2.msra.mxu0 0.0
    %191 = vmatprep.subr.mxu0 0.0
    %192 = vmatpush2.msra.mxu0 0.0
    %193 = vmatprep.subr.mxu0 0.0
    %194 = vmatpush2.msra.mxu0 0.0
    %195 = vmatprep.subr.mxu0 0.0
    %196 = vmatpush2.msra.mxu0 0.0
    %197 = vmatprep.subr.mxu0 0.0
    %198 = vmatpush2.msra.mxu0 0.0
    %199 = vmatprep.subr.mxu0 0.0
    %200 = vmatpush2.msra.mxu0 0.0
    %201 = vmatprep.subr.mxu0 0.0
    %202 = vmatpush2.msra.mxu0 0.0
    %203 = vmatprep.subr.mxu0 0.0
    %204 = vmatpush2.msra.mxu0 0.0
    %205 = vmatprep.subr.mxu0 0.0
    %206 = vmatpush2.msra.mxu0 0.0
    %207 = vmatprep.subr.mxu0 0.0
    %208 = vmatpush2.msra.mxu0 0.0
    %209 = vmatprep.subr.mxu0 0.0
    %210 = vmatpush2.msra.mxu0 0.0
    %211 = vmatprep.subr.mxu0 0.0
    %212 = vmatpush2.msra.mxu0 0.0
    %213 = vmatprep.subr.mxu0 0.0
    %214 = vmatpush2.msra.mxu0 0.0
    %215 = vmatprep.subr.mxu0 0.0
    %216 = vmatpush2.msra.mxu0 0.0
    %217 = vmatprep.subr.mxu0 0.0
    %218 = vmatpush2.msra.mxu0 0.0
    %219 = vmatprep.subr.mxu0 0.0
    %220 = vmatpush2.msra.mxu0 0.0
    %221 = vmatprep.mubr.f32.mxu0 0.0
    %222 = vmatmul.mubr.f32.gmra.mxu0 %v155
    %v223 = vpop.f32.mrf.mxu0
    %v224 = vadd.f32 0.0, %v223
    %v225 = vpop.f32.mrf.mxu0
    %226 = vdwg.mxu0
    %227 = vmatprep.subr.mxu0 0.0
    %228 = vmatpush1.msra.mxu0 0.0
    %229 = vmatprep.subr.mxu0 0.0
    %230 = vmatpush1.msra.mxu0 0.0
    %231 = vmatprep.subr.mxu0 0.0
    %232 = vmatpush1.msra.mxu0 0.0
    %233 = vmatprep.subr.mxu0 0.0
    %234 = vmatpush1.msra.mxu0 0.0
    %235 = vmatprep.subr.mxu0 0.0
    %236 = vmatpush1.msra.mxu0 0.0
    %237 = vmatprep.subr.mxu0 0.0
    %238 = vmatpush1.msra.mxu0 0.0
    %239 = vmatprep.subr.mxu0 0.0
    %240 = vmatpush1.msra.mxu0 0.0
    %241 = vmatprep.subr.mxu0 0.0
    %242 = vmatpush1.msra.mxu0 0.0
    %243 = vmatprep.subr.mxu0 0.0
    %244 = vmatpush1.msra.mxu0 0.0
    %245 = vmatprep.subr.mxu0 0.0
    %246 = vmatpush1.msra.mxu0 0.0
    %247 = vmatprep.subr.mxu0 0.0
    %248 = vmatpush1.msra.mxu0 0.0
    %249 = vmatprep.subr.mxu0 0.0
    %250 = vmatpush1.msra.mxu0 0.0
    %251 = vmatprep.subr.mxu0 0.0
    %252 = vmatpush1.msra.mxu0 %v105
    %253 = vmatprep.subr.mxu0 0.0
    %254 = vmatpush1.msra.mxu0 %v104
    %255 = vmatprep.subr.mxu0 0.0
    %256 = vmatpush1.msra.mxu0 %v103
    %257 = vmatprep.subr.mxu0 0.0
    %258 = vmatpush1.msra.mxu0 %v102
    %259 = vmatprep.subr.mxu0 0.0
    %260 = vmatpush2.msra.mxu0 0.0
    %261 = vmatprep.subr.mxu0 0.0
    %262 = vmatpush2.msra.mxu0 0.0
    %263 = vmatprep.subr.mxu0 0.0
    %264 = vmatpush2.msra.mxu0 0.0
    %265 = vmatprep.subr.mxu0 0.0
    %266 = vmatpush2.msra.mxu0 0.0
    %267 = vmatprep.subr.mxu0 0.0
    %268 = vmatpush2.msra.mxu0 0.0
    %269 = vmatprep.subr.mxu0 0.0
    %270 = vmatpush2.msra.mxu0 0.0
    %271 = vmatprep.subr.mxu0 0.0
    %272 = vmatpush2.msra.mxu0 0.0
    %273 = vmatprep.subr.mxu0 0.0
    %274 = vmatpush2.msra.mxu0 0.0
    %275 = vmatprep.subr.mxu0 0.0
    %276 = vmatpush2.msra.mxu0 0.0
    %277 = vmatprep.subr.mxu0 0.0
    %278 = vmatpush2.msra.mxu0 0.0
    %279 = vmatprep.subr.mxu0 0.0
    %280 = vmatpush2.msra.mxu0 0.0
    %281 = vmatprep.subr.mxu0 0.0
    %282 = vmatpush2.msra.mxu0 0.0
    %283 = vmatprep.subr.mxu0 0.0
    %284 = vmatpush2.msra.mxu0 0.0
    %285 = vmatprep.subr.mxu0 0.0
    %286 = vmatpush2.msra.mxu0 0.0
    %287 = vmatprep.subr.mxu0 0.0
    %288 = vmatpush2.msra.mxu0 0.0
    %289 = vmatprep.subr.mxu0 0.0
    %290 = vmatpush2.msra.mxu0 0.0
    %291 = vmatprep.mubr.f32.mxu0 0.0
    %292 = vmatmul.mubr.f32.gmra.mxu0 %v155
    %v293 = vpop.f32.mrf.mxu0
    %v294 = vadd.f32 0.0, %v293
    %v295 = vpop.f32.mrf.mxu0
    %296 = vdwg.mxu0
    %297 = vmatprep.subr.mxu0 0.0
    %298 = vmatpush1.msra.mxu0 0.0
    %299 = vmatprep.subr.mxu0 0.0
    %300 = vmatpush1.msra.mxu0 0.0
    %301 = vmatprep.subr.mxu0 0.0
    %302 = vmatpush1.msra.mxu0 0.0
    %303 = vmatprep.subr.mxu0 0.0
    %304 = vmatpush1.msra.mxu0 0.0
    %305 = vmatprep.subr.mxu0 0.0
    %306 = vmatpush1.msra.mxu0 0.0
    %307 = vmatprep.subr.mxu0 0.0
    %308 = vmatpush1.msra.mxu0 0.0
    %309 = vmatprep.subr.mxu0 0.0
    %310 = vmatpush1.msra.mxu0 0.0
    %311 = vmatprep.subr.mxu0 0.0
    %312 = vmatpush1.msra.mxu0 0.0
    %313 = vmatprep.subr.mxu0 0.0
    %314 = vmatpush1.msra.mxu0 0.0
    %315 = vmatprep.subr.mxu0 0.0
    %316 = vmatpush1.msra.mxu0 0.0
    %317 = vmatprep.subr.mxu0 0.0
    %318 = vmatpush1.msra.mxu0 0.0
    %319 = vmatprep.subr.mxu0 0.0
    %320 = vmatpush1.msra.mxu0 0.0
    %321 = vmatprep.subr.mxu0 0.0
    %322 = vmatpush1.msra.mxu0 %v109
    %323 = vmatprep.subr.mxu0 0.0
    %324 = vmatpush1.msra.mxu0 %v108
    %325 = vmatprep.subr.mxu0 0.0
    %326 = vmatpush1.msra.mxu0 %v107
    %327 = vmatprep.subr.mxu0 0.0
    %328 = vmatpush1.msra.mxu0 %v106
    %329 = vmatprep.subr.mxu0 0.0
    %330 = vmatpush2.msra.mxu0 0.0
    %331 = vmatprep.subr.mxu0 0.0
    %332 = vmatpush2.msra.mxu0 0.0
    %333 = vmatprep.subr.mxu0 0.0
    %334 = vmatpush2.msra.mxu0 0.0
    %335 = vmatprep.subr.mxu0 0.0
    %336 = vmatpush2.msra.mxu0 0.0
    %337 = vmatprep.subr.mxu0 0.0
    %338 = vmatpush2.msra.mxu0 0.0
    %339 = vmatprep.subr.mxu0 0.0
    %340 = vmatpush2.msra.mxu0 0.0
    %341 = vmatprep.subr.mxu0 0.0
    %342 = vmatpush2.msra.mxu0 0.0
    %343 = vmatprep.subr.mxu0 0.0
    %344 = vmatpush2.msra.mxu0 0.0
    %345 = vmatprep.subr.mxu0 0.0
    %346 = vmatpush2.msra.mxu0 0.0
    %347 = vmatprep.subr.mxu0 0.0
    %348 = vmatpush2.msra.mxu0 0.0
    %349 = vmatprep.subr.mxu0 0.0
    %350 = vmatpush2.msra.mxu0 0.0
    %351 = vmatprep.subr.mxu0 0.0
    %352 = vmatpush2.msra.mxu0 0.0
    %353 = vmatprep.subr.mxu0 0.0
    %354 = vmatpush2.msra.mxu0 0.0
    %355 = vmatprep.subr.mxu0 0.0
    %356 = vmatpush2.msra.mxu0 0.0
    %357 = vmatprep.subr.mxu0 0.0
    %358 = vmatpush2.msra.mxu0 0.0
    %359 = vmatprep.subr.mxu0 0.0
    %360 = vmatpush2.msra.mxu0 0.0
    %361 = vmatprep.mubr.f32.mxu0 0.0
    %362 = vmatmul.mubr.f32.gmra.mxu0 %v155
    %v363 = vpop.f32.mrf.mxu0
    %v364 = vadd.f32 0.0, %v363
    %v365 = vpop.f32.mrf.mxu0
    %366 = vdwg.mxu0
    %367 = vmatprep.subr.mxu0 0.0
    %368 = vmatpush1.msra.mxu0 0.0
    %369 = vmatprep.subr.mxu0 0.0
    %370 = vmatpush1.msra.mxu0 0.0
    %371 = vmatprep.subr.mxu0 0.0
    %372 = vmatpush1.msra.mxu0 0.0
    %373 = vmatprep.subr.mxu0 0.0
    %374 = vmatpush1.msra.mxu0 0.0
    %375 = vmatprep.subr.mxu0 0.0
    %376 = vmatpush1.msra.mxu0 0.0
    %377 = vmatprep.subr.mxu0 0.0
    %378 = vmatpush1.msra.mxu0 0.0
    %379 = vmatprep.subr.mxu0 0.0
    %380 = vmatpush1.msra.mxu0 0.0
    %381 = vmatprep.subr.mxu0 0.0
    %382 = vmatpush1.msra.mxu0 0.0
    %383 = vmatprep.subr.mxu0 0.0
    %384 = vmatpush1.msra.mxu0 0.0
    %385 = vmatprep.subr.mxu0 0.0
    %386 = vmatpush1.msra.mxu0 0.0
    %387 = vmatprep.subr.mxu0 0.0
    %388 = vmatpush1.msra.mxu0 0.0
    %389 = vmatprep.subr.mxu0 0.0
    %390 = vmatpush1.msra.mxu0 0.0
    %391 = vmatprep.subr.mxu0 0.0
    %392 = vmatpush1.msra.mxu0 %v113
    %393 = vmatprep.subr.mxu0 0.0
    %394 = vmatpush1.msra.mxu0 %v112
    %395 = vmatprep.subr.mxu0 0.0
    %396 = vmatpush1.msra.mxu0 %v111
    %397 = vmatprep.subr.mxu0 0.0
    %398 = vmatpush1.msra.mxu0 %v110
    %399 = vmatprep.subr.mxu0 0.0
    %400 = vmatpush2.msra.mxu0 0.0
    %401 = vmatprep.subr.mxu0 0.0
    %402 = vmatpush2.msra.mxu0 0.0
    %403 = vmatprep.subr.mxu0 0.0
    %404 = vmatpush2.msra.mxu0 0.0
    %405 = vmatprep.subr.mxu0 0.0
    %406 = vmatpush2.msra.mxu0 0.0
    %407 = vmatprep.subr.mxu0 0.0
    %408 = vmatpush2.msra.mxu0 0.0
    %409 = vmatprep.subr.mxu0 0.0
    %410 = vmatpush2.msra.mxu0 0.0
    %411 = vmatprep.subr.mxu0 0.0
    %412 = vmatpush2.msra.mxu0 0.0
    %413 = vmatprep.subr.mxu0 0.0
    %414 = vmatpush2.msra.mxu0 0.0
    %415 = vmatprep.subr.mxu0 0.0
    %416 = vmatpush2.msra.mxu0 0.0
    %417 = vmatprep.subr.mxu0 0.0
    %418 = vmatpush2.msra.mxu0 0.0
    %419 = vmatprep.subr.mxu0 0.0
    %420 = vmatpush2.msra.mxu0 0.0
    %421 = vmatprep.subr.mxu0 0.0
    %422 = vmatpush2.msra.mxu0 0.0
    %423 = vmatprep.subr.mxu0 0.0
    %424 = vmatpush2.msra.mxu0 0.0
    %425 = vmatprep.subr.mxu0 0.0
    %426 = vmatpush2.msra.mxu0 0.0
    %427 = vmatprep.subr.mxu0 0.0
    %428 = vmatpush2.msra.mxu0 0.0
    %429 = vmatprep.subr.mxu0 0.0
    %430 = vmatpush2.msra.mxu0 0.0
    %431 = vmatprep.mubr.f32.mxu0 0.0
    %432 = vmatmul.mubr.f32.gmra.mxu0 %v155
    %v433 = vpop.f32.mrf.mxu0
    %v434 = vadd.f32 0.0, %v433
    %v435 = vpop.f32.mrf.mxu0
    %436 = vdwg.mxu0
    %v438 = vsel %vm114, %v153, 0
    %440 = vmatprep.subr.mxu0 0.0
    %441 = vmatpush1.msra.mxu0 0.0
    %442 = vmatprep.subr.mxu0 0.0
    %443 = vmatpush1.msra.mxu0 0.0
    %444 = vmatprep.subr.mxu0 0.0
    %445 = vmatpush1.msra.mxu0 0.0
    %446 = vmatprep.subr.mxu0 0.0
    %447 = vmatpush1.msra.mxu0 0.0
    %448 = vmatprep.subr.mxu0 0.0
    %449 = vmatpush1.msra.mxu0 0.0
    %450 = vmatprep.subr.mxu0 0.0
    %451 = vmatpush1.msra.mxu0 0.0
    %452 = vmatprep.subr.mxu0 0.0
    %453 = vmatpush1.msra.mxu0 0.0
    %454 = vmatprep.subr.mxu0 0.0
    %455 = vmatpush1.msra.mxu0 0.0
    %456 = vmatprep.subr.mxu0 0.0
    %457 = vmatpush1.msra.mxu0 0.0
    %458 = vmatprep.subr.mxu0 0.0
    %459 = vmatpush1.msra.mxu0 0.0
    %460 = vmatprep.subr.mxu0 0.0
    %461 = vmatpush1.msra.mxu0 0.0
    %462 = vmatprep.subr.mxu0 0.0
    %463 = vmatpush1.msra.mxu0 0.0
    %464 = vmatprep.subr.mxu0 0.0
    %465 = vmatpush1.msra.mxu0 %v101
    %466 = vmatprep.subr.mxu0 0.0
    %467 = vmatpush1.msra.mxu0 %v100
    %468 = vmatprep.subr.mxu0 0.0
    %469 = vmatpush1.msra.mxu0 %v99
    %470 = vmatprep.subr.mxu0 0.0
    %471 = vmatpush1.msra.mxu0 %v98
    %472 = vmatprep.subr.mxu0 0.0
    %473 = vmatpush2.msra.mxu0 0.0
    %474 = vmatprep.subr.mxu0 0.0
    %475 = vmatpush2.msra.mxu0 0.0
    %476 = vmatprep.subr.mxu0 0.0
    %477 = vmatpush2.msra.mxu0 0.0
    %478 = vmatprep.subr.mxu0 0.0
    %479 = vmatpush2.msra.mxu0 0.0
    %480 = vmatprep.subr.mxu0 0.0
    %481 = vmatpush2.msra.mxu0 0.0
    %482 = vmatprep.subr.mxu0 0.0
    %483 = vmatpush2.msra.mxu0 0.0
    %484 = vmatprep.subr.mxu0 0.0
    %485 = vmatpush2.msra.mxu0 0.0
    %486 = vmatprep.subr.mxu0 0.0
    %487 = vmatpush2.msra.mxu0 0.0
    %488 = vmatprep.subr.mxu0 0.0
    %489 = vmatpush2.msra.mxu0 0.0
    %490 = vmatprep.subr.mxu0 0.0
    %491 = vmatpush2.msra.mxu0 0.0
    %492 = vmatprep.subr.mxu0 0.0
    %493 = vmatpush2.msra.mxu0 0.0
    %494 = vmatprep.subr.mxu0 0.0
    %495 = vmatpush2.msra.mxu0 0.0
    %496 = vmatprep.subr.mxu0 0.0
    %497 = vmatpush2.msra.mxu0 0.0
    %498 = vmatprep.subr.mxu0 0.0
    %499 = vmatpush2.msra.mxu0 0.0
    %500 = vmatprep.subr.mxu0 0.0
    %501 = vmatpush2.msra.mxu0 0.0
    %502 = vmatprep.subr.mxu0 0.0
    %503 = vmatpush2.msra.mxu0 0.0
    %504 = vmatprep.mubr.f32.mxu0 0.0
    %505 = vmatmul.mubr.f32.gmra.mxu0 %v438
    %v506 = vpop.f32.mrf.mxu0
    %v507 = vadd.f32 0.0, %v506
    %v508 = vpop.f32.mrf.mxu0
    %509 = vdwg.mxu0
    %510 = vmatprep.subr.mxu0 0.0
    %511 = vmatpush1.msra.mxu0 0.0
    %512 = vmatprep.subr.mxu0 0.0
    %513 = vmatpush1.msra.mxu0 0.0
    %514 = vmatprep.subr.mxu0 0.0
    %515 = vmatpush1.msra.mxu0 0.0
    %516 = vmatprep.subr.mxu0 0.0
    %517 = vmatpush1.msra.mxu0 0.0
    %518 = vmatprep.subr.mxu0 0.0
    %519 = vmatpush1.msra.mxu0 0.0
    %520 = vmatprep.subr.mxu0 0.0
    %521 = vmatpush1.msra.mxu0 0.0
    %522 = vmatprep.subr.mxu0 0.0
    %523 = vmatpush1.msra.mxu0 0.0
    %524 = vmatprep.subr.mxu0 0.0
    %525 = vmatpush1.msra.mxu0 0.0
    %526 = vmatprep.subr.mxu0 0.0
    %527 = vmatpush1.msra.mxu0 0.0
    %528 = vmatprep.subr.mxu0 0.0
    %529 = vmatpush1.msra.mxu0 0.0
    %530 = vmatprep.subr.mxu0 0.0
    %531 = vmatpush1.msra.mxu0 0.0
    %532 = vmatprep.subr.mxu0 0.0
    %533 = vmatpush1.msra.mxu0 0.0
    %534 = vmatprep.subr.mxu0 0.0
    %535 = vmatpush1.msra.mxu0 %v105
    %536 = vmatprep.subr.mxu0 0.0
    %537 = vmatpush1.msra.mxu0 %v104
    %538 = vmatprep.subr.mxu0 0.0
    %539 = vmatpush1.msra.mxu0 %v103
    %540 = vmatprep.subr.mxu0 0.0
    %541 = vmatpush1.msra.mxu0 %v102
    %542 = vmatprep.subr.mxu0 0.0
    %543 = vmatpush2.msra.mxu0 0.0
    %544 = vmatprep.subr.mxu0 0.0
    %545 = vmatpush2.msra.mxu0 0.0
    %546 = vmatprep.subr.mxu0 0.0
    %547 = vmatpush2.msra.mxu0 0.0
    %548 = vmatprep.subr.mxu0 0.0
    %549 = vmatpush2.msra.mxu0 0.0
    %550 = vmatprep.subr.mxu0 0.0
    %551 = vmatpush2.msra.mxu0 0.0
    %552 = vmatprep.subr.mxu0 0.0
    %553 = vmatpush2.msra.mxu0 0.0
    %554 = vmatprep.subr.mxu0 0.0
    %555 = vmatpush2.msra.mxu0 0.0
    %556 = vmatprep.subr.mxu0 0.0
    %557 = vmatpush2.msra.mxu0 0.0
    %558 = vmatprep.subr.mxu0 0.0
    %559 = vmatpush2.msra.mxu0 0.0
    %560 = vmatprep.subr.mxu0 0.0
    %561 = vmatpush2.msra.mxu0 0.0
    %562 = vmatprep.subr.mxu0 0.0
    %563 = vmatpush2.msra.mxu0 0.0
    %564 = vmatprep.subr.mxu0 0.0
    %565 = vmatpush2.msra.mxu0 0.0
    %566 = vmatprep.subr.mxu0 0.0
    %567 = vmatpush2.msra.mxu0 0.0
    %568 = vmatprep.subr.mxu0 0.0
    %569 = vmatpush2.msra.mxu0 0.0
    %570 = vmatprep.subr.mxu0 0.0
    %571 = vmatpush2.msra.mxu0 0.0
    %572 = vmatprep.subr.mxu0 0.0
    %573 = vmatpush2.msra.mxu0 0.0
    %574 = vmatprep.mubr.f32.mxu0 0.0
    %575 = vmatmul.mubr.f32.gmra.mxu0 %v438
    %v576 = vpop.f32.mrf.mxu0
    %v577 = vadd.f32 0.0, %v576
    %v578 = vpop.f32.mrf.mxu0
    %579 = vdwg.mxu0
    %580 = vmatprep.subr.mxu0 0.0
    %581 = vmatpush1.msra.mxu0 0.0
    %582 = vmatprep.subr.mxu0 0.0
    %583 = vmatpush1.msra.mxu0 0.0
    %584 = vmatprep.subr.mxu0 0.0
    %585 = vmatpush1.msra.mxu0 0.0
    %586 = vmatprep.subr.mxu0 0.0
    %587 = vmatpush1.msra.mxu0 0.0
    %588 = vmatprep.subr.mxu0 0.0
    %589 = vmatpush1.msra.mxu0 0.0
    %590 = vmatprep.subr.mxu0 0.0
    %591 = vmatpush1.msra.mxu0 0.0
    %592 = vmatprep.subr.mxu0 0.0
    %593 = vmatpush1.msra.mxu0 0.0
    %594 = vmatprep.subr.mxu0 0.0
    %595 = vmatpush1.msra.mxu0 0.0
    %596 = vmatprep.subr.mxu0 0.0
    %597 = vmatpush1.msra.mxu0 0.0
    %598 = vmatprep.subr.mxu0 0.0
    %599 = vmatpush1.msra.mxu0 0.0
    %600 = vmatprep.subr.mxu0 0.0
    %601 = vmatpush1.msra.mxu0 0.0
    %602 = vmatprep.subr.mxu0 0.0
    %603 = vmatpush1.msra.mxu0 0.0
    %604 = vmatprep.subr.mxu0 0.0
    %605 = vmatpush1.msra.mxu0 %v109
    %606 = vmatprep.subr.mxu0 0.0
    %607 = vmatpush1.msra.mxu0 %v108
    %608 = vmatprep.subr.mxu0 0.0
    %609 = vmatpush1.msra.mxu0 %v107
    %610 = vmatprep.subr.mxu0 0.0
    %611 = vmatpush1.msra.mxu0 %v106
    %612 = vmatprep.subr.mxu0 0.0
    %613 = vmatpush2.msra.mxu0 0.0
    %614 = vmatprep.subr.mxu0 0.0
    %615 = vmatpush2.msra.mxu0 0.0
    %616 = vmatprep.subr.mxu0 0.0
    %617 = vmatpush2.msra.mxu0 0.0
    %618 = vmatprep.subr.mxu0 0.0
    %619 = vmatpush2.msra.mxu0 0.0
    %620 = vmatprep.subr.mxu0 0.0
    %621 = vmatpush2.msra.mxu0 0.0
    %622 = vmatprep.subr.mxu0 0.0
    %623 = vmatpush2.msra.mxu0 0.0
    %624 = vmatprep.subr.mxu0 0.0
    %625 = vmatpush2.msra.mxu0 0.0
    %626 = vmatprep.subr.mxu0 0.0
    %627 = vmatpush2.msra.mxu0 0.0
    %628 = vmatprep.subr.mxu0 0.0
    %629 = vmatpush2.msra.mxu0 0.0
    %630 = vmatprep.subr.mxu0 0.0
    %631 = vmatpush2.msra.mxu0 0.0
    %632 = vmatprep.subr.mxu0 0.0
    %633 = vmatpush2.msra.mxu0 0.0
    %634 = vmatprep.subr.mxu0 0.0
    %635 = vmatpush2.msra.mxu0 0.0
    %636 = vmatprep.subr.mxu0 0.0
    %637 = vmatpush2.msra.mxu0 0.0
    %638 = vmatprep.subr.mxu0 0.0
    %639 = vmatpush2.msra.mxu0 0.0
    %640 = vmatprep.subr.mxu0 0.0
    %641 = vmatpush2.msra.mxu0 0.0
    %642 = vmatprep.subr.mxu0 0.0
    %643 = vmatpush2.msra.mxu0 0.0
    %644 = vmatprep.mubr.f32.mxu0 0.0
    %645 = vmatmul.mubr.f32.gmra.mxu0 %v438
    %v646 = vpop.f32.mrf.mxu0
    %v647 = vadd.f32 0.0, %v646
    %v648 = vpop.f32.mrf.mxu0
    %649 = vdwg.mxu0
    %650 = vmatprep.subr.mxu0 0.0
    %651 = vmatpush1.msra.mxu0 0.0
    %652 = vmatprep.subr.mxu0 0.0
    %653 = vmatpush1.msra.mxu0 0.0
    %654 = vmatprep.subr.mxu0 0.0
    %655 = vmatpush1.msra.mxu0 0.0
    %656 = vmatprep.subr.mxu0 0.0
    %657 = vmatpush1.msra.mxu0 0.0
    %658 = vmatprep.subr.mxu0 0.0
    %659 = vmatpush1.msra.mxu0 0.0
    %660 = vmatprep.subr.mxu0 0.0
    %661 = vmatpush1.msra.mxu0 0.0
    %662 = vmatprep.subr.mxu0 0.0
    %663 = vmatpush1.msra.mxu0 0.0
    %664 = vmatprep.subr.mxu0 0.0
    %665 = vmatpush1.msra.mxu0 0.0
    %666 = vmatprep.subr.mxu0 0.0
    %667 = vmatpush1.msra.mxu0 0.0
    %668 = vmatprep.subr.mxu0 0.0
    %669 = vmatpush1.msra.mxu0 0.0
    %670 = vmatprep.subr.mxu0 0.0
    %671 = vmatpush1.msra.mxu0 0.0
    %672 = vmatprep.subr.mxu0 0.0
    %673 = vmatpush1.msra.mxu0 0.0
    %674 = vmatprep.subr.mxu0 0.0
    %675 = vmatpush1.msra.mxu0 %v113
    %676 = vmatprep.subr.mxu0 0.0
    %677 = vmatpush1.msra.mxu0 %v112
    %678 = vmatprep.subr.mxu0 0.0
    %679 = vmatpush1.msra.mxu0 %v111
    %680 = vmatprep.subr.mxu0 0.0
    %681 = vmatpush1.msra.mxu0 %v110
    %682 = vmatprep.subr.mxu0 0.0
    %683 = vmatpush2.msra.mxu0 0.0
    %684 = vmatprep.subr.mxu0 0.0
    %685 = vmatpush2.msra.mxu0 0.0
    %686 = vmatprep.subr.mxu0 0.0
    %687 = vmatpush2.msra.mxu0 0.0
    %688 = vmatprep.subr.mxu0 0.0
    %689 = vmatpush2.msra.mxu0 0.0
    %690 = vmatprep.subr.mxu0 0.0
    %691 = vmatpush2.msra.mxu0 0.0
    %692 = vmatprep.subr.mxu0 0.0
    %693 = vmatpush2.msra.mxu0 0.0
    %694 = vmatprep.subr.mxu0 0.0
    %695 = vmatpush2.msra.mxu0 0.0
    %696 = vmatprep.subr.mxu0 0.0
    %697 = vmatpush2.msra.mxu0 0.0
    %698 = vmatprep.subr.mxu0 0.0
    %699 = vmatpush2.msra.mxu0 0.0
    %700 = vmatprep.subr.mxu0 0.0
    %701 = vmatpush2.msra.mxu0 0.0
    %702 = vmatprep.subr.mxu0 0.0
    %703 = vmatpush2.msra.mxu0 0.0
    %704 = vmatprep.subr.mxu0 0.0
    %705 = vmatpush2.msra.mxu0 0.0
    %706 = vmatprep.subr.mxu0 0.0
    %707 = vmatpush2.msra.mxu0 0.0
    %708 = vmatprep.subr.mxu0 0.0
    %709 = vmatpush2.msra.mxu0 0.0
    %710 = vmatprep.subr.mxu0 0.0
    %711 = vmatpush2.msra.mxu0 0.0
    %712 = vmatprep.subr.mxu0 0.0
    %713 = vmatpush2.msra.mxu0 0.0
    %714 = vmatprep.mubr.f32.mxu0 0.0
    %715 = vmatmul.mubr.f32.gmra.mxu0 %v438
    %v716 = vpop.f32.mrf.mxu0
    %v717 = vadd.f32 0.0, %v716
    %v718 = vpop.f32.mrf.mxu0
    %719 = vdwg.mxu0
    %728 = vrot.lane.b32.xlu0 %v224, 124
    %v729 = vpop.permute.xlu0 %728
    %730 = vrot.lane.b32.xlu0 %v294, 124
    %v731 = vpop.permute.xlu0 %730
    %732 = vrot.lane.b32.xlu0 %v364, 124
    %v733 = vpop.permute.xlu0 %732
    %734 = vrot.lane.b32.xlu0 %v434, 124
    %v735 = vpop.permute.xlu0 %734
    %736 = vrot.lane.b32.xlu0 %v507, 124
    %v737 = vpop.permute.xlu0 %736
    %738 = vrot.lane.b32.xlu0 %v577, 124
    %v739 = vpop.permute.xlu0 %738
    %740 = vrot.lane.b32.xlu0 %v647, 124
    %v741 = vpop.permute.xlu0 %740
    %742 = vrot.lane.b32.xlu0 %v717, 124
    %v743 = vpop.permute.xlu0 %742
    %752 = vrot.lane.b32.xlu0 %v224, 4
    %v753 = vpop.permute.xlu0 %752
    %754 = vrot.lane.b32.xlu0 %v294, 4
    %v755 = vpop.permute.xlu0 %754
    %756 = vrot.lane.b32.xlu0 %v364, 4
    %v757 = vpop.permute.xlu0 %756
    %758 = vrot.lane.b32.xlu0 %v434, 4
    %v759 = vpop.permute.xlu0 %758
    %760 = vrot.lane.b32.xlu0 %v507, 4
    %v761 = vpop.permute.xlu0 %760
    %762 = vrot.lane.b32.xlu0 %v577, 4
    %v763 = vpop.permute.xlu0 %762
    %764 = vrot.lane.b32.xlu0 %v647, 4
    %v765 = vpop.permute.xlu0 %764
    %766 = vrot.lane.b32.xlu0 %v717, 4
    %v767 = vpop.permute.xlu0 %766
    %vm776 = vcmask 31744
    %v777 = vsel %vm776, %v729, %v753
    %v778 = vsel %vm776, %v731, %v755
    %v779 = vsel %vm776, %v733, %v757
    %v780 = vsel %vm776, %v735, %v759
    %v781 = vsel %vm776, %v737, %v761
    %v782 = vsel %vm776, %v739, %v763
    %v783 = vsel %vm776, %v741, %v765
    %v784 = vsel %vm776, %v743, %v767
    %v785 = vmul.f32 %v224, %v93
    %v786 = vmul.f32 %v294, %v93
    %v787 = vmul.f32 %v364, %v93
    %v788 = vmul.f32 %v434, %v93
    %v789 = vmul.f32 %v507, %v93
    %v790 = vmul.f32 %v577, %v93
    %v791 = vmul.f32 %v647, %v93
    %v792 = vmul.f32 %v717, %v93
    %v793 = vmul.f32 %v777, %v95
    %v794 = vmul.f32 %v778, %v95
    %v795 = vmul.f32 %v779, %v95
    %v796 = vmul.f32 %v780, %v95
    %v797 = vmul.f32 %v781, %v95
    %v798 = vmul.f32 %v782, %v95
    %v799 = vmul.f32 %v783, %v95
    %v800 = vmul.f32 %v784, %v95
    %v801 = vadd.f32 %v785, %v793
    %v802 = vadd.f32 %v786, %v794
    %v803 = vadd.f32 %v787, %v795
    %v804 = vadd.f32 %v788, %v796
    %v805 = vadd.f32 %v789, %v797
    %v806 = vadd.f32 %v790, %v798
    %v807 = vadd.f32 %v791, %v799
    %v808 = vadd.f32 %v792, %v800
    %809 = vrot.lane.b32.xlu0 %v224, 116
    %v810 = vpop.permute.xlu0 %809
    %811 = vrot.lane.b32.xlu0 %v294, 116
    %v812 = vpop.permute.xlu0 %811
    %813 = vrot.lane.b32.xlu0 %v364, 116
    %v814 = vpop.permute.xlu0 %813
    %815 = vrot.lane.b32.xlu0 %v434, 116
    %v816 = vpop.permute.xlu0 %815
    %817 = vrot.lane.b32.xlu0 %v507, 116
    %v818 = vpop.permute.xlu0 %817
    %819 = vrot.lane.b32.xlu0 %v577, 116
    %v820 = vpop.permute.xlu0 %819
    %821 = vrot.lane.b32.xlu0 %v647, 116
    %v822 = vpop.permute.xlu0 %821
    %823 = vrot.lane.b32.xlu0 %v717, 116
    %v824 = vpop.permute.xlu0 %823
    %v833 = vsel %vm776, %v810, %v729
    %v834 = vsel %vm776, %v812, %v731
    %v835 = vsel %vm776, %v814, %v733
    %v836 = vsel %vm776, %v816, %v735
    %v837 = vsel %vm776, %v818, %v737
    %v838 = vsel %vm776, %v820, %v739
    %v839 = vsel %vm776, %v822, %v741
    %v840 = vsel %vm776, %v824, %v743
    %842 = vrot.lane.b32.xlu0 %v93, 8
    %v843 = vpop.permute.xlu0 %842
    %v845 = vmul.f32 %v224, %v843
    %v846 = vmul.f32 %v294, %v843
    %v847 = vmul.f32 %v364, %v843
    %v848 = vmul.f32 %v434, %v843
    %v849 = vmul.f32 %v507, %v843
    %v850 = vmul.f32 %v577, %v843
    %v851 = vmul.f32 %v647, %v843
    %v852 = vmul.f32 %v717, %v843
    %v853 = vmul.f32 %v833, %v95
    %v854 = vmul.f32 %v834, %v95
    %v855 = vmul.f32 %v835, %v95
    %v856 = vmul.f32 %v836, %v95
    %v857 = vmul.f32 %v837, %v95
    %v858 = vmul.f32 %v838, %v95
    %v859 = vmul.f32 %v839, %v95
    %v860 = vmul.f32 %v840, %v95
    %869 = vrot.lane.b32.xlu0 %v853, 8
    %v870 = vpop.permute.xlu0 %869
    %871 = vrot.lane.b32.xlu0 %v854, 8
    %v872 = vpop.permute.xlu0 %871
    %873 = vrot.lane.b32.xlu0 %v855, 8
    %v874 = vpop.permute.xlu0 %873
    %875 = vrot.lane.b32.xlu0 %v856, 8
    %v876 = vpop.permute.xlu0 %875
    %877 = vrot.lane.b32.xlu0 %v857, 8
    %v878 = vpop.permute.xlu0 %877
    %879 = vrot.lane.b32.xlu0 %v858, 8
    %v880 = vpop.permute.xlu0 %879
    %881 = vrot.lane.b32.xlu0 %v859, 8
    %v882 = vpop.permute.xlu0 %881
    %883 = vrot.lane.b32.xlu0 %v860, 8
    %v884 = vpop.permute.xlu0 %883
    %v893 = vadd.f32 %v845, %v870
    %v894 = vadd.f32 %v846, %v872
    %v895 = vadd.f32 %v847, %v874
    %v896 = vadd.f32 %v848, %v876
    %v897 = vadd.f32 %v849, %v878
    %v898 = vadd.f32 %v850, %v880
    %v899 = vadd.f32 %v851, %v882
    %v900 = vadd.f32 %v852, %v884
    %902 = vrot.lane.b32.xlu0 %v893, 120
    %v903 = vpop.permute.xlu0 %902
    %vm904 = vcmask 64512
    %v906 = vsel %vm904, %v801, 0
    %v908 = vsel %vm904, %v903, 0
    %910 = vmatprep.subr.mxu0 0.0
    %911 = vmatpush1.xpose.msra.mxu0 0.0
    %912 = vmatprep.subr.mxu0 0.0
    %913 = vmatpush1.xpose.msra.mxu0 0.0
    %914 = vmatprep.subr.mxu0 0.0
    %915 = vmatpush1.xpose.msra.mxu0 0.0
    %916 = vmatprep.subr.mxu0 0.0
    %917 = vmatpush1.xpose.msra.mxu0 0.0
    %918 = vmatprep.subr.mxu0 0.0
    %919 = vmatpush1.xpose.msra.mxu0 0.0
    %920 = vmatprep.subr.mxu0 0.0
    %921 = vmatpush1.xpose.msra.mxu0 0.0
    %922 = vmatprep.subr.mxu0 0.0
    %923 = vmatpush1.xpose.msra.mxu0 0.0
    %924 = vmatprep.subr.mxu0 0.0
    %925 = vmatpush1.xpose.msra.mxu0 0.0
    %926 = vmatprep.subr.mxu0 0.0
    %927 = vmatpush1.xpose.msra.mxu0 0.0
    %928 = vmatprep.subr.mxu0 0.0
    %929 = vmatpush1.xpose.msra.mxu0 0.0
    %930 = vmatprep.subr.mxu0 0.0
    %931 = vmatpush1.xpose.msra.mxu0 0.0
    %932 = vmatprep.subr.mxu0 0.0
    %933 = vmatpush1.xpose.msra.mxu0 0.0
    %934 = vmatprep.subr.mxu0 0.0
    %935 = vmatpush1.xpose.msra.mxu0 0.0
    %936 = vmatprep.subr.mxu0 0.0
    %937 = vmatpush1.xpose.msra.mxu0 0.0
    %938 = vmatprep.subr.mxu0 0.0
    %939 = vmatpush1.xpose.msra.mxu0 0.0
    %940 = vmatprep.subr.mxu0 0.0
    %941 = vmatpush1.xpose.msra.mxu0 %v908
    %942 = vmatprep.subr.mxu0 0.0
    %943 = vmatpush2.xpose.msra.mxu0 0.0
    %944 = vmatprep.subr.mxu0 0.0
    %945 = vmatpush2.xpose.msra.mxu0 0.0
    %946 = vmatprep.subr.mxu0 0.0
    %947 = vmatpush2.xpose.msra.mxu0 0.0
    %948 = vmatprep.subr.mxu0 0.0
    %949 = vmatpush2.xpose.msra.mxu0 0.0
    %950 = vmatprep.subr.mxu0 0.0
    %951 = vmatpush2.xpose.msra.mxu0 0.0
    %952 = vmatprep.subr.mxu0 0.0
    %953 = vmatpush2.xpose.msra.mxu0 0.0
    %954 = vmatprep.subr.mxu0 0.0
    %955 = vmatpush2.xpose.msra.mxu0 0.0
    %956 = vmatprep.subr.mxu0 0.0
    %957 = vmatpush2.xpose.msra.mxu0 0.0
    %958 = vmatprep.subr.mxu0 0.0
    %959 = vmatpush2.xpose.msra.mxu0 0.0
    %960 = vmatprep.subr.mxu0 0.0
    %961 = vmatpush2.xpose.msra.mxu0 0.0
    %962 = vmatprep.subr.mxu0 0.0
    %963 = vmatpush2.xpose.msra.mxu0 0.0
    %964 = vmatprep.subr.mxu0 0.0
    %965 = vmatpush2.xpose.msra.mxu0 0.0
    %966 = vmatprep.subr.mxu0 0.0
    %967 = vmatpush2.xpose.msra.mxu0 0.0
    %968 = vmatprep.subr.mxu0 0.0
    %969 = vmatpush2.xpose.msra.mxu0 0.0
    %970 = vmatprep.subr.mxu0 0.0
    %971 = vmatpush2.xpose.msra.mxu0 0.0
    %972 = vmatprep.subr.mxu0 0.0
    %973 = vmatpush2.xpose.msra.mxu0 0.0
    %974 = vmatprep.mubr.f32.mxu0 0.0
    %975 = vmatmul.mubr.f32.gmra.mxu0 %v906
    %v976 = vpop.f32.mrf.mxu0
    %v977 = vadd.f32 %v96, %v976
    %v978 = vpop.f32.mrf.mxu0
    %979 = vdwg.mxu0
    %981 = vrot.lane.b32.xlu0 %v894, 120
    %v982 = vpop.permute.xlu0 %981
    %v984 = vsel %vm904, %v802, 0
    %v986 = vsel %vm904, %v982, 0
    %988 = vmatprep.subr.mxu0 0.0
    %989 = vmatpush1.xpose.msra.mxu0 0.0
    %990 = vmatprep.subr.mxu0 0.0
    %991 = vmatpush1.xpose.msra.mxu0 0.0
    %992 = vmatprep.subr.mxu0 0.0
    %993 = vmatpush1.xpose.msra.mxu0 0.0
    %994 = vmatprep.subr.mxu0 0.0
    %995 = vmatpush1.xpose.msra.mxu0 0.0
    %996 = vmatprep.subr.mxu0 0.0
    %997 = vmatpush1.xpose.msra.mxu0 0.0
    %998 = vmatprep.subr.mxu0 0.0
    %999 = vmatpush1.xpose.msra.mxu0 0.0
    %1000 = vmatprep.subr.mxu0 0.0
    %1001 = vmatpush1.xpose.msra.mxu0 0.0
    %1002 = vmatprep.subr.mxu0 0.0
    %1003 = vmatpush1.xpose.msra.mxu0 0.0
    %1004 = vmatprep.subr.mxu0 0.0
    %1005 = vmatpush1.xpose.msra.mxu0 0.0
    %1006 = vmatprep.subr.mxu0 0.0
    %1007 = vmatpush1.xpose.msra.mxu0 0.0
    %1008 = vmatprep.subr.mxu0 0.0
    %1009 = vmatpush1.xpose.msra.mxu0 0.0
    %1010 = vmatprep.subr.mxu0 0.0
    %1011 = vmatpush1.xpose.msra.mxu0 0.0
    %1012 = vmatprep.subr.mxu0 0.0
    %1013 = vmatpush1.xpose.msra.mxu0 0.0
    %1014 = vmatprep.subr.mxu0 0.0
    %1015 = vmatpush1.xpose.msra.mxu0 0.0
    %1016 = vmatprep.subr.mxu0 0.0
    %1017 = vmatpush1.xpose.msra.mxu0 0.0
    %1018 = vmatprep.subr.mxu0 0.0
    %1019 = vmatpush1.xpose.msra.mxu0 %v986
    %1020 = vmatprep.subr.mxu0 0.0
    %1021 = vmatpush2.xpose.msra.mxu0 0.0
    %1022 = vmatprep.subr.mxu0 0.0
    %1023 = vmatpush2.xpose.msra.mxu0 0.0
    %1024 = vmatprep.subr.mxu0 0.0
    %1025 = vmatpush2.xpose.msra.mxu0 0.0
    %1026 = vmatprep.subr.mxu0 0.0
    %1027 = vmatpush2.xpose.msra.mxu0 0.0
    %1028 = vmatprep.subr.mxu0 0.0
    %1029 = vmatpush2.xpose.msra.mxu0 0.0
    %1030 = vmatprep.subr.mxu0 0.0
    %1031 = vmatpush2.xpose.msra.mxu0 0.0
    %1032 = vmatprep.subr.mxu0 0.0
    %1033 = vmatpush2.xpose.msra.mxu0 0.0
    %1034 = vmatprep.subr.mxu0 0.0
    %1035 = vmatpush2.xpose.msra.mxu0 0.0
    %1036 = vmatprep.subr.mxu0 0.0
    %1037 = vmatpush2.xpose.msra.mxu0 0.0
    %1038 = vmatprep.subr.mxu0 0.0
    %1039 = vmatpush2.xpose.msra.mxu0 0.0
    %1040 = vmatprep.subr.mxu0 0.0
    %1041 = vmatpush2.xpose.msra.mxu0 0.0
    %1042 = vmatprep.subr.mxu0 0.0
    %1043 = vmatpush2.xpose.msra.mxu0 0.0
    %1044 = vmatprep.subr.mxu0 0.0
    %1045 = vmatpush2.xpose.msra.mxu0 0.0
    %1046 = vmatprep.subr.mxu0 0.0
    %1047 = vmatpush2.xpose.msra.mxu0 0.0
    %1048 = vmatprep.subr.mxu0 0.0
    %1049 = vmatpush2.xpose.msra.mxu0 0.0
    %1050 = vmatprep.subr.mxu0 0.0
    %1051 = vmatpush2.xpose.msra.mxu0 0.0
    %1052 = vmatprep.mubr.f32.mxu0 0.0
    %1053 = vmatmul.mubr.f32.gmra.mxu0 %v984
    %v1054 = vpop.f32.mrf.mxu0
    %v1055 = vadd.f32 %v96, %v1054
    %v1056 = vpop.f32.mrf.mxu0
    %1057 = vdwg.mxu0
    %1059 = vrot.lane.b32.xlu0 %v895, 120
    %v1060 = vpop.permute.xlu0 %1059
    %v1062 = vsel %vm904, %v803, 0
    %v1064 = vsel %vm904, %v1060, 0
    %1066 = vmatprep.subr.mxu0 0.0
    %1067 = vmatpush1.xpose.msra.mxu0 0.0
    %1068 = vmatprep.subr.mxu0 0.0
    %1069 = vmatpush1.xpose.msra.mxu0 0.0
    %1070 = vmatprep.subr.mxu0 0.0
    %1071 = vmatpush1.xpose.msra.mxu0 0.0
    %1072 = vmatprep.subr.mxu0 0.0
    %1073 = vmatpush1.xpose.msra.mxu0 0.0
    %1074 = vmatprep.subr.mxu0 0.0
    %1075 = vmatpush1.xpose.msra.mxu0 0.0
    %1076 = vmatprep.subr.mxu0 0.0
    %1077 = vmatpush1.xpose.msra.mxu0 0.0
    %1078 = vmatprep.subr.mxu0 0.0
    %1079 = vmatpush1.xpose.msra.mxu0 0.0
    %1080 = vmatprep.subr.mxu0 0.0
    %1081 = vmatpush1.xpose.msra.mxu0 0.0
    %1082 = vmatprep.subr.mxu0 0.0
    %1083 = vmatpush1.xpose.msra.mxu0 0.0
    %1084 = vmatprep.subr.mxu0 0.0
    %1085 = vmatpush1.xpose.msra.mxu0 0.0
    %1086 = vmatprep.subr.mxu0 0.0
    %1087 = vmatpush1.xpose.msra.mxu0 0.0
    %1088 = vmatprep.subr.mxu0 0.0
    %1089 = vmatpush1.xpose.msra.mxu0 0.0
    %1090 = vmatprep.subr.mxu0 0.0
    %1091 = vmatpush1.xpose.msra.mxu0 0.0
    %1092 = vmatprep.subr.mxu0 0.0
    %1093 = vmatpush1.xpose.msra.mxu0 0.0
    %1094 = vmatprep.subr.mxu0 0.0
    %1095 = vmatpush1.xpose.msra.mxu0 0.0
    %1096 = vmatprep.subr.mxu0 0.0
    %1097 = vmatpush1.xpose.msra.mxu0 %v1064
    %1098 = vmatprep.subr.mxu0 0.0
    %1099 = vmatpush2.xpose.msra.mxu0 0.0
    %1100 = vmatprep.subr.mxu0 0.0
    %1101 = vmatpush2.xpose.msra.mxu0 0.0
    %1102 = vmatprep.subr.mxu0 0.0
    %1103 = vmatpush2.xpose.msra.mxu0 0.0
    %1104 = vmatprep.subr.mxu0 0.0
    %1105 = vmatpush2.xpose.msra.mxu0 0.0
    %1106 = vmatprep.subr.mxu0 0.0
    %1107 = vmatpush2.xpose.msra.mxu0 0.0
    %1108 = vmatprep.subr.mxu0 0.0
    %1109 = vmatpush2.xpose.msra.mxu0 0.0
    %1110 = vmatprep.subr.mxu0 0.0
    %1111 = vmatpush2.xpose.msra.mxu0 0.0
    %1112 = vmatprep.subr.mxu0 0.0
    %1113 = vmatpush2.xpose.msra.mxu0 0.0
    %1114 = vmatprep.subr.mxu0 0.0
    %1115 = vmatpush2.xpose.msra.mxu0 0.0
    %1116 = vmatprep.subr.mxu0 0.0
    %1117 = vmatpush2.xpose.msra.mxu0 0.0
    %1118 = vmatprep.subr.mxu0 0.0
    %1119 = vmatpush2.xpose.msra.mxu0 0.0
    %1120 = vmatprep.subr.mxu0 0.0
    %1121 = vmatpush2.xpose.msra.mxu0 0.0
    %1122 = vmatprep.subr.mxu0 0.0
    %1123 = vmatpush2.xpose.msra.mxu0 0.0
    %1124 = vmatprep.subr.mxu0 0.0
    %1125 = vmatpush2.xpose.msra.mxu0 0.0
    %1126 = vmatprep.subr.mxu0 0.0
    %1127 = vmatpush2.xpose.msra.mxu0 0.0
    %1128 = vmatprep.subr.mxu0 0.0
    %1129 = vmatpush2.xpose.msra.mxu0 0.0
    %1130 = vmatprep.mubr.f32.mxu0 0.0
    %1131 = vmatmul.mubr.f32.gmra.mxu0 %v1062
    %v1132 = vpop.f32.mrf.mxu0
    %v1133 = vadd.f32 %v96, %v1132
    %v1134 = vpop.f32.mrf.mxu0
    %1135 = vdwg.mxu0
    %1137 = vrot.lane.b32.xlu0 %v896, 120
    %v1138 = vpop.permute.xlu0 %1137
    %v1140 = vsel %vm904, %v804, 0
    %v1142 = vsel %vm904, %v1138, 0
    %1144 = vmatprep.subr.mxu0 0.0
    %1145 = vmatpush1.xpose.msra.mxu0 0.0
    %1146 = vmatprep.subr.mxu0 0.0
    %1147 = vmatpush1.xpose.msra.mxu0 0.0
    %1148 = vmatprep.subr.mxu0 0.0
    %1149 = vmatpush1.xpose.msra.mxu0 0.0
    %1150 = vmatprep.subr.mxu0 0.0
    %1151 = vmatpush1.xpose.msra.mxu0 0.0
    %1152 = vmatprep.subr.mxu0 0.0
    %1153 = vmatpush1.xpose.msra.mxu0 0.0
    %1154 = vmatprep.subr.mxu0 0.0
    %1155 = vmatpush1.xpose.msra.mxu0 0.0
    %1156 = vmatprep.subr.mxu0 0.0
    %1157 = vmatpush1.xpose.msra.mxu0 0.0
    %1158 = vmatprep.subr.mxu0 0.0
    %1159 = vmatpush1.xpose.msra.mxu0 0.0
    %1160 = vmatprep.subr.mxu0 0.0
    %1161 = vmatpush1.xpose.msra.mxu0 0.0
    %1162 = vmatprep.subr.mxu0 0.0
    %1163 = vmatpush1.xpose.msra.mxu0 0.0
    %1164 = vmatprep.subr.mxu0 0.0
    %1165 = vmatpush1.xpose.msra.mxu0 0.0
    %1166 = vmatprep.subr.mxu0 0.0
    %1167 = vmatpush1.xpose.msra.mxu0 0.0
    %1168 = vmatprep.subr.mxu0 0.0
    %1169 = vmatpush1.xpose.msra.mxu0 0.0
    %1170 = vmatprep.subr.mxu0 0.0
    %1171 = vmatpush1.xpose.msra.mxu0 0.0
    %1172 = vmatprep.subr.mxu0 0.0
    %1173 = vmatpush1.xpose.msra.mxu0 0.0
    %1174 = vmatprep.subr.mxu0 0.0
    %1175 = vmatpush1.xpose.msra.mxu0 %v1142
    %1176 = vmatprep.subr.mxu0 0.0
    %1177 = vmatpush2.xpose.msra.mxu0 0.0
    %1178 = vmatprep.subr.mxu0 0.0
    %1179 = vmatpush2.xpose.msra.mxu0 0.0
    %1180 = vmatprep.subr.mxu0 0.0
    %1181 = vmatpush2.xpose.msra.mxu0 0.0
    %1182 = vmatprep.subr.mxu0 0.0
    %1183 = vmatpush2.xpose.msra.mxu0 0.0
    %1184 = vmatprep.subr.mxu0 0.0
    %1185 = vmatpush2.xpose.msra.mxu0 0.0
    %1186 = vmatprep.subr.mxu0 0.0
    %1187 = vmatpush2.xpose.msra.mxu0 0.0
    %1188 = vmatprep.subr.mxu0 0.0
    %1189 = vmatpush2.xpose.msra.mxu0 0.0
    %1190 = vmatprep.subr.mxu0 0.0
    %1191 = vmatpush2.xpose.msra.mxu0 0.0
    %1192 = vmatprep.subr.mxu0 0.0
    %1193 = vmatpush2.xpose.msra.mxu0 0.0
    %1194 = vmatprep.subr.mxu0 0.0
    %1195 = vmatpush2.xpose.msra.mxu0 0.0
    %1196 = vmatprep.subr.mxu0 0.0
    %1197 = vmatpush2.xpose.msra.mxu0 0.0
    %1198 = vmatprep.subr.mxu0 0.0
    %1199 = vmatpush2.xpose.msra.mxu0 0.0
    %1200 = vmatprep.subr.mxu0 0.0
    %1201 = vmatpush2.xpose.msra.mxu0 0.0
    %1202 = vmatprep.subr.mxu0 0.0
    %1203 = vmatpush2.xpose.msra.mxu0 0.0
    %1204 = vmatprep.subr.mxu0 0.0
    %1205 = vmatpush2.xpose.msra.mxu0 0.0
    %1206 = vmatprep.subr.mxu0 0.0
    %1207 = vmatpush2.xpose.msra.mxu0 0.0
    %1208 = vmatprep.mubr.f32.mxu0 0.0
    %1209 = vmatmul.mubr.f32.gmra.mxu0 %v1140
    %v1210 = vpop.f32.mrf.mxu0
    %v1211 = vadd.f32 %v96, %v1210
    %v1212 = vpop.f32.mrf.mxu0
    %1213 = vdwg.mxu0
    %1215 = vrot.lane.b32.xlu0 %v897, 120
    %v1216 = vpop.permute.xlu0 %1215
    %v1218 = vsel %vm904, %v805, 0
    %v1220 = vsel %vm904, %v1216, 0
    %1222 = vmatprep.subr.mxu0 0.0
    %1223 = vmatpush1.xpose.msra.mxu0 0.0
    %1224 = vmatprep.subr.mxu0 0.0
    %1225 = vmatpush1.xpose.msra.mxu0 0.0
    %1226 = vmatprep.subr.mxu0 0.0
    %1227 = vmatpush1.xpose.msra.mxu0 0.0
    %1228 = vmatprep.subr.mxu0 0.0
    %1229 = vmatpush1.xpose.msra.mxu0 0.0
    %1230 = vmatprep.subr.mxu0 0.0
    %1231 = vmatpush1.xpose.msra.mxu0 0.0
    %1232 = vmatprep.subr.mxu0 0.0
    %1233 = vmatpush1.xpose.msra.mxu0 0.0
    %1234 = vmatprep.subr.mxu0 0.0
    %1235 = vmatpush1.xpose.msra.mxu0 0.0
    %1236 = vmatprep.subr.mxu0 0.0
    %1237 = vmatpush1.xpose.msra.mxu0 0.0
    %1238 = vmatprep.subr.mxu0 0.0
    %1239 = vmatpush1.xpose.msra.mxu0 0.0
    %1240 = vmatprep.subr.mxu0 0.0
    %1241 = vmatpush1.xpose.msra.mxu0 0.0
    %1242 = vmatprep.subr.mxu0 0.0
    %1243 = vmatpush1.xpose.msra.mxu0 0.0
    %1244 = vmatprep.subr.mxu0 0.0
    %1245 = vmatpush1.xpose.msra.mxu0 0.0
    %1246 = vmatprep.subr.mxu0 0.0
    %1247 = vmatpush1.xpose.msra.mxu0 0.0
    %1248 = vmatprep.subr.mxu0 0.0
    %1249 = vmatpush1.xpose.msra.mxu0 0.0
    %1250 = vmatprep.subr.mxu0 0.0
    %1251 = vmatpush1.xpose.msra.mxu0 0.0
    %1252 = vmatprep.subr.mxu0 0.0
    %1253 = vmatpush1.xpose.msra.mxu0 %v1220
    %1254 = vmatprep.subr.mxu0 0.0
    %1255 = vmatpush2.xpose.msra.mxu0 0.0
    %1256 = vmatprep.subr.mxu0 0.0
    %1257 = vmatpush2.xpose.msra.mxu0 0.0
    %1258 = vmatprep.subr.mxu0 0.0
    %1259 = vmatpush2.xpose.msra.mxu0 0.0
    %1260 = vmatprep.subr.mxu0 0.0
    %1261 = vmatpush2.xpose.msra.mxu0 0.0
    %1262 = vmatprep.subr.mxu0 0.0
    %1263 = vmatpush2.xpose.msra.mxu0 0.0
    %1264 = vmatprep.subr.mxu0 0.0
    %1265 = vmatpush2.xpose.msra.mxu0 0.0
    %1266 = vmatprep.subr.mxu0 0.0
    %1267 = vmatpush2.xpose.msra.mxu0 0.0
    %1268 = vmatprep.subr.mxu0 0.0
    %1269 = vmatpush2.xpose.msra.mxu0 0.0
    %1270 = vmatprep.subr.mxu0 0.0
    %1271 = vmatpush2.xpose.msra.mxu0 0.0
    %1272 = vmatprep.subr.mxu0 0.0
    %1273 = vmatpush2.xpose.msra.mxu0 0.0
    %1274 = vmatprep.subr.mxu0 0.0
    %1275 = vmatpush2.xpose.msra.mxu0 0.0
    %1276 = vmatprep.subr.mxu0 0.0
    %1277 = vmatpush2.xpose.msra.mxu0 0.0
    %1278 = vmatprep.subr.mxu0 0.0
    %1279 = vmatpush2.xpose.msra.mxu0 0.0
    %1280 = vmatprep.subr.mxu0 0.0
    %1281 = vmatpush2.xpose.msra.mxu0 0.0
    %1282 = vmatprep.subr.mxu0 0.0
    %1283 = vmatpush2.xpose.msra.mxu0 0.0
    %1284 = vmatprep.subr.mxu0 0.0
    %1285 = vmatpush2.xpose.msra.mxu0 0.0
    %1286 = vmatprep.mubr.f32.mxu0 0.0
    %1287 = vmatmul.mubr.f32.gmra.mxu0 %v1218
    %v1288 = vpop.f32.mrf.mxu0
    %v1289 = vadd.f32 %v96, %v1288
    %v1290 = vpop.f32.mrf.mxu0
    %1291 = vdwg.mxu0
    %1293 = vrot.lane.b32.xlu0 %v898, 120
    %v1294 = vpop.permute.xlu0 %1293
    %v1296 = vsel %vm904, %v806, 0
    %v1298 = vsel %vm904, %v1294, 0
    %1300 = vmatprep.subr.mxu0 0.0
    %1301 = vmatpush1.xpose.msra.mxu0 0.0
    %1302 = vmatprep.subr.mxu0 0.0
    %1303 = vmatpush1.xpose.msra.mxu0 0.0
    %1304 = vmatprep.subr.mxu0 0.0
    %1305 = vmatpush1.xpose.msra.mxu0 0.0
    %1306 = vmatprep.subr.mxu0 0.0
    %1307 = vmatpush1.xpose.msra.mxu0 0.0
    %1308 = vmatprep.subr.mxu0 0.0
    %1309 = vmatpush1.xpose.msra.mxu0 0.0
    %1310 = vmatprep.subr.mxu0 0.0
    %1311 = vmatpush1.xpose.msra.mxu0 0.0
    %1312 = vmatprep.subr.mxu0 0.0
    %1313 = vmatpush1.xpose.msra.mxu0 0.0
    %1314 = vmatprep.subr.mxu0 0.0
    %1315 = vmatpush1.xpose.msra.mxu0 0.0
    %1316 = vmatprep.subr.mxu0 0.0
    %1317 = vmatpush1.xpose.msra.mxu0 0.0
    %1318 = vmatprep.subr.mxu0 0.0
    %1319 = vmatpush1.xpose.msra.mxu0 0.0
    %1320 = vmatprep.subr.mxu0 0.0
    %1321 = vmatpush1.xpose.msra.mxu0 0.0
    %1322 = vmatprep.subr.mxu0 0.0
    %1323 = vmatpush1.xpose.msra.mxu0 0.0
    %1324 = vmatprep.subr.mxu0 0.0
    %1325 = vmatpush1.xpose.msra.mxu0 0.0
    %1326 = vmatprep.subr.mxu0 0.0
    %1327 = vmatpush1.xpose.msra.mxu0 0.0
    %1328 = vmatprep.subr.mxu0 0.0
    %1329 = vmatpush1.xpose.msra.mxu0 0.0
    %1330 = vmatprep.subr.mxu0 0.0
    %1331 = vmatpush1.xpose.msra.mxu0 %v1298
    %1332 = vmatprep.subr.mxu0 0.0
    %1333 = vmatpush2.xpose.msra.mxu0 0.0
    %1334 = vmatprep.subr.mxu0 0.0
    %1335 = vmatpush2.xpose.msra.mxu0 0.0
    %1336 = vmatprep.subr.mxu0 0.0
    %1337 = vmatpush2.xpose.msra.mxu0 0.0
    %1338 = vmatprep.subr.mxu0 0.0
    %1339 = vmatpush2.xpose.msra.mxu0 0.0
    %1340 = vmatprep.subr.mxu0 0.0
    %1341 = vmatpush2.xpose.msra.mxu0 0.0
    %1342 = vmatprep.subr.mxu0 0.0
    %1343 = vmatpush2.xpose.msra.mxu0 0.0
    %1344 = vmatprep.subr.mxu0 0.0
    %1345 = vmatpush2.xpose.msra.mxu0 0.0
    %1346 = vmatprep.subr.mxu0 0.0
    %1347 = vmatpush2.xpose.msra.mxu0 0.0
    %1348 = vmatprep.subr.mxu0 0.0
    %1349 = vmatpush2.xpose.msra.mxu0 0.0
    %1350 = vmatprep.subr.mxu0 0.0
    %1351 = vmatpush2.xpose.msra.mxu0 0.0
    %1352 = vmatprep.subr.mxu0 0.0
    %1353 = vmatpush2.xpose.msra.mxu0 0.0
    %1354 = vmatprep.subr.mxu0 0.0
    %1355 = vmatpush2.xpose.msra.mxu0 0.0
    %1356 = vmatprep.subr.mxu0 0.0
    %1357 = vmatpush2.xpose.msra.mxu0 0.0
    %1358 = vmatprep.subr.mxu0 0.0
    %1359 = vmatpush2.xpose.msra.mxu0 0.0
    %1360 = vmatprep.subr.mxu0 0.0
    %1361 = vmatpush2.xpose.msra.mxu0 0.0
    %1362 = vmatprep.subr.mxu0 0.0
    %1363 = vmatpush2.xpose.msra.mxu0 0.0
    %1364 = vmatprep.mubr.f32.mxu0 0.0
    %1365 = vmatmul.mubr.f32.gmra.mxu0 %v1296
    %v1366 = vpop.f32.mrf.mxu0
    %v1367 = vadd.f32 %v96, %v1366
    %v1368 = vpop.f32.mrf.mxu0
    %1369 = vdwg.mxu0
    %1371 = vrot.lane.b32.xlu0 %v899, 120
    %v1372 = vpop.permute.xlu0 %1371
    %v1374 = vsel %vm904, %v807, 0
    %v1376 = vsel %vm904, %v1372, 0
    %1378 = vmatprep.subr.mxu0 0.0
    %1379 = vmatpush1.xpose.msra.mxu0 0.0
    %1380 = vmatprep.subr.mxu0 0.0
    %1381 = vmatpush1.xpose.msra.mxu0 0.0
    %1382 = vmatprep.subr.mxu0 0.0
    %1383 = vmatpush1.xpose.msra.mxu0 0.0
    %1384 = vmatprep.subr.mxu0 0.0
    %1385 = vmatpush1.xpose.msra.mxu0 0.0
    %1386 = vmatprep.subr.mxu0 0.0
    %1387 = vmatpush1.xpose.msra.mxu0 0.0
    %1388 = vmatprep.subr.mxu0 0.0
    %1389 = vmatpush1.xpose.msra.mxu0 0.0
    %1390 = vmatprep.subr.mxu0 0.0
    %1391 = vmatpush1.xpose.msra.mxu0 0.0
    %1392 = vmatprep.subr.mxu0 0.0
    %1393 = vmatpush1.xpose.msra.mxu0 0.0
    %1394 = vmatprep.subr.mxu0 0.0
    %1395 = vmatpush1.xpose.msra.mxu0 0.0
    %1396 = vmatprep.subr.mxu0 0.0
    %1397 = vmatpush1.xpose.msra.mxu0 0.0
    %1398 = vmatprep.subr.mxu0 0.0
    %1399 = vmatpush1.xpose.msra.mxu0 0.0
    %1400 = vmatprep.subr.mxu0 0.0
    %1401 = vmatpush1.xpose.msra.mxu0 0.0
    %1402 = vmatprep.subr.mxu0 0.0
    %1403 = vmatpush1.xpose.msra.mxu0 0.0
    %1404 = vmatprep.subr.mxu0 0.0
    %1405 = vmatpush1.xpose.msra.mxu0 0.0
    %1406 = vmatprep.subr.mxu0 0.0
    %1407 = vmatpush1.xpose.msra.mxu0 0.0
    %1408 = vmatprep.subr.mxu0 0.0
    %1409 = vmatpush1.xpose.msra.mxu0 %v1376
    %1410 = vmatprep.subr.mxu0 0.0
    %1411 = vmatpush2.xpose.msra.mxu0 0.0
    %1412 = vmatprep.subr.mxu0 0.0
    %1413 = vmatpush2.xpose.msra.mxu0 0.0
    %1414 = vmatprep.subr.mxu0 0.0
    %1415 = vmatpush2.xpose.msra.mxu0 0.0
    %1416 = vmatprep.subr.mxu0 0.0
    %1417 = vmatpush2.xpose.msra.mxu0 0.0
    %1418 = vmatprep.subr.mxu0 0.0
    %1419 = vmatpush2.xpose.msra.mxu0 0.0
    %1420 = vmatprep.subr.mxu0 0.0
    %1421 = vmatpush2.xpose.msra.mxu0 0.0
    %1422 = vmatprep.subr.mxu0 0.0
    %1423 = vmatpush2.xpose.msra.mxu0 0.0
    %1424 = vmatprep.subr.mxu0 0.0
    %1425 = vmatpush2.xpose.msra.mxu0 0.0
    %1426 = vmatprep.subr.mxu0 0.0
    %1427 = vmatpush2.xpose.msra.mxu0 0.0
    %1428 = vmatprep.subr.mxu0 0.0
    %1429 = vmatpush2.xpose.msra.mxu0 0.0
    %1430 = vmatprep.subr.mxu0 0.0
    %1431 = vmatpush2.xpose.msra.mxu0 0.0
    %1432 = vmatprep.subr.mxu0 0.0
    %1433 = vmatpush2.xpose.msra.mxu0 0.0
    %1434 = vmatprep.subr.mxu0 0.0
    %1435 = vmatpush2.xpose.msra.mxu0 0.0
    %1436 = vmatprep.subr.mxu0 0.0
    %1437 = vmatpush2.xpose.msra.mxu0 0.0
    %1438 = vmatprep.subr.mxu0 0.0
    %1439 = vmatpush2.xpose.msra.mxu0 0.0
    %1440 = vmatprep.subr.mxu0 0.0
    %1441 = vmatpush2.xpose.msra.mxu0 0.0
    %1442 = vmatprep.mubr.f32.mxu0 0.0
    %1443 = vmatmul.mubr.f32.gmra.mxu0 %v1374
    %v1444 = vpop.f32.mrf.mxu0
    %v1445 = vadd.f32 %v96, %v1444
    %v1446 = vpop.f32.mrf.mxu0
    %1447 = vdwg.mxu0
    %1449 = vrot.lane.b32.xlu0 %v900, 120
    %v1450 = vpop.permute.xlu0 %1449
    %v1452 = vsel %vm904, %v808, 0
    %v1454 = vsel %vm904, %v1450, 0
    %1456 = vmatprep.subr.mxu0 0.0
    %1457 = vmatpush1.xpose.msra.mxu0 0.0
    %1458 = vmatprep.subr.mxu0 0.0
    %1459 = vmatpush1.xpose.msra.mxu0 0.0
    %1460 = vmatprep.subr.mxu0 0.0
    %1461 = vmatpush1.xpose.msra.mxu0 0.0
    %1462 = vmatprep.subr.mxu0 0.0
    %1463 = vmatpush1.xpose.msra.mxu0 0.0
    %1464 = vmatprep.subr.mxu0 0.0
    %1465 = vmatpush1.xpose.msra.mxu0 0.0
    %1466 = vmatprep.subr.mxu0 0.0
    %1467 = vmatpush1.xpose.msra.mxu0 0.0
    %1468 = vmatprep.subr.mxu0 0.0
    %1469 = vmatpush1.xpose.msra.mxu0 0.0
    %1470 = vmatprep.subr.mxu0 0.0
    %1471 = vmatpush1.xpose.msra.mxu0 0.0
    %1472 = vmatprep.subr.mxu0 0.0
    %1473 = vmatpush1.xpose.msra.mxu0 0.0
    %1474 = vmatprep.subr.mxu0 0.0
    %1475 = vmatpush1.xpose.msra.mxu0 0.0
    %1476 = vmatprep.subr.mxu0 0.0
    %1477 = vmatpush1.xpose.msra.mxu0 0.0
    %1478 = vmatprep.subr.mxu0 0.0
    %1479 = vmatpush1.xpose.msra.mxu0 0.0
    %1480 = vmatprep.subr.mxu0 0.0
    %1481 = vmatpush1.xpose.msra.mxu0 0.0
    %1482 = vmatprep.subr.mxu0 0.0
    %1483 = vmatpush1.xpose.msra.mxu0 0.0
    %1484 = vmatprep.subr.mxu0 0.0
    %1485 = vmatpush1.xpose.msra.mxu0 0.0
    %1486 = vmatprep.subr.mxu0 0.0
    %1487 = vmatpush1.xpose.msra.mxu0 %v1454
    %1488 = vmatprep.subr.mxu0 0.0
    %1489 = vmatpush2.xpose.msra.mxu0 0.0
    %1490 = vmatprep.subr.mxu0 0.0
    %1491 = vmatpush2.xpose.msra.mxu0 0.0
    %1492 = vmatprep.subr.mxu0 0.0
    %1493 = vmatpush2.xpose.msra.mxu0 0.0
    %1494 = vmatprep.subr.mxu0 0.0
    %1495 = vmatpush2.xpose.msra.mxu0 0.0
    %1496 = vmatprep.subr.mxu0 0.0
    %1497 = vmatpush2.xpose.msra.mxu0 0.0
    %1498 = vmatprep.subr.mxu0 0.0
    %1499 = vmatpush2.xpose.msra.mxu0 0.0
    %1500 = vmatprep.subr.mxu0 0.0
    %1501 = vmatpush2.xpose.msra.mxu0 0.0
    %1502 = vmatprep.subr.mxu0 0.0
    %1503 = vmatpush2.xpose.msra.mxu0 0.0
    %1504 = vmatprep.subr.mxu0 0.0
    %1505 = vmatpush2.xpose.msra.mxu0 0.0
    %1506 = vmatprep.subr.mxu0 0.0
    %1507 = vmatpush2.xpose.msra.mxu0 0.0
    %1508 = vmatprep.subr.mxu0 0.0
    %1509 = vmatpush2.xpose.msra.mxu0 0.0
    %1510 = vmatprep.subr.mxu0 0.0
    %1511 = vmatpush2.xpose.msra.mxu0 0.0
    %1512 = vmatprep.subr.mxu0 0.0
    %1513 = vmatpush2.xpose.msra.mxu0 0.0
    %1514 = vmatprep.subr.mxu0 0.0
    %1515 = vmatpush2.xpose.msra.mxu0 0.0
    %1516 = vmatprep.subr.mxu0 0.0
    %1517 = vmatpush2.xpose.msra.mxu0 0.0
    %1518 = vmatprep.subr.mxu0 0.0
    %1519 = vmatpush2.xpose.msra.mxu0 0.0
    %1520 = vmatprep.mubr.f32.mxu0 0.0
    %1521 = vmatmul.mubr.f32.gmra.mxu0 %v1452
    %v1522 = vpop.f32.mrf.mxu0
    %v1523 = vadd.f32 %v96, %v1522
    %v1524 = vpop.f32.mrf.mxu0
    %1525 = vdwg.mxu0
    %v1526 = vsel %vm904, %v977, -inf
    %1527 = vmax.xlane.f32.xlu0 %v1526
    %v1528 = vpop.xlane.xlu0 %1527
    %v1529 = vsel %vm904, %v1055, -inf
    %1530 = vmax.xlane.f32.xlu0 %v1529
    %v1531 = vpop.xlane.xlu0 %1530
    %v1532 = vsel %vm904, %v1133, -inf
    %1533 = vmax.xlane.f32.xlu0 %v1532
    %v1534 = vpop.xlane.xlu0 %1533
    %v1535 = vsel %vm904, %v1211, -inf
    %1536 = vmax.xlane.f32.xlu0 %v1535
    %v1537 = vpop.xlane.xlu0 %1536
    %v1538 = vsel %vm904, %v1289, -inf
    %1539 = vmax.xlane.f32.xlu0 %v1538
    %v1540 = vpop.xlane.xlu0 %1539
    %v1541 = vsel %vm904, %v1367, -inf
    %1542 = vmax.xlane.f32.xlu0 %v1541
    %v1543 = vpop.xlane.xlu0 %1542
    %v1544 = vsel %vm904, %v1445, -inf
    %1545 = vmax.xlane.f32.xlu0 %v1544
    %v1546 = vpop.xlane.xlu0 %1545
    %v1547 = vsel %vm904, %v1523, -inf
    %1548 = vmax.xlane.f32.xlu0 %v1547
    %v1549 = vpop.xlane.xlu0 %1548
    %v1550 = vsub.f32 %v977, %v1528
    %v1551 = vsub.f32 %v1055, %v1531
    %v1552 = vsub.f32 %v1133, %v1534
    %v1553 = vsub.f32 %v1211, %v1537
    %v1554 = vsub.f32 %v1289, %v1540
    %v1555 = vsub.f32 %v1367, %v1543
    %v1556 = vsub.f32 %v1445, %v1546
    %v1557 = vsub.f32 %v1523, %v1549
    %v1558 = vmul.f32 %v1550, 1.442695
    %v1559 = vpow.pop %v1558
    %v1560 = vmul.f32 %v1551, 1.442695
    %v1561 = vpow.pop %v1560
    %v1562 = vmul.f32 %v1552, 1.442695
    %v1563 = vpow.pop %v1562
    %v1564 = vmul.f32 %v1553, 1.442695
    %v1565 = vpow.pop %v1564
    %v1566 = vmul.f32 %v1554, 1.442695
    %v1567 = vpow.pop %v1566
    %v1568 = vmul.f32 %v1555, 1.442695
    %v1569 = vpow.pop %v1568
    %v1570 = vmul.f32 %v1556, 1.442695
    %v1571 = vpow.pop %v1570
    %v1572 = vmul.f32 %v1557, 1.442695
    %v1573 = vpow.pop %v1572
    %v1574 = vsel %vm904, %v1559, 0.0
    %1575 = vadd.xlane.f32.xlu0 %v1574
    %v1576 = vpop.xlane.xlu0 %1575
    %v1577 = vsel %vm904, %v1561, 0.0
    %1578 = vadd.xlane.f32.xlu0 %v1577
    %v1579 = vpop.xlane.xlu0 %1578
    %v1580 = vsel %vm904, %v1563, 0.0
    %1581 = vadd.xlane.f32.xlu0 %v1580
    %v1582 = vpop.xlane.xlu0 %1581
    %v1583 = vsel %vm904, %v1565, 0.0
    %1584 = vadd.xlane.f32.xlu0 %v1583
    %v1585 = vpop.xlane.xlu0 %1584
    %v1586 = vsel %vm904, %v1567, 0.0
    %1587 = vadd.xlane.f32.xlu0 %v1586
    %v1588 = vpop.xlane.xlu0 %1587
    %v1589 = vsel %vm904, %v1569, 0.0
    %1590 = vadd.xlane.f32.xlu0 %v1589
    %v1591 = vpop.xlane.xlu0 %1590
    %v1592 = vsel %vm904, %v1571, 0.0
    %1593 = vadd.xlane.f32.xlu0 %v1592
    %v1594 = vpop.xlane.xlu0 %1593
    %v1595 = vsel %vm904, %v1573, 0.0
    %1596 = vadd.xlane.f32.xlu0 %v1595
    %v1597 = vpop.xlane.xlu0 %1596
    %v1598 = vrcp.pop %v1576
    %v1599 = vmul.f32 %v1559, %v1598
    %v1600 = vrcp.pop %v1579
    %v1601 = vmul.f32 %v1561, %v1600
    %v1602 = vrcp.pop %v1582
    %v1603 = vmul.f32 %v1563, %v1602
    %v1604 = vrcp.pop %v1585
    %v1605 = vmul.f32 %v1565, %v1604
    %v1606 = vrcp.pop %v1588
    %v1607 = vmul.f32 %v1567, %v1606
    %v1608 = vrcp.pop %v1591
    %v1609 = vmul.f32 %v1569, %v1608
    %v1610 = vrcp.pop %v1594
    %v1611 = vmul.f32 %v1571, %v1610
    %v1612 = vrcp.pop %v1597
    %v1613 = vmul.f32 %v1573, %v1612
    %1614 = vrot.lane.b32.xlu0 %v224, 112
    %v1615 = vpop.permute.xlu0 %1614
    %v1618 = vsel %vm904, %v1599, 0
    %1620 = vmatprep.subr.mxu0 0.0
    %1621 = vmatpush1.msra.mxu0 0.0
    %1622 = vmatprep.subr.mxu0 0.0
    %1623 = vmatpush1.msra.mxu0 0.0
    %1624 = vmatprep.subr.mxu0 0.0
    %1625 = vmatpush1.msra.mxu0 0.0
    %1626 = vmatprep.subr.mxu0 0.0
    %1627 = vmatpush1.msra.mxu0 0.0
    %1628 = vmatprep.subr.mxu0 0.0
    %1629 = vmatpush1.msra.mxu0 0.0
    %1630 = vmatprep.subr.mxu0 0.0
    %1631 = vmatpush1.msra.mxu0 0.0
    %1632 = vmatprep.subr.mxu0 0.0
    %1633 = vmatpush1.msra.mxu0 0.0
    %1634 = vmatprep.subr.mxu0 0.0
    %1635 = vmatpush1.msra.mxu0 0.0
    %1636 = vmatprep.subr.mxu0 0.0
    %1637 = vmatpush1.msra.mxu0 0.0
    %1638 = vmatprep.subr.mxu0 0.0
    %1639 = vmatpush1.msra.mxu0 0.0
    %1640 = vmatprep.subr.mxu0 0.0
    %1641 = vmatpush1.msra.mxu0 0.0
    %1642 = vmatprep.subr.mxu0 0.0
    %1643 = vmatpush1.msra.mxu0 0.0
    %1644 = vmatprep.subr.mxu0 0.0
    %1645 = vmatpush1.msra.mxu0 0.0
    %1646 = vmatprep.subr.mxu0 0.0
    %1647 = vmatpush1.msra.mxu0 0.0
    %1648 = vmatprep.subr.mxu0 0.0
    %1649 = vmatpush1.msra.mxu0 0.0
    %1650 = vmatprep.subr.mxu0 0.0
    %1651 = vmatpush1.msra.mxu0 %v1615
    %1652 = vmatprep.subr.mxu0 0.0
    %1653 = vmatpush2.msra.mxu0 0.0
    %1654 = vmatprep.subr.mxu0 0.0
    %1655 = vmatpush2.msra.mxu0 0.0
    %1656 = vmatprep.subr.mxu0 0.0
    %1657 = vmatpush2.msra.mxu0 0.0
    %1658 = vmatprep.subr.mxu0 0.0
    %1659 = vmatpush2.msra.mxu0 0.0
    %1660 = vmatprep.subr.mxu0 0.0
    %1661 = vmatpush2.msra.mxu0 0.0
    %1662 = vmatprep.subr.mxu0 0.0
    %1663 = vmatpush2.msra.mxu0 0.0
    %1664 = vmatprep.subr.mxu0 0.0
    %1665 = vmatpush2.msra.mxu0 0.0
    %1666 = vmatprep.subr.mxu0 0.0
    %1667 = vmatpush2.msra.mxu0 0.0
    %1668 = vmatprep.subr.mxu0 0.0
    %1669 = vmatpush2.msra.mxu0 0.0
    %1670 = vmatprep.subr.mxu0 0.0
    %1671 = vmatpush2.msra.mxu0 0.0
    %1672 = vmatprep.subr.mxu0 0.0
    %1673 = vmatpush2.msra.mxu0 0.0
    %1674 = vmatprep.subr.mxu0 0.0
    %1675 = vmatpush2.msra.mxu0 0.0
    %1676 = vmatprep.subr.mxu0 0.0
    %1677 = vmatpush2.msra.mxu0 0.0
    %1678 = vmatprep.subr.mxu0 0.0
    %1679 = vmatpush2.msra.mxu0 0.0
    %1680 = vmatprep.subr.mxu0 0.0
    %1681 = vmatpush2.msra.mxu0 0.0
    %1682 = vmatprep.subr.mxu0 0.0
    %1683 = vmatpush2.msra.mxu0 0.0
    %1684 = vmatprep.mubr.f32.mxu0 0.0
    %1685 = vmatmul.mubr.f32.gmra.mxu0 %v1618
    %v1686 = vpop.f32.mrf.mxu0
    %v1687 = vadd.f32 0.0, %v1686
    %v1688 = vpop.f32.mrf.mxu0
    %1689 = vdwg.mxu0
    %1690 = vrot.lane.b32.xlu0 %v294, 112
    %v1691 = vpop.permute.xlu0 %1690
    %v1694 = vsel %vm904, %v1601, 0
    %1696 = vmatprep.subr.mxu0 0.0
    %1697 = vmatpush1.msra.mxu0 0.0
    %1698 = vmatprep.subr.mxu0 0.0
    %1699 = vmatpush1.msra.mxu0 0.0
    %1700 = vmatprep.subr.mxu0 0.0
    %1701 = vmatpush1.msra.mxu0 0.0
    %1702 = vmatprep.subr.mxu0 0.0
    %1703 = vmatpush1.msra.mxu0 0.0
    %1704 = vmatprep.subr.mxu0 0.0
    %1705 = vmatpush1.msra.mxu0 0.0
    %1706 = vmatprep.subr.mxu0 0.0
    %1707 = vmatpush1.msra.mxu0 0.0
    %1708 = vmatprep.subr.mxu0 0.0
    %1709 = vmatpush1.msra.mxu0 0.0
    %1710 = vmatprep.subr.mxu0 0.0
    %1711 = vmatpush1.msra.mxu0 0.0
    %1712 = vmatprep.subr.mxu0 0.0
    %1713 = vmatpush1.msra.mxu0 0.0
    %1714 = vmatprep.subr.mxu0 0.0
    %1715 = vmatpush1.msra.mxu0 0.0
    %1716 = vmatprep.subr.mxu0 0.0
    %1717 = vmatpush1.msra.mxu0 0.0
    %1718 = vmatprep.subr.mxu0 0.0
    %1719 = vmatpush1.msra.mxu0 0.0
    %1720 = vmatprep.subr.mxu0 0.0
    %1721 = vmatpush1.msra.mxu0 0.0
    %1722 = vmatprep.subr.mxu0 0.0
    %1723 = vmatpush1.msra.mxu0 0.0
    %1724 = vmatprep.subr.mxu0 0.0
    %1725 = vmatpush1.msra.mxu0 0.0
    %1726 = vmatprep.subr.mxu0 0.0
    %1727 = vmatpush1.msra.mxu0 %v1691
    %1728 = vmatprep.subr.mxu0 0.0
    %1729 = vmatpush2.msra.mxu0 0.0
    %1730 = vmatprep.subr.mxu0 0.0
    %1731 = vmatpush2.msra.mxu0 0.0
    %1732 = vmatprep.subr.mxu0 0.0
    %1733 = vmatpush2.msra.mxu0 0.0
    %1734 = vmatprep.subr.mxu0 0.0
    %1735 = vmatpush2.msra.mxu0 0.0
    %1736 = vmatprep.subr.mxu0 0.0
    %1737 = vmatpush2.msra.mxu0 0.0
    %1738 = vmatprep.subr.mxu0 0.0
    %1739 = vmatpush2.msra.mxu0 0.0
    %1740 = vmatprep.subr.mxu0 0.0
    %1741 = vmatpush2.msra.mxu0 0.0
    %1742 = vmatprep.subr.mxu0 0.0
    %1743 = vmatpush2.msra.mxu0 0.0
    %1744 = vmatprep.subr.mxu0 0.0
    %1745 = vmatpush2.msra.mxu0 0.0
    %1746 = vmatprep.subr.mxu0 0.0
    %1747 = vmatpush2.msra.mxu0 0.0
    %1748 = vmatprep.subr.mxu0 0.0
    %1749 = vmatpush2.msra.mxu0 0.0
    %1750 = vmatprep.subr.mxu0 0.0
    %1751 = vmatpush2.msra.mxu0 0.0
    %1752 = vmatprep.subr.mxu0 0.0
    %1753 = vmatpush2.msra.mxu0 0.0
    %1754 = vmatprep.subr.mxu0 0.0
    %1755 = vmatpush2.msra.mxu0 0.0
    %1756 = vmatprep.subr.mxu0 0.0
    %1757 = vmatpush2.msra.mxu0 0.0
    %1758 = vmatprep.subr.mxu0 0.0
    %1759 = vmatpush2.msra.mxu0 0.0
    %1760 = vmatprep.mubr.f32.mxu0 0.0
    %1761 = vmatmul.mubr.f32.gmra.mxu0 %v1694
    %v1762 = vpop.f32.mrf.mxu0
    %v1763 = vadd.f32 0.0, %v1762
    %v1764 = vpop.f32.mrf.mxu0
    %1765 = vdwg.mxu0
    %1766 = vrot.lane.b32.xlu0 %v364, 112
    %v1767 = vpop.permute.xlu0 %1766
    %v1770 = vsel %vm904, %v1603, 0
    %1772 = vmatprep.subr.mxu0 0.0
    %1773 = vmatpush1.msra.mxu0 0.0
    %1774 = vmatprep.subr.mxu0 0.0
    %1775 = vmatpush1.msra.mxu0 0.0
    %1776 = vmatprep.subr.mxu0 0.0
    %1777 = vmatpush1.msra.mxu0 0.0
    %1778 = vmatprep.subr.mxu0 0.0
    %1779 = vmatpush1.msra.mxu0 0.0
    %1780 = vmatprep.subr.mxu0 0.0
    %1781 = vmatpush1.msra.mxu0 0.0
    %1782 = vmatprep.subr.mxu0 0.0
    %1783 = vmatpush1.msra.mxu0 0.0
    %1784 = vmatprep.subr.mxu0 0.0
    %1785 = vmatpush1.msra.mxu0 0.0
    %1786 = vmatprep.subr.mxu0 0.0
    %1787 = vmatpush1.msra.mxu0 0.0
    %1788 = vmatprep.subr.mxu0 0.0
    %1789 = vmatpush1.msra.mxu0 0.0
    %1790 = vmatprep.subr.mxu0 0.0
    %1791 = vmatpush1.msra.mxu0 0.0
    %1792 = vmatprep.subr.mxu0 0.0
    %1793 = vmatpush1.msra.mxu0 0.0
    %1794 = vmatprep.subr.mxu0 0.0
    %1795 = vmatpush1.msra.mxu0 0.0
    %1796 = vmatprep.subr.mxu0 0.0
    %1797 = vmatpush1.msra.mxu0 0.0
    %1798 = vmatprep.subr.mxu0 0.0
    %1799 = vmatpush1.msra.mxu0 0.0
    %1800 = vmatprep.subr.mxu0 0.0
    %1801 = vmatpush1.msra.mxu0 0.0
    %1802 = vmatprep.subr.mxu0 0.0
    %1803 = vmatpush1.msra.mxu0 %v1767
    %1804 = vmatprep.subr.mxu0 0.0
    %1805 = vmatpush2.msra.mxu0 0.0
    %1806 = vmatprep.subr.mxu0 0.0
    %1807 = vmatpush2.msra.mxu0 0.0
    %1808 = vmatprep.subr.mxu0 0.0
    %1809 = vmatpush2.msra.mxu0 0.0
    %1810 = vmatprep.subr.mxu0 0.0
    %1811 = vmatpush2.msra.mxu0 0.0
    %1812 = vmatprep.subr.mxu0 0.0
    %1813 = vmatpush2.msra.mxu0 0.0
    %1814 = vmatprep.subr.mxu0 0.0
    %1815 = vmatpush2.msra.mxu0 0.0
    %1816 = vmatprep.subr.mxu0 0.0
    %1817 = vmatpush2.msra.mxu0 0.0
    %1818 = vmatprep.subr.mxu0 0.0
    %1819 = vmatpush2.msra.mxu0 0.0
    %1820 = vmatprep.subr.mxu0 0.0
    %1821 = vmatpush2.msra.mxu0 0.0
    %1822 = vmatprep.subr.mxu0 0.0
    %1823 = vmatpush2.msra.mxu0 0.0
    %1824 = vmatprep.subr.mxu0 0.0
    %1825 = vmatpush2.msra.mxu0 0.0
    %1826 = vmatprep.subr.mxu0 0.0
    %1827 = vmatpush2.msra.mxu0 0.0
    %1828 = vmatprep.subr.mxu0 0.0
    %1829 = vmatpush2.msra.mxu0 0.0
    %1830 = vmatprep.subr.mxu0 0.0
    %1831 = vmatpush2.msra.mxu0 0.0
    %1832 = vmatprep.subr.mxu0 0.0
    %1833 = vmatpush2.msra.mxu0 0.0
    %1834 = vmatprep.subr.mxu0 0.0
    %1835 = vmatpush2.msra.mxu0 0.0
    %1836 = vmatprep.mubr.f32.mxu0 0.0
    %1837 = vmatmul.mubr.f32.gmra.mxu0 %v1770
    %v1838 = vpop.f32.mrf.mxu0
    %v1839 = vadd.f32 0.0, %v1838
    %v1840 = vpop.f32.mrf.mxu0
    %1841 = vdwg.mxu0
    %1842 = vrot.lane.b32.xlu0 %v434, 112
    %v1843 = vpop.permute.xlu0 %1842
    %v1846 = vsel %vm904, %v1605, 0
    %1848 = vmatprep.subr.mxu0 0.0
    %1849 = vmatpush1.msra.mxu0 0.0
    %1850 = vmatprep.subr.mxu0 0.0
    %1851 = vmatpush1.msra.mxu0 0.0
    %1852 = vmatprep.subr.mxu0 0.0
    %1853 = vmatpush1.msra.mxu0 0.0
    %1854 = vmatprep.subr.mxu0 0.0
    %1855 = vmatpush1.msra.mxu0 0.0
    %1856 = vmatprep.subr.mxu0 0.0
    %1857 = vmatpush1.msra.mxu0 0.0
    %1858 = vmatprep.subr.mxu0 0.0
    %1859 = vmatpush1.msra.mxu0 0.0
    %1860 = vmatprep.subr.mxu0 0.0
    %1861 = vmatpush1.msra.mxu0 0.0
    %1862 = vmatprep.subr.mxu0 0.0
    %1863 = vmatpush1.msra.mxu0 0.0
    %1864 = vmatprep.subr.mxu0 0.0
    %1865 = vmatpush1.msra.mxu0 0.0
    %1866 = vmatprep.subr.mxu0 0.0
    %1867 = vmatpush1.msra.mxu0 0.0
    %1868 = vmatprep.subr.mxu0 0.0
    %1869 = vmatpush1.msra.mxu0 0.0
    %1870 = vmatprep.subr.mxu0 0.0
    %1871 = vmatpush1.msra.mxu0 0.0
    %1872 = vmatprep.subr.mxu0 0.0
    %1873 = vmatpush1.msra.mxu0 0.0
    %1874 = vmatprep.subr.mxu0 0.0
    %1875 = vmatpush1.msra.mxu0 0.0
    %1876 = vmatprep.subr.mxu0 0.0
    %1877 = vmatpush1.msra.mxu0 0.0
    %1878 = vmatprep.subr.mxu0 0.0
    %1879 = vmatpush1.msra.mxu0 %v1843
    %1880 = vmatprep.subr.mxu0 0.0
    %1881 = vmatpush2.msra.mxu0 0.0
    %1882 = vmatprep.subr.mxu0 0.0
    %1883 = vmatpush2.msra.mxu0 0.0
    %1884 = vmatprep.subr.mxu0 0.0
    %1885 = vmatpush2.msra.mxu0 0.0
    %1886 = vmatprep.subr.mxu0 0.0
    %1887 = vmatpush2.msra.mxu0 0.0
    %1888 = vmatprep.subr.mxu0 0.0
    %1889 = vmatpush2.msra.mxu0 0.0
    %1890 = vmatprep.subr.mxu0 0.0
    %1891 = vmatpush2.msra.mxu0 0.0
    %1892 = vmatprep.subr.mxu0 0.0
    %1893 = vmatpush2.msra.mxu0 0.0
    %1894 = vmatprep.subr.mxu0 0.0
    %1895 = vmatpush2.msra.mxu0 0.0
    %1896 = vmatprep.subr.mxu0 0.0
    %1897 = vmatpush2.msra.mxu0 0.0
    %1898 = vmatprep.subr.mxu0 0.0
    %1899 = vmatpush2.msra.mxu0 0.0
    %1900 = vmatprep.subr.mxu0 0.0
    %1901 = vmatpush2.msra.mxu0 0.0
    %1902 = vmatprep.subr.mxu0 0.0
    %1903 = vmatpush2.msra.mxu0 0.0
    %1904 = vmatprep.subr.mxu0 0.0
    %1905 = vmatpush2.msra.mxu0 0.0
    %1906 = vmatprep.subr.mxu0 0.0
    %1907 = vmatpush2.msra.mxu0 0.0
    %1908 = vmatprep.subr.mxu0 0.0
    %1909 = vmatpush2.msra.mxu0 0.0
    %1910 = vmatprep.subr.mxu0 0.0
    %1911 = vmatpush2.msra.mxu0 0.0
    %1912 = vmatprep.mubr.f32.mxu0 0.0
    %1913 = vmatmul.mubr.f32.gmra.mxu0 %v1846
    %v1914 = vpop.f32.mrf.mxu0
    %v1915 = vadd.f32 0.0, %v1914
    %v1916 = vpop.f32.mrf.mxu0
    %1917 = vdwg.mxu0
    %1918 = vrot.lane.b32.xlu0 %v507, 112
    %v1919 = vpop.permute.xlu0 %1918
    %v1922 = vsel %vm904, %v1607, 0
    %1924 = vmatprep.subr.mxu0 0.0
    %1925 = vmatpush1.msra.mxu0 0.0
    %1926 = vmatprep.subr.mxu0 0.0
    %1927 = vmatpush1.msra.mxu0 0.0
    %1928 = vmatprep.subr.mxu0 0.0
    %1929 = vmatpush1.msra.mxu0 0.0
    %1930 = vmatprep.subr.mxu0 0.0
    %1931 = vmatpush1.msra.mxu0 0.0
    %1932 = vmatprep.subr.mxu0 0.0
    %1933 = vmatpush1.msra.mxu0 0.0
    %1934 = vmatprep.subr.mxu0 0.0
    %1935 = vmatpush1.msra.mxu0 0.0
    %1936 = vmatprep.subr.mxu0 0.0
    %1937 = vmatpush1.msra.mxu0 0.0
    %1938 = vmatprep.subr.mxu0 0.0
    %1939 = vmatpush1.msra.mxu0 0.0
    %1940 = vmatprep.subr.mxu0 0.0
    %1941 = vmatpush1.msra.mxu0 0.0
    %1942 = vmatprep.subr.mxu0 0.0
    %1943 = vmatpush1.msra.mxu0 0.0
    %1944 = vmatprep.subr.mxu0 0.0
    %1945 = vmatpush1.msra.mxu0 0.0
    %1946 = vmatprep.subr.mxu0 0.0
    %1947 = vmatpush1.msra.mxu0 0.0
    %1948 = vmatprep.subr.mxu0 0.0
    %1949 = vmatpush1.msra.mxu0 0.0
    %1950 = vmatprep.subr.mxu0 0.0
    %1951 = vmatpush1.msra.mxu0 0.0
    %1952 = vmatprep.subr.mxu0 0.0
    %1953 = vmatpush1.msra.mxu0 0.0
    %1954 = vmatprep.subr.mxu0 0.0
    %1955 = vmatpush1.msra.mxu0 %v1919
    %1956 = vmatprep.subr.mxu0 0.0
    %1957 = vmatpush2.msra.mxu0 0.0
    %1958 = vmatprep.subr.mxu0 0.0
    %1959 = vmatpush2.msra.mxu0 0.0
    %1960 = vmatprep.subr.mxu0 0.0
    %1961 = vmatpush2.msra.mxu0 0.0
    %1962 = vmatprep.subr.mxu0 0.0
    %1963 = vmatpush2.msra.mxu0 0.0
    %1964 = vmatprep.subr.mxu0 0.0
    %1965 = vmatpush2.msra.mxu0 0.0
    %1966 = vmatprep.subr.mxu0 0.0
    %1967 = vmatpush2.msra.mxu0 0.0
    %1968 = vmatprep.subr.mxu0 0.0
    %1969 = vmatpush2.msra.mxu0 0.0
    %1970 = vmatprep.subr.mxu0 0.0
    %1971 = vmatpush2.msra.mxu0 0.0
    %1972 = vmatprep.subr.mxu0 0.0
    %1973 = vmatpush2.msra.mxu0 0.0
    %1974 = vmatprep.subr.mxu0 0.0
    %1975 = vmatpush2.msra.mxu0 0.0
    %1976 = vmatprep.subr.mxu0 0.0
    %1977 = vmatpush2.msra.mxu0 0.0
    %1978 = vmatprep.subr.mxu0 0.0
    %1979 = vmatpush2.msra.mxu0 0.0
    %1980 = vmatprep.subr.mxu0 0.0
    %1981 = vmatpush2.msra.mxu0 0.0
    %1982 = vmatprep.subr.mxu0 0.0
    %1983 = vmatpush2.msra.mxu0 0.0
    %1984 = vmatprep.subr.mxu0 0.0
    %1985 = vmatpush2.msra.mxu0 0.0
    %1986 = vmatprep.subr.mxu0 0.0
    %1987 = vmatpush2.msra.mxu0 0.0
    %1988 = vmatprep.mubr.f32.mxu0 0.0
    %1989 = vmatmul.mubr.f32.gmra.mxu0 %v1922
    %v1990 = vpop.f32.mrf.mxu0
    %v1991 = vadd.f32 0.0, %v1990
    %v1992 = vpop.f32.mrf.mxu0
    %1993 = vdwg.mxu0
    %1994 = vrot.lane.b32.xlu0 %v577, 112
    %v1995 = vpop.permute.xlu0 %1994
    %v1998 = vsel %vm904, %v1609, 0
    %2000 = vmatprep.subr.mxu0 0.0
    %2001 = vmatpush1.msra.mxu0 0.0
    %2002 = vmatprep.subr.mxu0 0.0
    %2003 = vmatpush1.msra.mxu0 0.0
    %2004 = vmatprep.subr.mxu0 0.0
    %2005 = vmatpush1.msra.mxu0 0.0
    %2006 = vmatprep.subr.mxu0 0.0
    %2007 = vmatpush1.msra.mxu0 0.0
    %2008 = vmatprep.subr.mxu0 0.0
    %2009 = vmatpush1.msra.mxu0 0.0
    %2010 = vmatprep.subr.mxu0 0.0
    %2011 = vmatpush1.msra.mxu0 0.0
    %2012 = vmatprep.subr.mxu0 0.0
    %2013 = vmatpush1.msra.mxu0 0.0
    %2014 = vmatprep.subr.mxu0 0.0
    %2015 = vmatpush1.msra.mxu0 0.0
    %2016 = vmatprep.subr.mxu0 0.0
    %2017 = vmatpush1.msra.mxu0 0.0
    %2018 = vmatprep.subr.mxu0 0.0
    %2019 = vmatpush1.msra.mxu0 0.0
    %2020 = vmatprep.subr.mxu0 0.0
    %2021 = vmatpush1.msra.mxu0 0.0
    %2022 = vmatprep.subr.mxu0 0.0
    %2023 = vmatpush1.msra.mxu0 0.0
    %2024 = vmatprep.subr.mxu0 0.0
    %2025 = vmatpush1.msra.mxu0 0.0
    %2026 = vmatprep.subr.mxu0 0.0
    %2027 = vmatpush1.msra.mxu0 0.0
    %2028 = vmatprep.subr.mxu0 0.0
    %2029 = vmatpush1.msra.mxu0 0.0
    %2030 = vmatprep.subr.mxu0 0.0
    %2031 = vmatpush1.msra.mxu0 %v1995
    %2032 = vmatprep.subr.mxu0 0.0
    %2033 = vmatpush2.msra.mxu0 0.0
    %2034 = vmatprep.subr.mxu0 0.0
    %2035 = vmatpush2.msra.mxu0 0.0
    %2036 = vmatprep.subr.mxu0 0.0
    %2037 = vmatpush2.msra.mxu0 0.0
    %2038 = vmatprep.subr.mxu0 0.0
    %2039 = vmatpush2.msra.mxu0 0.0
    %2040 = vmatprep.subr.mxu0 0.0
    %2041 = vmatpush2.msra.mxu0 0.0
    %2042 = vmatprep.subr.mxu0 0.0
    %2043 = vmatpush2.msra.mxu0 0.0
    %2044 = vmatprep.subr.mxu0 0.0
    %2045 = vmatpush2.msra.mxu0 0.0
    %2046 = vmatprep.subr.mxu0 0.0
    %2047 = vmatpush2.msra.mxu0 0.0
    %2048 = vmatprep.subr.mxu0 0.0
    %2049 = vmatpush2.msra.mxu0 0.0
    %2050 = vmatprep.subr.mxu0 0.0
    %2051 = vmatpush2.msra.mxu0 0.0
    %2052 = vmatprep.subr.mxu0 0.0
    %2053 = vmatpush2.msra.mxu0 0.0
    %2054 = vmatprep.subr.mxu0 0.0
    %2055 = vmatpush2.msra.mxu0 0.0
    %2056 = vmatprep.subr.mxu0 0.0
    %2057 = vmatpush2.msra.mxu0 0.0
    %2058 = vmatprep.subr.mxu0 0.0
    %2059 = vmatpush2.msra.mxu0 0.0
    %2060 = vmatprep.subr.mxu0 0.0
    %2061 = vmatpush2.msra.mxu0 0.0
    %2062 = vmatprep.subr.mxu0 0.0
    %2063 = vmatpush2.msra.mxu0 0.0
    %2064 = vmatprep.mubr.f32.mxu0 0.0
    %2065 = vmatmul.mubr.f32.gmra.mxu0 %v1998
    %v2066 = vpop.f32.mrf.mxu0
    %v2067 = vadd.f32 0.0, %v2066
    %v2068 = vpop.f32.mrf.mxu0
    %2069 = vdwg.mxu0
    %2070 = vrot.lane.b32.xlu0 %v647, 112
    %v2071 = vpop.permute.xlu0 %2070
    %v2074 = vsel %vm904, %v1611, 0
    %2076 = vmatprep.subr.mxu0 0.0
    %2077 = vmatpush1.msra.mxu0 0.0
    %2078 = vmatprep.subr.mxu0 0.0
    %2079 = vmatpush1.msra.mxu0 0.0
    %2080 = vmatprep.subr.mxu0 0.0
    %2081 = vmatpush1.msra.mxu0 0.0
    %2082 = vmatprep.subr.mxu0 0.0
    %2083 = vmatpush1.msra.mxu0 0.0
    %2084 = vmatprep.subr.mxu0 0.0
    %2085 = vmatpush1.msra.mxu0 0.0
    %2086 = vmatprep.subr.mxu0 0.0
    %2087 = vmatpush1.msra.mxu0 0.0
    %2088 = vmatprep.subr.mxu0 0.0
    %2089 = vmatpush1.msra.mxu0 0.0
    %2090 = vmatprep.subr.mxu0 0.0
    %2091 = vmatpush1.msra.mxu0 0.0
    %2092 = vmatprep.subr.mxu0 0.0
    %2093 = vmatpush1.msra.mxu0 0.0
    %2094 = vmatprep.subr.mxu0 0.0
    %2095 = vmatpush1.msra.mxu0 0.0
    %2096 = vmatprep.subr.mxu0 0.0
    %2097 = vmatpush1.msra.mxu0 0.0
    %2098 = vmatprep.subr.mxu0 0.0
    %2099 = vmatpush1.msra.mxu0 0.0
    %2100 = vmatprep.subr.mxu0 0.0
    %2101 = vmatpush1.msra.mxu0 0.0
    %2102 = vmatprep.subr.mxu0 0.0
    %2103 = vmatpush1.msra.mxu0 0.0
    %2104 = vmatprep.subr.mxu0 0.0
    %2105 = vmatpush1.msra.mxu0 0.0
    %2106 = vmatprep.subr.mxu0 0.0
    %2107 = vmatpush1.msra.mxu0 %v2071
    %2108 = vmatprep.subr.mxu0 0.0
    %2109 = vmatpush2.msra.mxu0 0.0
    %2110 = vmatprep.subr.mxu0 0.0
    %2111 = vmatpush2.msra.mxu0 0.0
    %2112 = vmatprep.subr.mxu0 0.0
    %2113 = vmatpush2.msra.mxu0 0.0
    %2114 = vmatprep.subr.mxu0 0.0
    %2115 = vmatpush2.msra.mxu0 0.0
    %2116 = vmatprep.subr.mxu0 0.0
    %2117 = vmatpush2.msra.mxu0 0.0
    %2118 = vmatprep.subr.mxu0 0.0
    %2119 = vmatpush2.msra.mxu0 0.0
    %2120 = vmatprep.subr.mxu0 0.0
    %2121 = vmatpush2.msra.mxu0 0.0
    %2122 = vmatprep.subr.mxu0 0.0
    %2123 = vmatpush2.msra.mxu0 0.0
    %2124 = vmatprep.subr.mxu0 0.0
    %2125 = vmatpush2.msra.mxu0 0.0
    %2126 = vmatprep.subr.mxu0 0.0
    %2127 = vmatpush2.msra.mxu0 0.0
    %2128 = vmatprep.subr.mxu0 0.0
    %2129 = vmatpush2.msra.mxu0 0.0
    %2130 = vmatprep.subr.mxu0 0.0
    %2131 = vmatpush2.msra.mxu0 0.0
    %2132 = vmatprep.subr.mxu0 0.0
    %2133 = vmatpush2.msra.mxu0 0.0
    %2134 = vmatprep.subr.mxu0 0.0
    %2135 = vmatpush2.msra.mxu0 0.0
    %2136 = vmatprep.subr.mxu0 0.0
    %2137 = vmatpush2.msra.mxu0 0.0
    %2138 = vmatprep.subr.mxu0 0.0
    %2139 = vmatpush2.msra.mxu0 0.0
    %2140 = vmatprep.mubr.f32.mxu0 0.0
    %2141 = vmatmul.mubr.f32.gmra.mxu0 %v2074
    %v2142 = vpop.f32.mrf.mxu0
    %v2143 = vadd.f32 0.0, %v2142
    %v2144 = vpop.f32.mrf.mxu0
    %2145 = vdwg.mxu0
    %2146 = vrot.lane.b32.xlu0 %v717, 112
    %v2147 = vpop.permute.xlu0 %2146
    %v2150 = vsel %vm904, %v1613, 0
    %2152 = vmatprep.subr.mxu0 0.0
    %2153 = vmatpush1.msra.mxu0 0.0
    %2154 = vmatprep.subr.mxu0 0.0
    %2155 = vmatpush1.msra.mxu0 0.0
    %2156 = vmatprep.subr.mxu0 0.0
    %2157 = vmatpush1.msra.mxu0 0.0
    %2158 = vmatprep.subr.mxu0 0.0
    %2159 = vmatpush1.msra.mxu0 0.0
    %2160 = vmatprep.subr.mxu0 0.0
    %2161 = vmatpush1.msra.mxu0 0.0
    %2162 = vmatprep.subr.mxu0 0.0
    %2163 = vmatpush1.msra.mxu0 0.0
    %2164 = vmatprep.subr.mxu0 0.0
    %2165 = vmatpush1.msra.mxu0 0.0
    %2166 = vmatprep.subr.mxu0 0.0
    %2167 = vmatpush1.msra.mxu0 0.0
    %2168 = vmatprep.subr.mxu0 0.0
    %2169 = vmatpush1.msra.mxu0 0.0
    %2170 = vmatprep.subr.mxu0 0.0
    %2171 = vmatpush1.msra.mxu0 0.0
    %2172 = vmatprep.subr.mxu0 0.0
    %2173 = vmatpush1.msra.mxu0 0.0
    %2174 = vmatprep.subr.mxu0 0.0
    %2175 = vmatpush1.msra.mxu0 0.0
    %2176 = vmatprep.subr.mxu0 0.0
    %2177 = vmatpush1.msra.mxu0 0.0
    %2178 = vmatprep.subr.mxu0 0.0
    %2179 = vmatpush1.msra.mxu0 0.0
    %2180 = vmatprep.subr.mxu0 0.0
    %2181 = vmatpush1.msra.mxu0 0.0
    %2182 = vmatprep.subr.mxu0 0.0
    %2183 = vmatpush1.msra.mxu0 %v2147
    %2184 = vmatprep.subr.mxu0 0.0
    %2185 = vmatpush2.msra.mxu0 0.0
    %2186 = vmatprep.subr.mxu0 0.0
    %2187 = vmatpush2.msra.mxu0 0.0
    %2188 = vmatprep.subr.mxu0 0.0
    %2189 = vmatpush2.msra.mxu0 0.0
    %2190 = vmatprep.subr.mxu0 0.0
    %2191 = vmatpush2.msra.mxu0 0.0
    %2192 = vmatprep.subr.mxu0 0.0
    %2193 = vmatpush2.msra.mxu0 0.0
    %2194 = vmatprep.subr.mxu0 0.0
    %2195 = vmatpush2.msra.mxu0 0.0
    %2196 = vmatprep.subr.mxu0 0.0
    %2197 = vmatpush2.msra.mxu0 0.0
    %2198 = vmatprep.subr.mxu0 0.0
    %2199 = vmatpush2.msra.mxu0 0.0
    %2200 = vmatprep.subr.mxu0 0.0
    %2201 = vmatpush2.msra.mxu0 0.0
    %2202 = vmatprep.subr.mxu0 0.0
    %2203 = vmatpush2.msra.mxu0 0.0
    %2204 = vmatprep.subr.mxu0 0.0
    %2205 = vmatpush2.msra.mxu0 0.0
    %2206 = vmatprep.subr.mxu0 0.0
    %2207 = vmatpush2.msra.mxu0 0.0
    %2208 = vmatprep.subr.mxu0 0.0
    %2209 = vmatpush2.msra.mxu0 0.0
    %2210 = vmatprep.subr.mxu0 0.0
    %2211 = vmatpush2.msra.mxu0 0.0
    %2212 = vmatprep.subr.mxu0 0.0
    %2213 = vmatpush2.msra.mxu0 0.0
    %2214 = vmatprep.subr.mxu0 0.0
    %2215 = vmatpush2.msra.mxu0 0.0
    %2216 = vmatprep.mubr.f32.mxu0 0.0
    %2217 = vmatmul.mubr.f32.gmra.mxu0 %v2150
    %v2218 = vpop.f32.mrf.mxu0
    %v2219 = vadd.f32 0.0, %v2218
    %v2220 = vpop.f32.mrf.mxu0
    %2221 = vdwg.mxu0
    %2226 = vrot.lane.b32.xlu0 %v98, 104
    %v2227 = vpop.permute.xlu0 %2226
    %2228 = vrot.lane.b32.xlu0 %v99, 104
    %v2229 = vpop.permute.xlu0 %2228
    %2230 = vrot.lane.b32.xlu0 %v100, 104
    %v2231 = vpop.permute.xlu0 %2230
    %2232 = vrot.lane.b32.xlu0 %v101, 104
    %v2233 = vpop.permute.xlu0 %2232
    %v2235 = vsel %vm904, %v1687, 0
    %v2237 = vsel %vm904, %v2227, 0
    %v2239 = vsel %vm904, %v2229, 0
    %v2241 = vsel %vm904, %v2231, 0
    %v2243 = vsel %vm904, %v2233, 0
    %2245 = vmatprep.subr.mxu0 0.0
    %2246 = vmatpush1.xpose.msra.mxu0 0.0
    %2247 = vmatprep.subr.mxu0 0.0
    %2248 = vmatpush1.xpose.msra.mxu0 0.0
    %2249 = vmatprep.subr.mxu0 0.0
    %2250 = vmatpush1.xpose.msra.mxu0 0.0
    %2251 = vmatprep.subr.mxu0 0.0
    %2252 = vmatpush1.xpose.msra.mxu0 0.0
    %2253 = vmatprep.subr.mxu0 0.0
    %2254 = vmatpush1.xpose.msra.mxu0 0.0
    %2255 = vmatprep.subr.mxu0 0.0
    %2256 = vmatpush1.xpose.msra.mxu0 0.0
    %2257 = vmatprep.subr.mxu0 0.0
    %2258 = vmatpush1.xpose.msra.mxu0 0.0
    %2259 = vmatprep.subr.mxu0 0.0
    %2260 = vmatpush1.xpose.msra.mxu0 0.0
    %2261 = vmatprep.subr.mxu0 0.0
    %2262 = vmatpush1.xpose.msra.mxu0 0.0
    %2263 = vmatprep.subr.mxu0 0.0
    %2264 = vmatpush1.xpose.msra.mxu0 0.0
    %2265 = vmatprep.subr.mxu0 0.0
    %2266 = vmatpush1.xpose.msra.mxu0 0.0
    %2267 = vmatprep.subr.mxu0 0.0
    %2268 = vmatpush1.xpose.msra.mxu0 0.0
    %2269 = vmatprep.subr.mxu0 0.0
    %2270 = vmatpush1.xpose.msra.mxu0 %v2243
    %2271 = vmatprep.subr.mxu0 0.0
    %2272 = vmatpush1.xpose.msra.mxu0 %v2241
    %2273 = vmatprep.subr.mxu0 0.0
    %2274 = vmatpush1.xpose.msra.mxu0 %v2239
    %2275 = vmatprep.subr.mxu0 0.0
    %2276 = vmatpush1.xpose.msra.mxu0 %v2237
    %2277 = vmatprep.subr.mxu0 0.0
    %2278 = vmatpush2.xpose.msra.mxu0 0.0
    %2279 = vmatprep.subr.mxu0 0.0
    %2280 = vmatpush2.xpose.msra.mxu0 0.0
    %2281 = vmatprep.subr.mxu0 0.0
    %2282 = vmatpush2.xpose.msra.mxu0 0.0
    %2283 = vmatprep.subr.mxu0 0.0
    %2284 = vmatpush2.xpose.msra.mxu0 0.0
    %2285 = vmatprep.subr.mxu0 0.0
    %2286 = vmatpush2.xpose.msra.mxu0 0.0
    %2287 = vmatprep.subr.mxu0 0.0
    %2288 = vmatpush2.xpose.msra.mxu0 0.0
    %2289 = vmatprep.subr.mxu0 0.0
    %2290 = vmatpush2.xpose.msra.mxu0 0.0
    %2291 = vmatprep.subr.mxu0 0.0
    %2292 = vmatpush2.xpose.msra.mxu0 0.0
    %2293 = vmatprep.subr.mxu0 0.0
    %2294 = vmatpush2.xpose.msra.mxu0 0.0
    %2295 = vmatprep.subr.mxu0 0.0
    %2296 = vmatpush2.xpose.msra.mxu0 0.0
    %2297 = vmatprep.subr.mxu0 0.0
    %2298 = vmatpush2.xpose.msra.mxu0 0.0
    %2299 = vmatprep.subr.mxu0 0.0
    %2300 = vmatpush2.xpose.msra.mxu0 0.0
    %2301 = vmatprep.subr.mxu0 0.0
    %2302 = vmatpush2.xpose.msra.mxu0 0.0
    %2303 = vmatprep.subr.mxu0 0.0
    %2304 = vmatpush2.xpose.msra.mxu0 0.0
    %2305 = vmatprep.subr.mxu0 0.0
    %2306 = vmatpush2.xpose.msra.mxu0 0.0
    %2307 = vmatprep.subr.mxu0 0.0
    %2308 = vmatpush2.xpose.msra.mxu0 0.0
    %2309 = vmatprep.mubr.f32.mxu0 0.0
    %2310 = vmatmul.mubr.f32.gmra.mxu0 %v2235
    %v2311 = vpop.f32.mrf.mxu0
    %v2312 = vadd.f32 0.0, %v2311
    %v2313 = vpop.f32.mrf.mxu0
    %2314 = vdwg.mxu0
    %2319 = vrot.lane.b32.xlu0 %v102, 104
    %v2320 = vpop.permute.xlu0 %2319
    %2321 = vrot.lane.b32.xlu0 %v103, 104
    %v2322 = vpop.permute.xlu0 %2321
    %2323 = vrot.lane.b32.xlu0 %v104, 104
    %v2324 = vpop.permute.xlu0 %2323
    %2325 = vrot.lane.b32.xlu0 %v105, 104
    %v2326 = vpop.permute.xlu0 %2325
    %v2328 = vsel %vm904, %v1763, 0
    %v2330 = vsel %vm904, %v2320, 0
    %v2332 = vsel %vm904, %v2322, 0
    %v2334 = vsel %vm904, %v2324, 0
    %v2336 = vsel %vm904, %v2326, 0
    %2338 = vmatprep.subr.mxu0 0.0
    %2339 = vmatpush1.xpose.msra.mxu0 0.0
    %2340 = vmatprep.subr.mxu0 0.0
    %2341 = vmatpush1.xpose.msra.mxu0 0.0
    %2342 = vmatprep.subr.mxu0 0.0
    %2343 = vmatpush1.xpose.msra.mxu0 0.0
    %2344 = vmatprep.subr.mxu0 0.0
    %2345 = vmatpush1.xpose.msra.mxu0 0.0
    %2346 = vmatprep.subr.mxu0 0.0
    %2347 = vmatpush1.xpose.msra.mxu0 0.0
    %2348 = vmatprep.subr.mxu0 0.0
    %2349 = vmatpush1.xpose.msra.mxu0 0.0
    %2350 = vmatprep.subr.mxu0 0.0
    %2351 = vmatpush1.xpose.msra.mxu0 0.0
    %2352 = vmatprep.subr.mxu0 0.0
    %2353 = vmatpush1.xpose.msra.mxu0 0.0
    %2354 = vmatprep.subr.mxu0 0.0
    %2355 = vmatpush1.xpose.msra.mxu0 0.0
    %2356 = vmatprep.subr.mxu0 0.0
    %2357 = vmatpush1.xpose.msra.mxu0 0.0
    %2358 = vmatprep.subr.mxu0 0.0
    %2359 = vmatpush1.xpose.msra.mxu0 0.0
    %2360 = vmatprep.subr.mxu0 0.0
    %2361 = vmatpush1.xpose.msra.mxu0 0.0
    %2362 = vmatprep.subr.mxu0 0.0
    %2363 = vmatpush1.xpose.msra.mxu0 %v2336
    %2364 = vmatprep.subr.mxu0 0.0
    %2365 = vmatpush1.xpose.msra.mxu0 %v2334
    %2366 = vmatprep.subr.mxu0 0.0
    %2367 = vmatpush1.xpose.msra.mxu0 %v2332
    %2368 = vmatprep.subr.mxu0 0.0
    %2369 = vmatpush1.xpose.msra.mxu0 %v2330
    %2370 = vmatprep.subr.mxu0 0.0
    %2371 = vmatpush2.xpose.msra.mxu0 0.0
    %2372 = vmatprep.subr.mxu0 0.0
    %2373 = vmatpush2.xpose.msra.mxu0 0.0
    %2374 = vmatprep.subr.mxu0 0.0
    %2375 = vmatpush2.xpose.msra.mxu0 0.0
    %2376 = vmatprep.subr.mxu0 0.0
    %2377 = vmatpush2.xpose.msra.mxu0 0.0
    %2378 = vmatprep.subr.mxu0 0.0
    %2379 = vmatpush2.xpose.msra.mxu0 0.0
    %2380 = vmatprep.subr.mxu0 0.0
    %2381 = vmatpush2.xpose.msra.mxu0 0.0
    %2382 = vmatprep.subr.mxu0 0.0
    %2383 = vmatpush2.xpose.msra.mxu0 0.0
    %2384 = vmatprep.subr.mxu0 0.0
    %2385 = vmatpush2.xpose.msra.mxu0 0.0
    %2386 = vmatprep.subr.mxu0 0.0
    %2387 = vmatpush2.xpose.msra.mxu0 0.0
    %2388 = vmatprep.subr.mxu0 0.0
    %2389 = vmatpush2.xpose.msra.mxu0 0.0
    %2390 = vmatprep.subr.mxu0 0.0
    %2391 = vmatpush2.xpose.msra.mxu0 0.0
    %2392 = vmatprep.subr.mxu0 0.0
    %2393 = vmatpush2.xpose.msra.mxu0 0.0
    %2394 = vmatprep.subr.mxu0 0.0
    %2395 = vmatpush2.xpose.msra.mxu0 0.0
    %2396 = vmatprep.subr.mxu0 0.0
    %2397 = vmatpush2.xpose.msra.mxu0 0.0
    %2398 = vmatprep.subr.mxu0 0.0
    %2399 = vmatpush2.xpose.msra.mxu0 0.0
    %2400 = vmatprep.subr.mxu0 0.0
    %2401 = vmatpush2.xpose.msra.mxu0 0.0
    %2402 = vmatprep.mubr.f32.mxu0 0.0
    %2403 = vmatmul.mubr.f32.gmra.mxu0 %v2328
    %v2404 = vpop.f32.mrf.mxu0
    %v2405 = vadd.f32 0.0, %v2404
    %v2406 = vpop.f32.mrf.mxu0
    %2407 = vdwg.mxu0
    %2412 = vrot.lane.b32.xlu0 %v106, 104
    %v2413 = vpop.permute.xlu0 %2412
    %2414 = vrot.lane.b32.xlu0 %v107, 104
    %v2415 = vpop.permute.xlu0 %2414
    %2416 = vrot.lane.b32.xlu0 %v108, 104
    %v2417 = vpop.permute.xlu0 %2416
    %2418 = vrot.lane.b32.xlu0 %v109, 104
    %v2419 = vpop.permute.xlu0 %2418
    %v2421 = vsel %vm904, %v1839, 0
    %v2423 = vsel %vm904, %v2413, 0
    %v2425 = vsel %vm904, %v2415, 0
    %v2427 = vsel %vm904, %v2417, 0
    %v2429 = vsel %vm904, %v2419, 0
    %2431 = vmatprep.subr.mxu0 0.0
    %2432 = vmatpush1.xpose.msra.mxu0 0.0
    %2433 = vmatprep.subr.mxu0 0.0
    %2434 = vmatpush1.xpose.msra.mxu0 0.0
    %2435 = vmatprep.subr.mxu0 0.0
    %2436 = vmatpush1.xpose.msra.mxu0 0.0
    %2437 = vmatprep.subr.mxu0 0.0
    %2438 = vmatpush1.xpose.msra.mxu0 0.0
    %2439 = vmatprep.subr.mxu0 0.0
    %2440 = vmatpush1.xpose.msra.mxu0 0.0
    %2441 = vmatprep.subr.mxu0 0.0
    %2442 = vmatpush1.xpose.msra.mxu0 0.0
    %2443 = vmatprep.subr.mxu0 0.0
    %2444 = vmatpush1.xpose.msra.mxu0 0.0
    %2445 = vmatprep.subr.mxu0 0.0
    %2446 = vmatpush1.xpose.msra.mxu0 0.0
    %2447 = vmatprep.subr.mxu0 0.0
    %2448 = vmatpush1.xpose.msra.mxu0 0.0
    %2449 = vmatprep.subr.mxu0 0.0
    %2450 = vmatpush1.xpose.msra.mxu0 0.0
    %2451 = vmatprep.subr.mxu0 0.0
    %2452 = vmatpush1.xpose.msra.mxu0 0.0
    %2453 = vmatprep.subr.mxu0 0.0
    %2454 = vmatpush1.xpose.msra.mxu0 0.0
    %2455 = vmatprep.subr.mxu0 0.0
    %2456 = vmatpush1.xpose.msra.mxu0 %v2429
    %2457 = vmatprep.subr.mxu0 0.0
    %2458 = vmatpush1.xpose.msra.mxu0 %v2427
    %2459 = vmatprep.subr.mxu0 0.0
    %2460 = vmatpush1.xpose.msra.mxu0 %v2425
    %2461 = vmatprep.subr.mxu0 0.0
    %2462 = vmatpush1.xpose.msra.mxu0 %v2423
    %2463 = vmatprep.subr.mxu0 0.0
    %2464 = vmatpush2.xpose.msra.mxu0 0.0
    %2465 = vmatprep.subr.mxu0 0.0
    %2466 = vmatpush2.xpose.msra.mxu0 0.0
    %2467 = vmatprep.subr.mxu0 0.0
    %2468 = vmatpush2.xpose.msra.mxu0 0.0
    %2469 = vmatprep.subr.mxu0 0.0
    %2470 = vmatpush2.xpose.msra.mxu0 0.0
    %2471 = vmatprep.subr.mxu0 0.0
    %2472 = vmatpush2.xpose.msra.mxu0 0.0
    %2473 = vmatprep.subr.mxu0 0.0
    %2474 = vmatpush2.xpose.msra.mxu0 0.0
    %2475 = vmatprep.subr.mxu0 0.0
    %2476 = vmatpush2.xpose.msra.mxu0 0.0
    %2477 = vmatprep.subr.mxu0 0.0
    %2478 = vmatpush2.xpose.msra.mxu0 0.0
    %2479 = vmatprep.subr.mxu0 0.0
    %2480 = vmatpush2.xpose.msra.mxu0 0.0
    %2481 = vmatprep.subr.mxu0 0.0
    %2482 = vmatpush2.xpose.msra.mxu0 0.0
    %2483 = vmatprep.subr.mxu0 0.0
    %2484 = vmatpush2.xpose.msra.mxu0 0.0
    %2485 = vmatprep.subr.mxu0 0.0
    %2486 = vmatpush2.xpose.msra.mxu0 0.0
    %2487 = vmatprep.subr.mxu0 0.0
    %2488 = vmatpush2.xpose.msra.mxu0 0.0
    %2489 = vmatprep.subr.mxu0 0.0
    %2490 = vmatpush2.xpose.msra.mxu0 0.0
    %2491 = vmatprep.subr.mxu0 0.0
    %2492 = vmatpush2.xpose.msra.mxu0 0.0
    %2493 = vmatprep.subr.mxu0 0.0
    %2494 = vmatpush2.xpose.msra.mxu0 0.0
    %2495 = vmatprep.mubr.f32.mxu0 0.0
    %2496 = vmatmul.mubr.f32.gmra.mxu0 %v2421
    %v2497 = vpop.f32.mrf.mxu0
    %v2498 = vadd.f32 0.0, %v2497
    %v2499 = vpop.f32.mrf.mxu0
    %2500 = vdwg.mxu0
    %2505 = vrot.lane.b32.xlu0 %v110, 104
    %v2506 = vpop.permute.xlu0 %2505
    %2507 = vrot.lane.b32.xlu0 %v111, 104
    %v2508 = vpop.permute.xlu0 %2507
    %2509 = vrot.lane.b32.xlu0 %v112, 104
    %v2510 = vpop.permute.xlu0 %2509
    %2511 = vrot.lane.b32.xlu0 %v113, 104
    %v2512 = vpop.permute.xlu0 %2511
    %v2514 = vsel %vm904, %v1915, 0
    %v2516 = vsel %vm904, %v2506, 0
    %v2518 = vsel %vm904, %v2508, 0
    %v2520 = vsel %vm904, %v2510, 0
    %v2522 = vsel %vm904, %v2512, 0
    %2524 = vmatprep.subr.mxu0 0.0
    %2525 = vmatpush1.xpose.msra.mxu0 0.0
    %2526 = vmatprep.subr.mxu0 0.0
    %2527 = vmatpush1.xpose.msra.mxu0 0.0
    %2528 = vmatprep.subr.mxu0 0.0
    %2529 = vmatpush1.xpose.msra.mxu0 0.0
    %2530 = vmatprep.subr.mxu0 0.0
    %2531 = vmatpush1.xpose.msra.mxu0 0.0
    %2532 = vmatprep.subr.mxu0 0.0
    %2533 = vmatpush1.xpose.msra.mxu0 0.0
    %2534 = vmatprep.subr.mxu0 0.0
    %2535 = vmatpush1.xpose.msra.mxu0 0.0
    %2536 = vmatprep.subr.mxu0 0.0
    %2537 = vmatpush1.xpose.msra.mxu0 0.0
    %2538 = vmatprep.subr.mxu0 0.0
    %2539 = vmatpush1.xpose.msra.mxu0 0.0
    %2540 = vmatprep.subr.mxu0 0.0
    %2541 = vmatpush1.xpose.msra.mxu0 0.0
    %2542 = vmatprep.subr.mxu0 0.0
    %2543 = vmatpush1.xpose.msra.mxu0 0.0
    %2544 = vmatprep.subr.mxu0 0.0
    %2545 = vmatpush1.xpose.msra.mxu0 0.0
    %2546 = vmatprep.subr.mxu0 0.0
    %2547 = vmatpush1.xpose.msra.mxu0 0.0
    %2548 = vmatprep.subr.mxu0 0.0
    %2549 = vmatpush1.xpose.msra.mxu0 %v2522
    %2550 = vmatprep.subr.mxu0 0.0
    %2551 = vmatpush1.xpose.msra.mxu0 %v2520
    %2552 = vmatprep.subr.mxu0 0.0
    %2553 = vmatpush1.xpose.msra.mxu0 %v2518
    %2554 = vmatprep.subr.mxu0 0.0
    %2555 = vmatpush1.xpose.msra.mxu0 %v2516
    %2556 = vmatprep.subr.mxu0 0.0
    %2557 = vmatpush2.xpose.msra.mxu0 0.0
    %2558 = vmatprep.subr.mxu0 0.0
    %2559 = vmatpush2.xpose.msra.mxu0 0.0
    %2560 = vmatprep.subr.mxu0 0.0
    %2561 = vmatpush2.xpose.msra.mxu0 0.0
    %2562 = vmatprep.subr.mxu0 0.0
    %2563 = vmatpush2.xpose.msra.mxu0 0.0
    %2564 = vmatprep.subr.mxu0 0.0
    %2565 = vmatpush2.xpose.msra.mxu0 0.0
    %2566 = vmatprep.subr.mxu0 0.0
    %2567 = vmatpush2.xpose.msra.mxu0 0.0
    %2568 = vmatprep.subr.mxu0 0.0
    %2569 = vmatpush2.xpose.msra.mxu0 0.0
    %2570 = vmatprep.subr.mxu0 0.0
    %2571 = vmatpush2.xpose.msra.mxu0 0.0
    %2572 = vmatprep.subr.mxu0 0.0
    %2573 = vmatpush2.xpose.msra.mxu0 0.0
    %2574 = vmatprep.subr.mxu0 0.0
    %2575 = vmatpush2.xpose.msra.mxu0 0.0
    %2576 = vmatprep.subr.mxu0 0.0
    %2577 = vmatpush2.xpose.msra.mxu0 0.0
    %2578 = vmatprep.subr.mxu0 0.0
    %2579 = vmatpush2.xpose.msra.mxu0 0.0
    %2580 = vmatprep.subr.mxu0 0.0
    %2581 = vmatpush2.xpose.msra.mxu0 0.0
    %2582 = vmatprep.subr.mxu0 0.0
    %2583 = vmatpush2.xpose.msra.mxu0 0.0
    %2584 = vmatprep.subr.mxu0 0.0
    %2585 = vmatpush2.xpose.msra.mxu0 0.0
    %2586 = vmatprep.subr.mxu0 0.0
    %2587 = vmatpush2.xpose.msra.mxu0 0.0
    %2588 = vmatprep.mubr.f32.mxu0 0.0
    %2589 = vmatmul.mubr.f32.gmra.mxu0 %v2514
    %v2590 = vpop.f32.mrf.mxu0
    %v2591 = vadd.f32 0.0, %v2590
    %v2592 = vpop.f32.mrf.mxu0
    %2593 = vdwg.mxu0
    %v2595 = vsel %vm904, %v1991, 0
    %2597 = vmatprep.subr.mxu0 0.0
    %2598 = vmatpush1.xpose.msra.mxu0 0.0
    %2599 = vmatprep.subr.mxu0 0.0
    %2600 = vmatpush1.xpose.msra.mxu0 0.0
    %2601 = vmatprep.subr.mxu0 0.0
    %2602 = vmatpush1.xpose.msra.mxu0 0.0
    %2603 = vmatprep.subr.mxu0 0.0
    %2604 = vmatpush1.xpose.msra.mxu0 0.0
    %2605 = vmatprep.subr.mxu0 0.0
    %2606 = vmatpush1.xpose.msra.mxu0 0.0
    %2607 = vmatprep.subr.mxu0 0.0
    %2608 = vmatpush1.xpose.msra.mxu0 0.0
    %2609 = vmatprep.subr.mxu0 0.0
    %2610 = vmatpush1.xpose.msra.mxu0 0.0
    %2611 = vmatprep.subr.mxu0 0.0
    %2612 = vmatpush1.xpose.msra.mxu0 0.0
    %2613 = vmatprep.subr.mxu0 0.0
    %2614 = vmatpush1.xpose.msra.mxu0 0.0
    %2615 = vmatprep.subr.mxu0 0.0
    %2616 = vmatpush1.xpose.msra.mxu0 0.0
    %2617 = vmatprep.subr.mxu0 0.0
    %2618 = vmatpush1.xpose.msra.mxu0 0.0
    %2619 = vmatprep.subr.mxu0 0.0
    %2620 = vmatpush1.xpose.msra.mxu0 0.0
    %2621 = vmatprep.subr.mxu0 0.0
    %2622 = vmatpush1.xpose.msra.mxu0 %v2243
    %2623 = vmatprep.subr.mxu0 0.0
    %2624 = vmatpush1.xpose.msra.mxu0 %v2241
    %2625 = vmatprep.subr.mxu0 0.0
    %2626 = vmatpush1.xpose.msra.mxu0 %v2239
    %2627 = vmatprep.subr.mxu0 0.0
    %2628 = vmatpush1.xpose.msra.mxu0 %v2237
    %2629 = vmatprep.subr.mxu0 0.0
    %2630 = vmatpush2.xpose.msra.mxu0 0.0
    %2631 = vmatprep.subr.mxu0 0.0
    %2632 = vmatpush2.xpose.msra.mxu0 0.0
    %2633 = vmatprep.subr.mxu0 0.0
    %2634 = vmatpush2.xpose.msra.mxu0 0.0
    %2635 = vmatprep.subr.mxu0 0.0
    %2636 = vmatpush2.xpose.msra.mxu0 0.0
    %2637 = vmatprep.subr.mxu0 0.0
    %2638 = vmatpush2.xpose.msra.mxu0 0.0
    %2639 = vmatprep.subr.mxu0 0.0
    %2640 = vmatpush2.xpose.msra.mxu0 0.0
    %2641 = vmatprep.subr.mxu0 0.0
    %2642 = vmatpush2.xpose.msra.mxu0 0.0
    %2643 = vmatprep.subr.mxu0 0.0
    %2644 = vmatpush2.xpose.msra.mxu0 0.0
    %2645 = vmatprep.subr.mxu0 0.0
    %2646 = vmatpush2.xpose.msra.mxu0 0.0
    %2647 = vmatprep.subr.mxu0 0.0
    %2648 = vmatpush2.xpose.msra.mxu0 0.0
    %2649 = vmatprep.subr.mxu0 0.0
    %2650 = vmatpush2.xpose.msra.mxu0 0.0
    %2651 = vmatprep.subr.mxu0 0.0
    %2652 = vmatpush2.xpose.msra.mxu0 0.0
    %2653 = vmatprep.subr.mxu0 0.0
    %2654 = vmatpush2.xpose.msra.mxu0 0.0
    %2655 = vmatprep.subr.mxu0 0.0
    %2656 = vmatpush2.xpose.msra.mxu0 0.0
    %2657 = vmatprep.subr.mxu0 0.0
    %2658 = vmatpush2.xpose.msra.mxu0 0.0
    %2659 = vmatprep.subr.mxu0 0.0
    %2660 = vmatpush2.xpose.msra.mxu0 0.0
    %2661 = vmatprep.mubr.f32.mxu0 0.0
    %2662 = vmatmul.mubr.f32.gmra.mxu0 %v2595
    %v2663 = vpop.f32.mrf.mxu0
    %v2664 = vadd.f32 0.0, %v2663
    %v2665 = vpop.f32.mrf.mxu0
    %2666 = vdwg.mxu0
    %v2668 = vsel %vm904, %v2067, 0
    %2670 = vmatprep.subr.mxu0 0.0
    %2671 = vmatpush1.xpose.msra.mxu0 0.0
    %2672 = vmatprep.subr.mxu0 0.0
    %2673 = vmatpush1.xpose.msra.mxu0 0.0
    %2674 = vmatprep.subr.mxu0 0.0
    %2675 = vmatpush1.xpose.msra.mxu0 0.0
    %2676 = vmatprep.subr.mxu0 0.0
    %2677 = vmatpush1.xpose.msra.mxu0 0.0
    %2678 = vmatprep.subr.mxu0 0.0
    %2679 = vmatpush1.xpose.msra.mxu0 0.0
    %2680 = vmatprep.subr.mxu0 0.0
    %2681 = vmatpush1.xpose.msra.mxu0 0.0
    %2682 = vmatprep.subr.mxu0 0.0
    %2683 = vmatpush1.xpose.msra.mxu0 0.0
    %2684 = vmatprep.subr.mxu0 0.0
    %2685 = vmatpush1.xpose.msra.mxu0 0.0
    %2686 = vmatprep.subr.mxu0 0.0
    %2687 = vmatpush1.xpose.msra.mxu0 0.0
    %2688 = vmatprep.subr.mxu0 0.0
    %2689 = vmatpush1.xpose.msra.mxu0 0.0
    %2690 = vmatprep.subr.mxu0 0.0
    %2691 = vmatpush1.xpose.msra.mxu0 0.0
    %2692 = vmatprep.subr.mxu0 0.0
    %2693 = vmatpush1.xpose.msra.mxu0 0.0
    %2694 = vmatprep.subr.mxu0 0.0
    %2695 = vmatpush1.xpose.msra.mxu0 %v2336
    %2696 = vmatprep.subr.mxu0 0.0
    %2697 = vmatpush1.xpose.msra.mxu0 %v2334
    %2698 = vmatprep.subr.mxu0 0.0
    %2699 = vmatpush1.xpose.msra.mxu0 %v2332
    %2700 = vmatprep.subr.mxu0 0.0
    %2701 = vmatpush1.xpose.msra.mxu0 %v2330
    %2702 = vmatprep.subr.mxu0 0.0
    %2703 = vmatpush2.xpose.msra.mxu0 0.0
    %2704 = vmatprep.subr.mxu0 0.0
    %2705 = vmatpush2.xpose.msra.mxu0 0.0
    %2706 = vmatprep.subr.mxu0 0.0
    %2707 = vmatpush2.xpose.msra.mxu0 0.0
    %2708 = vmatprep.subr.mxu0 0.0
    %2709 = vmatpush2.xpose.msra.mxu0 0.0
    %2710 = vmatprep.subr.mxu0 0.0
    %2711 = vmatpush2.xpose.msra.mxu0 0.0
    %2712 = vmatprep.subr.mxu0 0.0
    %2713 = vmatpush2.xpose.msra.mxu0 0.0
    %2714 = vmatprep.subr.mxu0 0.0
    %2715 = vmatpush2.xpose.msra.mxu0 0.0
    %2716 = vmatprep.subr.mxu0 0.0
    %2717 = vmatpush2.xpose.msra.mxu0 0.0
    %2718 = vmatprep.subr.mxu0 0.0
    %2719 = vmatpush2.xpose.msra.mxu0 0.0
    %2720 = vmatprep.subr.mxu0 0.0
    %2721 = vmatpush2.xpose.msra.mxu0 0.0
    %2722 = vmatprep.subr.mxu0 0.0
    %2723 = vmatpush2.xpose.msra.mxu0 0.0
    %2724 = vmatprep.subr.mxu0 0.0
    %2725 = vmatpush2.xpose.msra.mxu0 0.0
    %2726 = vmatprep.subr.mxu0 0.0
    %2727 = vmatpush2.xpose.msra.mxu0 0.0
    %2728 = vmatprep.subr.mxu0 0.0
    %2729 = vmatpush2.xpose.msra.mxu0 0.0
    %2730 = vmatprep.subr.mxu0 0.0
    %2731 = vmatpush2.xpose.msra.mxu0 0.0
    %2732 = vmatprep.subr.mxu0 0.0
    %2733 = vmatpush2.xpose.msra.mxu0 0.0
    %2734 = vmatprep.mubr.f32.mxu0 0.0
    %2735 = vmatmul.mubr.f32.gmra.mxu0 %v2668
    %v2736 = vpop.f32.mrf.mxu0
    %v2737 = vadd.f32 0.0, %v2736
    %v2738 = vpop.f32.mrf.mxu0
    %2739 = vdwg.mxu0
    %v2741 = vsel %vm904, %v2143, 0
    %2743 = vmatprep.subr.mxu0 0.0
    %2744 = vmatpush1.xpose.msra.mxu0 0.0
    %2745 = vmatprep.subr.mxu0 0.0
    %2746 = vmatpush1.xpose.msra.mxu0 0.0
    %2747 = vmatprep.subr.mxu0 0.0
    %2748 = vmatpush1.xpose.msra.mxu0 0.0
    %2749 = vmatprep.subr.mxu0 0.0
    %2750 = vmatpush1.xpose.msra.mxu0 0.0
    %2751 = vmatprep.subr.mxu0 0.0
    %2752 = vmatpush1.xpose.msra.mxu0 0.0
    %2753 = vmatprep.subr.mxu0 0.0
    %2754 = vmatpush1.xpose.msra.mxu0 0.0
    %2755 = vmatprep.subr.mxu0 0.0
    %2756 = vmatpush1.xpose.msra.mxu0 0.0
    %2757 = vmatprep.subr.mxu0 0.0
    %2758 = vmatpush1.xpose.msra.mxu0 0.0
    %2759 = vmatprep.subr.mxu0 0.0
    %2760 = vmatpush1.xpose.msra.mxu0 0.0
    %2761 = vmatprep.subr.mxu0 0.0
    %2762 = vmatpush1.xpose.msra.mxu0 0.0
    %2763 = vmatprep.subr.mxu0 0.0
    %2764 = vmatpush1.xpose.msra.mxu0 0.0
    %2765 = vmatprep.subr.mxu0 0.0
    %2766 = vmatpush1.xpose.msra.mxu0 0.0
    %2767 = vmatprep.subr.mxu0 0.0
    %2768 = vmatpush1.xpose.msra.mxu0 %v2429
    %2769 = vmatprep.subr.mxu0 0.0
    %2770 = vmatpush1.xpose.msra.mxu0 %v2427
    %2771 = vmatprep.subr.mxu0 0.0
    %2772 = vmatpush1.xpose.msra.mxu0 %v2425
    %2773 = vmatprep.subr.mxu0 0.0
    %2774 = vmatpush1.xpose.msra.mxu0 %v2423
    %2775 = vmatprep.subr.mxu0 0.0
    %2776 = vmatpush2.xpose.msra.mxu0 0.0
    %2777 = vmatprep.subr.mxu0 0.0
    %2778 = vmatpush2.xpose.msra.mxu0 0.0
    %2779 = vmatprep.subr.mxu0 0.0
    %2780 = vmatpush2.xpose.msra.mxu0 0.0
    %2781 = vmatprep.subr.mxu0 0.0
    %2782 = vmatpush2.xpose.msra.mxu0 0.0
    %2783 = vmatprep.subr.mxu0 0.0
    %2784 = vmatpush2.xpose.msra.mxu0 0.0
    %2785 = vmatprep.subr.mxu0 0.0
    %2786 = vmatpush2.xpose.msra.mxu0 0.0
    %2787 = vmatprep.subr.mxu0 0.0
    %2788 = vmatpush2.xpose.msra.mxu0 0.0
    %2789 = vmatprep.subr.mxu0 0.0
    %2790 = vmatpush2.xpose.msra.mxu0 0.0
    %2791 = vmatprep.subr.mxu0 0.0
    %2792 = vmatpush2.xpose.msra.mxu0 0.0
    %2793 = vmatprep.subr.mxu0 0.0
    %2794 = vmatpush2.xpose.msra.mxu0 0.0
    %2795 = vmatprep.subr.mxu0 0.0
    %2796 = vmatpush2.xpose.msra.mxu0 0.0
    %2797 = vmatprep.subr.mxu0 0.0
    %2798 = vmatpush2.xpose.msra.mxu0 0.0
    %2799 = vmatprep.subr.mxu0 0.0
    %2800 = vmatpush2.xpose.msra.mxu0 0.0
    %2801 = vmatprep.subr.mxu0 0.0
    %2802 = vmatpush2.xpose.msra.mxu0 0.0
    %2803 = vmatprep.subr.mxu0 0.0
    %2804 = vmatpush2.xpose.msra.mxu0 0.0
    %2805 = vmatprep.subr.mxu0 0.0
    %2806 = vmatpush2.xpose.msra.mxu0 0.0
    %2807 = vmatprep.mubr.f32.mxu0 0.0
    %2808 = vmatmul.mubr.f32.gmra.mxu0 %v2741
    %v2809 = vpop.f32.mrf.mxu0
    %v2810 = vadd.f32 0.0, %v2809
    %v2811 = vpop.f32.mrf.mxu0
    %2812 = vdwg.mxu0
    %v2814 = vsel %vm904, %v2219, 0
    %2816 = vmatprep.subr.mxu0 0.0
    %2817 = vmatpush1.xpose.msra.mxu0 0.0
    %2818 = vmatprep.subr.mxu0 0.0
    %2819 = vmatpush1.xpose.msra.mxu0 0.0
    %2820 = vmatprep.subr.mxu0 0.0
    %2821 = vmatpush1.xpose.msra.mxu0 0.0
    %2822 = vmatprep.subr.mxu0 0.0
    %2823 = vmatpush1.xpose.msra.mxu0 0.0
    %2824 = vmatprep.subr.mxu0 0.0
    %2825 = vmatpush1.xpose.msra.mxu0 0.0
    %2826 = vmatprep.subr.mxu0 0.0
    %2827 = vmatpush1.xpose.msra.mxu0 0.0
    %2828 = vmatprep.subr.mxu0 0.0
    %2829 = vmatpush1.xpose.msra.mxu0 0.0
    %2830 = vmatprep.subr.mxu0 0.0
    %2831 = vmatpush1.xpose.msra.mxu0 0.0
    %2832 = vmatprep.subr.mxu0 0.0
    %2833 = vmatpush1.xpose.msra.mxu0 0.0
    %2834 = vmatprep.subr.mxu0 0.0
    %2835 = vmatpush1.xpose.msra.mxu0 0.0
    %2836 = vmatprep.subr.mxu0 0.0
    %2837 = vmatpush1.xpose.msra.mxu0 0.0
    %2838 = vmatprep.subr.mxu0 0.0
    %2839 = vmatpush1.xpose.msra.mxu0 0.0
    %2840 = vmatprep.subr.mxu0 0.0
    %2841 = vmatpush1.xpose.msra.mxu0 %v2522
    %2842 = vmatprep.subr.mxu0 0.0
    %2843 = vmatpush1.xpose.msra.mxu0 %v2520
    %2844 = vmatprep.subr.mxu0 0.0
    %2845 = vmatpush1.xpose.msra.mxu0 %v2518
    %2846 = vmatprep.subr.mxu0 0.0
    %2847 = vmatpush1.xpose.msra.mxu0 %v2516
    %2848 = vmatprep.subr.mxu0 0.0
    %2849 = vmatpush2.xpose.msra.mxu0 0.0
    %2850 = vmatprep.subr.mxu0 0.0
    %2851 = vmatpush2.xpose.msra.mxu0 0.0
    %2852 = vmatprep.subr.mxu0 0.0
    %2853 = vmatpush2.xpose.msra.mxu0 0.0
    %2854 = vmatprep.subr.mxu0 0.0
    %2855 = vmatpush2.xpose.msra.mxu0 0.0
    %2856 = vmatprep.subr.mxu0 0.0
    %2857 = vmatpush2.xpose.msra.mxu0 0.0
    %2858 = vmatprep.subr.mxu0 0.0
    %2859 = vmatpush2.xpose.msra.mxu0 0.0
    %2860 = vmatprep.subr.mxu0 0.0
    %2861 = vmatpush2.xpose.msra.mxu0 0.0
    %2862 = vmatprep.subr.mxu0 0.0
    %2863 = vmatpush2.xpose.msra.mxu0 0.0
    %2864 = vmatprep.subr.mxu0 0.0
    %2865 = vmatpush2.xpose.msra.mxu0 0.0
    %2866 = vmatprep.subr.mxu0 0.0
    %2867 = vmatpush2.xpose.msra.mxu0 0.0
    %2868 = vmatprep.subr.mxu0 0.0
    %2869 = vmatpush2.xpose.msra.mxu0 0.0
    %2870 = vmatprep.subr.mxu0 0.0
    %2871 = vmatpush2.xpose.msra.mxu0 0.0
    %2872 = vmatprep.subr.mxu0 0.0
    %2873 = vmatpush2.xpose.msra.mxu0 0.0
    %2874 = vmatprep.subr.mxu0 0.0
    %2875 = vmatpush2.xpose.msra.mxu0 0.0
    %2876 = vmatprep.subr.mxu0 0.0
    %2877 = vmatpush2.xpose.msra.mxu0 0.0
    %2878 = vmatprep.subr.mxu0 0.0
    %2879 = vmatpush2.xpose.msra.mxu0 0.0
    %2880 = vmatprep.mubr.f32.mxu0 0.0
    %2881 = vmatmul.mubr.f32.gmra.mxu0 %v2814
    %v2882 = vpop.f32.mrf.mxu0
    %v2883 = vadd.f32 0.0, %v2882
    %v2884 = vpop.f32.mrf.mxu0
    %2885 = vdwg.mxu0
    %v2886 = vsel %vm114, %v2312, 0.0
    %v2887 = vsel %vm114, %v2405, 0.0
    %v2888 = vadd.f32 %v2886, %v2887
    %v2889 = vsel %vm114, %v2498, 0.0
    %v2890 = vadd.f32 %v2888, %v2889
    %v2891 = vsel %vm114, %v2591, 0.0
    %v2892 = vadd.f32 %v2890, %v2891
    %v2893 = vsel %vm114, %v2664, 0.0
    %v2894 = vsel %vm114, %v2737, 0.0
    %v2895 = vadd.f32 %v2893, %v2894
    %v2896 = vsel %vm114, %v2810, 0.0
    %v2897 = vadd.f32 %v2895, %v2896
    %v2898 = vsel %vm114, %v2883, 0.0
    %v2899 = vadd.f32 %v2897, %v2898
    %v2900 = vadd.f32 %v87, %v2892
    %v2901 = vadd.f32 %v88, %v2899
    %v2902 = vld [vmem:[%s6] sm:$0xff]
    %v2903 = vld [vmem:[%s6 + $0x8] sm:$0xff]
    %v2904 = vld [vmem:[%s6 + $0x10] sm:$0xff]
    %v2905 = vld [vmem:[%s6 + $0x18] sm:$0xff]
    %v2906 = vld [vmem:[%s6 + $0x20] sm:$0xff]
    %v2907 = vld [vmem:[%s6 + $0x28] sm:$0xff]
    %v2908 = vld [vmem:[%s6 + $0x30] sm:$0xff]
    %v2909 = vld [vmem:[%s6 + $0x38] sm:$0xff]
    %v2910 = vld [vmem:[%s6 + $0x40] sm:$0xff]
    %v2911 = vld [vmem:[%s6 + $0x48] sm:$0xff]
    %v2912 = vld [vmem:[%s6 + $0x50] sm:$0xff]
    %v2913 = vld [vmem:[%s6 + $0x58] sm:$0xff]
    %v2914 = vld [vmem:[%s6 + $0x60] sm:$0xff]
    %v2915 = vld [vmem:[%s6 + $0x68] sm:$0xff]
    %v2916 = vld [vmem:[%s6 + $0x70] sm:$0xff]
    %v2917 = vld [vmem:[%s6 + $0x78] sm:$0xff]
    %v2918 = vsel %vm114, %v2900, 0.0
    %2919 = vadd.xlane.f32.xlu0 %v2918
    %v2920 = vpop.xlane.xlu0 %2919
    %v2921 = vsel %vm114, %v2901, 0.0
    %2922 = vadd.xlane.f32.xlu0 %v2921
    %v2923 = vpop.xlane.xlu0 %2922
    %v2924 = vmul.f32 %v2920, %v121
    %v2925 = vmul.f32 %v2923, %v121
    %v2926 = vsub.f32 %v2900, %v2924
    %v2927 = vsub.f32 %v2901, %v2925
    %v2928 = vmul.f32 %v2926, %v2926
    %v2929 = vmul.f32 %v2927, %v2927
    %v2930 = vsel %vm114, %v2928, 0.0
    %2931 = vadd.xlane.f32.xlu0 %v2930
    %v2932 = vpop.xlane.xlu0 %2931
    %v2933 = vsel %vm114, %v2929, 0.0
    %2934 = vadd.xlane.f32.xlu0 %v2933
    %v2935 = vpop.xlane.xlu0 %2934
    %v2936 = vmul.f32 %v2932, %v121
    %v2937 = vmul.f32 %v2935, %v121
    %v2938 = vadd.f32 %v2936, 1e-05
    %v2939 = vadd.f32 %v2937, 1e-05
    %v2940 = vrsqrt.pop %v2938
    %v2941 = vrsqrt.pop %v2939
    %v2942 = vmul.f32 %v2926, %v2940
    %v2943 = vmul.f32 %v2927, %v2941
    %v2944 = vlaneseq
    %v2945 = vshrl.u32 %v2944, 7
    %v2946 = vsub.s32 2, %v2945
    %v2947 = vrot.slane %v97, %v2946
    %v2948 = vmul.f32 %v2942, %v2947
    %v2949 = vmul.f32 %v2943, %v2947
    %v2950 = vlaneseq
    %v2951 = vshrl.u32 %v2950, 7
    %v2952 = vsub.s32 3, %v2951
    %v2953 = vrot.slane %v97, %v2952
    %v2954 = vadd.f32 %v2948, %v2953
    %v2955 = vadd.f32 %v2949, %v2953
    %v2957 = vsel %vm114, %v2954, 0
    %2959 = vmatprep.subr.mxu0 0.0
    %2960 = vmatpush1.msra.mxu0 0.0
    %2961 = vmatprep.subr.mxu0 0.0
    %2962 = vmatpush1.msra.mxu0 0.0
    %2963 = vmatprep.subr.mxu0 0.0
    %2964 = vmatpush1.msra.mxu0 0.0
    %2965 = vmatprep.subr.mxu0 0.0
    %2966 = vmatpush1.msra.mxu0 0.0
    %2967 = vmatprep.subr.mxu0 0.0
    %2968 = vmatpush1.msra.mxu0 0.0
    %2969 = vmatprep.subr.mxu0 0.0
    %2970 = vmatpush1.msra.mxu0 0.0
    %2971 = vmatprep.subr.mxu0 0.0
    %2972 = vmatpush1.msra.mxu0 0.0
    %2973 = vmatprep.subr.mxu0 0.0
    %2974 = vmatpush1.msra.mxu0 0.0
    %2975 = vmatprep.subr.mxu0 0.0
    %2976 = vmatpush1.msra.mxu0 0.0
    %2977 = vmatprep.subr.mxu0 0.0
    %2978 = vmatpush1.msra.mxu0 0.0
    %2979 = vmatprep.subr.mxu0 0.0
    %2980 = vmatpush1.msra.mxu0 0.0
    %2981 = vmatprep.subr.mxu0 0.0
    %2982 = vmatpush1.msra.mxu0 0.0
    %2983 = vmatprep.subr.mxu0 0.0
    %2984 = vmatpush1.msra.mxu0 %v2905
    %2985 = vmatprep.subr.mxu0 0.0
    %2986 = vmatpush1.msra.mxu0 %v2904
    %2987 = vmatprep.subr.mxu0 0.0
    %2988 = vmatpush1.msra.mxu0 %v2903
    %2989 = vmatprep.subr.mxu0 0.0
    %2990 = vmatpush1.msra.mxu0 %v2902
    %2991 = vmatprep.subr.mxu0 0.0
    %2992 = vmatpush2.msra.mxu0 0.0
    %2993 = vmatprep.subr.mxu0 0.0
    %2994 = vmatpush2.msra.mxu0 0.0
    %2995 = vmatprep.subr.mxu0 0.0
    %2996 = vmatpush2.msra.mxu0 0.0
    %2997 = vmatprep.subr.mxu0 0.0
    %2998 = vmatpush2.msra.mxu0 0.0
    %2999 = vmatprep.subr.mxu0 0.0
    %3000 = vmatpush2.msra.mxu0 0.0
    %3001 = vmatprep.subr.mxu0 0.0
    %3002 = vmatpush2.msra.mxu0 0.0
    %3003 = vmatprep.subr.mxu0 0.0
    %3004 = vmatpush2.msra.mxu0 0.0
    %3005 = vmatprep.subr.mxu0 0.0
    %3006 = vmatpush2.msra.mxu0 0.0
    %3007 = vmatprep.subr.mxu0 0.0
    %3008 = vmatpush2.msra.mxu0 0.0
    %3009 = vmatprep.subr.mxu0 0.0
    %3010 = vmatpush2.msra.mxu0 0.0
    %3011 = vmatprep.subr.mxu0 0.0
    %3012 = vmatpush2.msra.mxu0 0.0
    %3013 = vmatprep.subr.mxu0 0.0
    %3014 = vmatpush2.msra.mxu0 0.0
    %3015 = vmatprep.subr.mxu0 0.0
    %3016 = vmatpush2.msra.mxu0 0.0
    %3017 = vmatprep.subr.mxu0 0.0
    %3018 = vmatpush2.msra.mxu0 0.0
    %3019 = vmatprep.subr.mxu0 0.0
    %3020 = vmatpush2.msra.mxu0 0.0
    %3021 = vmatprep.subr.mxu0 0.0
    %3022 = vmatpush2.msra.mxu0 0.0
    %3023 = vmatprep.mubr.f32.mxu0 0.0
    %3024 = vmatmul.mubr.f32.gmra.mxu0 %v2957
    %v3025 = vpop.f32.mrf.mxu0
    %v3026 = vadd.f32 0.0, %v3025
    %v3027 = vpop.f32.mrf.mxu0
    %3028 = vdwg.mxu0
    %3029 = vmatprep.subr.mxu0 0.0
    %3030 = vmatpush1.msra.mxu0 0.0
    %3031 = vmatprep.subr.mxu0 0.0
    %3032 = vmatpush1.msra.mxu0 0.0
    %3033 = vmatprep.subr.mxu0 0.0
    %3034 = vmatpush1.msra.mxu0 0.0
    %3035 = vmatprep.subr.mxu0 0.0
    %3036 = vmatpush1.msra.mxu0 0.0
    %3037 = vmatprep.subr.mxu0 0.0
    %3038 = vmatpush1.msra.mxu0 0.0
    %3039 = vmatprep.subr.mxu0 0.0
    %3040 = vmatpush1.msra.mxu0 0.0
    %3041 = vmatprep.subr.mxu0 0.0
    %3042 = vmatpush1.msra.mxu0 0.0
    %3043 = vmatprep.subr.mxu0 0.0
    %3044 = vmatpush1.msra.mxu0 0.0
    %3045 = vmatprep.subr.mxu0 0.0
    %3046 = vmatpush1.msra.mxu0 0.0
    %3047 = vmatprep.subr.mxu0 0.0
    %3048 = vmatpush1.msra.mxu0 0.0
    %3049 = vmatprep.subr.mxu0 0.0
    %3050 = vmatpush1.msra.mxu0 0.0
    %3051 = vmatprep.subr.mxu0 0.0
    %3052 = vmatpush1.msra.mxu0 0.0
    %3053 = vmatprep.subr.mxu0 0.0
    %3054 = vmatpush1.msra.mxu0 %v2909
    %3055 = vmatprep.subr.mxu0 0.0
    %3056 = vmatpush1.msra.mxu0 %v2908
    %3057 = vmatprep.subr.mxu0 0.0
    %3058 = vmatpush1.msra.mxu0 %v2907
    %3059 = vmatprep.subr.mxu0 0.0
    %3060 = vmatpush1.msra.mxu0 %v2906
    %3061 = vmatprep.subr.mxu0 0.0
    %3062 = vmatpush2.msra.mxu0 0.0
    %3063 = vmatprep.subr.mxu0 0.0
    %3064 = vmatpush2.msra.mxu0 0.0
    %3065 = vmatprep.subr.mxu0 0.0
    %3066 = vmatpush2.msra.mxu0 0.0
    %3067 = vmatprep.subr.mxu0 0.0
    %3068 = vmatpush2.msra.mxu0 0.0
    %3069 = vmatprep.subr.mxu0 0.0
    %3070 = vmatpush2.msra.mxu0 0.0
    %3071 = vmatprep.subr.mxu0 0.0
    %3072 = vmatpush2.msra.mxu0 0.0
    %3073 = vmatprep.subr.mxu0 0.0
    %3074 = vmatpush2.msra.mxu0 0.0
    %3075 = vmatprep.subr.mxu0 0.0
    %3076 = vmatpush2.msra.mxu0 0.0
    %3077 = vmatprep.subr.mxu0 0.0
    %3078 = vmatpush2.msra.mxu0 0.0
    %3079 = vmatprep.subr.mxu0 0.0
    %3080 = vmatpush2.msra.mxu0 0.0
    %3081 = vmatprep.subr.mxu0 0.0
    %3082 = vmatpush2.msra.mxu0 0.0
    %3083 = vmatprep.subr.mxu0 0.0
    %3084 = vmatpush2.msra.mxu0 0.0
    %3085 = vmatprep.subr.mxu0 0.0
    %3086 = vmatpush2.msra.mxu0 0.0
    %3087 = vmatprep.subr.mxu0 0.0
    %3088 = vmatpush2.msra.mxu0 0.0
    %3089 = vmatprep.subr.mxu0 0.0
    %3090 = vmatpush2.msra.mxu0 0.0
    %3091 = vmatprep.subr.mxu0 0.0
    %3092 = vmatpush2.msra.mxu0 0.0
    %3093 = vmatprep.mubr.f32.mxu0 0.0
    %3094 = vmatmul.mubr.f32.gmra.mxu0 %v2957
    %v3095 = vpop.f32.mrf.mxu0
    %v3096 = vadd.f32 0.0, %v3095
    %v3097 = vpop.f32.mrf.mxu0
    %3098 = vdwg.mxu0
    %3099 = vmatprep.subr.mxu0 0.0
    %3100 = vmatpush1.msra.mxu0 0.0
    %3101 = vmatprep.subr.mxu0 0.0
    %3102 = vmatpush1.msra.mxu0 0.0
    %3103 = vmatprep.subr.mxu0 0.0
    %3104 = vmatpush1.msra.mxu0 0.0
    %3105 = vmatprep.subr.mxu0 0.0
    %3106 = vmatpush1.msra.mxu0 0.0
    %3107 = vmatprep.subr.mxu0 0.0
    %3108 = vmatpush1.msra.mxu0 0.0
    %3109 = vmatprep.subr.mxu0 0.0
    %3110 = vmatpush1.msra.mxu0 0.0
    %3111 = vmatprep.subr.mxu0 0.0
    %3112 = vmatpush1.msra.mxu0 0.0
    %3113 = vmatprep.subr.mxu0 0.0
    %3114 = vmatpush1.msra.mxu0 0.0
    %3115 = vmatprep.subr.mxu0 0.0
    %3116 = vmatpush1.msra.mxu0 0.0
    %3117 = vmatprep.subr.mxu0 0.0
    %3118 = vmatpush1.msra.mxu0 0.0
    %3119 = vmatprep.subr.mxu0 0.0
    %3120 = vmatpush1.msra.mxu0 0.0
    %3121 = vmatprep.subr.mxu0 0.0
    %3122 = vmatpush1.msra.mxu0 0.0
    %3123 = vmatprep.subr.mxu0 0.0
    %3124 = vmatpush1.msra.mxu0 %v2913
    %3125 = vmatprep.subr.mxu0 0.0
    %3126 = vmatpush1.msra.mxu0 %v2912
    %3127 = vmatprep.subr.mxu0 0.0
    %3128 = vmatpush1.msra.mxu0 %v2911
    %3129 = vmatprep.subr.mxu0 0.0
    %3130 = vmatpush1.msra.mxu0 %v2910
    %3131 = vmatprep.subr.mxu0 0.0
    %3132 = vmatpush2.msra.mxu0 0.0
    %3133 = vmatprep.subr.mxu0 0.0
    %3134 = vmatpush2.msra.mxu0 0.0
    %3135 = vmatprep.subr.mxu0 0.0
    %3136 = vmatpush2.msra.mxu0 0.0
    %3137 = vmatprep.subr.mxu0 0.0
    %3138 = vmatpush2.msra.mxu0 0.0
    %3139 = vmatprep.subr.mxu0 0.0
    %3140 = vmatpush2.msra.mxu0 0.0
    %3141 = vmatprep.subr.mxu0 0.0
    %3142 = vmatpush2.msra.mxu0 0.0
    %3143 = vmatprep.subr.mxu0 0.0
    %3144 = vmatpush2.msra.mxu0 0.0
    %3145 = vmatprep.subr.mxu0 0.0
    %3146 = vmatpush2.msra.mxu0 0.0
    %3147 = vmatprep.subr.mxu0 0.0
    %3148 = vmatpush2.msra.mxu0 0.0
    %3149 = vmatprep.subr.mxu0 0.0
    %3150 = vmatpush2.msra.mxu0 0.0
    %3151 = vmatprep.subr.mxu0 0.0
    %3152 = vmatpush2.msra.mxu0 0.0
    %3153 = vmatprep.subr.mxu0 0.0
    %3154 = vmatpush2.msra.mxu0 0.0
    %3155 = vmatprep.subr.mxu0 0.0
    %3156 = vmatpush2.msra.mxu0 0.0
    %3157 = vmatprep.subr.mxu0 0.0
    %3158 = vmatpush2.msra.mxu0 0.0
    %3159 = vmatprep.subr.mxu0 0.0
    %3160 = vmatpush2.msra.mxu0 0.0
    %3161 = vmatprep.subr.mxu0 0.0
    %3162 = vmatpush2.msra.mxu0 0.0
    %3163 = vmatprep.mubr.f32.mxu0 0.0
    %3164 = vmatmul.mubr.f32.gmra.mxu0 %v2957
    %v3165 = vpop.f32.mrf.mxu0
    %v3166 = vadd.f32 0.0, %v3165
    %v3167 = vpop.f32.mrf.mxu0
    %3168 = vdwg.mxu0
    %3169 = vmatprep.subr.mxu0 0.0
    %3170 = vmatpush1.msra.mxu0 0.0
    %3171 = vmatprep.subr.mxu0 0.0
    %3172 = vmatpush1.msra.mxu0 0.0
    %3173 = vmatprep.subr.mxu0 0.0
    %3174 = vmatpush1.msra.mxu0 0.0
    %3175 = vmatprep.subr.mxu0 0.0
    %3176 = vmatpush1.msra.mxu0 0.0
    %3177 = vmatprep.subr.mxu0 0.0
    %3178 = vmatpush1.msra.mxu0 0.0
    %3179 = vmatprep.subr.mxu0 0.0
    %3180 = vmatpush1.msra.mxu0 0.0
    %3181 = vmatprep.subr.mxu0 0.0
    %3182 = vmatpush1.msra.mxu0 0.0
    %3183 = vmatprep.subr.mxu0 0.0
    %3184 = vmatpush1.msra.mxu0 0.0
    %3185 = vmatprep.subr.mxu0 0.0
    %3186 = vmatpush1.msra.mxu0 0.0
    %3187 = vmatprep.subr.mxu0 0.0
    %3188 = vmatpush1.msra.mxu0 0.0
    %3189 = vmatprep.subr.mxu0 0.0
    %3190 = vmatpush1.msra.mxu0 0.0
    %3191 = vmatprep.subr.mxu0 0.0
    %3192 = vmatpush1.msra.mxu0 0.0
    %3193 = vmatprep.subr.mxu0 0.0
    %3194 = vmatpush1.msra.mxu0 %v2917
    %3195 = vmatprep.subr.mxu0 0.0
    %3196 = vmatpush1.msra.mxu0 %v2916
    %3197 = vmatprep.subr.mxu0 0.0
    %3198 = vmatpush1.msra.mxu0 %v2915
    %3199 = vmatprep.subr.mxu0 0.0
    %3200 = vmatpush1.msra.mxu0 %v2914
    %3201 = vmatprep.subr.mxu0 0.0
    %3202 = vmatpush2.msra.mxu0 0.0
    %3203 = vmatprep.subr.mxu0 0.0
    %3204 = vmatpush2.msra.mxu0 0.0
    %3205 = vmatprep.subr.mxu0 0.0
    %3206 = vmatpush2.msra.mxu0 0.0
    %3207 = vmatprep.subr.mxu0 0.0
    %3208 = vmatpush2.msra.mxu0 0.0
    %3209 = vmatprep.subr.mxu0 0.0
    %3210 = vmatpush2.msra.mxu0 0.0
    %3211 = vmatprep.subr.mxu0 0.0
    %3212 = vmatpush2.msra.mxu0 0.0
    %3213 = vmatprep.subr.mxu0 0.0
    %3214 = vmatpush2.msra.mxu0 0.0
    %3215 = vmatprep.subr.mxu0 0.0
    %3216 = vmatpush2.msra.mxu0 0.0
    %3217 = vmatprep.subr.mxu0 0.0
    %3218 = vmatpush2.msra.mxu0 0.0
    %3219 = vmatprep.subr.mxu0 0.0
    %3220 = vmatpush2.msra.mxu0 0.0
    %3221 = vmatprep.subr.mxu0 0.0
    %3222 = vmatpush2.msra.mxu0 0.0
    %3223 = vmatprep.subr.mxu0 0.0
    %3224 = vmatpush2.msra.mxu0 0.0
    %3225 = vmatprep.subr.mxu0 0.0
    %3226 = vmatpush2.msra.mxu0 0.0
    %3227 = vmatprep.subr.mxu0 0.0
    %3228 = vmatpush2.msra.mxu0 0.0
    %3229 = vmatprep.subr.mxu0 0.0
    %3230 = vmatpush2.msra.mxu0 0.0
    %3231 = vmatprep.subr.mxu0 0.0
    %3232 = vmatpush2.msra.mxu0 0.0
    %3233 = vmatprep.mubr.f32.mxu0 0.0
    %3234 = vmatmul.mubr.f32.gmra.mxu0 %v2957
    %v3235 = vpop.f32.mrf.mxu0
    %v3236 = vadd.f32 0.0, %v3235
    %v3237 = vpop.f32.mrf.mxu0
    %3238 = vdwg.mxu0
    %v3240 = vsel %vm114, %v2955, 0
    %3242 = vmatprep.subr.mxu0 0.0
    %3243 = vmatpush1.msra.mxu0 0.0
    %3244 = vmatprep.subr.mxu0 0.0
    %3245 = vmatpush1.msra.mxu0 0.0
    %3246 = vmatprep.subr.mxu0 0.0
    %3247 = vmatpush1.msra.mxu0 0.0
    %3248 = vmatprep.subr.mxu0 0.0
    %3249 = vmatpush1.msra.mxu0 0.0
    %3250 = vmatprep.subr.mxu0 0.0
    %3251 = vmatpush1.msra.mxu0 0.0
    %3252 = vmatprep.subr.mxu0 0.0
    %3253 = vmatpush1.msra.mxu0 0.0
    %3254 = vmatprep.subr.mxu0 0.0
    %3255 = vmatpush1.msra.mxu0 0.0
    %3256 = vmatprep.subr.mxu0 0.0
    %3257 = vmatpush1.msra.mxu0 0.0
    %3258 = vmatprep.subr.mxu0 0.0
    %3259 = vmatpush1.msra.mxu0 0.0
    %3260 = vmatprep.subr.mxu0 0.0
    %3261 = vmatpush1.msra.mxu0 0.0
    %3262 = vmatprep.subr.mxu0 0.0
    %3263 = vmatpush1.msra.mxu0 0.0
    %3264 = vmatprep.subr.mxu0 0.0
    %3265 = vmatpush1.msra.mxu0 0.0
    %3266 = vmatprep.subr.mxu0 0.0
    %3267 = vmatpush1.msra.mxu0 %v2905
    %3268 = vmatprep.subr.mxu0 0.0
    %3269 = vmatpush1.msra.mxu0 %v2904
    %3270 = vmatprep.subr.mxu0 0.0
    %3271 = vmatpush1.msra.mxu0 %v2903
    %3272 = vmatprep.subr.mxu0 0.0
    %3273 = vmatpush1.msra.mxu0 %v2902
    %3274 = vmatprep.subr.mxu0 0.0
    %3275 = vmatpush2.msra.mxu0 0.0
    %3276 = vmatprep.subr.mxu0 0.0
    %3277 = vmatpush2.msra.mxu0 0.0
    %3278 = vmatprep.subr.mxu0 0.0
    %3279 = vmatpush2.msra.mxu0 0.0
    %3280 = vmatprep.subr.mxu0 0.0
    %3281 = vmatpush2.msra.mxu0 0.0
    %3282 = vmatprep.subr.mxu0 0.0
    %3283 = vmatpush2.msra.mxu0 0.0
    %3284 = vmatprep.subr.mxu0 0.0
    %3285 = vmatpush2.msra.mxu0 0.0
    %3286 = vmatprep.subr.mxu0 0.0
    %3287 = vmatpush2.msra.mxu0 0.0
    %3288 = vmatprep.subr.mxu0 0.0
    %3289 = vmatpush2.msra.mxu0 0.0
    %3290 = vmatprep.subr.mxu0 0.0
    %3291 = vmatpush2.msra.mxu0 0.0
    %3292 = vmatprep.subr.mxu0 0.0
    %3293 = vmatpush2.msra.mxu0 0.0
    %3294 = vmatprep.subr.mxu0 0.0
    %3295 = vmatpush2.msra.mxu0 0.0
    %3296 = vmatprep.subr.mxu0 0.0
    %3297 = vmatpush2.msra.mxu0 0.0
    %3298 = vmatprep.subr.mxu0 0.0
    %3299 = vmatpush2.msra.mxu0 0.0
    %3300 = vmatprep.subr.mxu0 0.0
    %3301 = vmatpush2.msra.mxu0 0.0
    %3302 = vmatprep.subr.mxu0 0.0
    %3303 = vmatpush2.msra.mxu0 0.0
    %3304 = vmatprep.subr.mxu0 0.0
    %3305 = vmatpush2.msra.mxu0 0.0
    %3306 = vmatprep.mubr.f32.mxu0 0.0
    %3307 = vmatmul.mubr.f32.gmra.mxu0 %v3240
    %v3308 = vpop.f32.mrf.mxu0
    %v3309 = vadd.f32 0.0, %v3308
    %v3310 = vpop.f32.mrf.mxu0
    %3311 = vdwg.mxu0
    %3312 = vmatprep.subr.mxu0 0.0
    %3313 = vmatpush1.msra.mxu0 0.0
    %3314 = vmatprep.subr.mxu0 0.0
    %3315 = vmatpush1.msra.mxu0 0.0
    %3316 = vmatprep.subr.mxu0 0.0
    %3317 = vmatpush1.msra.mxu0 0.0
    %3318 = vmatprep.subr.mxu0 0.0
    %3319 = vmatpush1.msra.mxu0 0.0
    %3320 = vmatprep.subr.mxu0 0.0
    %3321 = vmatpush1.msra.mxu0 0.0
    %3322 = vmatprep.subr.mxu0 0.0
    %3323 = vmatpush1.msra.mxu0 0.0
    %3324 = vmatprep.subr.mxu0 0.0
    %3325 = vmatpush1.msra.mxu0 0.0
    %3326 = vmatprep.subr.mxu0 0.0
    %3327 = vmatpush1.msra.mxu0 0.0
    %3328 = vmatprep.subr.mxu0 0.0
    %3329 = vmatpush1.msra.mxu0 0.0
    %3330 = vmatprep.subr.mxu0 0.0
    %3331 = vmatpush1.msra.mxu0 0.0
    %3332 = vmatprep.subr.mxu0 0.0
    %3333 = vmatpush1.msra.mxu0 0.0
    %3334 = vmatprep.subr.mxu0 0.0
    %3335 = vmatpush1.msra.mxu0 0.0
    %3336 = vmatprep.subr.mxu0 0.0
    %3337 = vmatpush1.msra.mxu0 %v2909
    %3338 = vmatprep.subr.mxu0 0.0
    %3339 = vmatpush1.msra.mxu0 %v2908
    %3340 = vmatprep.subr.mxu0 0.0
    %3341 = vmatpush1.msra.mxu0 %v2907
    %3342 = vmatprep.subr.mxu0 0.0
    %3343 = vmatpush1.msra.mxu0 %v2906
    %3344 = vmatprep.subr.mxu0 0.0
    %3345 = vmatpush2.msra.mxu0 0.0
    %3346 = vmatprep.subr.mxu0 0.0
    %3347 = vmatpush2.msra.mxu0 0.0
    %3348 = vmatprep.subr.mxu0 0.0
    %3349 = vmatpush2.msra.mxu0 0.0
    %3350 = vmatprep.subr.mxu0 0.0
    %3351 = vmatpush2.msra.mxu0 0.0
    %3352 = vmatprep.subr.mxu0 0.0
    %3353 = vmatpush2.msra.mxu0 0.0
    %3354 = vmatprep.subr.mxu0 0.0
    %3355 = vmatpush2.msra.mxu0 0.0
    %3356 = vmatprep.subr.mxu0 0.0
    %3357 = vmatpush2.msra.mxu0 0.0
    %3358 = vmatprep.subr.mxu0 0.0
    %3359 = vmatpush2.msra.mxu0 0.0
    %3360 = vmatprep.subr.mxu0 0.0
    %3361 = vmatpush2.msra.mxu0 0.0
    %3362 = vmatprep.subr.mxu0 0.0
    %3363 = vmatpush2.msra.mxu0 0.0
    %3364 = vmatprep.subr.mxu0 0.0
    %3365 = vmatpush2.msra.mxu0 0.0
    %3366 = vmatprep.subr.mxu0 0.0
    %3367 = vmatpush2.msra.mxu0 0.0
    %3368 = vmatprep.subr.mxu0 0.0
    %3369 = vmatpush2.msra.mxu0 0.0
    %3370 = vmatprep.subr.mxu0 0.0
    %3371 = vmatpush2.msra.mxu0 0.0
    %3372 = vmatprep.subr.mxu0 0.0
    %3373 = vmatpush2.msra.mxu0 0.0
    %3374 = vmatprep.subr.mxu0 0.0
    %3375 = vmatpush2.msra.mxu0 0.0
    %3376 = vmatprep.mubr.f32.mxu0 0.0
    %3377 = vmatmul.mubr.f32.gmra.mxu0 %v3240
    %v3378 = vpop.f32.mrf.mxu0
    %v3379 = vadd.f32 0.0, %v3378
    %v3380 = vpop.f32.mrf.mxu0
    %3381 = vdwg.mxu0
    %3382 = vmatprep.subr.mxu0 0.0
    %3383 = vmatpush1.msra.mxu0 0.0
    %3384 = vmatprep.subr.mxu0 0.0
    %3385 = vmatpush1.msra.mxu0 0.0
    %3386 = vmatprep.subr.mxu0 0.0
    %3387 = vmatpush1.msra.mxu0 0.0
    %3388 = vmatprep.subr.mxu0 0.0
    %3389 = vmatpush1.msra.mxu0 0.0
    %3390 = vmatprep.subr.mxu0 0.0
    %3391 = vmatpush1.msra.mxu0 0.0
    %3392 = vmatprep.subr.mxu0 0.0
    %3393 = vmatpush1.msra.mxu0 0.0
    %3394 = vmatprep.subr.mxu0 0.0
    %3395 = vmatpush1.msra.mxu0 0.0
    %3396 = vmatprep.subr.mxu0 0.0
    %3397 = vmatpush1.msra.mxu0 0.0
    %3398 = vmatprep.subr.mxu0 0.0
    %3399 = vmatpush1.msra.mxu0 0.0
    %3400 = vmatprep.subr.mxu0 0.0
    %3401 = vmatpush1.msra.mxu0 0.0
    %3402 = vmatprep.subr.mxu0 0.0
    %3403 = vmatpush1.msra.mxu0 0.0
    %3404 = vmatprep.subr.mxu0 0.0
    %3405 = vmatpush1.msra.mxu0 0.0
    %3406 = vmatprep.subr.mxu0 0.0
    %3407 = vmatpush1.msra.mxu0 %v2913
    %3408 = vmatprep.subr.mxu0 0.0
    %3409 = vmatpush1.msra.mxu0 %v2912
    %3410 = vmatprep.subr.mxu0 0.0
    %3411 = vmatpush1.msra.mxu0 %v2911
    %3412 = vmatprep.subr.mxu0 0.0
    %3413 = vmatpush1.msra.mxu0 %v2910
    %3414 = vmatprep.subr.mxu0 0.0
    %3415 = vmatpush2.msra.mxu0 0.0
    %3416 = vmatprep.subr.mxu0 0.0
    %3417 = vmatpush2.msra.mxu0 0.0
    %3418 = vmatprep.subr.mxu0 0.0
    %3419 = vmatpush2.msra.mxu0 0.0
    %3420 = vmatprep.subr.mxu0 0.0
    %3421 = vmatpush2.msra.mxu0 0.0
    %3422 = vmatprep.subr.mxu0 0.0
    %3423 = vmatpush2.msra.mxu0 0.0
    %3424 = vmatprep.subr.mxu0 0.0
    %3425 = vmatpush2.msra.mxu0 0.0
    %3426 = vmatprep.subr.mxu0 0.0
    %3427 = vmatpush2.msra.mxu0 0.0
    %3428 = vmatprep.subr.mxu0 0.0
    %3429 = vmatpush2.msra.mxu0 0.0
    %3430 = vmatprep.subr.mxu0 0.0
    %3431 = vmatpush2.msra.mxu0 0.0
    %3432 = vmatprep.subr.mxu0 0.0
    %3433 = vmatpush2.msra.mxu0 0.0
    %3434 = vmatprep.subr.mxu0 0.0
    %3435 = vmatpush2.msra.mxu0 0.0
    %3436 = vmatprep.subr.mxu0 0.0
    %3437 = vmatpush2.msra.mxu0 0.0
    %3438 = vmatprep.subr.mxu0 0.0
    %3439 = vmatpush2.msra.mxu0 0.0
    %3440 = vmatprep.subr.mxu0 0.0
    %3441 = vmatpush2.msra.mxu0 0.0
    %3442 = vmatprep.subr.mxu0 0.0
    %3443 = vmatpush2.msra.mxu0 0.0
    %3444 = vmatprep.subr.mxu0 0.0
    %3445 = vmatpush2.msra.mxu0 0.0
    %3446 = vmatprep.mubr.f32.mxu0 0.0
    %3447 = vmatmul.mubr.f32.gmra.mxu0 %v3240
    %v3448 = vpop.f32.mrf.mxu0
    %v3449 = vadd.f32 0.0, %v3448
    %v3450 = vpop.f32.mrf.mxu0
    %3451 = vdwg.mxu0
    %3452 = vmatprep.subr.mxu0 0.0
    %3453 = vmatpush1.msra.mxu0 0.0
    %3454 = vmatprep.subr.mxu0 0.0
    %3455 = vmatpush1.msra.mxu0 0.0
    %3456 = vmatprep.subr.mxu0 0.0
    %3457 = vmatpush1.msra.mxu0 0.0
    %3458 = vmatprep.subr.mxu0 0.0
    %3459 = vmatpush1.msra.mxu0 0.0
    %3460 = vmatprep.subr.mxu0 0.0
    %3461 = vmatpush1.msra.mxu0 0.0
    %3462 = vmatprep.subr.mxu0 0.0
    %3463 = vmatpush1.msra.mxu0 0.0
    %3464 = vmatprep.subr.mxu0 0.0
    %3465 = vmatpush1.msra.mxu0 0.0
    %3466 = vmatprep.subr.mxu0 0.0
    %3467 = vmatpush1.msra.mxu0 0.0
    %3468 = vmatprep.subr.mxu0 0.0
    %3469 = vmatpush1.msra.mxu0 0.0
    %3470 = vmatprep.subr.mxu0 0.0
    %3471 = vmatpush1.msra.mxu0 0.0
    %3472 = vmatprep.subr.mxu0 0.0
    %3473 = vmatpush1.msra.mxu0 0.0
    %3474 = vmatprep.subr.mxu0 0.0
    %3475 = vmatpush1.msra.mxu0 0.0
    %3476 = vmatprep.subr.mxu0 0.0
    %3477 = vmatpush1.msra.mxu0 %v2917
    %3478 = vmatprep.subr.mxu0 0.0
    %3479 = vmatpush1.msra.mxu0 %v2916
    %3480 = vmatprep.subr.mxu0 0.0
    %3481 = vmatpush1.msra.mxu0 %v2915
    %3482 = vmatprep.subr.mxu0 0.0
    %3483 = vmatpush1.msra.mxu0 %v2914
    %3484 = vmatprep.subr.mxu0 0.0
    %3485 = vmatpush2.msra.mxu0 0.0
    %3486 = vmatprep.subr.mxu0 0.0
    %3487 = vmatpush2.msra.mxu0 0.0
    %3488 = vmatprep.subr.mxu0 0.0
    %3489 = vmatpush2.msra.mxu0 0.0
    %3490 = vmatprep.subr.mxu0 0.0
    %3491 = vmatpush2.msra.mxu0 0.0
    %3492 = vmatprep.subr.mxu0 0.0
    %3493 = vmatpush2.msra.mxu0 0.0
    %3494 = vmatprep.subr.mxu0 0.0
    %3495 = vmatpush2.msra.mxu0 0.0
    %3496 = vmatprep.subr.mxu0 0.0
    %3497 = vmatpush2.msra.mxu0 0.0
    %3498 = vmatprep.subr.mxu0 0.0
    %3499 = vmatpush2.msra.mxu0 0.0
    %3500 = vmatprep.subr.mxu0 0.0
    %3501 = vmatpush2.msra.mxu0 0.0
    %3502 = vmatprep.subr.mxu0 0.0
    %3503 = vmatpush2.msra.mxu0 0.0
    %3504 = vmatprep.subr.mxu0 0.0
    %3505 = vmatpush2.msra.mxu0 0.0
    %3506 = vmatprep.subr.mxu0 0.0
    %3507 = vmatpush2.msra.mxu0 0.0
    %3508 = vmatprep.subr.mxu0 0.0
    %3509 = vmatpush2.msra.mxu0 0.0
    %3510 = vmatprep.subr.mxu0 0.0
    %3511 = vmatpush2.msra.mxu0 0.0
    %3512 = vmatprep.subr.mxu0 0.0
    %3513 = vmatpush2.msra.mxu0 0.0
    %3514 = vmatprep.subr.mxu0 0.0
    %3515 = vmatpush2.msra.mxu0 0.0
    %3516 = vmatprep.mubr.f32.mxu0 0.0
    %3517 = vmatmul.mubr.f32.gmra.mxu0 %v3240
    %v3518 = vpop.f32.mrf.mxu0
    %v3519 = vadd.f32 0.0, %v3518
    %v3520 = vpop.f32.mrf.mxu0
    %3521 = vdwg.mxu0
    %3526 = vrot.lane.b32.xlu0 %v2902, 120
    %v3527 = vpop.permute.xlu0 %3526
    %3528 = vrot.lane.b32.xlu0 %v2903, 120
    %v3529 = vpop.permute.xlu0 %3528
    %3530 = vrot.lane.b32.xlu0 %v2904, 120
    %v3531 = vpop.permute.xlu0 %3530
    %3532 = vrot.lane.b32.xlu0 %v2905, 120
    %v3533 = vpop.permute.xlu0 %3532
    %v3539 = vsel %vm114, %v89, 0
    %v3542 = vsel %vm114, %v90, 0
    %3544 = vmatprep.subr.mxu0 0.0
    %3545 = vmatpush1.msra.mxu0 0.0
    %3546 = vmatprep.subr.mxu0 0.0
    %3547 = vmatpush1.msra.mxu0 0.0
    %3548 = vmatprep.subr.mxu0 0.0
    %3549 = vmatpush1.msra.mxu0 0.0
    %3550 = vmatprep.subr.mxu0 0.0
    %3551 = vmatpush1.msra.mxu0 0.0
    %3552 = vmatprep.subr.mxu0 0.0
    %3553 = vmatpush1.msra.mxu0 0.0
    %3554 = vmatprep.subr.mxu0 0.0
    %3555 = vmatpush1.msra.mxu0 0.0
    %3556 = vmatprep.subr.mxu0 0.0
    %3557 = vmatpush1.msra.mxu0 0.0
    %3558 = vmatprep.subr.mxu0 0.0
    %3559 = vmatpush1.msra.mxu0 0.0
    %3560 = vmatprep.subr.mxu0 0.0
    %3561 = vmatpush1.msra.mxu0 0.0
    %3562 = vmatprep.subr.mxu0 0.0
    %3563 = vmatpush1.msra.mxu0 0.0
    %3564 = vmatprep.subr.mxu0 0.0
    %3565 = vmatpush1.msra.mxu0 0.0
    %3566 = vmatprep.subr.mxu0 0.0
    %3567 = vmatpush1.msra.mxu0 0.0
    %3568 = vmatprep.subr.mxu0 0.0
    %3569 = vmatpush1.msra.mxu0 %v3533
    %3570 = vmatprep.subr.mxu0 0.0
    %3571 = vmatpush1.msra.mxu0 %v3531
    %3572 = vmatprep.subr.mxu0 0.0
    %3573 = vmatpush1.msra.mxu0 %v3529
    %3574 = vmatprep.subr.mxu0 0.0
    %3575 = vmatpush1.msra.mxu0 %v3527
    %3576 = vmatprep.subr.mxu0 0.0
    %3577 = vmatpush2.msra.mxu0 0.0
    %3578 = vmatprep.subr.mxu0 0.0
    %3579 = vmatpush2.msra.mxu0 0.0
    %3580 = vmatprep.subr.mxu0 0.0
    %3581 = vmatpush2.msra.mxu0 0.0
    %3582 = vmatprep.subr.mxu0 0.0
    %3583 = vmatpush2.msra.mxu0 0.0
    %3584 = vmatprep.subr.mxu0 0.0
    %3585 = vmatpush2.msra.mxu0 0.0
    %3586 = vmatprep.subr.mxu0 0.0
    %3587 = vmatpush2.msra.mxu0 0.0
    %3588 = vmatprep.subr.mxu0 0.0
    %3589 = vmatpush2.msra.mxu0 0.0
    %3590 = vmatprep.subr.mxu0 0.0
    %3591 = vmatpush2.msra.mxu0 0.0
    %3592 = vmatprep.subr.mxu0 0.0
    %3593 = vmatpush2.msra.mxu0 0.0
    %3594 = vmatprep.subr.mxu0 0.0
    %3595 = vmatpush2.msra.mxu0 0.0
    %3596 = vmatprep.subr.mxu0 0.0
    %3597 = vmatpush2.msra.mxu0 0.0
    %3598 = vmatprep.subr.mxu0 0.0
    %3599 = vmatpush2.msra.mxu0 0.0
    %3600 = vmatprep.subr.mxu0 0.0
    %3601 = vmatpush2.msra.mxu0 0.0
    %3602 = vmatprep.subr.mxu0 0.0
    %3603 = vmatpush2.msra.mxu0 0.0
    %3604 = vmatprep.subr.mxu0 0.0
    %3605 = vmatpush2.msra.mxu0 0.0
    %3606 = vmatprep.subr.mxu0 0.0
    %3607 = vmatpush2.msra.mxu0 0.0
    %3608 = vmatprep.mubr.f32.mxu0 0.0
    %3609 = vmatmul.mubr.f32.gmra.mxu0 %v3539
    %v3610 = vpop.f32.mrf.mxu0
    %v3611 = vadd.f32 0.0, %v3610
    %v3612 = vpop.f32.mrf.mxu0
    %3613 = vmatprep.mubr.f32.mxu0 0.0
    %3614 = vmatmul.mubr.f32.gmra.mxu0 %v3542
    %v3615 = vpop.f32.mrf.mxu0
    %v3616 = vadd.f32 0.0, %v3615
    %v3617 = vpop.f32.mrf.mxu0
    %3618 = vdwg.mxu0
    %3623 = vrot.lane.b32.xlu0 %v2906, 120
    %v3624 = vpop.permute.xlu0 %3623
    %3625 = vrot.lane.b32.xlu0 %v2907, 120
    %v3626 = vpop.permute.xlu0 %3625
    %3627 = vrot.lane.b32.xlu0 %v2908, 120
    %v3628 = vpop.permute.xlu0 %3627
    %3629 = vrot.lane.b32.xlu0 %v2909, 120
    %v3630 = vpop.permute.xlu0 %3629
    %3635 = vmatprep.subr.mxu0 0.0
    %3636 = vmatpush1.msra.mxu0 0.0
    %3637 = vmatprep.subr.mxu0 0.0
    %3638 = vmatpush1.msra.mxu0 0.0
    %3639 = vmatprep.subr.mxu0 0.0
    %3640 = vmatpush1.msra.mxu0 0.0
    %3641 = vmatprep.subr.mxu0 0.0
    %3642 = vmatpush1.msra.mxu0 0.0
    %3643 = vmatprep.subr.mxu0 0.0
    %3644 = vmatpush1.msra.mxu0 0.0
    %3645 = vmatprep.subr.mxu0 0.0
    %3646 = vmatpush1.msra.mxu0 0.0
    %3647 = vmatprep.subr.mxu0 0.0
    %3648 = vmatpush1.msra.mxu0 0.0
    %3649 = vmatprep.subr.mxu0 0.0
    %3650 = vmatpush1.msra.mxu0 0.0
    %3651 = vmatprep.subr.mxu0 0.0
    %3652 = vmatpush1.msra.mxu0 0.0
    %3653 = vmatprep.subr.mxu0 0.0
    %3654 = vmatpush1.msra.mxu0 0.0
    %3655 = vmatprep.subr.mxu0 0.0
    %3656 = vmatpush1.msra.mxu0 0.0
    %3657 = vmatprep.subr.mxu0 0.0
    %3658 = vmatpush1.msra.mxu0 0.0
    %3659 = vmatprep.subr.mxu0 0.0
    %3660 = vmatpush1.msra.mxu0 %v3630
    %3661 = vmatprep.subr.mxu0 0.0
    %3662 = vmatpush1.msra.mxu0 %v3628
    %3663 = vmatprep.subr.mxu0 0.0
    %3664 = vmatpush1.msra.mxu0 %v3626
    %3665 = vmatprep.subr.mxu0 0.0
    %3666 = vmatpush1.msra.mxu0 %v3624
    %3667 = vmatprep.subr.mxu0 0.0
    %3668 = vmatpush2.msra.mxu0 0.0
    %3669 = vmatprep.subr.mxu0 0.0
    %3670 = vmatpush2.msra.mxu0 0.0
    %3671 = vmatprep.subr.mxu0 0.0
    %3672 = vmatpush2.msra.mxu0 0.0
    %3673 = vmatprep.subr.mxu0 0.0
    %3674 = vmatpush2.msra.mxu0 0.0
    %3675 = vmatprep.subr.mxu0 0.0
    %3676 = vmatpush2.msra.mxu0 0.0
    %3677 = vmatprep.subr.mxu0 0.0
    %3678 = vmatpush2.msra.mxu0 0.0
    %3679 = vmatprep.subr.mxu0 0.0
    %3680 = vmatpush2.msra.mxu0 0.0
    %3681 = vmatprep.subr.mxu0 0.0
    %3682 = vmatpush2.msra.mxu0 0.0
    %3683 = vmatprep.subr.mxu0 0.0
    %3684 = vmatpush2.msra.mxu0 0.0
    %3685 = vmatprep.subr.mxu0 0.0
    %3686 = vmatpush2.msra.mxu0 0.0
    %3687 = vmatprep.subr.mxu0 0.0
    %3688 = vmatpush2.msra.mxu0 0.0
    %3689 = vmatprep.subr.mxu0 0.0
    %3690 = vmatpush2.msra.mxu0 0.0
    %3691 = vmatprep.subr.mxu0 0.0
    %3692 = vmatpush2.msra.mxu0 0.0
    %3693 = vmatprep.subr.mxu0 0.0
    %3694 = vmatpush2.msra.mxu0 0.0
    %3695 = vmatprep.subr.mxu0 0.0
    %3696 = vmatpush2.msra.mxu0 0.0
    %3697 = vmatprep.subr.mxu0 0.0
    %3698 = vmatpush2.msra.mxu0 0.0
    %3699 = vmatprep.mubr.f32.mxu0 0.0
    %3700 = vmatmul.mubr.f32.gmra.mxu0 %v3539
    %v3701 = vpop.f32.mrf.mxu0
    %v3702 = vadd.f32 0.0, %v3701
    %v3703 = vpop.f32.mrf.mxu0
    %3704 = vmatprep.mubr.f32.mxu0 0.0
    %3705 = vmatmul.mubr.f32.gmra.mxu0 %v3542
    %v3706 = vpop.f32.mrf.mxu0
    %v3707 = vadd.f32 0.0, %v3706
    %v3708 = vpop.f32.mrf.mxu0
    %3709 = vdwg.mxu0
    %3714 = vrot.lane.b32.xlu0 %v2910, 120
    %v3715 = vpop.permute.xlu0 %3714
    %3716 = vrot.lane.b32.xlu0 %v2911, 120
    %v3717 = vpop.permute.xlu0 %3716
    %3718 = vrot.lane.b32.xlu0 %v2912, 120
    %v3719 = vpop.permute.xlu0 %3718
    %3720 = vrot.lane.b32.xlu0 %v2913, 120
    %v3721 = vpop.permute.xlu0 %3720
    %3726 = vmatprep.subr.mxu0 0.0
    %3727 = vmatpush1.msra.mxu0 0.0
    %3728 = vmatprep.subr.mxu0 0.0
    %3729 = vmatpush1.msra.mxu0 0.0
    %3730 = vmatprep.subr.mxu0 0.0
    %3731 = vmatpush1.msra.mxu0 0.0
    %3732 = vmatprep.subr.mxu0 0.0
    %3733 = vmatpush1.msra.mxu0 0.0
    %3734 = vmatprep.subr.mxu0 0.0
    %3735 = vmatpush1.msra.mxu0 0.0
    %3736 = vmatprep.subr.mxu0 0.0
    %3737 = vmatpush1.msra.mxu0 0.0
    %3738 = vmatprep.subr.mxu0 0.0
    %3739 = vmatpush1.msra.mxu0 0.0
    %3740 = vmatprep.subr.mxu0 0.0
    %3741 = vmatpush1.msra.mxu0 0.0
    %3742 = vmatprep.subr.mxu0 0.0
    %3743 = vmatpush1.msra.mxu0 0.0
    %3744 = vmatprep.subr.mxu0 0.0
    %3745 = vmatpush1.msra.mxu0 0.0
    %3746 = vmatprep.subr.mxu0 0.0
    %3747 = vmatpush1.msra.mxu0 0.0
    %3748 = vmatprep.subr.mxu0 0.0
    %3749 = vmatpush1.msra.mxu0 0.0
    %3750 = vmatprep.subr.mxu0 0.0
    %3751 = vmatpush1.msra.mxu0 %v3721
    %3752 = vmatprep.subr.mxu0 0.0
    %3753 = vmatpush1.msra.mxu0 %v3719
    %3754 = vmatprep.subr.mxu0 0.0
    %3755 = vmatpush1.msra.mxu0 %v3717
    %3756 = vmatprep.subr.mxu0 0.0
    %3757 = vmatpush1.msra.mxu0 %v3715
    %3758 = vmatprep.subr.mxu0 0.0
    %3759 = vmatpush2.msra.mxu0 0.0
    %3760 = vmatprep.subr.mxu0 0.0
    %3761 = vmatpush2.msra.mxu0 0.0
    %3762 = vmatprep.subr.mxu0 0.0
    %3763 = vmatpush2.msra.mxu0 0.0
    %3764 = vmatprep.subr.mxu0 0.0
    %3765 = vmatpush2.msra.mxu0 0.0
    %3766 = vmatprep.subr.mxu0 0.0
    %3767 = vmatpush2.msra.mxu0 0.0
    %3768 = vmatprep.subr.mxu0 0.0
    %3769 = vmatpush2.msra.mxu0 0.0
    %3770 = vmatprep.subr.mxu0 0.0
    %3771 = vmatpush2.msra.mxu0 0.0
    %3772 = vmatprep.subr.mxu0 0.0
    %3773 = vmatpush2.msra.mxu0 0.0
    %3774 = vmatprep.subr.mxu0 0.0
    %3775 = vmatpush2.msra.mxu0 0.0
    %3776 = vmatprep.subr.mxu0 0.0
    %3777 = vmatpush2.msra.mxu0 0.0
    %3778 = vmatprep.subr.mxu0 0.0
    %3779 = vmatpush2.msra.mxu0 0.0
    %3780 = vmatprep.subr.mxu0 0.0
    %3781 = vmatpush2.msra.mxu0 0.0
    %3782 = vmatprep.subr.mxu0 0.0
    %3783 = vmatpush2.msra.mxu0 0.0
    %3784 = vmatprep.subr.mxu0 0.0
    %3785 = vmatpush2.msra.mxu0 0.0
    %3786 = vmatprep.subr.mxu0 0.0
    %3787 = vmatpush2.msra.mxu0 0.0
    %3788 = vmatprep.subr.mxu0 0.0
    %3789 = vmatpush2.msra.mxu0 0.0
    %3790 = vmatprep.mubr.f32.mxu0 0.0
    %3791 = vmatmul.mubr.f32.gmra.mxu0 %v3539
    %v3792 = vpop.f32.mrf.mxu0
    %v3793 = vadd.f32 0.0, %v3792
    %v3794 = vpop.f32.mrf.mxu0
    %3795 = vmatprep.mubr.f32.mxu0 0.0
    %3796 = vmatmul.mubr.f32.gmra.mxu0 %v3542
    %v3797 = vpop.f32.mrf.mxu0
    %v3798 = vadd.f32 0.0, %v3797
    %v3799 = vpop.f32.mrf.mxu0
    %3800 = vdwg.mxu0
    %3805 = vrot.lane.b32.xlu0 %v2914, 120
    %v3806 = vpop.permute.xlu0 %3805
    %3807 = vrot.lane.b32.xlu0 %v2915, 120
    %v3808 = vpop.permute.xlu0 %3807
    %3809 = vrot.lane.b32.xlu0 %v2916, 120
    %v3810 = vpop.permute.xlu0 %3809
    %3811 = vrot.lane.b32.xlu0 %v2917, 120
    %v3812 = vpop.permute.xlu0 %3811
    %3817 = vmatprep.subr.mxu0 0.0
    %3818 = vmatpush1.msra.mxu0 0.0
    %3819 = vmatprep.subr.mxu0 0.0
    %3820 = vmatpush1.msra.mxu0 0.0
    %3821 = vmatprep.subr.mxu0 0.0
    %3822 = vmatpush1.msra.mxu0 0.0
    %3823 = vmatprep.subr.mxu0 0.0
    %3824 = vmatpush1.msra.mxu0 0.0
    %3825 = vmatprep.subr.mxu0 0.0
    %3826 = vmatpush1.msra.mxu0 0.0
    %3827 = vmatprep.subr.mxu0 0.0
    %3828 = vmatpush1.msra.mxu0 0.0
    %3829 = vmatprep.subr.mxu0 0.0
    %3830 = vmatpush1.msra.mxu0 0.0
    %3831 = vmatprep.subr.mxu0 0.0
    %3832 = vmatpush1.msra.mxu0 0.0
    %3833 = vmatprep.subr.mxu0 0.0
    %3834 = vmatpush1.msra.mxu0 0.0
    %3835 = vmatprep.subr.mxu0 0.0
    %3836 = vmatpush1.msra.mxu0 0.0
    %3837 = vmatprep.subr.mxu0 0.0
    %3838 = vmatpush1.msra.mxu0 0.0
    %3839 = vmatprep.subr.mxu0 0.0
    %3840 = vmatpush1.msra.mxu0 0.0
    %3841 = vmatprep.subr.mxu0 0.0
    %3842 = vmatpush1.msra.mxu0 %v3812
    %3843 = vmatprep.subr.mxu0 0.0
    %3844 = vmatpush1.msra.mxu0 %v3810
    %3845 = vmatprep.subr.mxu0 0.0
    %3846 = vmatpush1.msra.mxu0 %v3808
    %3847 = vmatprep.subr.mxu0 0.0
    %3848 = vmatpush1.msra.mxu0 %v3806
    %3849 = vmatprep.subr.mxu0 0.0
    %3850 = vmatpush2.msra.mxu0 0.0
    %3851 = vmatprep.subr.mxu0 0.0
    %3852 = vmatpush2.msra.mxu0 0.0
    %3853 = vmatprep.subr.mxu0 0.0
    %3854 = vmatpush2.msra.mxu0 0.0
    %3855 = vmatprep.subr.mxu0 0.0
    %3856 = vmatpush2.msra.mxu0 0.0
    %3857 = vmatprep.subr.mxu0 0.0
    %3858 = vmatpush2.msra.mxu0 0.0
    %3859 = vmatprep.subr.mxu0 0.0
    %3860 = vmatpush2.msra.mxu0 0.0
    %3861 = vmatprep.subr.mxu0 0.0
    %3862 = vmatpush2.msra.mxu0 0.0
    %3863 = vmatprep.subr.mxu0 0.0
    %3864 = vmatpush2.msra.mxu0 0.0
    %3865 = vmatprep.subr.mxu0 0.0
    %3866 = vmatpush2.msra.mxu0 0.0
    %3867 = vmatprep.subr.mxu0 0.0
    %3868 = vmatpush2.msra.mxu0 0.0
    %3869 = vmatprep.subr.mxu0 0.0
    %3870 = vmatpush2.msra.mxu0 0.0
    %3871 = vmatprep.subr.mxu0 0.0
    %3872 = vmatpush2.msra.mxu0 0.0
    %3873 = vmatprep.subr.mxu0 0.0
    %3874 = vmatpush2.msra.mxu0 0.0
    %3875 = vmatprep.subr.mxu0 0.0
    %3876 = vmatpush2.msra.mxu0 0.0
    %3877 = vmatprep.subr.mxu0 0.0
    %3878 = vmatpush2.msra.mxu0 0.0
    %3879 = vmatprep.subr.mxu0 0.0
    %3880 = vmatpush2.msra.mxu0 0.0
    %3881 = vmatprep.mubr.f32.mxu0 0.0
    %3882 = vmatmul.mubr.f32.gmra.mxu0 %v3539
    %v3883 = vpop.f32.mrf.mxu0
    %v3884 = vadd.f32 0.0, %v3883
    %v3885 = vpop.f32.mrf.mxu0
    %3886 = vmatprep.mubr.f32.mxu0 0.0
    %3887 = vmatmul.mubr.f32.gmra.mxu0 %v3542
    %v3888 = vpop.f32.mrf.mxu0
    %v3889 = vadd.f32 0.0, %v3888
    %v3890 = vpop.f32.mrf.mxu0
    %3891 = vdwg.mxu0
    %v3893 = vsel %vm114, %v91, 0
    %v3896 = vsel %vm114, %v92, 0
    %3898 = vmatprep.subr.mxu0 0.0
    %3899 = vmatpush1.msra.mxu0 0.0
    %3900 = vmatprep.subr.mxu0 0.0
    %3901 = vmatpush1.msra.mxu0 0.0
    %3902 = vmatprep.subr.mxu0 0.0
    %3903 = vmatpush1.msra.mxu0 0.0
    %3904 = vmatprep.subr.mxu0 0.0
    %3905 = vmatpush1.msra.mxu0 0.0
    %3906 = vmatprep.subr.mxu0 0.0
    %3907 = vmatpush1.msra.mxu0 0.0
    %3908 = vmatprep.subr.mxu0 0.0
    %3909 = vmatpush1.msra.mxu0 0.0
    %3910 = vmatprep.subr.mxu0 0.0
    %3911 = vmatpush1.msra.mxu0 0.0
    %3912 = vmatprep.subr.mxu0 0.0
    %3913 = vmatpush1.msra.mxu0 0.0
    %3914 = vmatprep.subr.mxu0 0.0
    %3915 = vmatpush1.msra.mxu0 0.0
    %3916 = vmatprep.subr.mxu0 0.0
    %3917 = vmatpush1.msra.mxu0 0.0
    %3918 = vmatprep.subr.mxu0 0.0
    %3919 = vmatpush1.msra.mxu0 0.0
    %3920 = vmatprep.subr.mxu0 0.0
    %3921 = vmatpush1.msra.mxu0 0.0
    %3922 = vmatprep.subr.mxu0 0.0
    %3923 = vmatpush1.msra.mxu0 %v3533
    %3924 = vmatprep.subr.mxu0 0.0
    %3925 = vmatpush1.msra.mxu0 %v3531
    %3926 = vmatprep.subr.mxu0 0.0
    %3927 = vmatpush1.msra.mxu0 %v3529
    %3928 = vmatprep.subr.mxu0 0.0
    %3929 = vmatpush1.msra.mxu0 %v3527
    %3930 = vmatprep.subr.mxu0 0.0
    %3931 = vmatpush2.msra.mxu0 0.0
    %3932 = vmatprep.subr.mxu0 0.0
    %3933 = vmatpush2.msra.mxu0 0.0
    %3934 = vmatprep.subr.mxu0 0.0
    %3935 = vmatpush2.msra.mxu0 0.0
    %3936 = vmatprep.subr.mxu0 0.0
    %3937 = vmatpush2.msra.mxu0 0.0
    %3938 = vmatprep.subr.mxu0 0.0
    %3939 = vmatpush2.msra.mxu0 0.0
    %3940 = vmatprep.subr.mxu0 0.0
    %3941 = vmatpush2.msra.mxu0 0.0
    %3942 = vmatprep.subr.mxu0 0.0
    %3943 = vmatpush2.msra.mxu0 0.0
    %3944 = vmatprep.subr.mxu0 0.0
    %3945 = vmatpush2.msra.mxu0 0.0
    %3946 = vmatprep.subr.mxu0 0.0
    %3947 = vmatpush2.msra.mxu0 0.0
    %3948 = vmatprep.subr.mxu0 0.0
    %3949 = vmatpush2.msra.mxu0 0.0
    %3950 = vmatprep.subr.mxu0 0.0
    %3951 = vmatpush2.msra.mxu0 0.0
    %3952 = vmatprep.subr.mxu0 0.0
    %3953 = vmatpush2.msra.mxu0 0.0
    %3954 = vmatprep.subr.mxu0 0.0
    %3955 = vmatpush2.msra.mxu0 0.0
    %3956 = vmatprep.subr.mxu0 0.0
    %3957 = vmatpush2.msra.mxu0 0.0
    %3958 = vmatprep.subr.mxu0 0.0
    %3959 = vmatpush2.msra.mxu0 0.0
    %3960 = vmatprep.subr.mxu0 0.0
    %3961 = vmatpush2.msra.mxu0 0.0
    %3962 = vmatprep.mubr.f32.mxu0 0.0
    %3963 = vmatmul.mubr.f32.gmra.mxu0 %v3893
    %v3964 = vpop.f32.mrf.mxu0
    %v3965 = vadd.f32 0.0, %v3964
    %v3966 = vpop.f32.mrf.mxu0
    %3967 = vmatprep.mubr.f32.mxu0 0.0
    %3968 = vmatmul.mubr.f32.gmra.mxu0 %v3896
    %v3969 = vpop.f32.mrf.mxu0
    %v3970 = vadd.f32 0.0, %v3969
    %v3971 = vpop.f32.mrf.mxu0
    %3972 = vdwg.mxu0
    %3973 = vmatprep.subr.mxu0 0.0
    %3974 = vmatpush1.msra.mxu0 0.0
    %3975 = vmatprep.subr.mxu0 0.0
    %3976 = vmatpush1.msra.mxu0 0.0
    %3977 = vmatprep.subr.mxu0 0.0
    %3978 = vmatpush1.msra.mxu0 0.0
    %3979 = vmatprep.subr.mxu0 0.0
    %3980 = vmatpush1.msra.mxu0 0.0
    %3981 = vmatprep.subr.mxu0 0.0
    %3982 = vmatpush1.msra.mxu0 0.0
    %3983 = vmatprep.subr.mxu0 0.0
    %3984 = vmatpush1.msra.mxu0 0.0
    %3985 = vmatprep.subr.mxu0 0.0
    %3986 = vmatpush1.msra.mxu0 0.0
    %3987 = vmatprep.subr.mxu0 0.0
    %3988 = vmatpush1.msra.mxu0 0.0
    %3989 = vmatprep.subr.mxu0 0.0
    %3990 = vmatpush1.msra.mxu0 0.0
    %3991 = vmatprep.subr.mxu0 0.0
    %3992 = vmatpush1.msra.mxu0 0.0
    %3993 = vmatprep.subr.mxu0 0.0
    %3994 = vmatpush1.msra.mxu0 0.0
    %3995 = vmatprep.subr.mxu0 0.0
    %3996 = vmatpush1.msra.mxu0 0.0
    %3997 = vmatprep.subr.mxu0 0.0
    %3998 = vmatpush1.msra.mxu0 %v3630
    %3999 = vmatprep.subr.mxu0 0.0
    %4000 = vmatpush1.msra.mxu0 %v3628
    %4001 = vmatprep.subr.mxu0 0.0
    %4002 = vmatpush1.msra.mxu0 %v3626
    %4003 = vmatprep.subr.mxu0 0.0
    %4004 = vmatpush1.msra.mxu0 %v3624
    %4005 = vmatprep.subr.mxu0 0.0
    %4006 = vmatpush2.msra.mxu0 0.0
    %4007 = vmatprep.subr.mxu0 0.0
    %4008 = vmatpush2.msra.mxu0 0.0
    %4009 = vmatprep.subr.mxu0 0.0
    %4010 = vmatpush2.msra.mxu0 0.0
    %4011 = vmatprep.subr.mxu0 0.0
    %4012 = vmatpush2.msra.mxu0 0.0
    %4013 = vmatprep.subr.mxu0 0.0
    %4014 = vmatpush2.msra.mxu0 0.0
    %4015 = vmatprep.subr.mxu0 0.0
    %4016 = vmatpush2.msra.mxu0 0.0
    %4017 = vmatprep.subr.mxu0 0.0
    %4018 = vmatpush2.msra.mxu0 0.0
    %4019 = vmatprep.subr.mxu0 0.0
    %4020 = vmatpush2.msra.mxu0 0.0
    %4021 = vmatprep.subr.mxu0 0.0
    %4022 = vmatpush2.msra.mxu0 0.0
    %4023 = vmatprep.subr.mxu0 0.0
    %4024 = vmatpush2.msra.mxu0 0.0
    %4025 = vmatprep.subr.mxu0 0.0
    %4026 = vmatpush2.msra.mxu0 0.0
    %4027 = vmatprep.subr.mxu0 0.0
    %4028 = vmatpush2.msra.mxu0 0.0
    %4029 = vmatprep.subr.mxu0 0.0
    %4030 = vmatpush2.msra.mxu0 0.0
    %4031 = vmatprep.subr.mxu0 0.0
    %4032 = vmatpush2.msra.mxu0 0.0
    %4033 = vmatprep.subr.mxu0 0.0
    %4034 = vmatpush2.msra.mxu0 0.0
    %4035 = vmatprep.subr.mxu0 0.0
    %4036 = vmatpush2.msra.mxu0 0.0
    %4037 = vmatprep.mubr.f32.mxu0 0.0
    %4038 = vmatmul.mubr.f32.gmra.mxu0 %v3893
    %v4039 = vpop.f32.mrf.mxu0
    %v4040 = vadd.f32 0.0, %v4039
    %v4041 = vpop.f32.mrf.mxu0
    %4042 = vmatprep.mubr.f32.mxu0 0.0
    %4043 = vmatmul.mubr.f32.gmra.mxu0 %v3896
    %v4044 = vpop.f32.mrf.mxu0
    %v4045 = vadd.f32 0.0, %v4044
    %v4046 = vpop.f32.mrf.mxu0
    %4047 = vdwg.mxu0
    %4048 = vmatprep.subr.mxu0 0.0
    %4049 = vmatpush1.msra.mxu0 0.0
    %4050 = vmatprep.subr.mxu0 0.0
    %4051 = vmatpush1.msra.mxu0 0.0
    %4052 = vmatprep.subr.mxu0 0.0
    %4053 = vmatpush1.msra.mxu0 0.0
    %4054 = vmatprep.subr.mxu0 0.0
    %4055 = vmatpush1.msra.mxu0 0.0
    %4056 = vmatprep.subr.mxu0 0.0
    %4057 = vmatpush1.msra.mxu0 0.0
    %4058 = vmatprep.subr.mxu0 0.0
    %4059 = vmatpush1.msra.mxu0 0.0
    %4060 = vmatprep.subr.mxu0 0.0
    %4061 = vmatpush1.msra.mxu0 0.0
    %4062 = vmatprep.subr.mxu0 0.0
    %4063 = vmatpush1.msra.mxu0 0.0
    %4064 = vmatprep.subr.mxu0 0.0
    %4065 = vmatpush1.msra.mxu0 0.0
    %4066 = vmatprep.subr.mxu0 0.0
    %4067 = vmatpush1.msra.mxu0 0.0
    %4068 = vmatprep.subr.mxu0 0.0
    %4069 = vmatpush1.msra.mxu0 0.0
    %4070 = vmatprep.subr.mxu0 0.0
    %4071 = vmatpush1.msra.mxu0 0.0
    %4072 = vmatprep.subr.mxu0 0.0
    %4073 = vmatpush1.msra.mxu0 %v3721
    %4074 = vmatprep.subr.mxu0 0.0
    %4075 = vmatpush1.msra.mxu0 %v3719
    %4076 = vmatprep.subr.mxu0 0.0
    %4077 = vmatpush1.msra.mxu0 %v3717
    %4078 = vmatprep.subr.mxu0 0.0
    %4079 = vmatpush1.msra.mxu0 %v3715
    %4080 = vmatprep.subr.mxu0 0.0
    %4081 = vmatpush2.msra.mxu0 0.0
    %4082 = vmatprep.subr.mxu0 0.0
    %4083 = vmatpush2.msra.mxu0 0.0
    %4084 = vmatprep.subr.mxu0 0.0
    %4085 = vmatpush2.msra.mxu0 0.0
    %4086 = vmatprep.subr.mxu0 0.0
    %4087 = vmatpush2.msra.mxu0 0.0
    %4088 = vmatprep.subr.mxu0 0.0
    %4089 = vmatpush2.msra.mxu0 0.0
    %4090 = vmatprep.subr.mxu0 0.0
    %4091 = vmatpush2.msra.mxu0 0.0
    %4092 = vmatprep.subr.mxu0 0.0
    %4093 = vmatpush2.msra.mxu0 0.0
    %4094 = vmatprep.subr.mxu0 0.0
    %4095 = vmatpush2.msra.mxu0 0.0
    %4096 = vmatprep.subr.mxu0 0.0
    %4097 = vmatpush2.msra.mxu0 0.0
    %4098 = vmatprep.subr.mxu0 0.0
    %4099 = vmatpush2.msra.mxu0 0.0
    %4100 = vmatprep.subr.mxu0 0.0
    %4101 = vmatpush2.msra.mxu0 0.0
    %4102 = vmatprep.subr.mxu0 0.0
    %4103 = vmatpush2.msra.mxu0 0.0
    %4104 = vmatprep.subr.mxu0 0.0
    %4105 = vmatpush2.msra.mxu0 0.0
    %4106 = vmatprep.subr.mxu0 0.0
    %4107 = vmatpush2.msra.mxu0 0.0
    %4108 = vmatprep.subr.mxu0 0.0
    %4109 = vmatpush2.msra.mxu0 0.0
    %4110 = vmatprep.subr.mxu0 0.0
    %4111 = vmatpush2.msra.mxu0 0.0
    %4112 = vmatprep.mubr.f32.mxu0 0.0
    %4113 = vmatmul.mubr.f32.gmra.mxu0 %v3893
    %v4114 = vpop.f32.mrf.mxu0
    %v4115 = vadd.f32 0.0, %v4114
    %v4116 = vpop.f32.mrf.mxu0
    %4117 = vmatprep.mubr.f32.mxu0 0.0
    %4118 = vmatmul.mubr.f32.gmra.mxu0 %v3896
    %v4119 = vpop.f32.mrf.mxu0
    %v4120 = vadd.f32 0.0, %v4119
    %v4121 = vpop.f32.mrf.mxu0
    %4122 = vdwg.mxu0
    %4123 = vmatprep.subr.mxu0 0.0
    %4124 = vmatpush1.msra.mxu0 0.0
    %4125 = vmatprep.subr.mxu0 0.0
    %4126 = vmatpush1.msra.mxu0 0.0
    %4127 = vmatprep.subr.mxu0 0.0
    %4128 = vmatpush1.msra.mxu0 0.0
    %4129 = vmatprep.subr.mxu0 0.0
    %4130 = vmatpush1.msra.mxu0 0.0
    %4131 = vmatprep.subr.mxu0 0.0
    %4132 = vmatpush1.msra.mxu0 0.0
    %4133 = vmatprep.subr.mxu0 0.0
    %4134 = vmatpush1.msra.mxu0 0.0
    %4135 = vmatprep.subr.mxu0 0.0
    %4136 = vmatpush1.msra.mxu0 0.0
    %4137 = vmatprep.subr.mxu0 0.0
    %4138 = vmatpush1.msra.mxu0 0.0
    %4139 = vmatprep.subr.mxu0 0.0
    %4140 = vmatpush1.msra.mxu0 0.0
    %4141 = vmatprep.subr.mxu0 0.0
    %4142 = vmatpush1.msra.mxu0 0.0
    %4143 = vmatprep.subr.mxu0 0.0
    %4144 = vmatpush1.msra.mxu0 0.0
    %4145 = vmatprep.subr.mxu0 0.0
    %4146 = vmatpush1.msra.mxu0 0.0
    %4147 = vmatprep.subr.mxu0 0.0
    %4148 = vmatpush1.msra.mxu0 %v3812
    %4149 = vmatprep.subr.mxu0 0.0
    %4150 = vmatpush1.msra.mxu0 %v3810
    %4151 = vmatprep.subr.mxu0 0.0
    %4152 = vmatpush1.msra.mxu0 %v3808
    %4153 = vmatprep.subr.mxu0 0.0
    %4154 = vmatpush1.msra.mxu0 %v3806
    %4155 = vmatprep.subr.mxu0 0.0
    %4156 = vmatpush2.msra.mxu0 0.0
    %4157 = vmatprep.subr.mxu0 0.0
    %4158 = vmatpush2.msra.mxu0 0.0
    %4159 = vmatprep.subr.mxu0 0.0
    %4160 = vmatpush2.msra.mxu0 0.0
    %4161 = vmatprep.subr.mxu0 0.0
    %4162 = vmatpush2.msra.mxu0 0.0
    %4163 = vmatprep.subr.mxu0 0.0
    %4164 = vmatpush2.msra.mxu0 0.0
    %4165 = vmatprep.subr.mxu0 0.0
    %4166 = vmatpush2.msra.mxu0 0.0
    %4167 = vmatprep.subr.mxu0 0.0
    %4168 = vmatpush2.msra.mxu0 0.0
    %4169 = vmatprep.subr.mxu0 0.0
    %4170 = vmatpush2.msra.mxu0 0.0
    %4171 = vmatprep.subr.mxu0 0.0
    %4172 = vmatpush2.msra.mxu0 0.0
    %4173 = vmatprep.subr.mxu0 0.0
    %4174 = vmatpush2.msra.mxu0 0.0
    %4175 = vmatprep.subr.mxu0 0.0
    %4176 = vmatpush2.msra.mxu0 0.0
    %4177 = vmatprep.subr.mxu0 0.0
    %4178 = vmatpush2.msra.mxu0 0.0
    %4179 = vmatprep.subr.mxu0 0.0
    %4180 = vmatpush2.msra.mxu0 0.0
    %4181 = vmatprep.subr.mxu0 0.0
    %4182 = vmatpush2.msra.mxu0 0.0
    %4183 = vmatprep.subr.mxu0 0.0
    %4184 = vmatpush2.msra.mxu0 0.0
    %4185 = vmatprep.subr.mxu0 0.0
    %4186 = vmatpush2.msra.mxu0 0.0
    %4187 = vmatprep.mubr.f32.mxu0 0.0
    %4188 = vmatmul.mubr.f32.gmra.mxu0 %v3893
    %v4189 = vpop.f32.mrf.mxu0
    %v4190 = vadd.f32 0.0, %v4189
    %v4191 = vpop.f32.mrf.mxu0
    %4192 = vmatprep.mubr.f32.mxu0 0.0
    %4193 = vmatmul.mubr.f32.gmra.mxu0 %v3896
    %v4194 = vpop.f32.mrf.mxu0
    %v4195 = vadd.f32 0.0, %v4194
    %v4196 = vpop.f32.mrf.mxu0
    %4197 = vdwg.mxu0
    %v4199 = vsel %vm904, %v3026, 0
    %v4202 = vsel %vm904, %v3611, 0
    %v4205 = vsel %vm904, %v3616, 0
    %4207 = vmatprep.subr.mxu0 0.0
    %4208 = vmatpush1.xpose.msra.mxu0 0.0
    %4209 = vmatprep.subr.mxu0 0.0
    %4210 = vmatpush1.xpose.msra.mxu0 0.0
    %4211 = vmatprep.subr.mxu0 0.0
    %4212 = vmatpush1.xpose.msra.mxu0 0.0
    %4213 = vmatprep.subr.mxu0 0.0
    %4214 = vmatpush1.xpose.msra.mxu0 0.0
    %4215 = vmatprep.subr.mxu0 0.0
    %4216 = vmatpush1.xpose.msra.mxu0 0.0
    %4217 = vmatprep.subr.mxu0 0.0
    %4218 = vmatpush1.xpose.msra.mxu0 0.0
    %4219 = vmatprep.subr.mxu0 0.0
    %4220 = vmatpush1.xpose.msra.mxu0 0.0
    %4221 = vmatprep.subr.mxu0 0.0
    %4222 = vmatpush1.xpose.msra.mxu0 0.0
    %4223 = vmatprep.subr.mxu0 0.0
    %4224 = vmatpush1.xpose.msra.mxu0 0.0
    %4225 = vmatprep.subr.mxu0 0.0
    %4226 = vmatpush1.xpose.msra.mxu0 0.0
    %4227 = vmatprep.subr.mxu0 0.0
    %4228 = vmatpush1.xpose.msra.mxu0 0.0
    %4229 = vmatprep.subr.mxu0 0.0
    %4230 = vmatpush1.xpose.msra.mxu0 0.0
    %4231 = vmatprep.subr.mxu0 0.0
    %4232 = vmatpush1.xpose.msra.mxu0 0.0
    %4233 = vmatprep.subr.mxu0 0.0
    %4234 = vmatpush1.xpose.msra.mxu0 0.0
    %4235 = vmatprep.subr.mxu0 0.0
    %4236 = vmatpush1.xpose.msra.mxu0 %v4205
    %4237 = vmatprep.subr.mxu0 0.0
    %4238 = vmatpush1.xpose.msra.mxu0 %v4202
    %4239 = vmatprep.subr.mxu0 0.0
    %4240 = vmatpush2.xpose.msra.mxu0 0.0
    %4241 = vmatprep.subr.mxu0 0.0
    %4242 = vmatpush2.xpose.msra.mxu0 0.0
    %4243 = vmatprep.subr.mxu0 0.0
    %4244 = vmatpush2.xpose.msra.mxu0 0.0
    %4245 = vmatprep.subr.mxu0 0.0
    %4246 = vmatpush2.xpose.msra.mxu0 0.0
    %4247 = vmatprep.subr.mxu0 0.0
    %4248 = vmatpush2.xpose.msra.mxu0 0.0
    %4249 = vmatprep.subr.mxu0 0.0
    %4250 = vmatpush2.xpose.msra.mxu0 0.0
    %4251 = vmatprep.subr.mxu0 0.0
    %4252 = vmatpush2.xpose.msra.mxu0 0.0
    %4253 = vmatprep.subr.mxu0 0.0
    %4254 = vmatpush2.xpose.msra.mxu0 0.0
    %4255 = vmatprep.subr.mxu0 0.0
    %4256 = vmatpush2.xpose.msra.mxu0 0.0
    %4257 = vmatprep.subr.mxu0 0.0
    %4258 = vmatpush2.xpose.msra.mxu0 0.0
    %4259 = vmatprep.subr.mxu0 0.0
    %4260 = vmatpush2.xpose.msra.mxu0 0.0
    %4261 = vmatprep.subr.mxu0 0.0
    %4262 = vmatpush2.xpose.msra.mxu0 0.0
    %4263 = vmatprep.subr.mxu0 0.0
    %4264 = vmatpush2.xpose.msra.mxu0 0.0
    %4265 = vmatprep.subr.mxu0 0.0
    %4266 = vmatpush2.xpose.msra.mxu0 0.0
    %4267 = vmatprep.subr.mxu0 0.0
    %4268 = vmatpush2.xpose.msra.mxu0 0.0
    %4269 = vmatprep.subr.mxu0 0.0
    %4270 = vmatpush2.xpose.msra.mxu0 0.0
    %4271 = vmatprep.mubr.f32.mxu0 0.0
    %4272 = vmatmul.mubr.f32.gmra.mxu0 %v4199
    %v4273 = vpop.f32.mrf.mxu0
    %v4274 = vadd.f32 0.0, %v4273
    %v4275 = vpop.f32.mrf.mxu0
    %4276 = vdwg.mxu0
    %v4278 = vsel %vm904, %v3096, 0
    %v4281 = vsel %vm904, %v3702, 0
    %v4284 = vsel %vm904, %v3707, 0
    %4286 = vmatprep.subr.mxu0 0.0
    %4287 = vmatpush1.xpose.msra.mxu0 0.0
    %4288 = vmatprep.subr.mxu0 0.0
    %4289 = vmatpush1.xpose.msra.mxu0 0.0
    %4290 = vmatprep.subr.mxu0 0.0
    %4291 = vmatpush1.xpose.msra.mxu0 0.0
    %4292 = vmatprep.subr.mxu0 0.0
    %4293 = vmatpush1.xpose.msra.mxu0 0.0
    %4294 = vmatprep.subr.mxu0 0.0
    %4295 = vmatpush1.xpose.msra.mxu0 0.0
    %4296 = vmatprep.subr.mxu0 0.0
    %4297 = vmatpush1.xpose.msra.mxu0 0.0
    %4298 = vmatprep.subr.mxu0 0.0
    %4299 = vmatpush1.xpose.msra.mxu0 0.0
    %4300 = vmatprep.subr.mxu0 0.0
    %4301 = vmatpush1.xpose.msra.mxu0 0.0
    %4302 = vmatprep.subr.mxu0 0.0
    %4303 = vmatpush1.xpose.msra.mxu0 0.0
    %4304 = vmatprep.subr.mxu0 0.0
    %4305 = vmatpush1.xpose.msra.mxu0 0.0
    %4306 = vmatprep.subr.mxu0 0.0
    %4307 = vmatpush1.xpose.msra.mxu0 0.0
    %4308 = vmatprep.subr.mxu0 0.0
    %4309 = vmatpush1.xpose.msra.mxu0 0.0
    %4310 = vmatprep.subr.mxu0 0.0
    %4311 = vmatpush1.xpose.msra.mxu0 0.0
    %4312 = vmatprep.subr.mxu0 0.0
    %4313 = vmatpush1.xpose.msra.mxu0 0.0
    %4314 = vmatprep.subr.mxu0 0.0
    %4315 = vmatpush1.xpose.msra.mxu0 %v4284
    %4316 = vmatprep.subr.mxu0 0.0
    %4317 = vmatpush1.xpose.msra.mxu0 %v4281
    %4318 = vmatprep.subr.mxu0 0.0
    %4319 = vmatpush2.xpose.msra.mxu0 0.0
    %4320 = vmatprep.subr.mxu0 0.0
    %4321 = vmatpush2.xpose.msra.mxu0 0.0
    %4322 = vmatprep.subr.mxu0 0.0
    %4323 = vmatpush2.xpose.msra.mxu0 0.0
    %4324 = vmatprep.subr.mxu0 0.0
    %4325 = vmatpush2.xpose.msra.mxu0 0.0
    %4326 = vmatprep.subr.mxu0 0.0
    %4327 = vmatpush2.xpose.msra.mxu0 0.0
    %4328 = vmatprep.subr.mxu0 0.0
    %4329 = vmatpush2.xpose.msra.mxu0 0.0
    %4330 = vmatprep.subr.mxu0 0.0
    %4331 = vmatpush2.xpose.msra.mxu0 0.0
    %4332 = vmatprep.subr.mxu0 0.0
    %4333 = vmatpush2.xpose.msra.mxu0 0.0
    %4334 = vmatprep.subr.mxu0 0.0
    %4335 = vmatpush2.xpose.msra.mxu0 0.0
    %4336 = vmatprep.subr.mxu0 0.0
    %4337 = vmatpush2.xpose.msra.mxu0 0.0
    %4338 = vmatprep.subr.mxu0 0.0
    %4339 = vmatpush2.xpose.msra.mxu0 0.0
    %4340 = vmatprep.subr.mxu0 0.0
    %4341 = vmatpush2.xpose.msra.mxu0 0.0
    %4342 = vmatprep.subr.mxu0 0.0
    %4343 = vmatpush2.xpose.msra.mxu0 0.0
    %4344 = vmatprep.subr.mxu0 0.0
    %4345 = vmatpush2.xpose.msra.mxu0 0.0
    %4346 = vmatprep.subr.mxu0 0.0
    %4347 = vmatpush2.xpose.msra.mxu0 0.0
    %4348 = vmatprep.subr.mxu0 0.0
    %4349 = vmatpush2.xpose.msra.mxu0 0.0
    %4350 = vmatprep.mubr.f32.mxu0 0.0
    %4351 = vmatmul.mubr.f32.gmra.mxu0 %v4278
    %v4352 = vpop.f32.mrf.mxu0
    %v4353 = vadd.f32 0.0, %v4352
    %v4354 = vpop.f32.mrf.mxu0
    %4355 = vdwg.mxu0
    %v4357 = vsel %vm904, %v3166, 0
    %v4360 = vsel %vm904, %v3793, 0
    %v4363 = vsel %vm904, %v3798, 0
    %4365 = vmatprep.subr.mxu0 0.0
    %4366 = vmatpush1.xpose.msra.mxu0 0.0
    %4367 = vmatprep.subr.mxu0 0.0
    %4368 = vmatpush1.xpose.msra.mxu0 0.0
    %4369 = vmatprep.subr.mxu0 0.0
    %4370 = vmatpush1.xpose.msra.mxu0 0.0
    %4371 = vmatprep.subr.mxu0 0.0
    %4372 = vmatpush1.xpose.msra.mxu0 0.0
    %4373 = vmatprep.subr.mxu0 0.0
    %4374 = vmatpush1.xpose.msra.mxu0 0.0
    %4375 = vmatprep.subr.mxu0 0.0
    %4376 = vmatpush1.xpose.msra.mxu0 0.0
    %4377 = vmatprep.subr.mxu0 0.0
    %4378 = vmatpush1.xpose.msra.mxu0 0.0
    %4379 = vmatprep.subr.mxu0 0.0
    %4380 = vmatpush1.xpose.msra.mxu0 0.0
    %4381 = vmatprep.subr.mxu0 0.0
    %4382 = vmatpush1.xpose.msra.mxu0 0.0
    %4383 = vmatprep.subr.mxu0 0.0
    %4384 = vmatpush1.xpose.msra.mxu0 0.0
    %4385 = vmatprep.subr.mxu0 0.0
    %4386 = vmatpush1.xpose.msra.mxu0 0.0
    %4387 = vmatprep.subr.mxu0 0.0
    %4388 = vmatpush1.xpose.msra.mxu0 0.0
    %4389 = vmatprep.subr.mxu0 0.0
    %4390 = vmatpush1.xpose.msra.mxu0 0.0
    %4391 = vmatprep.subr.mxu0 0.0
    %4392 = vmatpush1.xpose.msra.mxu0 0.0
    %4393 = vmatprep.subr.mxu0 0.0
    %4394 = vmatpush1.xpose.msra.mxu0 %v4363
    %4395 = vmatprep.subr.mxu0 0.0
    %4396 = vmatpush1.xpose.msra.mxu0 %v4360
    %4397 = vmatprep.subr.mxu0 0.0
    %4398 = vmatpush2.xpose.msra.mxu0 0.0
    %4399 = vmatprep.subr.mxu0 0.0
    %4400 = vmatpush2.xpose.msra.mxu0 0.0
    %4401 = vmatprep.subr.mxu0 0.0
    %4402 = vmatpush2.xpose.msra.mxu0 0.0
    %4403 = vmatprep.subr.mxu0 0.0
    %4404 = vmatpush2.xpose.msra.mxu0 0.0
    %4405 = vmatprep.subr.mxu0 0.0
    %4406 = vmatpush2.xpose.msra.mxu0 0.0
    %4407 = vmatprep.subr.mxu0 0.0
    %4408 = vmatpush2.xpose.msra.mxu0 0.0
    %4409 = vmatprep.subr.mxu0 0.0
    %4410 = vmatpush2.xpose.msra.mxu0 0.0
    %4411 = vmatprep.subr.mxu0 0.0
    %4412 = vmatpush2.xpose.msra.mxu0 0.0
    %4413 = vmatprep.subr.mxu0 0.0
    %4414 = vmatpush2.xpose.msra.mxu0 0.0
    %4415 = vmatprep.subr.mxu0 0.0
    %4416 = vmatpush2.xpose.msra.mxu0 0.0
    %4417 = vmatprep.subr.mxu0 0.0
    %4418 = vmatpush2.xpose.msra.mxu0 0.0
    %4419 = vmatprep.subr.mxu0 0.0
    %4420 = vmatpush2.xpose.msra.mxu0 0.0
    %4421 = vmatprep.subr.mxu0 0.0
    %4422 = vmatpush2.xpose.msra.mxu0 0.0
    %4423 = vmatprep.subr.mxu0 0.0
    %4424 = vmatpush2.xpose.msra.mxu0 0.0
    %4425 = vmatprep.subr.mxu0 0.0
    %4426 = vmatpush2.xpose.msra.mxu0 0.0
    %4427 = vmatprep.subr.mxu0 0.0
    %4428 = vmatpush2.xpose.msra.mxu0 0.0
    %4429 = vmatprep.mubr.f32.mxu0 0.0
    %4430 = vmatmul.mubr.f32.gmra.mxu0 %v4357
    %v4431 = vpop.f32.mrf.mxu0
    %v4432 = vadd.f32 0.0, %v4431
    %v4433 = vpop.f32.mrf.mxu0
    %4434 = vdwg.mxu0
    %v4436 = vsel %vm904, %v3236, 0
    %v4439 = vsel %vm904, %v3884, 0
    %v4442 = vsel %vm904, %v3889, 0
    %4444 = vmatprep.subr.mxu0 0.0
    %4445 = vmatpush1.xpose.msra.mxu0 0.0
    %4446 = vmatprep.subr.mxu0 0.0
    %4447 = vmatpush1.xpose.msra.mxu0 0.0
    %4448 = vmatprep.subr.mxu0 0.0
    %4449 = vmatpush1.xpose.msra.mxu0 0.0
    %4450 = vmatprep.subr.mxu0 0.0
    %4451 = vmatpush1.xpose.msra.mxu0 0.0
    %4452 = vmatprep.subr.mxu0 0.0
    %4453 = vmatpush1.xpose.msra.mxu0 0.0
    %4454 = vmatprep.subr.mxu0 0.0
    %4455 = vmatpush1.xpose.msra.mxu0 0.0
    %4456 = vmatprep.subr.mxu0 0.0
    %4457 = vmatpush1.xpose.msra.mxu0 0.0
    %4458 = vmatprep.subr.mxu0 0.0
    %4459 = vmatpush1.xpose.msra.mxu0 0.0
    %4460 = vmatprep.subr.mxu0 0.0
    %4461 = vmatpush1.xpose.msra.mxu0 0.0
    %4462 = vmatprep.subr.mxu0 0.0
    %4463 = vmatpush1.xpose.msra.mxu0 0.0
    %4464 = vmatprep.subr.mxu0 0.0
    %4465 = vmatpush1.xpose.msra.mxu0 0.0
    %4466 = vmatprep.subr.mxu0 0.0
    %4467 = vmatpush1.xpose.msra.mxu0 0.0
    %4468 = vmatprep.subr.mxu0 0.0
    %4469 = vmatpush1.xpose.msra.mxu0 0.0
    %4470 = vmatprep.subr.mxu0 0.0
    %4471 = vmatpush1.xpose.msra.mxu0 0.0
    %4472 = vmatprep.subr.mxu0 0.0
    %4473 = vmatpush1.xpose.msra.mxu0 %v4442
    %4474 = vmatprep.subr.mxu0 0.0
    %4475 = vmatpush1.xpose.msra.mxu0 %v4439
    %4476 = vmatprep.subr.mxu0 0.0
    %4477 = vmatpush2.xpose.msra.mxu0 0.0
    %4478 = vmatprep.subr.mxu0 0.0
    %4479 = vmatpush2.xpose.msra.mxu0 0.0
    %4480 = vmatprep.subr.mxu0 0.0
    %4481 = vmatpush2.xpose.msra.mxu0 0.0
    %4482 = vmatprep.subr.mxu0 0.0
    %4483 = vmatpush2.xpose.msra.mxu0 0.0
    %4484 = vmatprep.subr.mxu0 0.0
    %4485 = vmatpush2.xpose.msra.mxu0 0.0
    %4486 = vmatprep.subr.mxu0 0.0
    %4487 = vmatpush2.xpose.msra.mxu0 0.0
    %4488 = vmatprep.subr.mxu0 0.0
    %4489 = vmatpush2.xpose.msra.mxu0 0.0
    %4490 = vmatprep.subr.mxu0 0.0
    %4491 = vmatpush2.xpose.msra.mxu0 0.0
    %4492 = vmatprep.subr.mxu0 0.0
    %4493 = vmatpush2.xpose.msra.mxu0 0.0
    %4494 = vmatprep.subr.mxu0 0.0
    %4495 = vmatpush2.xpose.msra.mxu0 0.0
    %4496 = vmatprep.subr.mxu0 0.0
    %4497 = vmatpush2.xpose.msra.mxu0 0.0
    %4498 = vmatprep.subr.mxu0 0.0
    %4499 = vmatpush2.xpose.msra.mxu0 0.0
    %4500 = vmatprep.subr.mxu0 0.0
    %4501 = vmatpush2.xpose.msra.mxu0 0.0
    %4502 = vmatprep.subr.mxu0 0.0
    %4503 = vmatpush2.xpose.msra.mxu0 0.0
    %4504 = vmatprep.subr.mxu0 0.0
    %4505 = vmatpush2.xpose.msra.mxu0 0.0
    %4506 = vmatprep.subr.mxu0 0.0
    %4507 = vmatpush2.xpose.msra.mxu0 0.0
    %4508 = vmatprep.mubr.f32.mxu0 0.0
    %4509 = vmatmul.mubr.f32.gmra.mxu0 %v4436
    %v4510 = vpop.f32.mrf.mxu0
    %v4511 = vadd.f32 0.0, %v4510
    %v4512 = vpop.f32.mrf.mxu0
    %4513 = vdwg.mxu0
    %v4515 = vsel %vm904, %v3309, 0
    %v4518 = vsel %vm904, %v3965, 0
    %v4521 = vsel %vm904, %v3970, 0
    %4523 = vmatprep.subr.mxu0 0.0
    %4524 = vmatpush1.xpose.msra.mxu0 0.0
    %4525 = vmatprep.subr.mxu0 0.0
    %4526 = vmatpush1.xpose.msra.mxu0 0.0
    %4527 = vmatprep.subr.mxu0 0.0
    %4528 = vmatpush1.xpose.msra.mxu0 0.0
    %4529 = vmatprep.subr.mxu0 0.0
    %4530 = vmatpush1.xpose.msra.mxu0 0.0
    %4531 = vmatprep.subr.mxu0 0.0
    %4532 = vmatpush1.xpose.msra.mxu0 0.0
    %4533 = vmatprep.subr.mxu0 0.0
    %4534 = vmatpush1.xpose.msra.mxu0 0.0
    %4535 = vmatprep.subr.mxu0 0.0
    %4536 = vmatpush1.xpose.msra.mxu0 0.0
    %4537 = vmatprep.subr.mxu0 0.0
    %4538 = vmatpush1.xpose.msra.mxu0 0.0
    %4539 = vmatprep.subr.mxu0 0.0
    %4540 = vmatpush1.xpose.msra.mxu0 0.0
    %4541 = vmatprep.subr.mxu0 0.0
    %4542 = vmatpush1.xpose.msra.mxu0 0.0
    %4543 = vmatprep.subr.mxu0 0.0
    %4544 = vmatpush1.xpose.msra.mxu0 0.0
    %4545 = vmatprep.subr.mxu0 0.0
    %4546 = vmatpush1.xpose.msra.mxu0 0.0
    %4547 = vmatprep.subr.mxu0 0.0
    %4548 = vmatpush1.xpose.msra.mxu0 0.0
    %4549 = vmatprep.subr.mxu0 0.0
    %4550 = vmatpush1.xpose.msra.mxu0 0.0
    %4551 = vmatprep.subr.mxu0 0.0
    %4552 = vmatpush1.xpose.msra.mxu0 %v4521
    %4553 = vmatprep.subr.mxu0 0.0
    %4554 = vmatpush1.xpose.msra.mxu0 %v4518
    %4555 = vmatprep.subr.mxu0 0.0
    %4556 = vmatpush2.xpose.msra.mxu0 0.0
    %4557 = vmatprep.subr.mxu0 0.0
    %4558 = vmatpush2.xpose.msra.mxu0 0.0
    %4559 = vmatprep.subr.mxu0 0.0
    %4560 = vmatpush2.xpose.msra.mxu0 0.0
    %4561 = vmatprep.subr.mxu0 0.0
    %4562 = vmatpush2.xpose.msra.mxu0 0.0
    %4563 = vmatprep.subr.mxu0 0.0
    %4564 = vmatpush2.xpose.msra.mxu0 0.0
    %4565 = vmatprep.subr.mxu0 0.0
    %4566 = vmatpush2.xpose.msra.mxu0 0.0
    %4567 = vmatprep.subr.mxu0 0.0
    %4568 = vmatpush2.xpose.msra.mxu0 0.0
    %4569 = vmatprep.subr.mxu0 0.0
    %4570 = vmatpush2.xpose.msra.mxu0 0.0
    %4571 = vmatprep.subr.mxu0 0.0
    %4572 = vmatpush2.xpose.msra.mxu0 0.0
    %4573 = vmatprep.subr.mxu0 0.0
    %4574 = vmatpush2.xpose.msra.mxu0 0.0
    %4575 = vmatprep.subr.mxu0 0.0
    %4576 = vmatpush2.xpose.msra.mxu0 0.0
    %4577 = vmatprep.subr.mxu0 0.0
    %4578 = vmatpush2.xpose.msra.mxu0 0.0
    %4579 = vmatprep.subr.mxu0 0.0
    %4580 = vmatpush2.xpose.msra.mxu0 0.0
    %4581 = vmatprep.subr.mxu0 0.0
    %4582 = vmatpush2.xpose.msra.mxu0 0.0
    %4583 = vmatprep.subr.mxu0 0.0
    %4584 = vmatpush2.xpose.msra.mxu0 0.0
    %4585 = vmatprep.subr.mxu0 0.0
    %4586 = vmatpush2.xpose.msra.mxu0 0.0
    %4587 = vmatprep.mubr.f32.mxu0 0.0
    %4588 = vmatmul.mubr.f32.gmra.mxu0 %v4515
    %v4589 = vpop.f32.mrf.mxu0
    %v4590 = vadd.f32 0.0, %v4589
    %v4591 = vpop.f32.mrf.mxu0
    %4592 = vdwg.mxu0
    %v4594 = vsel %vm904, %v3379, 0
    %v4597 = vsel %vm904, %v4040, 0
    %v4600 = vsel %vm904, %v4045, 0
    %4602 = vmatprep.subr.mxu0 0.0
    %4603 = vmatpush1.xpose.msra.mxu0 0.0
    %4604 = vmatprep.subr.mxu0 0.0
    %4605 = vmatpush1.xpose.msra.mxu0 0.0
    %4606 = vmatprep.subr.mxu0 0.0
    %4607 = vmatpush1.xpose.msra.mxu0 0.0
    %4608 = vmatprep.subr.mxu0 0.0
    %4609 = vmatpush1.xpose.msra.mxu0 0.0
    %4610 = vmatprep.subr.mxu0 0.0
    %4611 = vmatpush1.xpose.msra.mxu0 0.0
    %4612 = vmatprep.subr.mxu0 0.0
    %4613 = vmatpush1.xpose.msra.mxu0 0.0
    %4614 = vmatprep.subr.mxu0 0.0
    %4615 = vmatpush1.xpose.msra.mxu0 0.0
    %4616 = vmatprep.subr.mxu0 0.0
    %4617 = vmatpush1.xpose.msra.mxu0 0.0
    %4618 = vmatprep.subr.mxu0 0.0
    %4619 = vmatpush1.xpose.msra.mxu0 0.0
    %4620 = vmatprep.subr.mxu0 0.0
    %4621 = vmatpush1.xpose.msra.mxu0 0.0
    %4622 = vmatprep.subr.mxu0 0.0
    %4623 = vmatpush1.xpose.msra.mxu0 0.0
    %4624 = vmatprep.subr.mxu0 0.0
    %4625 = vmatpush1.xpose.msra.mxu0 0.0
    %4626 = vmatprep.subr.mxu0 0.0
    %4627 = vmatpush1.xpose.msra.mxu0 0.0
    %4628 = vmatprep.subr.mxu0 0.0
    %4629 = vmatpush1.xpose.msra.mxu0 0.0
    %4630 = vmatprep.subr.mxu0 0.0
    %4631 = vmatpush1.xpose.msra.mxu0 %v4600
    %4632 = vmatprep.subr.mxu0 0.0
    %4633 = vmatpush1.xpose.msra.mxu0 %v4597
    %4634 = vmatprep.subr.mxu0 0.0
    %4635 = vmatpush2.xpose.msra.mxu0 0.0
    %4636 = vmatprep.subr.mxu0 0.0
    %4637 = vmatpush2.xpose.msra.mxu0 0.0
    %4638 = vmatprep.subr.mxu0 0.0
    %4639 = vmatpush2.xpose.msra.mxu0 0.0
    %4640 = vmatprep.subr.mxu0 0.0
    %4641 = vmatpush2.xpose.msra.mxu0 0.0
    %4642 = vmatprep.subr.mxu0 0.0
    %4643 = vmatpush2.xpose.msra.mxu0 0.0
    %4644 = vmatprep.subr.mxu0 0.0
    %4645 = vmatpush2.xpose.msra.mxu0 0.0
    %4646 = vmatprep.subr.mxu0 0.0
    %4647 = vmatpush2.xpose.msra.mxu0 0.0
    %4648 = vmatprep.subr.mxu0 0.0
    %4649 = vmatpush2.xpose.msra.mxu0 0.0
    %4650 = vmatprep.subr.mxu0 0.0
    %4651 = vmatpush2.xpose.msra.mxu0 0.0
    %4652 = vmatprep.subr.mxu0 0.0
    %4653 = vmatpush2.xpose.msra.mxu0 0.0
    %4654 = vmatprep.subr.mxu0 0.0
    %4655 = vmatpush2.xpose.msra.mxu0 0.0
    %4656 = vmatprep.subr.mxu0 0.0
    %4657 = vmatpush2.xpose.msra.mxu0 0.0
    %4658 = vmatprep.subr.mxu0 0.0
    %4659 = vmatpush2.xpose.msra.mxu0 0.0
    %4660 = vmatprep.subr.mxu0 0.0
    %4661 = vmatpush2.xpose.msra.mxu0 0.0
    %4662 = vmatprep.subr.mxu0 0.0
    %4663 = vmatpush2.xpose.msra.mxu0 0.0
    %4664 = vmatprep.subr.mxu0 0.0
    %4665 = vmatpush2.xpose.msra.mxu0 0.0
    %4666 = vmatprep.mubr.f32.mxu0 0.0
    %4667 = vmatmul.mubr.f32.gmra.mxu0 %v4594
    %v4668 = vpop.f32.mrf.mxu0
    %v4669 = vadd.f32 0.0, %v4668
    %v4670 = vpop.f32.mrf.mxu0
    %4671 = vdwg.mxu0
    %v4673 = vsel %vm904, %v3449, 0
    %v4676 = vsel %vm904, %v4115, 0
    %v4679 = vsel %vm904, %v4120, 0
    %4681 = vmatprep.subr.mxu0 0.0
    %4682 = vmatpush1.xpose.msra.mxu0 0.0
    %4683 = vmatprep.subr.mxu0 0.0
    %4684 = vmatpush1.xpose.msra.mxu0 0.0
    %4685 = vmatprep.subr.mxu0 0.0
    %4686 = vmatpush1.xpose.msra.mxu0 0.0
    %4687 = vmatprep.subr.mxu0 0.0
    %4688 = vmatpush1.xpose.msra.mxu0 0.0
    %4689 = vmatprep.subr.mxu0 0.0
    %4690 = vmatpush1.xpose.msra.mxu0 0.0
    %4691 = vmatprep.subr.mxu0 0.0
    %4692 = vmatpush1.xpose.msra.mxu0 0.0
    %4693 = vmatprep.subr.mxu0 0.0
    %4694 = vmatpush1.xpose.msra.mxu0 0.0
    %4695 = vmatprep.subr.mxu0 0.0
    %4696 = vmatpush1.xpose.msra.mxu0 0.0
    %4697 = vmatprep.subr.mxu0 0.0
    %4698 = vmatpush1.xpose.msra.mxu0 0.0
    %4699 = vmatprep.subr.mxu0 0.0
    %4700 = vmatpush1.xpose.msra.mxu0 0.0
    %4701 = vmatprep.subr.mxu0 0.0
    %4702 = vmatpush1.xpose.msra.mxu0 0.0
    %4703 = vmatprep.subr.mxu0 0.0
    %4704 = vmatpush1.xpose.msra.mxu0 0.0
    %4705 = vmatprep.subr.mxu0 0.0
    %4706 = vmatpush1.xpose.msra.mxu0 0.0
    %4707 = vmatprep.subr.mxu0 0.0
    %4708 = vmatpush1.xpose.msra.mxu0 0.0
    %4709 = vmatprep.subr.mxu0 0.0
    %4710 = vmatpush1.xpose.msra.mxu0 %v4679
    %4711 = vmatprep.subr.mxu0 0.0
    %4712 = vmatpush1.xpose.msra.mxu0 %v4676
    %4713 = vmatprep.subr.mxu0 0.0
    %4714 = vmatpush2.xpose.msra.mxu0 0.0
    %4715 = vmatprep.subr.mxu0 0.0
    %4716 = vmatpush2.xpose.msra.mxu0 0.0
    %4717 = vmatprep.subr.mxu0 0.0
    %4718 = vmatpush2.xpose.msra.mxu0 0.0
    %4719 = vmatprep.subr.mxu0 0.0
    %4720 = vmatpush2.xpose.msra.mxu0 0.0
    %4721 = vmatprep.subr.mxu0 0.0
    %4722 = vmatpush2.xpose.msra.mxu0 0.0
    %4723 = vmatprep.subr.mxu0 0.0
    %4724 = vmatpush2.xpose.msra.mxu0 0.0
    %4725 = vmatprep.subr.mxu0 0.0
    %4726 = vmatpush2.xpose.msra.mxu0 0.0
    %4727 = vmatprep.subr.mxu0 0.0
    %4728 = vmatpush2.xpose.msra.mxu0 0.0
    %4729 = vmatprep.subr.mxu0 0.0
    %4730 = vmatpush2.xpose.msra.mxu0 0.0
    %4731 = vmatprep.subr.mxu0 0.0
    %4732 = vmatpush2.xpose.msra.mxu0 0.0
    %4733 = vmatprep.subr.mxu0 0.0
    %4734 = vmatpush2.xpose.msra.mxu0 0.0
    %4735 = vmatprep.subr.mxu0 0.0
    %4736 = vmatpush2.xpose.msra.mxu0 0.0
    %4737 = vmatprep.subr.mxu0 0.0
    %4738 = vmatpush2.xpose.msra.mxu0 0.0
    %4739 = vmatprep.subr.mxu0 0.0
    %4740 = vmatpush2.xpose.msra.mxu0 0.0
    %4741 = vmatprep.subr.mxu0 0.0
    %4742 = vmatpush2.xpose.msra.mxu0 0.0
    %4743 = vmatprep.subr.mxu0 0.0
    %4744 = vmatpush2.xpose.msra.mxu0 0.0
    %4745 = vmatprep.mubr.f32.mxu0 0.0
    %4746 = vmatmul.mubr.f32.gmra.mxu0 %v4673
    %v4747 = vpop.f32.mrf.mxu0
    %v4748 = vadd.f32 0.0, %v4747
    %v4749 = vpop.f32.mrf.mxu0
    %4750 = vdwg.mxu0
    %v4752 = vsel %vm904, %v3519, 0
    %v4755 = vsel %vm904, %v4190, 0
    %v4758 = vsel %vm904, %v4195, 0
    %4760 = vmatprep.subr.mxu0 0.0
    %4761 = vmatpush1.xpose.msra.mxu0 0.0
    %4762 = vmatprep.subr.mxu0 0.0
    %4763 = vmatpush1.xpose.msra.mxu0 0.0
    %4764 = vmatprep.subr.mxu0 0.0
    %4765 = vmatpush1.xpose.msra.mxu0 0.0
    %4766 = vmatprep.subr.mxu0 0.0
    %4767 = vmatpush1.xpose.msra.mxu0 0.0
    %4768 = vmatprep.subr.mxu0 0.0
    %4769 = vmatpush1.xpose.msra.mxu0 0.0
    %4770 = vmatprep.subr.mxu0 0.0
    %4771 = vmatpush1.xpose.msra.mxu0 0.0
    %4772 = vmatprep.subr.mxu0 0.0
    %4773 = vmatpush1.xpose.msra.mxu0 0.0
    %4774 = vmatprep.subr.mxu0 0.0
    %4775 = vmatpush1.xpose.msra.mxu0 0.0
    %4776 = vmatprep.subr.mxu0 0.0
    %4777 = vmatpush1.xpose.msra.mxu0 0.0
    %4778 = vmatprep.subr.mxu0 0.0
    %4779 = vmatpush1.xpose.msra.mxu0 0.0
    %4780 = vmatprep.subr.mxu0 0.0
    %4781 = vmatpush1.xpose.msra.mxu0 0.0
    %4782 = vmatprep.subr.mxu0 0.0
    %4783 = vmatpush1.xpose.msra.mxu0 0.0
    %4784 = vmatprep.subr.mxu0 0.0
    %4785 = vmatpush1.xpose.msra.mxu0 0.0
    %4786 = vmatprep.subr.mxu0 0.0
    %4787 = vmatpush1.xpose.msra.mxu0 0.0
    %4788 = vmatprep.subr.mxu0 0.0
    %4789 = vmatpush1.xpose.msra.mxu0 %v4758
    %4790 = vmatprep.subr.mxu0 0.0
    %4791 = vmatpush1.xpose.msra.mxu0 %v4755
    %4792 = vmatprep.subr.mxu0 0.0
    %4793 = vmatpush2.xpose.msra.mxu0 0.0
    %4794 = vmatprep.subr.mxu0 0.0
    %4795 = vmatpush2.xpose.msra.mxu0 0.0
    %4796 = vmatprep.subr.mxu0 0.0
    %4797 = vmatpush2.xpose.msra.mxu0 0.0
    %4798 = vmatprep.subr.mxu0 0.0
    %4799 = vmatpush2.xpose.msra.mxu0 0.0
    %4800 = vmatprep.subr.mxu0 0.0
    %4801 = vmatpush2.xpose.msra.mxu0 0.0
    %4802 = vmatprep.subr.mxu0 0.0
    %4803 = vmatpush2.xpose.msra.mxu0 0.0
    %4804 = vmatprep.subr.mxu0 0.0
    %4805 = vmatpush2.xpose.msra.mxu0 0.0
    %4806 = vmatprep.subr.mxu0 0.0
    %4807 = vmatpush2.xpose.msra.mxu0 0.0
    %4808 = vmatprep.subr.mxu0 0.0
    %4809 = vmatpush2.xpose.msra.mxu0 0.0
    %4810 = vmatprep.subr.mxu0 0.0
    %4811 = vmatpush2.xpose.msra.mxu0 0.0
    %4812 = vmatprep.subr.mxu0 0.0
    %4813 = vmatpush2.xpose.msra.mxu0 0.0
    %4814 = vmatprep.subr.mxu0 0.0
    %4815 = vmatpush2.xpose.msra.mxu0 0.0
    %4816 = vmatprep.subr.mxu0 0.0
    %4817 = vmatpush2.xpose.msra.mxu0 0.0
    %4818 = vmatprep.subr.mxu0 0.0
    %4819 = vmatpush2.xpose.msra.mxu0 0.0
    %4820 = vmatprep.subr.mxu0 0.0
    %4821 = vmatpush2.xpose.msra.mxu0 0.0
    %4822 = vmatprep.subr.mxu0 0.0
    %4823 = vmatpush2.xpose.msra.mxu0 0.0
    %4824 = vmatprep.mubr.f32.mxu0 0.0
    %4825 = vmatmul.mubr.f32.gmra.mxu0 %v4752
    %v4826 = vpop.f32.mrf.mxu0
    %v4827 = vadd.f32 0.0, %v4826
    %v4828 = vpop.f32.mrf.mxu0
    %4829 = vdwg.mxu0
    %vm4830 = vcmask 97280
    %v4831 = vsel %vm4830, %v4274, -inf
    %4832 = vmax.xlane.f32.xlu0 %v4831
    %v4833 = vpop.xlane.xlu0 %4832
    %v4834 = vsel %vm4830, %v4353, -inf
    %4835 = vmax.xlane.f32.xlu0 %v4834
    %v4836 = vpop.xlane.xlu0 %4835
    %v4837 = vsel %vm4830, %v4432, -inf
    %4838 = vmax.xlane.f32.xlu0 %v4837
    %v4839 = vpop.xlane.xlu0 %4838
    %v4840 = vsel %vm4830, %v4511, -inf
    %4841 = vmax.xlane.f32.xlu0 %v4840
    %v4842 = vpop.xlane.xlu0 %4841
    %v4843 = vsel %vm4830, %v4590, -inf
    %4844 = vmax.xlane.f32.xlu0 %v4843
    %v4845 = vpop.xlane.xlu0 %4844
    %v4846 = vsel %vm4830, %v4669, -inf
    %4847 = vmax.xlane.f32.xlu0 %v4846
    %v4848 = vpop.xlane.xlu0 %4847
    %v4849 = vsel %vm4830, %v4748, -inf
    %4850 = vmax.xlane.f32.xlu0 %v4849
    %v4851 = vpop.xlane.xlu0 %4850
    %v4852 = vsel %vm4830, %v4827, -inf
    %4853 = vmax.xlane.f32.xlu0 %v4852
    %v4854 = vpop.xlane.xlu0 %4853
    %v4855 = vsub.f32 %v4274, %v4833
    %v4856 = vsub.f32 %v4353, %v4836
    %v4857 = vsub.f32 %v4432, %v4839
    %v4858 = vsub.f32 %v4511, %v4842
    %v4859 = vsub.f32 %v4590, %v4845
    %v4860 = vsub.f32 %v4669, %v4848
    %v4861 = vsub.f32 %v4748, %v4851
    %v4862 = vsub.f32 %v4827, %v4854
    %v4863 = vmul.f32 %v4855, 1.442695
    %v4864 = vpow.pop %v4863
    %v4865 = vmul.f32 %v4856, 1.442695
    %v4866 = vpow.pop %v4865
    %v4867 = vmul.f32 %v4857, 1.442695
    %v4868 = vpow.pop %v4867
    %v4869 = vmul.f32 %v4858, 1.442695
    %v4870 = vpow.pop %v4869
    %v4871 = vmul.f32 %v4859, 1.442695
    %v4872 = vpow.pop %v4871
    %v4873 = vmul.f32 %v4860, 1.442695
    %v4874 = vpow.pop %v4873
    %v4875 = vmul.f32 %v4861, 1.442695
    %v4876 = vpow.pop %v4875
    %v4877 = vmul.f32 %v4862, 1.442695
    %v4878 = vpow.pop %v4877
    %v4879 = vsel %vm4830, %v4864, 0.0
    %4880 = vadd.xlane.f32.xlu0 %v4879
    %v4881 = vpop.xlane.xlu0 %4880
    %v4882 = vsel %vm4830, %v4866, 0.0
    %4883 = vadd.xlane.f32.xlu0 %v4882
    %v4884 = vpop.xlane.xlu0 %4883
    %v4885 = vsel %vm4830, %v4868, 0.0
    %4886 = vadd.xlane.f32.xlu0 %v4885
    %v4887 = vpop.xlane.xlu0 %4886
    %v4888 = vsel %vm4830, %v4870, 0.0
    %4889 = vadd.xlane.f32.xlu0 %v4888
    %v4890 = vpop.xlane.xlu0 %4889
    %v4891 = vsel %vm4830, %v4872, 0.0
    %4892 = vadd.xlane.f32.xlu0 %v4891
    %v4893 = vpop.xlane.xlu0 %4892
    %v4894 = vsel %vm4830, %v4874, 0.0
    %4895 = vadd.xlane.f32.xlu0 %v4894
    %v4896 = vpop.xlane.xlu0 %4895
    %v4897 = vsel %vm4830, %v4876, 0.0
    %4898 = vadd.xlane.f32.xlu0 %v4897
    %v4899 = vpop.xlane.xlu0 %4898
    %v4900 = vsel %vm4830, %v4878, 0.0
    %4901 = vadd.xlane.f32.xlu0 %v4900
    %v4902 = vpop.xlane.xlu0 %4901
    %v4903 = vrcp.pop %v4881
    %v4904 = vmul.f32 %v4864, %v4903
    %v4905 = vrcp.pop %v4884
    %v4906 = vmul.f32 %v4866, %v4905
    %v4907 = vrcp.pop %v4887
    %v4908 = vmul.f32 %v4868, %v4907
    %v4909 = vrcp.pop %v4890
    %v4910 = vmul.f32 %v4870, %v4909
    %v4911 = vrcp.pop %v4893
    %v4912 = vmul.f32 %v4872, %v4911
    %v4913 = vrcp.pop %v4896
    %v4914 = vmul.f32 %v4874, %v4913
    %v4915 = vrcp.pop %v4899
    %v4916 = vmul.f32 %v4876, %v4915
    %v4917 = vrcp.pop %v4902
    %v4918 = vmul.f32 %v4878, %v4917
    %4919 = vrot.lane.b32.xlu0 %v3611, 120
    %v4920 = vpop.permute.xlu0 %4919
    %4921 = vrot.lane.b32.xlu0 %v3616, 120
    %v4922 = vpop.permute.xlu0 %4921
    %v4925 = vsel %vm4830, %v4904, 0
    %vm4927 = vcmask 1043456
    %v4928 = vsel %vm4927, %v4922, 0
    %4930 = vmatprep.subr.mxu0 0.0
    %4931 = vmatpush1.msra.mxu0 0.0
    %4932 = vmatprep.subr.mxu0 0.0
    %4933 = vmatpush1.msra.mxu0 0.0
    %4934 = vmatprep.subr.mxu0 0.0
    %4935 = vmatpush1.msra.mxu0 0.0
    %4936 = vmatprep.subr.mxu0 0.0
    %4937 = vmatpush1.msra.mxu0 0.0
    %4938 = vmatprep.subr.mxu0 0.0
    %4939 = vmatpush1.msra.mxu0 0.0
    %4940 = vmatprep.subr.mxu0 0.0
    %4941 = vmatpush1.msra.mxu0 0.0
    %4942 = vmatprep.subr.mxu0 0.0
    %4943 = vmatpush1.msra.mxu0 0.0
    %4944 = vmatprep.subr.mxu0 0.0
    %4945 = vmatpush1.msra.mxu0 0.0
    %4946 = vmatprep.subr.mxu0 0.0
    %4947 = vmatpush1.msra.mxu0 0.0
    %4948 = vmatprep.subr.mxu0 0.0
    %4949 = vmatpush1.msra.mxu0 0.0
    %4950 = vmatprep.subr.mxu0 0.0
    %4951 = vmatpush1.msra.mxu0 0.0
    %4952 = vmatprep.subr.mxu0 0.0
    %4953 = vmatpush1.msra.mxu0 0.0
    %4954 = vmatprep.subr.mxu0 0.0
    %4955 = vmatpush1.msra.mxu0 0.0
    %4956 = vmatprep.subr.mxu0 0.0
    %4957 = vmatpush1.msra.mxu0 0.0
    %4958 = vmatprep.subr.mxu0 0.0
    %4959 = vmatpush1.msra.mxu0 %v4928
    %4960 = vmatprep.subr.mxu0 0.0
    %4961 = vmatpush1.msra.mxu0 %v4920
    %4962 = vmatprep.subr.mxu0 0.0
    %4963 = vmatpush2.msra.mxu0 0.0
    %4964 = vmatprep.subr.mxu0 0.0
    %4965 = vmatpush2.msra.mxu0 0.0
    %4966 = vmatprep.subr.mxu0 0.0
    %4967 = vmatpush2.msra.mxu0 0.0
    %4968 = vmatprep.subr.mxu0 0.0
    %4969 = vmatpush2.msra.mxu0 0.0
    %4970 = vmatprep.subr.mxu0 0.0
    %4971 = vmatpush2.msra.mxu0 0.0
    %4972 = vmatprep.subr.mxu0 0.0
    %4973 = vmatpush2.msra.mxu0 0.0
    %4974 = vmatprep.subr.mxu0 0.0
    %4975 = vmatpush2.msra.mxu0 0.0
    %4976 = vmatprep.subr.mxu0 0.0
    %4977 = vmatpush2.msra.mxu0 0.0
    %4978 = vmatprep.subr.mxu0 0.0
    %4979 = vmatpush2.msra.mxu0 0.0
    %4980 = vmatprep.subr.mxu0 0.0
    %4981 = vmatpush2.msra.mxu0 0.0
    %4982 = vmatprep.subr.mxu0 0.0
    %4983 = vmatpush2.msra.mxu0 0.0
    %4984 = vmatprep.subr.mxu0 0.0
    %4985 = vmatpush2.msra.mxu0 0.0
    %4986 = vmatprep.subr.mxu0 0.0
    %4987 = vmatpush2.msra.mxu0 0.0
    %4988 = vmatprep.subr.mxu0 0.0
    %4989 = vmatpush2.msra.mxu0 0.0
    %4990 = vmatprep.subr.mxu0 0.0
    %4991 = vmatpush2.msra.mxu0 0.0
    %4992 = vmatprep.subr.mxu0 0.0
    %4993 = vmatpush2.msra.mxu0 0.0
    %4994 = vmatprep.mubr.f32.mxu0 0.0
    %4995 = vmatmul.mubr.f32.gmra.mxu0 %v4925
    %v4996 = vpop.f32.mrf.mxu0
    %v4997 = vadd.f32 0.0, %v4996
    %v4998 = vpop.f32.mrf.mxu0
    %4999 = vdwg.mxu0
    %5000 = vrot.lane.b32.xlu0 %v3702, 120
    %v5001 = vpop.permute.xlu0 %5000
    %5002 = vrot.lane.b32.xlu0 %v3707, 120
    %v5003 = vpop.permute.xlu0 %5002
    %v5006 = vsel %vm4830, %v4906, 0
    %v5008 = vsel %vm4927, %v5003, 0
    %5010 = vmatprep.subr.mxu0 0.0
    %5011 = vmatpush1.msra.mxu0 0.0
    %5012 = vmatprep.subr.mxu0 0.0
    %5013 = vmatpush1.msra.mxu0 0.0
    %5014 = vmatprep.subr.mxu0 0.0
    %5015 = vmatpush1.msra.mxu0 0.0
    %5016 = vmatprep.subr.mxu0 0.0
    %5017 = vmatpush1.msra.mxu0 0.0
    %5018 = vmatprep.subr.mxu0 0.0
    %5019 = vmatpush1.msra.mxu0 0.0
    %5020 = vmatprep.subr.mxu0 0.0
    %5021 = vmatpush1.msra.mxu0 0.0
    %5022 = vmatprep.subr.mxu0 0.0
    %5023 = vmatpush1.msra.mxu0 0.0
    %5024 = vmatprep.subr.mxu0 0.0
    %5025 = vmatpush1.msra.mxu0 0.0
    %5026 = vmatprep.subr.mxu0 0.0
    %5027 = vmatpush1.msra.mxu0 0.0
    %5028 = vmatprep.subr.mxu0 0.0
    %5029 = vmatpush1.msra.mxu0 0.0
    %5030 = vmatprep.subr.mxu0 0.0
    %5031 = vmatpush1.msra.mxu0 0.0
    %5032 = vmatprep.subr.mxu0 0.0
    %5033 = vmatpush1.msra.mxu0 0.0
    %5034 = vmatprep.subr.mxu0 0.0
    %5035 = vmatpush1.msra.mxu0 0.0
    %5036 = vmatprep.subr.mxu0 0.0
    %5037 = vmatpush1.msra.mxu0 0.0
    %5038 = vmatprep.subr.mxu0 0.0
    %5039 = vmatpush1.msra.mxu0 %v5008
    %5040 = vmatprep.subr.mxu0 0.0
    %5041 = vmatpush1.msra.mxu0 %v5001
    %5042 = vmatprep.subr.mxu0 0.0
    %5043 = vmatpush2.msra.mxu0 0.0
    %5044 = vmatprep.subr.mxu0 0.0
    %5045 = vmatpush2.msra.mxu0 0.0
    %5046 = vmatprep.subr.mxu0 0.0
    %5047 = vmatpush2.msra.mxu0 0.0
    %5048 = vmatprep.subr.mxu0 0.0
    %5049 = vmatpush2.msra.mxu0 0.0
    %5050 = vmatprep.subr.mxu0 0.0
    %5051 = vmatpush2.msra.mxu0 0.0
    %5052 = vmatprep.subr.mxu0 0.0
    %5053 = vmatpush2.msra.mxu0 0.0
    %5054 = vmatprep.subr.mxu0 0.0
    %5055 = vmatpush2.msra.mxu0 0.0
    %5056 = vmatprep.subr.mxu0 0.0
    %5057 = vmatpush2.msra.mxu0 0.0
    %5058 = vmatprep.subr.mxu0 0.0
    %5059 = vmatpush2.msra.mxu0 0.0
    %5060 = vmatprep.subr.mxu0 0.0
    %5061 = vmatpush2.msra.mxu0 0.0
    %5062 = vmatprep.subr.mxu0 0.0
    %5063 = vmatpush2.msra.mxu0 0.0
    %5064 = vmatprep.subr.mxu0 0.0
    %5065 = vmatpush2.msra.mxu0 0.0
    %5066 = vmatprep.subr.mxu0 0.0
    %5067 = vmatpush2.msra.mxu0 0.0
    %5068 = vmatprep.subr.mxu0 0.0
    %5069 = vmatpush2.msra.mxu0 0.0
    %5070 = vmatprep.subr.mxu0 0.0
    %5071 = vmatpush2.msra.mxu0 0.0
    %5072 = vmatprep.subr.mxu0 0.0
    %5073 = vmatpush2.msra.mxu0 0.0
    %5074 = vmatprep.mubr.f32.mxu0 0.0
    %5075 = vmatmul.mubr.f32.gmra.mxu0 %v5006
    %v5076 = vpop.f32.mrf.mxu0
    %v5077 = vadd.f32 0.0, %v5076
    %v5078 = vpop.f32.mrf.mxu0
    %5079 = vdwg.mxu0
    %5080 = vrot.lane.b32.xlu0 %v3793, 120
    %v5081 = vpop.permute.xlu0 %5080
    %5082 = vrot.lane.b32.xlu0 %v3798, 120
    %v5083 = vpop.permute.xlu0 %5082
    %v5086 = vsel %vm4830, %v4908, 0
    %v5088 = vsel %vm4927, %v5083, 0
    %5090 = vmatprep.subr.mxu0 0.0
    %5091 = vmatpush1.msra.mxu0 0.0
    %5092 = vmatprep.subr.mxu0 0.0
    %5093 = vmatpush1.msra.mxu0 0.0
    %5094 = vmatprep.subr.mxu0 0.0
    %5095 = vmatpush1.msra.mxu0 0.0
    %5096 = vmatprep.subr.mxu0 0.0
    %5097 = vmatpush1.msra.mxu0 0.0
    %5098 = vmatprep.subr.mxu0 0.0
    %5099 = vmatpush1.msra.mxu0 0.0
    %5100 = vmatprep.subr.mxu0 0.0
    %5101 = vmatpush1.msra.mxu0 0.0
    %5102 = vmatprep.subr.mxu0 0.0
    %5103 = vmatpush1.msra.mxu0 0.0
    %5104 = vmatprep.subr.mxu0 0.0
    %5105 = vmatpush1.msra.mxu0 0.0
    %5106 = vmatprep.subr.mxu0 0.0
    %5107 = vmatpush1.msra.mxu0 0.0
    %5108 = vmatprep.subr.mxu0 0.0
    %5109 = vmatpush1.msra.mxu0 0.0
    %5110 = vmatprep.subr.mxu0 0.0
    %5111 = vmatpush1.msra.mxu0 0.0
    %5112 = vmatprep.subr.mxu0 0.0
    %5113 = vmatpush1.msra.mxu0 0.0
    %5114 = vmatprep.subr.mxu0 0.0
    %5115 = vmatpush1.msra.mxu0 0.0
    %5116 = vmatprep.subr.mxu0 0.0
    %5117 = vmatpush1.msra.mxu0 0.0
    %5118 = vmatprep.subr.mxu0 0.0
    %5119 = vmatpush1.msra.mxu0 %v5088
    %5120 = vmatprep.subr.mxu0 0.0
    %5121 = vmatpush1.msra.mxu0 %v5081
    %5122 = vmatprep.subr.mxu0 0.0
    %5123 = vmatpush2.msra.mxu0 0.0
    %5124 = vmatprep.subr.mxu0 0.0
    %5125 = vmatpush2.msra.mxu0 0.0
    %5126 = vmatprep.subr.mxu0 0.0
    %5127 = vmatpush2.msra.mxu0 0.0
    %5128 = vmatprep.subr.mxu0 0.0
    %5129 = vmatpush2.msra.mxu0 0.0
    %5130 = vmatprep.subr.mxu0 0.0
    %5131 = vmatpush2.msra.mxu0 0.0
    %5132 = vmatprep.subr.mxu0 0.0
    %5133 = vmatpush2.msra.mxu0 0.0
    %5134 = vmatprep.subr.mxu0 0.0
    %5135 = vmatpush2.msra.mxu0 0.0
    %5136 = vmatprep.subr.mxu0 0.0
    %5137 = vmatpush2.msra.mxu0 0.0
    %5138 = vmatprep.subr.mxu0 0.0
    %5139 = vmatpush2.msra.mxu0 0.0
    %5140 = vmatprep.subr.mxu0 0.0
    %5141 = vmatpush2.msra.mxu0 0.0
    %5142 = vmatprep.subr.mxu0 0.0
    %5143 = vmatpush2.msra.mxu0 0.0
    %5144 = vmatprep.subr.mxu0 0.0
    %5145 = vmatpush2.msra.mxu0 0.0
    %5146 = vmatprep.subr.mxu0 0.0
    %5147 = vmatpush2.msra.mxu0 0.0
    %5148 = vmatprep.subr.mxu0 0.0
    %5149 = vmatpush2.msra.mxu0 0.0
    %5150 = vmatprep.subr.mxu0 0.0
    %5151 = vmatpush2.msra.mxu0 0.0
    %5152 = vmatprep.subr.mxu0 0.0
    %5153 = vmatpush2.msra.mxu0 0.0
    %5154 = vmatprep.mubr.f32.mxu0 0.0
    %5155 = vmatmul.mubr.f32.gmra.mxu0 %v5086
    %v5156 = vpop.f32.mrf.mxu0
    %v5157 = vadd.f32 0.0, %v5156
    %v5158 = vpop.f32.mrf.mxu0
    %5159 = vdwg.mxu0
    %5160 = vrot.lane.b32.xlu0 %v3884, 120
    %v5161 = vpop.permute.xlu0 %5160
    %5162 = vrot.lane.b32.xlu0 %v3889, 120
    %v5163 = vpop.permute.xlu0 %5162
    %v5166 = vsel %vm4830, %v4910, 0
    %v5168 = vsel %vm4927, %v5163, 0
    %5170 = vmatprep.subr.mxu0 0.0
    %5171 = vmatpush1.msra.mxu0 0.0
    %5172 = vmatprep.subr.mxu0 0.0
    %5173 = vmatpush1.msra.mxu0 0.0
    %5174 = vmatprep.subr.mxu0 0.0
    %5175 = vmatpush1.msra.mxu0 0.0
    %5176 = vmatprep.subr.mxu0 0.0
    %5177 = vmatpush1.msra.mxu0 0.0
    %5178 = vmatprep.subr.mxu0 0.0
    %5179 = vmatpush1.msra.mxu0 0.0
    %5180 = vmatprep.subr.mxu0 0.0
    %5181 = vmatpush1.msra.mxu0 0.0
    %5182 = vmatprep.subr.mxu0 0.0
    %5183 = vmatpush1.msra.mxu0 0.0
    %5184 = vmatprep.subr.mxu0 0.0
    %5185 = vmatpush1.msra.mxu0 0.0
    %5186 = vmatprep.subr.mxu0 0.0
    %5187 = vmatpush1.msra.mxu0 0.0
    %5188 = vmatprep.subr.mxu0 0.0
    %5189 = vmatpush1.msra.mxu0 0.0
    %5190 = vmatprep.subr.mxu0 0.0
    %5191 = vmatpush1.msra.mxu0 0.0
    %5192 = vmatprep.subr.mxu0 0.0
    %5193 = vmatpush1.msra.mxu0 0.0
    %5194 = vmatprep.subr.mxu0 0.0
    %5195 = vmatpush1.msra.mxu0 0.0
    %5196 = vmatprep.subr.mxu0 0.0
    %5197 = vmatpush1.msra.mxu0 0.0
    %5198 = vmatprep.subr.mxu0 0.0
    %5199 = vmatpush1.msra.mxu0 %v5168
    %5200 = vmatprep.subr.mxu0 0.0
    %5201 = vmatpush1.msra.mxu0 %v5161
    %5202 = vmatprep.subr.mxu0 0.0
    %5203 = vmatpush2.msra.mxu0 0.0
    %5204 = vmatprep.subr.mxu0 0.0
    %5205 = vmatpush2.msra.mxu0 0.0
    %5206 = vmatprep.subr.mxu0 0.0
    %5207 = vmatpush2.msra.mxu0 0.0
    %5208 = vmatprep.subr.mxu0 0.0
    %5209 = vmatpush2.msra.mxu0 0.0
    %5210 = vmatprep.subr.mxu0 0.0
    %5211 = vmatpush2.msra.mxu0 0.0
    %5212 = vmatprep.subr.mxu0 0.0
    %5213 = vmatpush2.msra.mxu0 0.0
    %5214 = vmatprep.subr.mxu0 0.0
    %5215 = vmatpush2.msra.mxu0 0.0
    %5216 = vmatprep.subr.mxu0 0.0
    %5217 = vmatpush2.msra.mxu0 0.0
    %5218 = vmatprep.subr.mxu0 0.0
    %5219 = vmatpush2.msra.mxu0 0.0
    %5220 = vmatprep.subr.mxu0 0.0
    %5221 = vmatpush2.msra.mxu0 0.0
    %5222 = vmatprep.subr.mxu0 0.0
    %5223 = vmatpush2.msra.mxu0 0.0
    %5224 = vmatprep.subr.mxu0 0.0
    %5225 = vmatpush2.msra.mxu0 0.0
    %5226 = vmatprep.subr.mxu0 0.0
    %5227 = vmatpush2.msra.mxu0 0.0
    %5228 = vmatprep.subr.mxu0 0.0
    %5229 = vmatpush2.msra.mxu0 0.0
    %5230 = vmatprep.subr.mxu0 0.0
    %5231 = vmatpush2.msra.mxu0 0.0
    %5232 = vmatprep.subr.mxu0 0.0
    %5233 = vmatpush2.msra.mxu0 0.0
    %5234 = vmatprep.mubr.f32.mxu0 0.0
    %5235 = vmatmul.mubr.f32.gmra.mxu0 %v5166
    %v5236 = vpop.f32.mrf.mxu0
    %v5237 = vadd.f32 0.0, %v5236
    %v5238 = vpop.f32.mrf.mxu0
    %5239 = vdwg.mxu0
    %5240 = vrot.lane.b32.xlu0 %v3965, 120
    %v5241 = vpop.permute.xlu0 %5240
    %5242 = vrot.lane.b32.xlu0 %v3970, 120
    %v5243 = vpop.permute.xlu0 %5242
    %v5246 = vsel %vm4830, %v4912, 0
    %v5248 = vsel %vm4927, %v5243, 0
    %5250 = vmatprep.subr.mxu0 0.0
    %5251 = vmatpush1.msra.mxu0 0.0
    %5252 = vmatprep.subr.mxu0 0.0
    %5253 = vmatpush1.msra.mxu0 0.0
    %5254 = vmatprep.subr.mxu0 0.0
    %5255 = vmatpush1.msra.mxu0 0.0
    %5256 = vmatprep.subr.mxu0 0.0
    %5257 = vmatpush1.msra.mxu0 0.0
    %5258 = vmatprep.subr.mxu0 0.0
    %5259 = vmatpush1.msra.mxu0 0.0
    %5260 = vmatprep.subr.mxu0 0.0
    %5261 = vmatpush1.msra.mxu0 0.0
    %5262 = vmatprep.subr.mxu0 0.0
    %5263 = vmatpush1.msra.mxu0 0.0
    %5264 = vmatprep.subr.mxu0 0.0
    %5265 = vmatpush1.msra.mxu0 0.0
    %5266 = vmatprep.subr.mxu0 0.0
    %5267 = vmatpush1.msra.mxu0 0.0
    %5268 = vmatprep.subr.mxu0 0.0
    %5269 = vmatpush1.msra.mxu0 0.0
    %5270 = vmatprep.subr.mxu0 0.0
    %5271 = vmatpush1.msra.mxu0 0.0
    %5272 = vmatprep.subr.mxu0 0.0
    %5273 = vmatpush1.msra.mxu0 0.0
    %5274 = vmatprep.subr.mxu0 0.0
    %5275 = vmatpush1.msra.mxu0 0.0
    %5276 = vmatprep.subr.mxu0 0.0
    %5277 = vmatpush1.msra.mxu0 0.0
    %5278 = vmatprep.subr.mxu0 0.0
    %5279 = vmatpush1.msra.mxu0 %v5248
    %5280 = vmatprep.subr.mxu0 0.0
    %5281 = vmatpush1.msra.mxu0 %v5241
    %5282 = vmatprep.subr.mxu0 0.0
    %5283 = vmatpush2.msra.mxu0 0.0
    %5284 = vmatprep.subr.mxu0 0.0
    %5285 = vmatpush2.msra.mxu0 0.0
    %5286 = vmatprep.subr.mxu0 0.0
    %5287 = vmatpush2.msra.mxu0 0.0
    %5288 = vmatprep.subr.mxu0 0.0
    %5289 = vmatpush2.msra.mxu0 0.0
    %5290 = vmatprep.subr.mxu0 0.0
    %5291 = vmatpush2.msra.mxu0 0.0
    %5292 = vmatprep.subr.mxu0 0.0
    %5293 = vmatpush2.msra.mxu0 0.0
    %5294 = vmatprep.subr.mxu0 0.0
    %5295 = vmatpush2.msra.mxu0 0.0
    %5296 = vmatprep.subr.mxu0 0.0
    %5297 = vmatpush2.msra.mxu0 0.0
    %5298 = vmatprep.subr.mxu0 0.0
    %5299 = vmatpush2.msra.mxu0 0.0
    %5300 = vmatprep.subr.mxu0 0.0
    %5301 = vmatpush2.msra.mxu0 0.0
    %5302 = vmatprep.subr.mxu0 0.0
    %5303 = vmatpush2.msra.mxu0 0.0
    %5304 = vmatprep.subr.mxu0 0.0
    %5305 = vmatpush2.msra.mxu0 0.0
    %5306 = vmatprep.subr.mxu0 0.0
    %5307 = vmatpush2.msra.mxu0 0.0
    %5308 = vmatprep.subr.mxu0 0.0
    %5309 = vmatpush2.msra.mxu0 0.0
    %5310 = vmatprep.subr.mxu0 0.0
    %5311 = vmatpush2.msra.mxu0 0.0
    %5312 = vmatprep.subr.mxu0 0.0
    %5313 = vmatpush2.msra.mxu0 0.0
    %5314 = vmatprep.mubr.f32.mxu0 0.0
    %5315 = vmatmul.mubr.f32.gmra.mxu0 %v5246
    %v5316 = vpop.f32.mrf.mxu0
    %v5317 = vadd.f32 0.0, %v5316
    %v5318 = vpop.f32.mrf.mxu0
    %5319 = vdwg.mxu0
    %5320 = vrot.lane.b32.xlu0 %v4040, 120
    %v5321 = vpop.permute.xlu0 %5320
    %5322 = vrot.lane.b32.xlu0 %v4045, 120
    %v5323 = vpop.permute.xlu0 %5322
    %v5326 = vsel %vm4830, %v4914, 0
    %v5328 = vsel %vm4927, %v5323, 0
    %5330 = vmatprep.subr.mxu0 0.0
    %5331 = vmatpush1.msra.mxu0 0.0
    %5332 = vmatprep.subr.mxu0 0.0
    %5333 = vmatpush1.msra.mxu0 0.0
    %5334 = vmatprep.subr.mxu0 0.0
    %5335 = vmatpush1.msra.mxu0 0.0
    %5336 = vmatprep.subr.mxu0 0.0
    %5337 = vmatpush1.msra.mxu0 0.0
    %5338 = vmatprep.subr.mxu0 0.0
    %5339 = vmatpush1.msra.mxu0 0.0
    %5340 = vmatprep.subr.mxu0 0.0
    %5341 = vmatpush1.msra.mxu0 0.0
    %5342 = vmatprep.subr.mxu0 0.0
    %5343 = vmatpush1.msra.mxu0 0.0
    %5344 = vmatprep.subr.mxu0 0.0
    %5345 = vmatpush1.msra.mxu0 0.0
    %5346 = vmatprep.subr.mxu0 0.0
    %5347 = vmatpush1.msra.mxu0 0.0
    %5348 = vmatprep.subr.mxu0 0.0
    %5349 = vmatpush1.msra.mxu0 0.0
    %5350 = vmatprep.subr.mxu0 0.0
    %5351 = vmatpush1.msra.mxu0 0.0
    %5352 = vmatprep.subr.mxu0 0.0
    %5353 = vmatpush1.msra.mxu0 0.0
    %5354 = vmatprep.subr.mxu0 0.0
    %5355 = vmatpush1.msra.mxu0 0.0
    %5356 = vmatprep.subr.mxu0 0.0
    %5357 = vmatpush1.msra.mxu0 0.0
    %5358 = vmatprep.subr.mxu0 0.0
    %5359 = vmatpush1.msra.mxu0 %v5328
    %5360 = vmatprep.subr.mxu0 0.0
    %5361 = vmatpush1.msra.mxu0 %v5321
    %5362 = vmatprep.subr.mxu0 0.0
    %5363 = vmatpush2.msra.mxu0 0.0
    %5364 = vmatprep.subr.mxu0 0.0
    %5365 = vmatpush2.msra.mxu0 0.0
    %5366 = vmatprep.subr.mxu0 0.0
    %5367 = vmatpush2.msra.mxu0 0.0
    %5368 = vmatprep.subr.mxu0 0.0
    %5369 = vmatpush2.msra.mxu0 0.0
    %5370 = vmatprep.subr.mxu0 0.0
    %5371 = vmatpush2.msra.mxu0 0.0
    %5372 = vmatprep.subr.mxu0 0.0
    %5373 = vmatpush2.msra.mxu0 0.0
    %5374 = vmatprep.subr.mxu0 0.0
    %5375 = vmatpush2.msra.mxu0 0.0
    %5376 = vmatprep.subr.mxu0 0.0
    %5377 = vmatpush2.msra.mxu0 0.0
    %5378 = vmatprep.subr.mxu0 0.0
    %5379 = vmatpush2.msra.mxu0 0.0
    %5380 = vmatprep.subr.mxu0 0.0
    %5381 = vmatpush2.msra.mxu0 0.0
    %5382 = vmatprep.subr.mxu0 0.0
    %5383 = vmatpush2.msra.mxu0 0.0
    %5384 = vmatprep.subr.mxu0 0.0
    %5385 = vmatpush2.msra.mxu0 0.0
    %5386 = vmatprep.subr.mxu0 0.0
    %5387 = vmatpush2.msra.mxu0 0.0
    %5388 = vmatprep.subr.mxu0 0.0
    %5389 = vmatpush2.msra.mxu0 0.0
    %5390 = vmatprep.subr.mxu0 0.0
    %5391 = vmatpush2.msra.mxu0 0.0
    %5392 = vmatprep.subr.mxu0 0.0
    %5393 = vmatpush2.msra.mxu0 0.0
    %5394 = vmatprep.mubr.f32.mxu0 0.0
    %5395 = vmatmul.mubr.f32.gmra.mxu0 %v5326
    %v5396 = vpop.f32.mrf.mxu0
    %v5397 = vadd.f32 0.0, %v5396
    %v5398 = vpop.f32.mrf.mxu0
    %5399 = vdwg.mxu0
    %5400 = vrot.lane.b32.xlu0 %v4115, 120
    %v5401 = vpop.permute.xlu0 %5400
    %5402 = vrot.lane.b32.xlu0 %v4120, 120
    %v5403 = vpop.permute.xlu0 %5402
    %v5406 = vsel %vm4830, %v4916, 0
    %v5408 = vsel %vm4927, %v5403, 0
    %5410 = vmatprep.subr.mxu0 0.0
    %5411 = vmatpush1.msra.mxu0 0.0
    %5412 = vmatprep.subr.mxu0 0.0
    %5413 = vmatpush1.msra.mxu0 0.0
    %5414 = vmatprep.subr.mxu0 0.0
    %5415 = vmatpush1.msra.mxu0 0.0
    %5416 = vmatprep.subr.mxu0 0.0
    %5417 = vmatpush1.msra.mxu0 0.0
    %5418 = vmatprep.subr.mxu0 0.0
    %5419 = vmatpush1.msra.mxu0 0.0
    %5420 = vmatprep.subr.mxu0 0.0
    %5421 = vmatpush1.msra.mxu0 0.0
    %5422 = vmatprep.subr.mxu0 0.0
    %5423 = vmatpush1.msra.mxu0 0.0
    %5424 = vmatprep.subr.mxu0 0.0
    %5425 = vmatpush1.msra.mxu0 0.0
    %5426 = vmatprep.subr.mxu0 0.0
    %5427 = vmatpush1.msra.mxu0 0.0
    %5428 = vmatprep.subr.mxu0 0.0
    %5429 = vmatpush1.msra.mxu0 0.0
    %5430 = vmatprep.subr.mxu0 0.0
    %5431 = vmatpush1.msra.mxu0 0.0
    %5432 = vmatprep.subr.mxu0 0.0
    %5433 = vmatpush1.msra.mxu0 0.0
    %5434 = vmatprep.subr.mxu0 0.0
    %5435 = vmatpush1.msra.mxu0 0.0
    %5436 = vmatprep.subr.mxu0 0.0
    %5437 = vmatpush1.msra.mxu0 0.0
    %5438 = vmatprep.subr.mxu0 0.0
    %5439 = vmatpush1.msra.mxu0 %v5408
    %5440 = vmatprep.subr.mxu0 0.0
    %5441 = vmatpush1.msra.mxu0 %v5401
    %5442 = vmatprep.subr.mxu0 0.0
    %5443 = vmatpush2.msra.mxu0 0.0
    %5444 = vmatprep.subr.mxu0 0.0
    %5445 = vmatpush2.msra.mxu0 0.0
    %5446 = vmatprep.subr.mxu0 0.0
    %5447 = vmatpush2.msra.mxu0 0.0
    %5448 = vmatprep.subr.mxu0 0.0
    %5449 = vmatpush2.msra.mxu0 0.0
    %5450 = vmatprep.subr.mxu0 0.0
    %5451 = vmatpush2.msra.mxu0 0.0
    %5452 = vmatprep.subr.mxu0 0.0
    %5453 = vmatpush2.msra.mxu0 0.0
    %5454 = vmatprep.subr.mxu0 0.0
    %5455 = vmatpush2.msra.mxu0 0.0
    %5456 = vmatprep.subr.mxu0 0.0
    %5457 = vmatpush2.msra.mxu0 0.0
    %5458 = vmatprep.subr.mxu0 0.0
    %5459 = vmatpush2.msra.mxu0 0.0
    %5460 = vmatprep.subr.mxu0 0.0
    %5461 = vmatpush2.msra.mxu0 0.0
    %5462 = vmatprep.subr.mxu0 0.0
    %5463 = vmatpush2.msra.mxu0 0.0
    %5464 = vmatprep.subr.mxu0 0.0
    %5465 = vmatpush2.msra.mxu0 0.0
    %5466 = vmatprep.subr.mxu0 0.0
    %5467 = vmatpush2.msra.mxu0 0.0
    %5468 = vmatprep.subr.mxu0 0.0
    %5469 = vmatpush2.msra.mxu0 0.0
    %5470 = vmatprep.subr.mxu0 0.0
    %5471 = vmatpush2.msra.mxu0 0.0
    %5472 = vmatprep.subr.mxu0 0.0
    %5473 = vmatpush2.msra.mxu0 0.0
    %5474 = vmatprep.mubr.f32.mxu0 0.0
    %5475 = vmatmul.mubr.f32.gmra.mxu0 %v5406
    %v5476 = vpop.f32.mrf.mxu0
    %v5477 = vadd.f32 0.0, %v5476
    %v5478 = vpop.f32.mrf.mxu0
    %5479 = vdwg.mxu0
    %5480 = vrot.lane.b32.xlu0 %v4190, 120
    %v5481 = vpop.permute.xlu0 %5480
    %5482 = vrot.lane.b32.xlu0 %v4195, 120
    %v5483 = vpop.permute.xlu0 %5482
    %v5486 = vsel %vm4830, %v4918, 0
    %v5488 = vsel %vm4927, %v5483, 0
    %5490 = vmatprep.subr.mxu0 0.0
    %5491 = vmatpush1.msra.mxu0 0.0
    %5492 = vmatprep.subr.mxu0 0.0
    %5493 = vmatpush1.msra.mxu0 0.0
    %5494 = vmatprep.subr.mxu0 0.0
    %5495 = vmatpush1.msra.mxu0 0.0
    %5496 = vmatprep.subr.mxu0 0.0
    %5497 = vmatpush1.msra.mxu0 0.0
    %5498 = vmatprep.subr.mxu0 0.0
    %5499 = vmatpush1.msra.mxu0 0.0
    %5500 = vmatprep.subr.mxu0 0.0
    %5501 = vmatpush1.msra.mxu0 0.0
    %5502 = vmatprep.subr.mxu0 0.0
    %5503 = vmatpush1.msra.mxu0 0.0
    %5504 = vmatprep.subr.mxu0 0.0
    %5505 = vmatpush1.msra.mxu0 0.0
    %5506 = vmatprep.subr.mxu0 0.0
    %5507 = vmatpush1.msra.mxu0 0.0
    %5508 = vmatprep.subr.mxu0 0.0
    %5509 = vmatpush1.msra.mxu0 0.0
    %5510 = vmatprep.subr.mxu0 0.0
    %5511 = vmatpush1.msra.mxu0 0.0
    %5512 = vmatprep.subr.mxu0 0.0
    %5513 = vmatpush1.msra.mxu0 0.0
    %5514 = vmatprep.subr.mxu0 0.0
    %5515 = vmatpush1.msra.mxu0 0.0
    %5516 = vmatprep.subr.mxu0 0.0
    %5517 = vmatpush1.msra.mxu0 0.0
    %5518 = vmatprep.subr.mxu0 0.0
    %5519 = vmatpush1.msra.mxu0 %v5488
    %5520 = vmatprep.subr.mxu0 0.0
    %5521 = vmatpush1.msra.mxu0 %v5481
    %5522 = vmatprep.subr.mxu0 0.0
    %5523 = vmatpush2.msra.mxu0 0.0
    %5524 = vmatprep.subr.mxu0 0.0
    %5525 = vmatpush2.msra.mxu0 0.0
    %5526 = vmatprep.subr.mxu0 0.0
    %5527 = vmatpush2.msra.mxu0 0.0
    %5528 = vmatprep.subr.mxu0 0.0
    %5529 = vmatpush2.msra.mxu0 0.0
    %5530 = vmatprep.subr.mxu0 0.0
    %5531 = vmatpush2.msra.mxu0 0.0
    %5532 = vmatprep.subr.mxu0 0.0
    %5533 = vmatpush2.msra.mxu0 0.0
    %5534 = vmatprep.subr.mxu0 0.0
    %5535 = vmatpush2.msra.mxu0 0.0
    %5536 = vmatprep.subr.mxu0 0.0
    %5537 = vmatpush2.msra.mxu0 0.0
    %5538 = vmatprep.subr.mxu0 0.0
    %5539 = vmatpush2.msra.mxu0 0.0
    %5540 = vmatprep.subr.mxu0 0.0
    %5541 = vmatpush2.msra.mxu0 0.0
    %5542 = vmatprep.subr.mxu0 0.0
    %5543 = vmatpush2.msra.mxu0 0.0
    %5544 = vmatprep.subr.mxu0 0.0
    %5545 = vmatpush2.msra.mxu0 0.0
    %5546 = vmatprep.subr.mxu0 0.0
    %5547 = vmatpush2.msra.mxu0 0.0
    %5548 = vmatprep.subr.mxu0 0.0
    %5549 = vmatpush2.msra.mxu0 0.0
    %5550 = vmatprep.subr.mxu0 0.0
    %5551 = vmatpush2.msra.mxu0 0.0
    %5552 = vmatprep.subr.mxu0 0.0
    %5553 = vmatpush2.msra.mxu0 0.0
    %5554 = vmatprep.mubr.f32.mxu0 0.0
    %5555 = vmatmul.mubr.f32.gmra.mxu0 %v5486
    %v5556 = vpop.f32.mrf.mxu0
    %v5557 = vadd.f32 0.0, %v5556
    %v5558 = vpop.f32.mrf.mxu0
    %5559 = vdwg.mxu0
    %5560 = vrot.lane.b32.xlu0 %v2902, 104
    %v5561 = vpop.permute.xlu0 %5560
    %5562 = vrot.lane.b32.xlu0 %v2903, 104
    %v5563 = vpop.permute.xlu0 %5562
    %5564 = vrot.lane.b32.xlu0 %v2904, 104
    %v5565 = vpop.permute.xlu0 %5564
    %5566 = vrot.lane.b32.xlu0 %v2905, 104
    %v5567 = vpop.permute.xlu0 %5566
    %v5569 = vsel %vm904, %v4997, 0
    %v5571 = vsel %vm904, %v5561, 0
    %v5573 = vsel %vm904, %v5563, 0
    %v5575 = vsel %vm904, %v5565, 0
    %v5577 = vsel %vm904, %v5567, 0
    %5579 = vmatprep.subr.mxu0 0.0
    %5580 = vmatpush1.xpose.msra.mxu0 0.0
    %5581 = vmatprep.subr.mxu0 0.0
    %5582 = vmatpush1.xpose.msra.mxu0 0.0
    %5583 = vmatprep.subr.mxu0 0.0
    %5584 = vmatpush1.xpose.msra.mxu0 0.0
    %5585 = vmatprep.subr.mxu0 0.0
    %5586 = vmatpush1.xpose.msra.mxu0 0.0
    %5587 = vmatprep.subr.mxu0 0.0
    %5588 = vmatpush1.xpose.msra.mxu0 0.0
    %5589 = vmatprep.subr.mxu0 0.0
    %5590 = vmatpush1.xpose.msra.mxu0 0.0
    %5591 = vmatprep.subr.mxu0 0.0
    %5592 = vmatpush1.xpose.msra.mxu0 0.0
    %5593 = vmatprep.subr.mxu0 0.0
    %5594 = vmatpush1.xpose.msra.mxu0 0.0
    %5595 = vmatprep.subr.mxu0 0.0
    %5596 = vmatpush1.xpose.msra.mxu0 0.0
    %5597 = vmatprep.subr.mxu0 0.0
    %5598 = vmatpush1.xpose.msra.mxu0 0.0
    %5599 = vmatprep.subr.mxu0 0.0
    %5600 = vmatpush1.xpose.msra.mxu0 0.0
    %5601 = vmatprep.subr.mxu0 0.0
    %5602 = vmatpush1.xpose.msra.mxu0 0.0
    %5603 = vmatprep.subr.mxu0 0.0
    %5604 = vmatpush1.xpose.msra.mxu0 %v5577
    %5605 = vmatprep.subr.mxu0 0.0
    %5606 = vmatpush1.xpose.msra.mxu0 %v5575
    %5607 = vmatprep.subr.mxu0 0.0
    %5608 = vmatpush1.xpose.msra.mxu0 %v5573
    %5609 = vmatprep.subr.mxu0 0.0
    %5610 = vmatpush1.xpose.msra.mxu0 %v5571
    %5611 = vmatprep.subr.mxu0 0.0
    %5612 = vmatpush2.xpose.msra.mxu0 0.0
    %5613 = vmatprep.subr.mxu0 0.0
    %5614 = vmatpush2.xpose.msra.mxu0 0.0
    %5615 = vmatprep.subr.mxu0 0.0
    %5616 = vmatpush2.xpose.msra.mxu0 0.0
    %5617 = vmatprep.subr.mxu0 0.0
    %5618 = vmatpush2.xpose.msra.mxu0 0.0
    %5619 = vmatprep.subr.mxu0 0.0
    %5620 = vmatpush2.xpose.msra.mxu0 0.0
    %5621 = vmatprep.subr.mxu0 0.0
    %5622 = vmatpush2.xpose.msra.mxu0 0.0
    %5623 = vmatprep.subr.mxu0 0.0
    %5624 = vmatpush2.xpose.msra.mxu0 0.0
    %5625 = vmatprep.subr.mxu0 0.0
    %5626 = vmatpush2.xpose.msra.mxu0 0.0
    %5627 = vmatprep.subr.mxu0 0.0
    %5628 = vmatpush2.xpose.msra.mxu0 0.0
    %5629 = vmatprep.subr.mxu0 0.0
    %5630 = vmatpush2.xpose.msra.mxu0 0.0
    %5631 = vmatprep.subr.mxu0 0.0
    %5632 = vmatpush2.xpose.msra.mxu0 0.0
    %5633 = vmatprep.subr.mxu0 0.0
    %5634 = vmatpush2.xpose.msra.mxu0 0.0
    %5635 = vmatprep.subr.mxu0 0.0
    %5636 = vmatpush2.xpose.msra.mxu0 0.0
    %5637 = vmatprep.subr.mxu0 0.0
    %5638 = vmatpush2.xpose.msra.mxu0 0.0
    %5639 = vmatprep.subr.mxu0 0.0
    %5640 = vmatpush2.xpose.msra.mxu0 0.0
    %5641 = vmatprep.subr.mxu0 0.0
    %5642 = vmatpush2.xpose.msra.mxu0 0.0
    %5643 = vmatprep.mubr.f32.mxu0 0.0
    %5644 = vmatmul.mubr.f32.gmra.mxu0 %v5569
    %v5645 = vpop.f32.mrf.mxu0
    %v5646 = vadd.f32 0.0, %v5645
    %v5647 = vpop.f32.mrf.mxu0
    %5648 = vdwg.mxu0
    %5649 = vrot.lane.b32.xlu0 %v2906, 104
    %v5650 = vpop.permute.xlu0 %5649
    %5651 = vrot.lane.b32.xlu0 %v2907, 104
    %v5652 = vpop.permute.xlu0 %5651
    %5653 = vrot.lane.b32.xlu0 %v2908, 104
    %v5654 = vpop.permute.xlu0 %5653
    %5655 = vrot.lane.b32.xlu0 %v2909, 104
    %v5656 = vpop.permute.xlu0 %5655
    %v5658 = vsel %vm904, %v5077, 0
    %v5660 = vsel %vm904, %v5650, 0
    %v5662 = vsel %vm904, %v5652, 0
    %v5664 = vsel %vm904, %v5654, 0
    %v5666 = vsel %vm904, %v5656, 0
    %5668 = vmatprep.subr.mxu0 0.0
    %5669 = vmatpush1.xpose.msra.mxu0 0.0
    %5670 = vmatprep.subr.mxu0 0.0
    %5671 = vmatpush1.xpose.msra.mxu0 0.0
    %5672 = vmatprep.subr.mxu0 0.0
    %5673 = vmatpush1.xpose.msra.mxu0 0.0
    %5674 = vmatprep.subr.mxu0 0.0
    %5675 = vmatpush1.xpose.msra.mxu0 0.0
    %5676 = vmatprep.subr.mxu0 0.0
    %5677 = vmatpush1.xpose.msra.mxu0 0.0
    %5678 = vmatprep.subr.mxu0 0.0
    %5679 = vmatpush1.xpose.msra.mxu0 0.0
    %5680 = vmatprep.subr.mxu0 0.0
    %5681 = vmatpush1.xpose.msra.mxu0 0.0
    %5682 = vmatprep.subr.mxu0 0.0
    %5683 = vmatpush1.xpose.msra.mxu0 0.0
    %5684 = vmatprep.subr.mxu0 0.0
    %5685 = vmatpush1.xpose.msra.mxu0 0.0
    %5686 = vmatprep.subr.mxu0 0.0
    %5687 = vmatpush1.xpose.msra.mxu0 0.0
    %5688 = vmatprep.subr.mxu0 0.0
    %5689 = vmatpush1.xpose.msra.mxu0 0.0
    %5690 = vmatprep.subr.mxu0 0.0
    %5691 = vmatpush1.xpose.msra.mxu0 0.0
    %5692 = vmatprep.subr.mxu0 0.0
    %5693 = vmatpush1.xpose.msra.mxu0 %v5666
    %5694 = vmatprep.subr.mxu0 0.0
    %5695 = vmatpush1.xpose.msra.mxu0 %v5664
    %5696 = vmatprep.subr.mxu0 0.0
    %5697 = vmatpush1.xpose.msra.mxu0 %v5662
    %5698 = vmatprep.subr.mxu0 0.0
    %5699 = vmatpush1.xpose.msra.mxu0 %v5660
    %5700 = vmatprep.subr.mxu0 0.0
    %5701 = vmatpush2.xpose.msra.mxu0 0.0
    %5702 = vmatprep.subr.mxu0 0.0
    %5703 = vmatpush2.xpose.msra.mxu0 0.0
    %5704 = vmatprep.subr.mxu0 0.0
    %5705 = vmatpush2.xpose.msra.mxu0 0.0
    %5706 = vmatprep.subr.mxu0 0.0
    %5707 = vmatpush2.xpose.msra.mxu0 0.0
    %5708 = vmatprep.subr.mxu0 0.0
    %5709 = vmatpush2.xpose.msra.mxu0 0.0
    %5710 = vmatprep.subr.mxu0 0.0
    %5711 = vmatpush2.xpose.msra.mxu0 0.0
    %5712 = vmatprep.subr.mxu0 0.0
    %5713 = vmatpush2.xpose.msra.mxu0 0.0
    %5714 = vmatprep.subr.mxu0 0.0
    %5715 = vmatpush2.xpose.msra.mxu0 0.0
    %5716 = vmatprep.subr.mxu0 0.0
    %5717 = vmatpush2.xpose.msra.mxu0 0.0
    %5718 = vmatprep.subr.mxu0 0.0
    %5719 = vmatpush2.xpose.msra.mxu0 0.0
    %5720 = vmatprep.subr.mxu0 0.0
    %5721 = vmatpush2.xpose.msra.mxu0 0.0
    %5722 = vmatprep.subr.mxu0 0.0
    %5723 = vmatpush2.xpose.msra.mxu0 0.0
    %5724 = vmatprep.subr.mxu0 0.0
    %5725 = vmatpush2.xpose.msra.mxu0 0.0
    %5726 = vmatprep.subr.mxu0 0.0
    %5727 = vmatpush2.xpose.msra.mxu0 0.0
    %5728 = vmatprep.subr.mxu0 0.0
    %5729 = vmatpush2.xpose.msra.mxu0 0.0
    %5730 = vmatprep.subr.mxu0 0.0
    %5731 = vmatpush2.xpose.msra.mxu0 0.0
    %5732 = vmatprep.mubr.f32.mxu0 0.0
    %5733 = vmatmul.mubr.f32.gmra.mxu0 %v5658
    %v5734 = vpop.f32.mrf.mxu0
    %v5735 = vadd.f32 0.0, %v5734
    %v5736 = vpop.f32.mrf.mxu0
    %5737 = vdwg.mxu0
    %5738 = vrot.lane.b32.xlu0 %v2910, 104
    %v5739 = vpop.permute.xlu0 %5738
    %5740 = vrot.lane.b32.xlu0 %v2911, 104
    %v5741 = vpop.permute.xlu0 %5740
    %5742 = vrot.lane.b32.xlu0 %v2912, 104
    %v5743 = vpop.permute.xlu0 %5742
    %5744 = vrot.lane.b32.xlu0 %v2913, 104
    %v5745 = vpop.permute.xlu0 %5744
    %v5747 = vsel %vm904, %v5157, 0
    %v5749 = vsel %vm904, %v5739, 0
    %v5751 = vsel %vm904, %v5741, 0
    %v5753 = vsel %vm904, %v5743, 0
    %v5755 = vsel %vm904, %v5745, 0
    %5757 = vmatprep.subr.mxu0 0.0
    %5758 = vmatpush1.xpose.msra.mxu0 0.0
    %5759 = vmatprep.subr.mxu0 0.0
    %5760 = vmatpush1.xpose.msra.mxu0 0.0
    %5761 = vmatprep.subr.mxu0 0.0
    %5762 = vmatpush1.xpose.msra.mxu0 0.0
    %5763 = vmatprep.subr.mxu0 0.0
    %5764 = vmatpush1.xpose.msra.mxu0 0.0
    %5765 = vmatprep.subr.mxu0 0.0
    %5766 = vmatpush1.xpose.msra.mxu0 0.0
    %5767 = vmatprep.subr.mxu0 0.0
    %5768 = vmatpush1.xpose.msra.mxu0 0.0
    %5769 = vmatprep.subr.mxu0 0.0
    %5770 = vmatpush1.xpose.msra.mxu0 0.0
    %5771 = vmatprep.subr.mxu0 0.0
    %5772 = vmatpush1.xpose.msra.mxu0 0.0
    %5773 = vmatprep.subr.mxu0 0.0
    %5774 = vmatpush1.xpose.msra.mxu0 0.0
    %5775 = vmatprep.subr.mxu0 0.0
    %5776 = vmatpush1.xpose.msra.mxu0 0.0
    %5777 = vmatprep.subr.mxu0 0.0
    %5778 = vmatpush1.xpose.msra.mxu0 0.0
    %5779 = vmatprep.subr.mxu0 0.0
    %5780 = vmatpush1.xpose.msra.mxu0 0.0
    %5781 = vmatprep.subr.mxu0 0.0
    %5782 = vmatpush1.xpose.msra.mxu0 %v5755
    %5783 = vmatprep.subr.mxu0 0.0
    %5784 = vmatpush1.xpose.msra.mxu0 %v5753
    %5785 = vmatprep.subr.mxu0 0.0
    %5786 = vmatpush1.xpose.msra.mxu0 %v5751
    %5787 = vmatprep.subr.mxu0 0.0
    %5788 = vmatpush1.xpose.msra.mxu0 %v5749
    %5789 = vmatprep.subr.mxu0 0.0
    %5790 = vmatpush2.xpose.msra.mxu0 0.0
    %5791 = vmatprep.subr.mxu0 0.0
    %5792 = vmatpush2.xpose.msra.mxu0 0.0
    %5793 = vmatprep.subr.mxu0 0.0
    %5794 = vmatpush2.xpose.msra.mxu0 0.0
    %5795 = vmatprep.subr.mxu0 0.0
    %5796 = vmatpush2.xpose.msra.mxu0 0.0
    %5797 = vmatprep.subr.mxu0 0.0
    %5798 = vmatpush2.xpose.msra.mxu0 0.0
    %5799 = vmatprep.subr.mxu0 0.0
    %5800 = vmatpush2.xpose.msra.mxu0 0.0
    %5801 = vmatprep.subr.mxu0 0.0
    %5802 = vmatpush2.xpose.msra.mxu0 0.0
    %5803 = vmatprep.subr.mxu0 0.0
    %5804 = vmatpush2.xpose.msra.mxu0 0.0
    %5805 = vmatprep.subr.mxu0 0.0
    %5806 = vmatpush2.xpose.msra.mxu0 0.0
    %5807 = vmatprep.subr.mxu0 0.0
    %5808 = vmatpush2.xpose.msra.mxu0 0.0
    %5809 = vmatprep.subr.mxu0 0.0
    %5810 = vmatpush2.xpose.msra.mxu0 0.0
    %5811 = vmatprep.subr.mxu0 0.0
    %5812 = vmatpush2.xpose.msra.mxu0 0.0
    %5813 = vmatprep.subr.mxu0 0.0
    %5814 = vmatpush2.xpose.msra.mxu0 0.0
    %5815 = vmatprep.subr.mxu0 0.0
    %5816 = vmatpush2.xpose.msra.mxu0 0.0
    %5817 = vmatprep.subr.mxu0 0.0
    %5818 = vmatpush2.xpose.msra.mxu0 0.0
    %5819 = vmatprep.subr.mxu0 0.0
    %5820 = vmatpush2.xpose.msra.mxu0 0.0
    %5821 = vmatprep.mubr.f32.mxu0 0.0
    %5822 = vmatmul.mubr.f32.gmra.mxu0 %v5747
    %v5823 = vpop.f32.mrf.mxu0
    %v5824 = vadd.f32 0.0, %v5823
    %v5825 = vpop.f32.mrf.mxu0
    %5826 = vdwg.mxu0
    %5827 = vrot.lane.b32.xlu0 %v2914, 104
    %v5828 = vpop.permute.xlu0 %5827
    %5829 = vrot.lane.b32.xlu0 %v2915, 104
    %v5830 = vpop.permute.xlu0 %5829
    %5831 = vrot.lane.b32.xlu0 %v2916, 104
    %v5832 = vpop.permute.xlu0 %5831
    %5833 = vrot.lane.b32.xlu0 %v2917, 104
    %v5834 = vpop.permute.xlu0 %5833
    %v5836 = vsel %vm904, %v5237, 0
    %v5838 = vsel %vm904, %v5828, 0
    %v5840 = vsel %vm904, %v5830, 0
    %v5842 = vsel %vm904, %v5832, 0
    %v5844 = vsel %vm904, %v5834, 0
    %5846 = vmatprep.subr.mxu0 0.0
    %5847 = vmatpush1.xpose.msra.mxu0 0.0
    %5848 = vmatprep.subr.mxu0 0.0
    %5849 = vmatpush1.xpose.msra.mxu0 0.0
    %5850 = vmatprep.subr.mxu0 0.0
    %5851 = vmatpush1.xpose.msra.mxu0 0.0
    %5852 = vmatprep.subr.mxu0 0.0
    %5853 = vmatpush1.xpose.msra.mxu0 0.0
    %5854 = vmatprep.subr.mxu0 0.0
    %5855 = vmatpush1.xpose.msra.mxu0 0.0
    %5856 = vmatprep.subr.mxu0 0.0
    %5857 = vmatpush1.xpose.msra.mxu0 0.0
    %5858 = vmatprep.subr.mxu0 0.0
    %5859 = vmatpush1.xpose.msra.mxu0 0.0
    %5860 = vmatprep.subr.mxu0 0.0
    %5861 = vmatpush1.xpose.msra.mxu0 0.0
    %5862 = vmatprep.subr.mxu0 0.0
    %5863 = vmatpush1.xpose.msra.mxu0 0.0
    %5864 = vmatprep.subr.mxu0 0.0
    %5865 = vmatpush1.xpose.msra.mxu0 0.0
    %5866 = vmatprep.subr.mxu0 0.0
    %5867 = vmatpush1.xpose.msra.mxu0 0.0
    %5868 = vmatprep.subr.mxu0 0.0
    %5869 = vmatpush1.xpose.msra.mxu0 0.0
    %5870 = vmatprep.subr.mxu0 0.0
    %5871 = vmatpush1.xpose.msra.mxu0 %v5844
    %5872 = vmatprep.subr.mxu0 0.0
    %5873 = vmatpush1.xpose.msra.mxu0 %v5842
    %5874 = vmatprep.subr.mxu0 0.0
    %5875 = vmatpush1.xpose.msra.mxu0 %v5840
    %5876 = vmatprep.subr.mxu0 0.0
    %5877 = vmatpush1.xpose.msra.mxu0 %v5838
    %5878 = vmatprep.subr.mxu0 0.0
    %5879 = vmatpush2.xpose.msra.mxu0 0.0
    %5880 = vmatprep.subr.mxu0 0.0
    %5881 = vmatpush2.xpose.msra.mxu0 0.0
    %5882 = vmatprep.subr.mxu0 0.0
    %5883 = vmatpush2.xpose.msra.mxu0 0.0
    %5884 = vmatprep.subr.mxu0 0.0
    %5885 = vmatpush2.xpose.msra.mxu0 0.0
    %5886 = vmatprep.subr.mxu0 0.0
    %5887 = vmatpush2.xpose.msra.mxu0 0.0
    %5888 = vmatprep.subr.mxu0 0.0
    %5889 = vmatpush2.xpose.msra.mxu0 0.0
    %5890 = vmatprep.subr.mxu0 0.0
    %5891 = vmatpush2.xpose.msra.mxu0 0.0
    %5892 = vmatprep.subr.mxu0 0.0
    %5893 = vmatpush2.xpose.msra.mxu0 0.0
    %5894 = vmatprep.subr.mxu0 0.0
    %5895 = vmatpush2.xpose.msra.mxu0 0.0
    %5896 = vmatprep.subr.mxu0 0.0
    %5897 = vmatpush2.xpose.msra.mxu0 0.0
    %5898 = vmatprep.subr.mxu0 0.0
    %5899 = vmatpush2.xpose.msra.mxu0 0.0
    %5900 = vmatprep.subr.mxu0 0.0
    %5901 = vmatpush2.xpose.msra.mxu0 0.0
    %5902 = vmatprep.subr.mxu0 0.0
    %5903 = vmatpush2.xpose.msra.mxu0 0.0
    %5904 = vmatprep.subr.mxu0 0.0
    %5905 = vmatpush2.xpose.msra.mxu0 0.0
    %5906 = vmatprep.subr.mxu0 0.0
    %5907 = vmatpush2.xpose.msra.mxu0 0.0
    %5908 = vmatprep.subr.mxu0 0.0
    %5909 = vmatpush2.xpose.msra.mxu0 0.0
    %5910 = vmatprep.mubr.f32.mxu0 0.0
    %5911 = vmatmul.mubr.f32.gmra.mxu0 %v5836
    %v5912 = vpop.f32.mrf.mxu0
    %v5913 = vadd.f32 0.0, %v5912
    %v5914 = vpop.f32.mrf.mxu0
    %5915 = vdwg.mxu0
    %v5917 = vsel %vm904, %v5317, 0
    %5919 = vmatprep.subr.mxu0 0.0
    %5920 = vmatpush1.xpose.msra.mxu0 0.0
    %5921 = vmatprep.subr.mxu0 0.0
    %5922 = vmatpush1.xpose.msra.mxu0 0.0
    %5923 = vmatprep.subr.mxu0 0.0
    %5924 = vmatpush1.xpose.msra.mxu0 0.0
    %5925 = vmatprep.subr.mxu0 0.0
    %5926 = vmatpush1.xpose.msra.mxu0 0.0
    %5927 = vmatprep.subr.mxu0 0.0
    %5928 = vmatpush1.xpose.msra.mxu0 0.0
    %5929 = vmatprep.subr.mxu0 0.0
    %5930 = vmatpush1.xpose.msra.mxu0 0.0
    %5931 = vmatprep.subr.mxu0 0.0
    %5932 = vmatpush1.xpose.msra.mxu0 0.0
    %5933 = vmatprep.subr.mxu0 0.0
    %5934 = vmatpush1.xpose.msra.mxu0 0.0
    %5935 = vmatprep.subr.mxu0 0.0
    %5936 = vmatpush1.xpose.msra.mxu0 0.0
    %5937 = vmatprep.subr.mxu0 0.0
    %5938 = vmatpush1.xpose.msra.mxu0 0.0
    %5939 = vmatprep.subr.mxu0 0.0
    %5940 = vmatpush1.xpose.msra.mxu0 0.0
    %5941 = vmatprep.subr.mxu0 0.0
    %5942 = vmatpush1.xpose.msra.mxu0 0.0
    %5943 = vmatprep.subr.mxu0 0.0
    %5944 = vmatpush1.xpose.msra.mxu0 %v5577
    %5945 = vmatprep.subr.mxu0 0.0
    %5946 = vmatpush1.xpose.msra.mxu0 %v5575
    %5947 = vmatprep.subr.mxu0 0.0
    %5948 = vmatpush1.xpose.msra.mxu0 %v5573
    %5949 = vmatprep.subr.mxu0 0.0
    %5950 = vmatpush1.xpose.msra.mxu0 %v5571
    %5951 = vmatprep.subr.mxu0 0.0
    %5952 = vmatpush2.xpose.msra.mxu0 0.0
    %5953 = vmatprep.subr.mxu0 0.0
    %5954 = vmatpush2.xpose.msra.mxu0 0.0
    %5955 = vmatprep.subr.mxu0 0.0
    %5956 = vmatpush2.xpose.msra.mxu0 0.0
    %5957 = vmatprep.subr.mxu0 0.0
    %5958 = vmatpush2.xpose.msra.mxu0 0.0
    %5959 = vmatprep.subr.mxu0 0.0
    %5960 = vmatpush2.xpose.msra.mxu0 0.0
    %5961 = vmatprep.subr.mxu0 0.0
    %5962 = vmatpush2.xpose.msra.mxu0 0.0
    %5963 = vmatprep.subr.mxu0 0.0
    %5964 = vmatpush2.xpose.msra.mxu0 0.0
    %5965 = vmatprep.subr.mxu0 0.0
    %5966 = vmatpush2.xpose.msra.mxu0 0.0
    %5967 = vmatprep.subr.mxu0 0.0
    %5968 = vmatpush2.xpose.msra.mxu0 0.0
    %5969 = vmatprep.subr.mxu0 0.0
    %5970 = vmatpush2.xpose.msra.mxu0 0.0
    %5971 = vmatprep.subr.mxu0 0.0
    %5972 = vmatpush2.xpose.msra.mxu0 0.0
    %5973 = vmatprep.subr.mxu0 0.0
    %5974 = vmatpush2.xpose.msra.mxu0 0.0
    %5975 = vmatprep.subr.mxu0 0.0
    %5976 = vmatpush2.xpose.msra.mxu0 0.0
    %5977 = vmatprep.subr.mxu0 0.0
    %5978 = vmatpush2.xpose.msra.mxu0 0.0
    %5979 = vmatprep.subr.mxu0 0.0
    %5980 = vmatpush2.xpose.msra.mxu0 0.0
    %5981 = vmatprep.subr.mxu0 0.0
    %5982 = vmatpush2.xpose.msra.mxu0 0.0
    %5983 = vmatprep.mubr.f32.mxu0 0.0
    %5984 = vmatmul.mubr.f32.gmra.mxu0 %v5917
    %v5985 = vpop.f32.mrf.mxu0
    %v5986 = vadd.f32 0.0, %v5985
    %v5987 = vpop.f32.mrf.mxu0
    %5988 = vdwg.mxu0
    %v5990 = vsel %vm904, %v5397, 0
    %5992 = vmatprep.subr.mxu0 0.0
    %5993 = vmatpush1.xpose.msra.mxu0 0.0
    %5994 = vmatprep.subr.mxu0 0.0
    %5995 = vmatpush1.xpose.msra.mxu0 0.0
    %5996 = vmatprep.subr.mxu0 0.0
    %5997 = vmatpush1.xpose.msra.mxu0 0.0
    %5998 = vmatprep.subr.mxu0 0.0
    %5999 = vmatpush1.xpose.msra.mxu0 0.0
    %6000 = vmatprep.subr.mxu0 0.0
    %6001 = vmatpush1.xpose.msra.mxu0 0.0
    %6002 = vmatprep.subr.mxu0 0.0
    %6003 = vmatpush1.xpose.msra.mxu0 0.0
    %6004 = vmatprep.subr.mxu0 0.0
    %6005 = vmatpush1.xpose.msra.mxu0 0.0
    %6006 = vmatprep.subr.mxu0 0.0
    %6007 = vmatpush1.xpose.msra.mxu0 0.0
    %6008 = vmatprep.subr.mxu0 0.0
    %6009 = vmatpush1.xpose.msra.mxu0 0.0
    %6010 = vmatprep.subr.mxu0 0.0
    %6011 = vmatpush1.xpose.msra.mxu0 0.0
    %6012 = vmatprep.subr.mxu0 0.0
    %6013 = vmatpush1.xpose.msra.mxu0 0.0
    %6014 = vmatprep.subr.mxu0 0.0
    %6015 = vmatpush1.xpose.msra.mxu0 0.0
    %6016 = vmatprep.subr.mxu0 0.0
    %6017 = vmatpush1.xpose.msra.mxu0 %v5666
    %6018 = vmatprep.subr.mxu0 0.0
    %6019 = vmatpush1.xpose.msra.mxu0 %v5664
    %6020 = vmatprep.subr.mxu0 0.0
    %6021 = vmatpush1.xpose.msra.mxu0 %v5662
    %6022 = vmatprep.subr.mxu0 0.0
    %6023 = vmatpush1.xpose.msra.mxu0 %v5660
    %6024 = vmatprep.subr.mxu0 0.0
    %6025 = vmatpush2.xpose.msra.mxu0 0.0
    %6026 = vmatprep.subr.mxu0 0.0
    %6027 = vmatpush2.xpose.msra.mxu0 0.0
    %6028 = vmatprep.subr.mxu0 0.0
    %6029 = vmatpush2.xpose.msra.mxu0 0.0
    %6030 = vmatprep.subr.mxu0 0.0
    %6031 = vmatpush2.xpose.msra.mxu0 0.0
    %6032 = vmatprep.subr.mxu0 0.0
    %6033 = vmatpush2.xpose.msra.mxu0 0.0
    %6034 = vmatprep.subr.mxu0 0.0
    %6035 = vmatpush2.xpose.msra.mxu0 0.0
    %6036 = vmatprep.subr.mxu0 0.0
    %6037 = vmatpush2.xpose.msra.mxu0 0.0
    %6038 = vmatprep.subr.mxu0 0.0
    %6039 = vmatpush2.xpose.msra.mxu0 0.0
    %6040 = vmatprep.subr.mxu0 0.0
    %6041 = vmatpush2.xpose.msra.mxu0 0.0
    %6042 = vmatprep.subr.mxu0 0.0
    %6043 = vmatpush2.xpose.msra.mxu0 0.0
    %6044 = vmatprep.subr.mxu0 0.0
    %6045 = vmatpush2.xpose.msra.mxu0 0.0
    %6046 = vmatprep.subr.mxu0 0.0
    %6047 = vmatpush2.xpose.msra.mxu0 0.0
    %6048 = vmatprep.subr.mxu0 0.0
    %6049 = vmatpush2.xpose.msra.mxu0 0.0
    %6050 = vmatprep.subr.mxu0 0.0
    %6051 = vmatpush2.xpose.msra.mxu0 0.0
    %6052 = vmatprep.subr.mxu0 0.0
    %6053 = vmatpush2.xpose.msra.mxu0 0.0
    %6054 = vmatprep.subr.mxu0 0.0
    %6055 = vmatpush2.xpose.msra.mxu0 0.0
    %6056 = vmatprep.mubr.f32.mxu0 0.0
    %6057 = vmatmul.mubr.f32.gmra.mxu0 %v5990
    %v6058 = vpop.f32.mrf.mxu0
    %v6059 = vadd.f32 0.0, %v6058
    %v6060 = vpop.f32.mrf.mxu0
    %6061 = vdwg.mxu0
    %v6063 = vsel %vm904, %v5477, 0
    %6065 = vmatprep.subr.mxu0 0.0
    %6066 = vmatpush1.xpose.msra.mxu0 0.0
    %6067 = vmatprep.subr.mxu0 0.0
    %6068 = vmatpush1.xpose.msra.mxu0 0.0
    %6069 = vmatprep.subr.mxu0 0.0
    %6070 = vmatpush1.xpose.msra.mxu0 0.0
    %6071 = vmatprep.subr.mxu0 0.0
    %6072 = vmatpush1.xpose.msra.mxu0 0.0
    %6073 = vmatprep.subr.mxu0 0.0
    %6074 = vmatpush1.xpose.msra.mxu0 0.0
    %6075 = vmatprep.subr.mxu0 0.0
    %6076 = vmatpush1.xpose.msra.mxu0 0.0
    %6077 = vmatprep.subr.mxu0 0.0
    %6078 = vmatpush1.xpose.msra.mxu0 0.0
    %6079 = vmatprep.subr.mxu0 0.0
    %6080 = vmatpush1.xpose.msra.mxu0 0.0
    %6081 = vmatprep.subr.mxu0 0.0
    %6082 = vmatpush1.xpose.msra.mxu0 0.0
    %6083 = vmatprep.subr.mxu0 0.0
    %6084 = vmatpush1.xpose.msra.mxu0 0.0
    %6085 = vmatprep.subr.mxu0 0.0
    %6086 = vmatpush1.xpose.msra.mxu0 0.0
    %6087 = vmatprep.subr.mxu0 0.0
    %6088 = vmatpush1.xpose.msra.mxu0 0.0
    %6089 = vmatprep.subr.mxu0 0.0
    %6090 = vmatpush1.xpose.msra.mxu0 %v5755
    %6091 = vmatprep.subr.mxu0 0.0
    %6092 = vmatpush1.xpose.msra.mxu0 %v5753
    %6093 = vmatprep.subr.mxu0 0.0
    %6094 = vmatpush1.xpose.msra.mxu0 %v5751
    %6095 = vmatprep.subr.mxu0 0.0
    %6096 = vmatpush1.xpose.msra.mxu0 %v5749
    %6097 = vmatprep.subr.mxu0 0.0
    %6098 = vmatpush2.xpose.msra.mxu0 0.0
    %6099 = vmatprep.subr.mxu0 0.0
    %6100 = vmatpush2.xpose.msra.mxu0 0.0
    %6101 = vmatprep.subr.mxu0 0.0
    %6102 = vmatpush2.xpose.msra.mxu0 0.0
    %6103 = vmatprep.subr.mxu0 0.0
    %6104 = vmatpush2.xpose.msra.mxu0 0.0
    %6105 = vmatprep.subr.mxu0 0.0
    %6106 = vmatpush2.xpose.msra.mxu0 0.0
    %6107 = vmatprep.subr.mxu0 0.0
    %6108 = vmatpush2.xpose.msra.mxu0 0.0
    %6109 = vmatprep.subr.mxu0 0.0
    %6110 = vmatpush2.xpose.msra.mxu0 0.0
    %6111 = vmatprep.subr.mxu0 0.0
    %6112 = vmatpush2.xpose.msra.mxu0 0.0
    %6113 = vmatprep.subr.mxu0 0.0
    %6114 = vmatpush2.xpose.msra.mxu0 0.0
    %6115 = vmatprep.subr.mxu0 0.0
    %6116 = vmatpush2.xpose.msra.mxu0 0.0
    %6117 = vmatprep.subr.mxu0 0.0
    %6118 = vmatpush2.xpose.msra.mxu0 0.0
    %6119 = vmatprep.subr.mxu0 0.0
    %6120 = vmatpush2.xpose.msra.mxu0 0.0
    %6121 = vmatprep.subr.mxu0 0.0
    %6122 = vmatpush2.xpose.msra.mxu0 0.0
    %6123 = vmatprep.subr.mxu0 0.0
    %6124 = vmatpush2.xpose.msra.mxu0 0.0
    %6125 = vmatprep.subr.mxu0 0.0
    %6126 = vmatpush2.xpose.msra.mxu0 0.0
    %6127 = vmatprep.subr.mxu0 0.0
    %6128 = vmatpush2.xpose.msra.mxu0 0.0
    %6129 = vmatprep.mubr.f32.mxu0 0.0
    %6130 = vmatmul.mubr.f32.gmra.mxu0 %v6063
    %v6131 = vpop.f32.mrf.mxu0
    %v6132 = vadd.f32 0.0, %v6131
    %v6133 = vpop.f32.mrf.mxu0
    %6134 = vdwg.mxu0
    %v6136 = vsel %vm904, %v5557, 0
    %6138 = vmatprep.subr.mxu0 0.0
    %6139 = vmatpush1.xpose.msra.mxu0 0.0
    %6140 = vmatprep.subr.mxu0 0.0
    %6141 = vmatpush1.xpose.msra.mxu0 0.0
    %6142 = vmatprep.subr.mxu0 0.0
    %6143 = vmatpush1.xpose.msra.mxu0 0.0
    %6144 = vmatprep.subr.mxu0 0.0
    %6145 = vmatpush1.xpose.msra.mxu0 0.0
    %6146 = vmatprep.subr.mxu0 0.0
    %6147 = vmatpush1.xpose.msra.mxu0 0.0
    %6148 = vmatprep.subr.mxu0 0.0
    %6149 = vmatpush1.xpose.msra.mxu0 0.0
    %6150 = vmatprep.subr.mxu0 0.0
    %6151 = vmatpush1.xpose.msra.mxu0 0.0
    %6152 = vmatprep.subr.mxu0 0.0
    %6153 = vmatpush1.xpose.msra.mxu0 0.0
    %6154 = vmatprep.subr.mxu0 0.0
    %6155 = vmatpush1.xpose.msra.mxu0 0.0
    %6156 = vmatprep.subr.mxu0 0.0
    %6157 = vmatpush1.xpose.msra.mxu0 0.0
    %6158 = vmatprep.subr.mxu0 0.0
    %6159 = vmatpush1.xpose.msra.mxu0 0.0
    %6160 = vmatprep.subr.mxu0 0.0
    %6161 = vmatpush1.xpose.msra.mxu0 0.0
    %6162 = vmatprep.subr.mxu0 0.0
    %6163 = vmatpush1.xpose.msra.mxu0 %v5844
    %6164 = vmatprep.subr.mxu0 0.0
    %6165 = vmatpush1.xpose.msra.mxu0 %v5842
    %6166 = vmatprep.subr.mxu0 0.0
    %6167 = vmatpush1.xpose.msra.mxu0 %v5840
    %6168 = vmatprep.subr.mxu0 0.0
    %6169 = vmatpush1.xpose.msra.mxu0 %v5838
    %6170 = vmatprep.subr.mxu0 0.0
    %6171 = vmatpush2.xpose.msra.mxu0 0.0
    %6172 = vmatprep.subr.mxu0 0.0
    %6173 = vmatpush2.xpose.msra.mxu0 0.0
    %6174 = vmatprep.subr.mxu0 0.0
    %6175 = vmatpush2.xpose.msra.mxu0 0.0
    %6176 = vmatprep.subr.mxu0 0.0
    %6177 = vmatpush2.xpose.msra.mxu0 0.0
    %6178 = vmatprep.subr.mxu0 0.0
    %6179 = vmatpush2.xpose.msra.mxu0 0.0
    %6180 = vmatprep.subr.mxu0 0.0
    %6181 = vmatpush2.xpose.msra.mxu0 0.0
    %6182 = vmatprep.subr.mxu0 0.0
    %6183 = vmatpush2.xpose.msra.mxu0 0.0
    %6184 = vmatprep.subr.mxu0 0.0
    %6185 = vmatpush2.xpose.msra.mxu0 0.0
    %6186 = vmatprep.subr.mxu0 0.0
    %6187 = vmatpush2.xpose.msra.mxu0 0.0
    %6188 = vmatprep.subr.mxu0 0.0
    %6189 = vmatpush2.xpose.msra.mxu0 0.0
    %6190 = vmatprep.subr.mxu0 0.0
    %6191 = vmatpush2.xpose.msra.mxu0 0.0
    %6192 = vmatprep.subr.mxu0 0.0
    %6193 = vmatpush2.xpose.msra.mxu0 0.0
    %6194 = vmatprep.subr.mxu0 0.0
    %6195 = vmatpush2.xpose.msra.mxu0 0.0
    %6196 = vmatprep.subr.mxu0 0.0
    %6197 = vmatpush2.xpose.msra.mxu0 0.0
    %6198 = vmatprep.subr.mxu0 0.0
    %6199 = vmatpush2.xpose.msra.mxu0 0.0
    %6200 = vmatprep.subr.mxu0 0.0
    %6201 = vmatpush2.xpose.msra.mxu0 0.0
    %6202 = vmatprep.mubr.f32.mxu0 0.0
    %6203 = vmatmul.mubr.f32.gmra.mxu0 %v6136
    %v6204 = vpop.f32.mrf.mxu0
    %v6205 = vadd.f32 0.0, %v6204
    %v6206 = vpop.f32.mrf.mxu0
    %6207 = vdwg.mxu0
    %v6208 = vsel %vm114, %v5646, 0.0
    %v6209 = vsel %vm114, %v5735, 0.0
    %v6210 = vadd.f32 %v6208, %v6209
    %v6211 = vsel %vm114, %v5824, 0.0
    %v6212 = vadd.f32 %v6210, %v6211
    %v6213 = vsel %vm114, %v5913, 0.0
    %v6214 = vadd.f32 %v6212, %v6213
    %v6215 = vsel %vm114, %v5986, 0.0
    %v6216 = vsel %vm114, %v6059, 0.0
    %v6217 = vadd.f32 %v6215, %v6216
    %v6218 = vsel %vm114, %v6132, 0.0
    %v6219 = vadd.f32 %v6217, %v6218
    %v6220 = vsel %vm114, %v6205, 0.0
    %v6221 = vadd.f32 %v6219, %v6220
    %v6222 = vadd.f32 %v2900, %v6214
    %v6223 = vadd.f32 %v2901, %v6221
    %v6224 = vsel %vm114, %v6222, 0.0
    %6225 = vadd.xlane.f32.xlu0 %v6224
    %v6226 = vpop.xlane.xlu0 %6225
    %v6227 = vsel %vm114, %v6223, 0.0
    %6228 = vadd.xlane.f32.xlu0 %v6227
    %v6229 = vpop.xlane.xlu0 %6228
    %v6230 = vmul.f32 %v6226, %v121
    %v6231 = vmul.f32 %v6229, %v121
    %v6232 = vsub.f32 %v6222, %v6230
    %v6233 = vsub.f32 %v6223, %v6231
    %v6234 = vmul.f32 %v6232, %v6232
    %v6235 = vmul.f32 %v6233, %v6233
    %v6236 = vsel %vm114, %v6234, 0.0
    %6237 = vadd.xlane.f32.xlu0 %v6236
    %v6238 = vpop.xlane.xlu0 %6237
    %v6239 = vsel %vm114, %v6235, 0.0
    %6240 = vadd.xlane.f32.xlu0 %v6239
    %v6241 = vpop.xlane.xlu0 %6240
    %v6242 = vmul.f32 %v6238, %v121
    %v6243 = vmul.f32 %v6241, %v121
    %v6244 = vadd.f32 %v6242, 1e-05
    %v6245 = vadd.f32 %v6243, 1e-05
    %v6246 = vrsqrt.pop %v6244
    %v6247 = vrsqrt.pop %v6245
    %v6248 = vmul.f32 %v6232, %v6246
    %v6249 = vmul.f32 %v6233, %v6247
    %v6250 = vlaneseq
    %v6251 = vshrl.u32 %v6250, 7
    %v6252 = vsub.s32 4, %v6251
    %v6253 = vrot.slane %v97, %v6252
    %v6254 = vmul.f32 %v6248, %v6253
    %v6255 = vmul.f32 %v6249, %v6253
    %v6256 = vlaneseq
    %v6257 = vshrl.u32 %v6256, 7
    %v6258 = vsub.s32 5, %v6257
    %v6259 = vrot.slane %v97, %v6258
    %v6260 = vadd.f32 %v6254, %v6259
    %v6261 = vadd.f32 %v6255, %v6259
    %v6262 = vld [vmem:[%s7] sm:$0xff]
    %v6263 = vld [vmem:[%s7 + $0x8] sm:$0xff]
    %v6264 = vld [vmem:[%s7 + $0x10] sm:$0xff]
    %v6265 = vld [vmem:[%s7 + $0x18] sm:$0xff]
    %v6266 = vld [vmem:[%s7 + $0x20] sm:$0xff]
    %v6267 = vld [vmem:[%s7 + $0x28] sm:$0xff]
    %v6268 = vld [vmem:[%s7 + $0x30] sm:$0xff]
    %v6269 = vld [vmem:[%s7 + $0x38] sm:$0xff]
    %v6270 = vld [vmem:[#allocation8] sm:$0x3]
    %v6272 = vlaneseq
    %v6273 = vshrl.u32 %v6272, 7
    %v6274 = vsub.s32 0, %v6273
    %v6275 = vrot.slane %v6270, %v6274
    %v6276 = vlaneseq
    %v6277 = vshrl.u32 %v6276, 7
    %v6278 = vsub.s32 1, %v6277
    %v6279 = vrot.slane %v6270, %v6278
    %v6283 = vsel %vm114, %v6260, 0
    %v6286 = vsel %vm114, %v6261, 0
    %6288 = vmatprep.subr.mxu0 0.0
    %6289 = vmatpush1.msra.mxu0 0.0
    %6290 = vmatprep.subr.mxu0 0.0
    %6291 = vmatpush1.msra.mxu0 0.0
    %6292 = vmatprep.subr.mxu0 0.0
    %6293 = vmatpush1.msra.mxu0 0.0
    %6294 = vmatprep.subr.mxu0 0.0
    %6295 = vmatpush1.msra.mxu0 0.0
    %6296 = vmatprep.subr.mxu0 0.0
    %6297 = vmatpush1.msra.mxu0 0.0
    %6298 = vmatprep.subr.mxu0 0.0
    %6299 = vmatpush1.msra.mxu0 0.0
    %6300 = vmatprep.subr.mxu0 0.0
    %6301 = vmatpush1.msra.mxu0 0.0
    %6302 = vmatprep.subr.mxu0 0.0
    %6303 = vmatpush1.msra.mxu0 0.0
    %6304 = vmatprep.subr.mxu0 0.0
    %6305 = vmatpush1.msra.mxu0 0.0
    %6306 = vmatprep.subr.mxu0 0.0
    %6307 = vmatpush1.msra.mxu0 0.0
    %6308 = vmatprep.subr.mxu0 0.0
    %6309 = vmatpush1.msra.mxu0 0.0
    %6310 = vmatprep.subr.mxu0 0.0
    %6311 = vmatpush1.msra.mxu0 0.0
    %6312 = vmatprep.subr.mxu0 %v6269
    %6313 = vmatpush1.msra.mxu0 %v6268
    %6314 = vmatprep.subr.mxu0 %v6267
    %6315 = vmatpush1.msra.mxu0 %v6266
    %6316 = vmatprep.subr.mxu0 %v6265
    %6317 = vmatpush1.msra.mxu0 %v6264
    %6318 = vmatprep.subr.mxu0 %v6263
    %6319 = vmatpush1.msra.mxu0 %v6262
    %6320 = vmatprep.subr.mxu0 0.0
    %6321 = vmatpush2.msra.mxu0 0.0
    %6322 = vmatprep.subr.mxu0 0.0
    %6323 = vmatpush2.msra.mxu0 0.0
    %6324 = vmatprep.subr.mxu0 0.0
    %6325 = vmatpush2.msra.mxu0 0.0
    %6326 = vmatprep.subr.mxu0 0.0
    %6327 = vmatpush2.msra.mxu0 0.0
    %6328 = vmatprep.subr.mxu0 0.0
    %6329 = vmatpush2.msra.mxu0 0.0
    %6330 = vmatprep.subr.mxu0 0.0
    %6331 = vmatpush2.msra.mxu0 0.0
    %6332 = vmatprep.subr.mxu0 0.0
    %6333 = vmatpush2.msra.mxu0 0.0
    %6334 = vmatprep.subr.mxu0 0.0
    %6335 = vmatpush2.msra.mxu0 0.0
    %6336 = vmatprep.subr.mxu0 0.0
    %6337 = vmatpush2.msra.mxu0 0.0
    %6338 = vmatprep.subr.mxu0 0.0
    %6339 = vmatpush2.msra.mxu0 0.0
    %6340 = vmatprep.subr.mxu0 0.0
    %6341 = vmatpush2.msra.mxu0 0.0
    %6342 = vmatprep.subr.mxu0 0.0
    %6343 = vmatpush2.msra.mxu0 0.0
    %6344 = vmatprep.subr.mxu0 0.0
    %6345 = vmatpush2.msra.mxu0 0.0
    %6346 = vmatprep.subr.mxu0 0.0
    %6347 = vmatpush2.msra.mxu0 0.0
    %6348 = vmatprep.subr.mxu0 0.0
    %6349 = vmatpush2.msra.mxu0 0.0
    %6350 = vmatprep.subr.mxu0 0.0
    %6351 = vmatpush2.msra.mxu0 0.0
    %6352 = vmatprep.mubr.f32.mxu0 0.0
    %6353 = vmatmul.mubr.f32.gmra.mxu0 %v6283
    %v6354 = vpop.f32.mrf.mxu0
    %v6355 = vadd.f32 %v6275, %v6354
    %v6356 = vpop.f32.mrf.mxu0
    %v6357 = vadd.f32 %v6279, %v6356
    %6358 = vmatprep.mubr.f32.mxu0 0.0
    %6359 = vmatmul.mubr.f32.gmra.mxu0 %v6286
    %v6360 = vpop.f32.mrf.mxu0
    %v6361 = vadd.f32 %v6275, %v6360
    %v6362 = vpop.f32.mrf.mxu0
    %v6363 = vadd.f32 %v6279, %v6362
    %6364 = vdwg.mxu0
    %v6365 = vxor.u32 %v6355, 2147483648
    %v6366 = vxor.u32 %v6357, 2147483648
    %v6367 = vxor.u32 %v6361, 2147483648
    %v6368 = vxor.u32 %v6363, 2147483648
    %v6369 = vmul.f32 %v6365, 1.442695
    %v6370 = vpow.pop %v6369
    %v6371 = vmul.f32 %v6366, 1.442695
    %v6372 = vpow.pop %v6371
    %v6373 = vmul.f32 %v6367, 1.442695
    %v6374 = vpow.pop %v6373
    %v6375 = vmul.f32 %v6368, 1.442695
    %v6376 = vpow.pop %v6375
    %v6377 = vadd.f32 %v6370, 1.0
    %v6378 = vadd.f32 %v6372, 1.0
    %v6379 = vadd.f32 %v6374, 1.0
    %v6380 = vadd.f32 %v6376, 1.0
    %v6381 = vrcp.pop %v6377
    %v6382 = vmul.f32 1.0, %v6381
    %v6383 = vrcp.pop %v6378
    %v6384 = vmul.f32 1.0, %v6383
    %v6385 = vrcp.pop %v6379
    %v6386 = vmul.f32 1.0, %v6385
    %v6387 = vrcp.pop %v6380
    %v6388 = vmul.f32 1.0, %v6387
    %v6389 = vmul.f32 %v6355, %v6382
    %v6390 = vmul.f32 %v6357, %v6384
    %v6391 = vmul.f32 %v6361, %v6386
    %v6392 = vmul.f32 %v6363, %v6388
    %v6393 = vld [vmem:[%s9] sm:$0xff]
    %v6394 = vld [vmem:[%s9 + $0x8] sm:$0xff]
    %v6395 = vld [vmem:[%s9 + $0x10] sm:$0xff]
    %v6396 = vld [vmem:[%s9 + $0x18] sm:$0xff]
    %v6397 = vld [vmem:[%s9 + $0x20] sm:$0xff]
    %v6398 = vld [vmem:[%s9 + $0x28] sm:$0xff]
    %v6399 = vld [vmem:[%s9 + $0x30] sm:$0xff]
    %v6400 = vld [vmem:[%s9 + $0x38] sm:$0xff]
    %v6401 = vld [vmem:[%s9 + $0x40] sm:$0xff]
    %v6402 = vld [vmem:[%s9 + $0x48] sm:$0xff]
    %v6403 = vld [vmem:[%s9 + $0x50] sm:$0xff]
    %v6404 = vld [vmem:[%s9 + $0x58] sm:$0xff]
    %v6405 = vld [vmem:[%s9 + $0x60] sm:$0xff]
    %v6406 = vld [vmem:[%s9 + $0x68] sm:$0xff]
    %v6407 = vld [vmem:[%s9 + $0x70] sm:$0xff]
    %v6408 = vld [vmem:[%s9 + $0x78] sm:$0xff]
    %v6409 = vld [vmem:[%s9 + $0x80] sm:$0xff]
    %v6410 = vld [vmem:[%s9 + $0x88] sm:$0xff]
    %v6411 = vld [vmem:[%s9 + $0x90] sm:$0xff]
    %v6412 = vld [vmem:[%s9 + $0x98] sm:$0xff]
    %v6413 = vld [vmem:[%s9 + $0xa0] sm:$0xff]
    %v6414 = vld [vmem:[%s9 + $0xa8] sm:$0xff]
    %v6415 = vld [vmem:[%s9 + $0xb0] sm:$0xff]
    %v6416 = vld [vmem:[%s9 + $0xb8] sm:$0xff]
    %v6417 = vld [vmem:[%s9 + $0xc0] sm:$0xff]
    %v6418 = vld [vmem:[%s9 + $0xc8] sm:$0xff]
    %v6419 = vld [vmem:[%s9 + $0xd0] sm:$0xff]
    %v6420 = vld [vmem:[%s9 + $0xd8] sm:$0xff]
    %v6421 = vld [vmem:[%s9 + $0xe0] sm:$0xff]
    %v6422 = vld [vmem:[%s9 + $0xe8] sm:$0xff]
    %v6423 = vld [vmem:[%s9 + $0xf0] sm:$0xff]
    %v6424 = vld [vmem:[%s9 + $0xf8] sm:$0xff]
    %v6425 = vlaneseq
    %v6426 = vshrl.u32 %v6425, 7
    %v6427 = vsub.s32 6, %v6426
    %v6428 = vrot.slane %v97, %v6427
    %6429 = vmatprep.subr.mxu0 0.0
    %6430 = vmatpush1.msra.mxu0 %v6408
    %6431 = vmatprep.subr.mxu0 0.0
    %6432 = vmatpush1.msra.mxu0 %v6407
    %6433 = vmatprep.subr.mxu0 0.0
    %6434 = vmatpush1.msra.mxu0 %v6406
    %6435 = vmatprep.subr.mxu0 0.0
    %6436 = vmatpush1.msra.mxu0 %v6405
    %6437 = vmatprep.subr.mxu0 0.0
    %6438 = vmatpush1.msra.mxu0 %v6404
    %6439 = vmatprep.subr.mxu0 0.0
    %6440 = vmatpush1.msra.mxu0 %v6403
    %6441 = vmatprep.subr.mxu0 0.0
    %6442 = vmatpush1.msra.mxu0 %v6402
    %6443 = vmatprep.subr.mxu0 0.0
    %6444 = vmatpush1.msra.mxu0 %v6401
    %6445 = vmatprep.subr.mxu0 0.0
    %6446 = vmatpush1.msra.mxu0 %v6400
    %6447 = vmatprep.subr.mxu0 0.0
    %6448 = vmatpush1.msra.mxu0 %v6399
    %6449 = vmatprep.subr.mxu0 0.0
    %6450 = vmatpush1.msra.mxu0 %v6398
    %6451 = vmatprep.subr.mxu0 0.0
    %6452 = vmatpush1.msra.mxu0 %v6397
    %6453 = vmatprep.subr.mxu0 0.0
    %6454 = vmatpush1.msra.mxu0 %v6396
    %6455 = vmatprep.subr.mxu0 0.0
    %6456 = vmatpush1.msra.mxu0 %v6395
    %6457 = vmatprep.subr.mxu0 0.0
    %6458 = vmatpush1.msra.mxu0 %v6394
    %6459 = vmatprep.subr.mxu0 0.0
    %6460 = vmatpush1.msra.mxu0 %v6393
    %6461 = vmatprep.subr.mxu0 0.0
    %6462 = vmatpush2.msra.mxu0 %v6424
    %6463 = vmatprep.subr.mxu0 0.0
    %6464 = vmatpush2.msra.mxu0 %v6423
    %6465 = vmatprep.subr.mxu0 0.0
    %6466 = vmatpush2.msra.mxu0 %v6422
    %6467 = vmatprep.subr.mxu0 0.0
    %6468 = vmatpush2.msra.mxu0 %v6421
    %6469 = vmatprep.subr.mxu0 0.0
    %6470 = vmatpush2.msra.mxu0 %v6420
    %6471 = vmatprep.subr.mxu0 0.0
    %6472 = vmatpush2.msra.mxu0 %v6419
    %6473 = vmatprep.subr.mxu0 0.0
    %6474 = vmatpush2.msra.mxu0 %v6418
    %6475 = vmatprep.subr.mxu0 0.0
    %6476 = vmatpush2.msra.mxu0 %v6417
    %6477 = vmatprep.subr.mxu0 0.0
    %6478 = vmatpush2.msra.mxu0 %v6416
    %6479 = vmatprep.subr.mxu0 0.0
    %6480 = vmatpush2.msra.mxu0 %v6415
    %6481 = vmatprep.subr.mxu0 0.0
    %6482 = vmatpush2.msra.mxu0 %v6414
    %6483 = vmatprep.subr.mxu0 0.0
    %6484 = vmatpush2.msra.mxu0 %v6413
    %6485 = vmatprep.subr.mxu0 0.0
    %6486 = vmatpush2.msra.mxu0 %v6412
    %6487 = vmatprep.subr.mxu0 0.0
    %6488 = vmatpush2.msra.mxu0 %v6411
    %6489 = vmatprep.subr.mxu0 0.0
    %6490 = vmatpush2.msra.mxu0 %v6410
    %6491 = vmatprep.subr.mxu0 0.0
    %6492 = vmatpush2.msra.mxu0 %v6409
    %6493 = vmatprep.mubr.f32.mxu0 %v6390
    %6494 = vmatmul.mubr.f32.gmra.mxu0 %v6389
    %v6495 = vpop.f32.mrf.mxu0
    %v6496 = vadd.f32 %v6428, %v6495
    %v6497 = vpop.f32.mrf.mxu0
    %6498 = vmatprep.mubr.f32.mxu0 %v6392
    %6499 = vmatmul.mubr.f32.gmra.mxu0 %v6391
    %v6500 = vpop.f32.mrf.mxu0
    %v6501 = vadd.f32 %v6428, %v6500
    %v6502 = vpop.f32.mrf.mxu0
    %6503 = vdwg.mxu0
    %v6504 = vadd.f32 %v6222, %v6496
    %v6505 = vadd.f32 %v6223, %v6501
    %6506 = vst.msk [vmem:[#allocation10] sm:$0xff] %vm114, %v6504
    %6507 = vst.msk [vmem:[#allocation10 + $0x8] sm:$0xff] %vm114, %v6505
    // Predicated region
    $region58: #{decoder_block.1} parent=1 // pred_check
      _
    $region59: #{decoder_block.1} parent=1 // pred_check_branch
      %6509 = sbr.rel (0) target = $region61
    $region60: #{decoder_block.1} parent=1 // pred_region
      %s6511 = ssub.s32 256, 256
      %6512 = vsyncadd [#allocation4], %s6511
      %s6513 = sshll.u32 [#allocation10], 4
      %s6514 = int_to_ptr.vmem [resolvable:$true] %s6513
      %6519 = dma.vmem_to_hbm [thread:$0]  %s6514, 256, %s10, [#allocation4], 128, 128, 8
    $region61: #{decoder_block.1} parent=1 // pred_fallthru
      _
    // Predicated region
    $region62: #{decoder_block.1} parent=1 // pred_check
      _
    $region63: #{decoder_block.1} parent=1 // pred_check_branch
      %6521 = sbr.rel (0) target = $region65
    $region64: #{decoder_block.1} parent=1 // pred_region
      %6522 = dma.done [#allocation4], 256
    $region65: #{decoder_block.1} parent=1 // pred_fallthru
      _
    %6523 = vsyncpa [#allocation3], 1
    %6524 = vsyncpa [#allocation6], 1
    %6525 = vsyncpa [#allocation9], 1
    %6526 = vsyncpa [#allocation4], 1

</llo_original>
